<compile_context>
chip_gen: v6e
topology: v6e:2x2x1
jax: 0.10.0
libtpu: 0.0.40
codegen_flags: <defaults>
</compile_context>

<pallas_src>
import jax
import jax.numpy as jnp
from jax.experimental import pallas as pl
from jax.experimental.pallas import tpu as pltpu

# ----------------------------- model sizes ---------------------------------
# original: N = 256, M = 256 + 64 = 320; demo keeps the same relations.
N = 32
M = N + N // 4            # 40

D_IN = 2 * M * N          # nn.Flatten() output features (2560 at demo)
H1 = 8 * N                # 256
H2 = 4 * N                # 128
H3 = 4 * N                # 128
D_OUT = 2 * N * N         # 2048

VMEM_LIMIT = 48 * 1024 * 1024      # headroom under v7x's 64 MiB physical VMEM
TILE_BUDGET = 8 * 1024 * 1024      # per-array double-buffered tile footprint


def _round_up(x, m):
    return (x + m - 1) // m * m


def _pick_tile(dim, bytes_per_elem_row, max_tile=None):
    """Largest multiple of 128 that divides `dim` and keeps a double-buffered
    tile (tile * bytes_per_elem_row bytes per unit of tile, x2 buffers) under
    TILE_BUDGET.  Falls back to `dim` if no lane-dense divisor exists."""
    cap = TILE_BUDGET // max(1, 2 * bytes_per_elem_row)
    if max_tile is not None:
        cap = min(cap, max_tile)
    cap = min(cap, dim)
    t = (cap // 128) * 128
    while t >= 128:
        if dim % t == 0:
            return t
        t -= 128
    return dim


def _gelu_exact(x):
    # torch.nn.GELU() default is the exact (erf-based) GELU.
    inv_sqrt2 = jnp.float32(0.7071067811865476)
    return 0.5 * x * (1.0 + jax.lax.erf(x * inv_sqrt2))


# ----------------------------- Pallas kernels --------------------------------
def layers123_kernel(x_ref, w1_ref, b1_ref, w2_ref, b2_ref, w3_ref, b3_ref,
                     h3_ref, acc_ref):
    """Layer 1 streamed over D_IN chunks + resident layers 2/3, all with GELU.

    grid = (D_IN // TK,)  -- reduction axis, 'arbitrary'.
    acc_ref: (B_pad, H1) f32 accumulator living across grid steps.
    """
    k = pl.program_id(0)

    @pl.when(k == 0)
    def _():
        acc_ref[...] = jnp.zeros_like(acc_ref)

    # bf16 x bf16 -> f32 accumulate on the MXU.
    acc_ref[...] += jnp.dot(x_ref[...], w1_ref[...],
                            preferred_element_type=jnp.float32)

    @pl.when(k == pl.num_programs(0) - 1)
    def _():
        h = _gelu_exact(acc_ref[...] + b1_ref[...])
        h = jnp.dot(h.astype(w2_ref.dtype), w2_ref[...],
                    preferred_element_type=jnp.float32) + b2_ref[...]
        h = _gelu_exact(h)
        h = jnp.dot(h.astype(w3_ref.dtype), w3_ref[...],
                    preferred_element_type=jnp.float32) + b3_ref[...]
        h = _gelu_exact(h)
        h3_ref[...] = h.astype(h3_ref.dtype)


def layer4_kernel(h3_ref, w4_ref, b4_ref, o_ref):
    """Layer 4 tiled over D_OUT (lane-dense, 'parallel' grid axis)."""
    o_ref[...] = (jnp.dot(h3_ref[...], w4_ref[...],
                          preferred_element_type=jnp.float32)
                  + b4_ref[...]).astype(o_ref.dtype)


# ----------------------------- forward pass ----------------------------------
@jax.jit
def modu_network_forward(H, params):
    """Forward pass reproducing moduNetwork.forward.

    H: (B, 2, M, N) float32
    returns: (B, 2, N, N) float32  (real / imag parts of Q from complex QR)
    """
    B = H.shape[0]
    (w1, b1), (w2, b2), (w3, b3), (w4, b4) = params

    # nn.Flatten() + bf16 cast; pad batch to >=8 rows for MXU/sublane density.
    x2d = H.reshape(B, D_IN).astype(jnp.bfloat16)
    B_pad = _round_up(max(B, 8), 8)
    if B_pad != B:
        x2d = jnp.pad(x2d, ((0, B_pad - B), (0, 0)))

    # Streamed-K tile for W1 (bf16 W1 chunk: TK x H1 x 2 bytes, double-buffered)
    # and lane-dense output tile for W4 / layer-4 output (kept <= D_OUT/2 when
    # possible so the 'parallel' axis has >= 2 tiles to shard across TCs).
    TK = _pick_tile(D_IN, bytes_per_elem_row=H1 * 2)
    TN = _pick_tile(D_OUT, bytes_per_elem_row=H3 * 2 + B_pad * 4,
                    max_tile=max(128, D_OUT // 2))
    n_k = D_IN // TK
    n_n = D_OUT // TN

    # ---------------- call A: Linear1 (streamed) + Linear2/3 + GELUs --------
    flops_a = 2 * B_pad * (D_IN * H1 + H1 * H2 + H2 * H3)
    bytes_a = (x2d.size * 2 + (w1.size + w2.size + w3.size) * 2
               + (b1.size + b2.size + b3.size) * 4 + B_pad * H3 * 2)
    h3 = pl.pallas_call(
        layers123_kernel,
        out_shape=jax.ShapeDtypeStruct((B_pad, H3), jnp.bfloat16),
        grid_spec=pltpu.PrefetchScalarGridSpec(
            num_scalar_prefetch=0,
            grid=(n_k,),
            in_specs=[
                pl.BlockSpec((B_pad, TK), lambda k: (0, k)),   # x chunk
                pl.BlockSpec((TK, H1), lambda k: (k, 0)),      # W1 chunk
                pl.BlockSpec((1, H1), lambda k: (0, 0)),       # b1 (resident)
                pl.BlockSpec((H1, H2), lambda k: (0, 0)),      # W2 (resident)
                pl.BlockSpec((1, H2), lambda k: (0, 0)),       # b2
                pl.BlockSpec((H2, H3), lambda k: (0, 0)),      # W3 (resident)
                pl.BlockSpec((1, H3), lambda k: (0, 0)),       # b3
            ],
            out_specs=pl.BlockSpec((B_pad, H3), lambda k: (0, 0)),
            scratch_shapes=[pltpu.VMEM((B_pad, H1), jnp.float32)],
        ),
        compiler_params=pltpu.CompilerParams(
            dimension_semantics=("arbitrary",),      # K-reduction axis
            vmem_limit_bytes=VMEM_LIMIT),
        cost_estimate=pl.CostEstimate(
            flops=flops_a,
            transcendentals=B_pad * (H1 + H2 + H3),
            bytes_accessed=bytes_a),
    )(x2d, w1, b1, w2, b2, w3, b3)

    # ---------------- call B: Linear4 tiled over D_OUT -----------------------
    flops_b = 2 * B_pad * H3 * D_OUT
    bytes_b = w4.size * 2 + b4.size * 4 + B_pad * (H3 * 2 + D_OUT * 4)
    out = pl.pallas_call(
        layer4_kernel,
        out_shape=jax.ShapeDtypeStruct((B_pad, D_OUT), jnp.float32),
        grid_spec=pltpu.PrefetchScalarGridSpec(
            num_scalar_prefetch=0,
            grid=(n_n,),
            in_specs=[
                pl.BlockSpec((B_pad, H3), lambda j: (0, 0)),   # h3 (resident)
                pl.BlockSpec((H3, TN), lambda j: (0, j)),      # W4 tile
                pl.BlockSpec((1, TN), lambda j: (0, j)),       # b4 tile
            ],
            out_specs=pl.BlockSpec((B_pad, TN), lambda j: (0, j)),
        ),
        compiler_params=pltpu.CompilerParams(
            dimension_semantics=("parallel",),       # shardable across TCs
            vmem_limit_bytes=VMEM_LIMIT),
        cost_estimate=pl.CostEstimate(
            flops=flops_b, transcendentals=0, bytes_accessed=bytes_b),
    )(h3, w4, b4)

    out = out[:B]                                   # drop batch padding

    # reshape(B, 2, N, N), build complex matrix, QR, split back to real/imag.
    mtx_mod1 = out.reshape(B, 2, N, N)
    mtx_c = jax.lax.complex(mtx_mod1[:, 0, :, :], mtx_mod1[:, 1, :, :])
    # TODO(synk): complex QR has no clean Pallas equivalent; done in plain JAX.
    q, _ = jnp.linalg.qr(mtx_c, mode="reduced")
    mtx_mod = jnp.stack([jnp.real(q), jnp.imag(q)], axis=1)
    return mtx_mod.astype(jnp.float32)


# -------------------------- deterministic params ----------------------------
def init_params(key):
    """PyTorch-Linear-style uniform(-1/sqrt(fan_in), 1/sqrt(fan_in)) init.

    Weights stored (fan_in, fan_out) in bf16 (HBM-BW-bound workload);
    biases kept f32 (added to the f32 accumulator); f32 accumulation inside
    the kernels preserves numerics to tolerance.
    """
    dims = [(D_IN, H1), (H1, H2), (H2, H3), (H3, D_OUT)]
    params = []
    for (fi, fo) in dims:
        key, kw, kb = jax.random.split(key, 3)
        bound = 1.0 / jnp.sqrt(jnp.float32(fi))
        w = jax.random.uniform(kw, (fi, fo), jnp.float32, -bound, bound)
        b = jax.random.uniform(kb, (1, fo), jnp.float32, -bound, bound)
        params.append((w.astype(jnp.bfloat16), b))
    return tuple(params)


# --------------------------------- main --------------------------------------
if __name__ == "__main__":
    key = jax.random.PRNGKey(0)
    k_in, k_par = jax.random.split(key)

    B = 2
    H = jax.random.normal(k_in, (B, 2, M, N), dtype=jnp.float32)
    params = init_params(k_par)

    out = jax.block_until_ready(modu_network_forward(H, params))

    assert out.shape == (B, 2, N, N), out.shape
    assert out.dtype == jnp.float32
    # sanity: Q should be (approximately) unitary: Q^H Q = I
    qc = jax.lax.complex(out[:, 0], out[:, 1])
    eye = jnp.eye(N, dtype=jnp.complex64)
    err = jnp.max(jnp.abs(jnp.einsum("bij,bik->bjk", jnp.conj(qc), qc) - eye))
    assert float(err) < 1e-3, float(err)

    print("KERNEL_OK")
</pallas_src>

<mosaic_0001>
module attributes {stable_mosaic.version = 11 : i64} {
  func.func @layer4_kernel(%arg0: i32, %arg1: memref<8x128xbf16, #tpu.memory_space<vmem>>, %arg2: memref<128x1024xbf16, #tpu.memory_space<vmem>>, %arg3: memref<1x1024xf32, #tpu.memory_space<vmem>>, %arg4: memref<8x1024xf32, #tpu.memory_space<vmem>>) attributes {dimension_semantics = [#tpu.dimension_semantics<parallel>], iteration_bounds = array<i64: 2>, scalar_prefetch = 0 : i64, scratch_operands = 0 : i64, tpu.core_type = #tpu.core_type<tc>, window_params = [{pipeline_mode = #tpu.pipeline_mode<synchronous>, transform_indices = @transform_0, window_bounds = array<i64: 8, 128>}, {transform_indices = @transform_1, window_bounds = array<i64: 128, 1024>}, {transform_indices = @transform_2, window_bounds = array<i64: 1, 1024>}, {transform_indices = @transform_3, window_bounds = array<i64: 8, 1024>}]} {
    %c0 = arith.constant 0 : index
    %c0_0 = arith.constant 0 : index
    %0 = vector.load %arg1[%c0, %c0_0] : memref<8x128xbf16, #tpu.memory_space<vmem>>, vector<8x128xbf16>
    %c0_1 = arith.constant 0 : index
    %c0_2 = arith.constant 0 : index
    %1 = vector.load %arg2[%c0_1, %c0_2] : memref<128x1024xbf16, #tpu.memory_space<vmem>>, vector<128x1024xbf16>
    %cst = arith.constant dense<0.000000e+00> : vector<8x1024xf32>
    %2 = tpu.matmul %0, %1, %cst {dimension_numbers = #tpu.dot_dimension_numbers<[1], [0], [0], [1], [0, 0, 1, 1], [], []>} : vector<8x128xbf16>, vector<128x1024xbf16>, vector<8x1024xf32> -> vector<8x1024xf32>
    %c0_3 = arith.constant 0 : index
    %c0_4 = arith.constant 0 : index
    %3 = vector.load %arg3[%c0_3, %c0_4] : memref<1x1024xf32, #tpu.memory_space<vmem>>, vector<1x1024xf32>
    %4 = vector.broadcast %3 : vector<1x1024xf32> to vector<8x1024xf32>
    %5 = arith.addf %2, %4 : vector<8x1024xf32>
    %c0_5 = arith.constant 0 : index
    %c0_6 = arith.constant 0 : index
    %6 = vector.load %arg4[%c0_5, %c0_6] : memref<8x1024xf32, #tpu.memory_space<vmem>>, vector<8x1024xf32>
    tpu.vector_store %arg4[%c0_5, %c0_6], %5 {strides = array<i32>} : memref<8x1024xf32, #tpu.memory_space<vmem>>, vector<8x1024xf32>,
    return
  }
  func.func @transform_0(%arg0: i32) -> (i32, i32) {
    %c0_i32 = arith.constant 0 : i32
    %c0_i32_0 = arith.constant 0 : i32
    %c0_i32_1 = arith.constant 0 : i32
    return %c0_i32, %c0_i32_0 : i32, i32
  }
  func.func @transform_1(%arg0: i32) -> (i32, i32) {
    %c0_i32 = arith.constant 0 : i32
    %c0_i32_0 = arith.constant 0 : i32
    return %c0_i32, %arg0 : i32, i32
  }
  func.func @transform_2(%arg0: i32) -> (i32, i32) {
    %c0_i32 = arith.constant 0 : i32
    %c0_i32_0 = arith.constant 0 : i32
    return %c0_i32, %arg0 : i32, i32
  }
  func.func @transform_3(%arg0: i32) -> (i32, i32) {
    %c0_i32 = arith.constant 0 : i32
    %c0_i32_0 = arith.constant 0 : i32
    return %c0_i32, %arg0 : i32, i32
  }
}

module attributes {stable_mosaic.version = 11 : i64} {
  func.func @layers123_kernel(%arg0: i32, %arg1: memref<8x2560xbf16, #tpu.memory_space<vmem>>, %arg2: memref<2560x256xbf16, #tpu.memory_space<vmem>>, %arg3: memref<1x256xf32, #tpu.memory_space<vmem>>, %arg4: memref<256x128xbf16, #tpu.memory_space<vmem>>, %arg5: memref<1x128xf32, #tpu.memory_space<vmem>>, %arg6: memref<128x128xbf16, #tpu.memory_space<vmem>>, %arg7: memref<1x128xf32, #tpu.memory_space<vmem>>, %arg8: memref<8x128xbf16, #tpu.memory_space<vmem>>, %arg9: memref<8x256xf32, #tpu.memory_space<vmem>>) attributes {dimension_semantics = [#tpu.dimension_semantics<arbitrary>], iteration_bounds = array<i64: 1>, scalar_prefetch = 0 : i64, scratch_operands = 1 : i64, tpu.core_type = #tpu.core_type<tc>, window_params = [{transform_indices = @transform_0, window_bounds = array<i64: 8, 2560>}, {transform_indices = @transform_1, window_bounds = array<i64: 2560, 256>}, {pipeline_mode = #tpu.pipeline_mode<synchronous>, transform_indices = @transform_2, window_bounds = array<i64: 1, 256>}, {pipeline_mode = #tpu.pipeline_mode<synchronous>, transform_indices = @transform_3, window_bounds = array<i64: 256, 128>}, {pipeline_mode = #tpu.pipeline_mode<synchronous>, transform_indices = @transform_4, window_bounds = array<i64: 1, 128>}, {pipeline_mode = #tpu.pipeline_mode<synchronous>, transform_indices = @transform_5, window_bounds = array<i64: 128, 128>}, {pipeline_mode = #tpu.pipeline_mode<synchronous>, transform_indices = @transform_6, window_bounds = array<i64: 1, 128>}, {pipeline_mode = #tpu.pipeline_mode<synchronous>, transform_indices = @transform_7, window_bounds = array<i64: 8, 128>}]} {
    %c0_i32 = arith.constant 0 : i32
    %0 = arith.cmpi eq, %arg0, %c0_i32 : i32
    %1 = arith.extui %0 : i1 to i32
    %c0_i32_0 = arith.constant 0 : i32
    %2 = arith.cmpi ne, %1, %c0_i32_0 : i32
    scf.if %2 {
      %cst_10 = arith.constant 0.000000e+00 : f32
      %12 = vector.broadcast %cst_10 : f32 to vector<8x256xf32>
      %c0_11 = arith.constant 0 : index
      %c0_12 = arith.constant 0 : index
      %13 = vector.load %arg9[%c0_11, %c0_12] : memref<8x256xf32, #tpu.memory_space<vmem>>, vector<8x256xf32>
      tpu.vector_store %arg9[%c0_11, %c0_12], %12 {strides = array<i32>} : memref<8x256xf32, #tpu.memory_space<vmem>>, vector<8x256xf32>,
    } else {
    }
    %c0 = arith.constant 0 : index
    %c0_1 = arith.constant 0 : index
    %3 = vector.load %arg9[%c0, %c0_1] : memref<8x256xf32, #tpu.memory_space<vmem>>, vector<8x256xf32>
    %c0_2 = arith.constant 0 : index
    %c0_3 = arith.constant 0 : index
    %4 = vector.load %arg1[%c0_2, %c0_3] : memref<8x2560xbf16, #tpu.memory_space<vmem>>, vector<8x2560xbf16>
    %c0_4 = arith.constant 0 : index
    %c0_5 = arith.constant 0 : index
    %5 = vector.load %arg2[%c0_4, %c0_5] : memref<2560x256xbf16, #tpu.memory_space<vmem>>, vector<2560x256xbf16>
    %cst = arith.constant dense<0.000000e+00> : vector<8x256xf32>
    %6 = tpu.matmul %4, %5, %cst {dimension_numbers = #tpu.dot_dimension_numbers<[1], [0], [0], [1], [0, 0, 1, 1], [], []>} : vector<8x2560xbf16>, vector<2560x256xbf16>, vector<8x256xf32> -> vector<8x256xf32>
    %7 = arith.addf %3, %6 : vector<8x256xf32>
    %c0_6 = arith.constant 0 : index
    %c0_7 = arith.constant 0 : index
    %8 = vector.load %arg9[%c0_6, %c0_7] : memref<8x256xf32, #tpu.memory_space<vmem>>, vector<8x256xf32>
    tpu.vector_store %arg9[%c0_6, %c0_7], %7 {strides = array<i32>} : memref<8x256xf32, #tpu.memory_space<vmem>>, vector<8x256xf32>,
    %c0_i32_8 = arith.constant 0 : i32
    %9 = arith.cmpi eq, %arg0, %c0_i32_8 : i32
    %10 = arith.extui %9 : i1 to i32
    %c0_i32_9 = arith.constant 0 : i32
    %11 = arith.cmpi ne, %10, %c0_i32_9 : i32
    scf.if %11 {
      %c0_10 = arith.constant 0 : index
      %c0_11 = arith.constant 0 : index
      %12 = vector.load %arg9[%c0_10, %c0_11] : memref<8x256xf32, #tpu.memory_space<vmem>>, vector<8x256xf32>
      %c0_12 = arith.constant 0 : index
      %c0_13 = arith.constant 0 : index
      %13 = vector.load %arg3[%c0_12, %c0_13] : memref<1x256xf32, #tpu.memory_space<vmem>>, vector<1x256xf32>
      %14 = vector.broadcast %13 : vector<1x256xf32> to vector<8x256xf32>
      %15 = arith.addf %12, %14 : vector<8x256xf32>
      %cst_14 = arith.constant 5.000000e-01 : f32
      %16 = vector.broadcast %cst_14 : f32 to vector<8x256xf32>
      %17 = arith.mulf %16, %15 : vector<8x256xf32>
      %cst_15 = arith.constant 0.707106769 : f32
      %18 = vector.broadcast %cst_15 : f32 to vector<8x256xf32>
      %19 = arith.mulf %15, %18 : vector<8x256xf32>
      %20 = math.erf %19 : vector<8x256xf32>
      %cst_16 = arith.constant 1.000000e+00 : f32
      %21 = vector.broadcast %cst_16 : f32 to vector<8x256xf32>
      %22 = arith.addf %21, %20 : vector<8x256xf32>
      %23 = arith.mulf %17, %22 : vector<8x256xf32>
      %24 = arith.truncf %23 : vector<8x256xf32> to vector<8x256xbf16>
      %c0_17 = arith.constant 0 : index
      %c0_18 = arith.constant 0 : index
      %25 = vector.load %arg4[%c0_17, %c0_18] : memref<256x128xbf16, #tpu.memory_space<vmem>>, vector<256x128xbf16>
      %cst_19 = arith.constant dense<0.000000e+00> : vector<8x128xf32>
      %26 = tpu.matmul %24, %25, %cst_19 {dimension_numbers = #tpu.dot_dimension_numbers<[1], [0], [0], [1], [0, 0, 1, 1], [], []>} : vector<8x256xbf16>, vector<256x128xbf16>, vector<8x128xf32> -> vector<8x128xf32>
      %c0_20 = arith.constant 0 : index
      %c0_21 = arith.constant 0 : index
      %27 = vector.load %arg5[%c0_20, %c0_21] : memref<1x128xf32, #tpu.memory_space<vmem>>, vector<1x128xf32>
      %28 = vector.broadcast %27 : vector<1x128xf32> to vector<8x128xf32>
      %29 = arith.addf %26, %28 : vector<8x128xf32>
      %cst_22 = arith.constant 5.000000e-01 : f32
      %30 = vector.broadcast %cst_22 : f32 to vector<8x128xf32>
      %31 = arith.mulf %30, %29 : vector<8x128xf32>
      %cst_23 = arith.constant 0.707106769 : f32
      %32 = vector.broadcast %cst_23 : f32 to vector<8x128xf32>
      %33 = arith.mulf %29, %32 : vector<8x128xf32>
      %34 = math.erf %33 : vector<8x128xf32>
      %cst_24 = arith.constant 1.000000e+00 : f32
      %35 = vector.broadcast %cst_24 : f32 to vector<8x128xf32>
      %36 = arith.addf %35, %34 : vector<8x128xf32>
      %37 = arith.mulf %31, %36 : vector<8x128xf32>
      %38 = arith.truncf %37 : vector<8x128xf32> to vector<8x128xbf16>
      %c0_25 = arith.constant 0 : index
      %c0_26 = arith.constant 0 : index
      %39 = vector.load %arg6[%c0_25, %c0_26] : memref<128x128xbf16, #tpu.memory_space<vmem>>, vector<128x128xbf16>
      %cst_27 = arith.constant dense<0.000000e+00> : vector<8x128xf32>
      %40 = tpu.matmul %38, %39, %cst_27 {dimension_numbers = #tpu.dot_dimension_numbers<[1], [0], [0], [1], [0, 0, 1, 1], [], []>} : vector<8x128xbf16>, vector<128x128xbf16>, vector<8x128xf32> -> vector<8x128xf32>
      %c0_28 = arith.constant 0 : index
      %c0_29 = arith.constant 0 : index
      %41 = vector.load %arg7[%c0_28, %c0_29] : memref<1x128xf32, #tpu.memory_space<vmem>>, vector<1x128xf32>
      %42 = vector.broadcast %41 : vector<1x128xf32> to vector<8x128xf32>
      %43 = arith.addf %40, %42 : vector<8x128xf32>
      %cst_30 = arith.constant 5.000000e-01 : f32
      %44 = vector.broadcast %cst_30 : f32 to vector<8x128xf32>
      %45 = arith.mulf %44, %43 : vector<8x128xf32>
      %cst_31 = arith.constant 0.707106769 : f32
      %46 = vector.broadcast %cst_31 : f32 to vector<8x128xf32>
      %47 = arith.mulf %43, %46 : vector<8x128xf32>
      %48 = math.erf %47 : vector<8x128xf32>
      %cst_32 = arith.constant 1.000000e+00 : f32
      %49 = vector.broadcast %cst_32 : f32 to vector<8x128xf32>
      %50 = arith.addf %49, %48 : vector<8x128xf32>
      %51 = arith.mulf %45, %50 : vector<8x128xf32>
      %52 = arith.truncf %51 : vector<8x128xf32> to vector<8x128xbf16>
      %c0_33 = arith.constant 0 : index
      %c0_34 = arith.constant 0 : index
      %53 = vector.load %arg8[%c0_33, %c0_34] : memref<8x128xbf16, #tpu.memory_space<vmem>>, vector<8x128xbf16>
      tpu.vector_store %arg8[%c0_33, %c0_34], %52 {strides = array<i32>} : memref<8x128xbf16, #tpu.memory_space<vmem>>, vector<8x128xbf16>,
    } else {
    }
    return
  }
  func.func @transform_0(%arg0: i32) -> (i32, i32) {
    %c0_i32 = arith.constant 0 : i32
    %c0_i32_0 = arith.constant 0 : i32
    return %c0_i32, %arg0 : i32, i32
  }
  func.func @transform_1(%arg0: i32) -> (i32, i32) {
    %c0_i32 = arith.constant 0 : i32
    %c0_i32_0 = arith.constant 0 : i32
    return %arg0, %c0_i32 : i32, i32
  }
  func.func @transform_2(%arg0: i32) -> (i32, i32) {
    %c0_i32 = arith.constant 0 : i32
    %c0_i32_0 = arith.constant 0 : i32
    %c0_i32_1 = arith.constant 0 : i32
    return %c0_i32, %c0_i32_0 : i32, i32
  }
  func.func @transform_3(%arg0: i32) -> (i32, i32) {
    %c0_i32 = arith.constant 0 : i32
    %c0_i32_0 = arith.constant 0 : i32
    %c0_i32_1 = arith.constant 0 : i32
    return %c0_i32, %c0_i32_0 : i32, i32
  }
  func.func @transform_4(%arg0: i32) -> (i32, i32) {
    %c0_i32 = arith.constant 0 : i32
    %c0_i32_0 = arith.constant 0 : i32
    %c0_i32_1 = arith.constant 0 : i32
    return %c0_i32, %c0_i32_0 : i32, i32
  }
  func.func @transform_5(%arg0: i32) -> (i32, i32) {
    %c0_i32 = arith.constant 0 : i32
    %c0_i32_0 = arith.constant 0 : i32
    %c0_i32_1 = arith.constant 0 : i32
    return %c0_i32, %c0_i32_0 : i32, i32
  }
  func.func @transform_6(%arg0: i32) -> (i32, i32) {
    %c0_i32 = arith.constant 0 : i32
    %c0_i32_0 = arith.constant 0 : i32
    %c0_i32_1 = arith.constant 0 : i32
    return %c0_i32, %c0_i32_0 : i32, i32
  }
  func.func @transform_7(%arg0: i32) -> (i32, i32) {
    %c0_i32 = arith.constant 0 : i32
    %c0_i32_0 = arith.constant 0 : i32
    %c0_i32_1 = arith.constant 0 : i32
    return %c0_i32, %c0_i32_0 : i32, i32
  }
}

</mosaic_0001>

<llo_original>
// kernel: custom-call.6
$region0: #{custom-call.6}
  %s0 = inlined_call_operand.vmem [shape: f32[2,32,32], index: 0, kind: input, shape index: {}]
  %s1 = inlined_call_operand.vmem [shape: f32[2,32,32], index: 1, kind: input, shape index: {}]
  %s2 = inlined_call_operand.vmem [shape: f32[2,32,32], index: 2, kind: output, shape index: {0}]
  %s3 = inlined_call_operand.vmem [shape: f32[2,32,32], index: 3, kind: output, shape index: {1}]
  %s4 = inlined_call_operand.vmem [shape: f32[2,32], index: 4, kind: output, shape index: {2}]
  %s5 = inlined_call_operand.vmem [shape: f32[2,32], index: 5, kind: output, shape index: {3}]
  %6 = xla_tuple %s2, %s3, %s4, %s5
  $region1: #{custom-call.6} parent=0
    #allocation0 [shape = 'u8[32768]{0}', space=vmem, size = 0x8000, scoped, tag = 'operand span for operand 0']
    #allocation1 [shape = 'u8[32768]{0}', space=vmem, size = 0x8000, scoped, tag = 'operand span for operand 1']
    #allocation2 [shape = 'u8[32768]{0}', space=vmem, size = 0x8000, scoped, tag = 'operand span for operand 2']
    #allocation3 [shape = 'u8[32768]{0}', space=vmem, size = 0x8000, scoped, tag = 'operand span for operand 3']
    #allocation4 [shape = 'u8[4096]{0}', space=vmem, size = 0x1000, scoped, tag = 'operand span for operand 4']
    #allocation5 [shape = 'u8[2048]{0}', space=vmem, size = 0x800, scoped, tag = 'packed  for operand 4']
    #allocation6 [shape = 'u8[4096]{0}', space=vmem, size = 0x1000, scoped, tag = 'operand span for operand 5']
    #allocation7 [shape = 'u8[2048]{0}', space=vmem, size = 0x800, scoped, tag = 'packed  for operand 5']
    loop: start=0, step=1, limit=4
    $region2: #{custom-call.6} parent=1 // loop_pre_header
      _
    $region3: #{custom-call.6} parent=1 // loop_header
      %s8 = sphi 0, %s12
      %p9 = scmp.ge.s32.totalorder %s8, 4
      %s15 = sphi 0, %s34
      %s16 = sphi 0, %s30
      %s17 = sphi 0, %s26
      %s18 = sphi 0, %s15
      %s19 = sphi 0, %s16
      %s20 = sphi 0, %s17
      %s21 = sphi 0, %s18
      %s22 = sphi 0, %s19
      %s23 = sphi 0, %s20
      %s49 = sphi 0, %s51
      %s52 = sphi 0, %s49
      %s53 = sphi 0, %s52
      %s69 = sphi 0, %s53
      %s87 = sphi 0, %s89
      %s90 = sphi 0, %s87
      %s91 = sphi 0, %s90
      %s107 = sphi 0, %s91
    $region4: #{custom-call.6} parent=1 // loop_header_branch
      %11 = sbr.rel (%p9) target = $region8
    $region5: #{custom-call.6} parent=1 // loop_body
      %s13 = ssub.s32 %s8, 1
      %s14 = ssub.s32 %s8, 2
      %s24 = sadd.s32 1, %s17
      %p25 = scmp.ge.s32.totalorder %s24, 1
      %s26 = scalar_select %p25, 0, %s24
      %s27 = sadd.s32 1, %s16
      %s28 = scalar_select %p25, %s27, %s16
      %p29 = scmp.ge.s32.totalorder %s28, 1
      %s30 = scalar_select %p29, 0, %s28
      %s31 = sadd.s32 1, %s15
      %s32 = scalar_select %p29, %s31, %s15
      %p33 = scmp.ge.s32.totalorder %s32, 2
      %s34 = scalar_select %p33, 0, %s32
      %p35 = scmp.lt.s32.totalorder %s15, 0
      %s36 = ssub.s32 0, %s15
      %s37 = scalar_select %p35, %s36, %s15
      %s38 = sshrl.u32 %s37, 3
      %s39 = ssub.s32 0, %s38
      %s40 = scalar_select %p35, %s39, %s38
      %p41 = scmp.lt.s32.totalorder %s34, 0
      %s42 = ssub.s32 0, %s34
      %s43 = scalar_select %p41, %s42, %s34
      %s44 = sshrl.u32 %s43, 3
      %s45 = ssub.s32 0, %s44
      %s46 = scalar_select %p41, %s45, %s44
      %s47 = ssub.s32 %s40, %s46
      %p48 = scmp.eq.s32.totalorder %s47, 0
      %s50 = sadd.s32 %s49, 1
      %s51 = scalar_select %p48, %s49, %s50
      %p54 = pneg %p48
      %p55 = scmp.eq.s32.totalorder %s8, 1
      %p56 = por %p54, %p55
      %p57 = scmp.ne.s32.totalorder %s49, %s52
      %p58 = scmp.eq.s32.totalorder %s8, 0
      %p59 = por %p57, %p58
      %p60 = scmp.ne.s32.totalorder %s49, %s52
      %p61 = scmp.eq.s32.totalorder %s13, 1
      %p62 = por %p60, %p61
      %p63 = scmp.ne.s32.totalorder %s52, %s53
      %p64 = scmp.eq.s32.totalorder %s13, 0
      %p65 = por %p63, %p64
      %p66 = scmp.ne.s32.totalorder %s52, %s53
      %p67 = scmp.eq.s32.totalorder %s14, 1
      %p68 = por %p66, %p67
      %p70 = scmp.ne.s32.totalorder %s53, %s69
      %p71 = scmp.eq.s32.totalorder %s14, 0
      %p72 = por %p70, %p71
      %p73 = scmp.lt.s32.totalorder %s15, 0
      %s74 = ssub.s32 0, %s15
      %s75 = scalar_select %p73, %s74, %s15
      %s76 = sshrl.u32 %s75, 3
      %s77 = ssub.s32 0, %s76
      %s78 = scalar_select %p73, %s77, %s76
      %p79 = scmp.lt.s32.totalorder %s34, 0
      %s80 = ssub.s32 0, %s34
      %s81 = scalar_select %p79, %s80, %s34
      %s82 = sshrl.u32 %s81, 3
      %s83 = ssub.s32 0, %s82
      %s84 = scalar_select %p79, %s83, %s82
      %s85 = ssub.s32 %s78, %s84
      %p86 = scmp.eq.s32.totalorder %s85, 0
      %s88 = sadd.s32 %s87, 1
      %s89 = scalar_select %p86, %s87, %s88
      %p92 = pneg %p86
      %p93 = scmp.eq.s32.totalorder %s8, 1
      %p94 = por %p92, %p93
      %p95 = scmp.ne.s32.totalorder %s87, %s90
      %p96 = scmp.eq.s32.totalorder %s8, 0
      %p97 = por %p95, %p96
      %p98 = scmp.ne.s32.totalorder %s87, %s90
      %p99 = scmp.eq.s32.totalorder %s13, 1
      %p100 = por %p98, %p99
      %p101 = scmp.ne.s32.totalorder %s90, %s91
      %p102 = scmp.eq.s32.totalorder %s13, 0
      %p103 = por %p101, %p102
      %p104 = scmp.ne.s32.totalorder %s90, %s91
      %p105 = scmp.eq.s32.totalorder %s14, 1
      %p106 = por %p104, %p105
      %p108 = scmp.ne.s32.totalorder %s91, %s107
      %p109 = scmp.eq.s32.totalorder %s14, 0
      %p110 = por %p108, %p109
      %p111 = scmp.le.s32.totalorder 1, %s8
      %p112 = scmp.lt.s32.totalorder %s8, 3
      %p113 = pnand %p111, %p112
      %p114 = pneg %p113
      // Predicated region
      $region9: #{custom-call.6} parent=5 // pred_check
        _
      $region10: #{custom-call.6} parent=5 // pred_check_branch
        %116 = sbr.rel (%p113) target = $region12
      $region11: #{custom-call.6} parent=5 // pred_region
        %s117 = ssub.s32 %s8, 1
      $region12: #{custom-call.6} parent=5 // pred_fallthru
        _
      %p118 = scmp.lt.s32.totalorder %s8, 2
      // Predicated region
      $region13: #{custom-call.6} parent=5 // pred_check
        %p119 = pneg %p118
      $region14: #{custom-call.6} parent=5 // pred_check_branch
        %121 = sbr.rel (%p119) target = $region16
      $region15: #{custom-call.6} parent=5 // pred_region
        %s122 = sand.u32 %s8, 1
        %s123 = sand.u32 %s8, 1
        %s124 = smul.addr %s123, 32
        %s125 = scalar_lea.vmem [#allocation0], %s124
        %s126 = smul.u32 4, %s16
        %s127 = sadd.s32 %s17, %s126
        %s128 = smul.addr %s15, 4
        %s129 = sadd.s32 %s127, %s128
        %s130 = smul.addr %s129, 8
        %s131 = scalar_lea.vmem %s0, %s130
        // Predicated region
        $region17: #{custom-call.6} parent=15 // pred_check
          _
        $region18: #{custom-call.6} parent=15 // pred_check_branch
          %133 = sbr.rel (0) target = $region20
        $region19: #{custom-call.6} parent=15 // pred_region
          // Predicated region
          $region21: #{custom-call.6} parent=19 // pred_check
            _
          $region22: #{custom-call.6} parent=19 // pred_check_branch
            %135 = sbr.rel (0) target = $region24
          $region23: #{custom-call.6} parent=19 // pred_region
            // Predicated region
            $region36: #{custom-call.6} parent=23 // pred_check
              _
            $region37: #{custom-call.6} parent=23 // pred_check_branch
              %157 = sbr.rel (0) target = $region39
            $region38: #{custom-call.6} parent=23 // pred_region
              loop: start=0, step=1, limit=1
              $region40: #{custom-call.6} parent=38 // loop_pre_header
                _
              $region41: #{custom-call.6} parent=38 // loop_header
                %s159 = sphi 0, %s163
                %p160 = scmp.ge.s32.totalorder %s159, 1
                %s164 = sphi %s131, %s131
                %s165 = sphi %s125, %s125
              $region42: #{custom-call.6} parent=38 // loop_header_branch
                %162 = sbr.rel (%p160) target = $region46
              $region43: #{custom-call.6} parent=38 // loop_body
                %v166 = vld [vmem:[%s164] sm:$0xff]
                %167 = vst [vmem:[%s165] sm:$0xff] %v166
                %v168 = vld [vmem:[%s164 + $0x8] sm:$0xff]
                %169 = vst [vmem:[%s165 + $0x8] sm:$0xff] %v168
                %v170 = vld [vmem:[%s164 + $0x10] sm:$0xff]
                %171 = vst [vmem:[%s165 + $0x10] sm:$0xff] %v170
                %v172 = vld [vmem:[%s164 + $0x18] sm:$0xff]
                %173 = vst [vmem:[%s165 + $0x18] sm:$0xff] %v172
              $region44: #{custom-call.6} parent=38 // loop_footer
                %s163 = sadd.s32 1, %s159
              $region45: #{custom-call.6} parent=38 // loop_footer_branch
                %158 = sbr.rel target = $region41
              $region46: #{custom-call.6} parent=38 // loop_exit
                _
            $region39: #{custom-call.6} parent=23 // pred_fallthru
              _
            // Predicated region
            $region47: #{custom-call.6} parent=23 // pred_check
              _
            $region48: #{custom-call.6} parent=23 // pred_check_branch
              %175 = sbr.rel target = $region50
            $region49: #{custom-call.6} parent=23 // pred_region
              _
            $region50: #{custom-call.6} parent=23 // pred_fallthru
              _
          $region24: #{custom-call.6} parent=19 // pred_fallthru
            _
          // Predicated region
          $region25: #{custom-call.6} parent=19 // pred_check
            _
          $region26: #{custom-call.6} parent=19 // pred_check_branch
            %137 = sbr.rel target = $region28
          $region27: #{custom-call.6} parent=19 // pred_region
            %s139 = ssub.s32 256, 1
            loop: start=0, step=1, limit=1
            $region29: #{custom-call.6} parent=27 // loop_pre_header
              _
            $region30: #{custom-call.6} parent=27 // loop_header
              %s141 = sphi 0, %s145
              %p142 = scmp.ge.s32.totalorder %s141, 1
              %s146 = sphi %s131, %s131
              %s147 = sphi %s125, %s125
            $region31: #{custom-call.6} parent=27 // loop_header_branch
              %144 = sbr.rel (%p142) target = $region35
            $region32: #{custom-call.6} parent=27 // loop_body
              %v148 = vld [vmem:[%s146] sm:%s139]
              %149 = vst [vmem:[%s147] sm:%s139] %v148
              %v150 = vld [vmem:[%s146 + $0x8] sm:%s139]
              %151 = vst [vmem:[%s147 + $0x8] sm:%s139] %v150
              %v152 = vld [vmem:[%s146 + $0x10] sm:%s139]
              %153 = vst [vmem:[%s147 + $0x10] sm:%s139] %v152
              %v154 = vld [vmem:[%s146 + $0x18] sm:%s139]
              %155 = vst [vmem:[%s147 + $0x18] sm:%s139] %v154
            $region33: #{custom-call.6} parent=27 // loop_footer
              %s145 = sadd.s32 1, %s141
            $region34: #{custom-call.6} parent=27 // loop_footer_branch
              %140 = sbr.rel target = $region30
            $region35: #{custom-call.6} parent=27 // loop_exit
              _
          $region28: #{custom-call.6} parent=19 // pred_fallthru
            _
        $region20: #{custom-call.6} parent=15 // pred_fallthru
          _
        %176 = vnop
        %s177 = sand.u32 %s8, 1
        %s178 = sand.u32 %s8, 1
        %s179 = smul.addr %s178, 32
        %s180 = scalar_lea.vmem [#allocation1], %s179
        %s181 = smul.u32 4, %s16
        %s182 = sadd.s32 %s17, %s181
        %s183 = smul.addr %s15, 4
        %s184 = sadd.s32 %s182, %s183
        %s185 = smul.addr %s184, 8
        %s186 = scalar_lea.vmem %s1, %s185
        // Predicated region
        $region51: #{custom-call.6} parent=15 // pred_check
          _
        $region52: #{custom-call.6} parent=15 // pred_check_branch
          %188 = sbr.rel (0) target = $region54
        $region53: #{custom-call.6} parent=15 // pred_region
          // Predicated region
          $region55: #{custom-call.6} parent=53 // pred_check
            _
          $region56: #{custom-call.6} parent=53 // pred_check_branch
            %190 = sbr.rel (0) target = $region58
          $region57: #{custom-call.6} parent=53 // pred_region
            // Predicated region
            $region70: #{custom-call.6} parent=57 // pred_check
              _
            $region71: #{custom-call.6} parent=57 // pred_check_branch
              %212 = sbr.rel (0) target = $region73
            $region72: #{custom-call.6} parent=57 // pred_region
              loop: start=0, step=1, limit=1
              $region74: #{custom-call.6} parent=72 // loop_pre_header
                _
              $region75: #{custom-call.6} parent=72 // loop_header
                %s214 = sphi 0, %s218
                %p215 = scmp.ge.s32.totalorder %s214, 1
                %s219 = sphi %s186, %s186
                %s220 = sphi %s180, %s180
              $region76: #{custom-call.6} parent=72 // loop_header_branch
                %217 = sbr.rel (%p215) target = $region80
              $region77: #{custom-call.6} parent=72 // loop_body
                %v221 = vld [vmem:[%s219] sm:$0xff]
                %222 = vst [vmem:[%s220] sm:$0xff] %v221
                %v223 = vld [vmem:[%s219 + $0x8] sm:$0xff]
                %224 = vst [vmem:[%s220 + $0x8] sm:$0xff] %v223
                %v225 = vld [vmem:[%s219 + $0x10] sm:$0xff]
                %226 = vst [vmem:[%s220 + $0x10] sm:$0xff] %v225
                %v227 = vld [vmem:[%s219 + $0x18] sm:$0xff]
                %228 = vst [vmem:[%s220 + $0x18] sm:$0xff] %v227
              $region78: #{custom-call.6} parent=72 // loop_footer
                %s218 = sadd.s32 1, %s214
              $region79: #{custom-call.6} parent=72 // loop_footer_branch
                %213 = sbr.rel target = $region75
              $region80: #{custom-call.6} parent=72 // loop_exit
                _
            $region73: #{custom-call.6} parent=57 // pred_fallthru
              _
            // Predicated region
            $region81: #{custom-call.6} parent=57 // pred_check
              _
            $region82: #{custom-call.6} parent=57 // pred_check_branch
              %230 = sbr.rel target = $region84
            $region83: #{custom-call.6} parent=57 // pred_region
              _
            $region84: #{custom-call.6} parent=57 // pred_fallthru
              _
          $region58: #{custom-call.6} parent=53 // pred_fallthru
            _
          // Predicated region
          $region59: #{custom-call.6} parent=53 // pred_check
            _
          $region60: #{custom-call.6} parent=53 // pred_check_branch
            %192 = sbr.rel target = $region62
          $region61: #{custom-call.6} parent=53 // pred_region
            %s194 = ssub.s32 256, 1
            loop: start=0, step=1, limit=1
            $region63: #{custom-call.6} parent=61 // loop_pre_header
              _
            $region64: #{custom-call.6} parent=61 // loop_header
              %s196 = sphi 0, %s200
              %p197 = scmp.ge.s32.totalorder %s196, 1
              %s201 = sphi %s186, %s186
              %s202 = sphi %s180, %s180
            $region65: #{custom-call.6} parent=61 // loop_header_branch
              %199 = sbr.rel (%p197) target = $region69
            $region66: #{custom-call.6} parent=61 // loop_body
              %v203 = vld [vmem:[%s201] sm:%s194]
              %204 = vst [vmem:[%s202] sm:%s194] %v203
              %v205 = vld [vmem:[%s201 + $0x8] sm:%s194]
              %206 = vst [vmem:[%s202 + $0x8] sm:%s194] %v205
              %v207 = vld [vmem:[%s201 + $0x10] sm:%s194]
              %208 = vst [vmem:[%s202 + $0x10] sm:%s194] %v207
              %v209 = vld [vmem:[%s201 + $0x18] sm:%s194]
              %210 = vst [vmem:[%s202 + $0x18] sm:%s194] %v209
            $region67: #{custom-call.6} parent=61 // loop_footer
              %s200 = sadd.s32 1, %s196
            $region68: #{custom-call.6} parent=61 // loop_footer_branch
              %195 = sbr.rel target = $region64
            $region69: #{custom-call.6} parent=61 // loop_exit
              _
          $region62: #{custom-call.6} parent=53 // pred_fallthru
            _
        $region54: #{custom-call.6} parent=15 // pred_fallthru
          _
        %231 = vnop
      $region16: #{custom-call.6} parent=5 // pred_fallthru
        _
      %p232 = scmp.le.s32.totalorder 1, %s8
      %p233 = scmp.lt.s32.totalorder %s8, 3
      %p234 = pnand %p232, %p233
      %p235 = pneg %p234
      // Predicated region
      $region85: #{custom-call.6} parent=5 // pred_check
        _
      $region86: #{custom-call.6} parent=5 // pred_check_branch
        %237 = sbr.rel (%p234) target = $region88
      $region87: #{custom-call.6} parent=5 // pred_region
        #allocation8 [shape = 'f32[32,128]{1,0}', space=vmem, size = 0x4000, scoped, tag = 'scratch for real Householder reflectors']
        #allocation9 [shape = 'f32[32,128]{1,0}', space=vmem, size = 0x4000, scoped, tag = 'scratch for imaginary Householder reflectors']
        %s238 = ssub.s32 %s8, 1
        %s239 = sand.u32 %s13, 1
        %s240 = sand.u32 %s13, 1
        %s241 = smul.addr %s240, 32
        %s242 = scalar_lea.vmem [#allocation0], %s241
        %s243 = sand.u32 %s13, 1
        %s244 = sand.u32 %s13, 1
        %s245 = smul.addr %s244, 32
        %s246 = scalar_lea.vmem [#allocation1], %s245
        %s247 = sand.u32 %s13, 1
        %s248 = sand.u32 %s13, 1
        %s249 = smul.addr %s248, 32
        %s250 = scalar_lea.vmem [#allocation0], %s249
        %s251 = sand.u32 %s13, 1
        %s252 = sand.u32 %s13, 1
        %s253 = smul.addr %s252, 32
        %s254 = scalar_lea.vmem [#allocation1], %s253
        %s255 = sand.u32 %s13, 1
        %s256 = sand.u32 %s13, 1
        %s257 = smul.addr %s256, 32
        %s258 = scalar_lea.vmem [#allocation2], %s257
        %s259 = sand.u32 %s13, 1
        %s260 = sand.u32 %s13, 1
        %s261 = smul.addr %s260, 32
        %s262 = scalar_lea.vmem [#allocation3], %s261
        %p263 = pneg %p65
        %p264 = pneg %p62
        %s265 = sand.u32 %s52, 1
        %s266 = sand.u32 %s52, 1
        %s267 = smul.addr %s266, 2
        %s268 = scalar_lea.vmem [#allocation5], %s267
        %p269 = pneg %p103
        %p270 = pneg %p100
        %s271 = sand.u32 %s90, 1
        %s272 = sand.u32 %s90, 1
        %s273 = smul.addr %s272, 2
        %s274 = scalar_lea.vmem [#allocation7], %s273
        %s275 = smul.u32 4, %s19
        %s276 = smul.u32 4, %s19
        %s277 = smul.u32 4, %s19
        %s278 = smul.u32 4, %s19
        %p279 = scmp.lt.s32.totalorder %s18, 0
        %s280 = ssub.s32 0, %s18
        %s281 = scalar_select %p279, %s280, %s18
        %s282 = sshrl.u32 %s281, 3
        %s283 = ssub.s32 0, %s282
        %s284 = scalar_select %p279, %s283, %s282
        %p285 = scmp.lt.s32.totalorder %s18, 0
        %s286 = ssub.s32 0, %s18
        %s287 = scalar_select %p285, %s286, %s18
        %s288 = sshrl.u32 %s287, 3
        %s289 = ssub.s32 0, %s288
        %s290 = scalar_select %p285, %s289, %s288
        %s291 = sand.u32 %s18, 7
        %s292 = scalar_lea.vmem [#allocation4], %s291
        %s293 = scalar_lea.vmem [#allocation6], %s291
        %v294 = vld [vmem:[%s242] sm:$0xff]
        %295 = vst [vmem:[%s258] sm:$0xff] %v294
        %s296 = scalar_lea.vmem %s258, 8 [#allocation2]
        %s297 = scalar_lea.vmem %s242, 8 [#allocation0]
        %v298 = vld [vmem:[%s297] sm:$0xff]
        %299 = vst [vmem:[%s296] sm:$0xff] %v298
        %s300 = scalar_lea.vmem %s258, 16 [#allocation2]
        %s301 = scalar_lea.vmem %s242, 16 [#allocation0]
        %v302 = vld [vmem:[%s301] sm:$0xff]
        %303 = vst [vmem:[%s300] sm:$0xff] %v302
        %s304 = scalar_lea.vmem %s258, 24 [#allocation2]
        %s305 = scalar_lea.vmem %s242, 24 [#allocation0]
        %v306 = vld [vmem:[%s305] sm:$0xff]
        %307 = vst [vmem:[%s304] sm:$0xff] %v306
        %v308 = vld [vmem:[%s246] sm:$0xff]
        %309 = vst [vmem:[%s262] sm:$0xff] %v308
        %s310 = scalar_lea.vmem %s262, 8 [#allocation3]
        %s311 = scalar_lea.vmem %s246, 8 [#allocation1]
        %v312 = vld [vmem:[%s311] sm:$0xff]
        %313 = vst [vmem:[%s310] sm:$0xff] %v312
        %s314 = scalar_lea.vmem %s262, 16 [#allocation3]
        %s315 = scalar_lea.vmem %s246, 16 [#allocation1]
        %v316 = vld [vmem:[%s315] sm:$0xff]
        %317 = vst [vmem:[%s314] sm:$0xff] %v316
        %s318 = scalar_lea.vmem %s262, 24 [#allocation3]
        %s319 = scalar_lea.vmem %s246, 24 [#allocation1]
        %v320 = vld [vmem:[%s319] sm:$0xff]
        %321 = vst [vmem:[%s318] sm:$0xff] %v320
        %322 = vst [vmem:[%s292] sm:$0x1] 0.0
        %323 = vst [vmem:[%s293] sm:$0x1] 0.0
        loop: start=0, step=1, limit=32
        $region89: #{custom-call.6} parent=87 // loop_pre_header
          _
        $region90: #{custom-call.6} parent=87 // loop_header
          %s325 = sphi 0, %s329
          %p326 = scmp.ge.s32.totalorder %s325, 32
        $region91: #{custom-call.6} parent=87 // loop_header_branch
          %328 = sbr.rel (%p326) target = $region95
        $region92: #{custom-call.6} parent=87 // loop_body
          %v330 = vld [vmem:[%s258] sm:$0xff]
          %v331 = vld [vmem:[%s262] sm:$0xff]
          %v332 = vlaneseq
          %v333 = vshrl.u32 %v332, 7
          %v335 = vstv %s325
          %vm336 = vcmp.gt.s32.totalorder %v333, %v335
          %v337 = vsel %vm336, %v330, 0.0
          %v338 = vsel %vm336, %v331, 0.0
          %v339 = vxor.u32 %v338, 2147483648
          %340 = xla_tuple %v337, %v338
          %341 = xla_tuple %v337, %v339
          %v342 = vmul.f32 %v337, %v337
          %v343 = vmul.f32 %v338, %v339
          %v344 = vsub.f32 %v342, %v343
          %v345 = vmul.f32 %v337, %v339
          %v346 = vmul.f32 %v338, %v337
          %v347 = vadd.f32 %v345, %v346
          %348 = xla_tuple %v344, %v347
          %s349 = scalar_lea.vmem %s258, 8 [#allocation2]
          %s350 = scalar_lea.vmem %s262, 8 [#allocation3]
          %v351 = vld [vmem:[%s349] sm:$0xff]
          %v352 = vld [vmem:[%s350] sm:$0xff]
          %v353 = vlaneseq
          %v354 = vshrl.u32 %v353, 7
          %v355 = vadd.s32 %v354, 8
          %v356 = vstv %s325
          %vm357 = vcmp.gt.s32.totalorder %v355, %v356
          %v358 = vsel %vm357, %v351, 0.0
          %v359 = vsel %vm357, %v352, 0.0
          %v360 = vxor.u32 %v359, 2147483648
          %361 = xla_tuple %v358, %v359
          %362 = xla_tuple %v358, %v360
          %v363 = vmul.f32 %v358, %v358
          %v364 = vmul.f32 %v359, %v360
          %v365 = vsub.f32 %v363, %v364
          %v366 = vmul.f32 %v358, %v360
          %v367 = vmul.f32 %v359, %v358
          %v368 = vadd.f32 %v366, %v367
          %369 = xla_tuple %v365, %v368
          %v370 = vadd.f32 %v344, %v365
          %s371 = scalar_lea.vmem %s258, 16 [#allocation2]
          %s372 = scalar_lea.vmem %s262, 16 [#allocation3]
          %v373 = vld [vmem:[%s371] sm:$0xff]
          %v374 = vld [vmem:[%s372] sm:$0xff]
          %v375 = vlaneseq
          %v376 = vshrl.u32 %v375, 7
          %v377 = vadd.s32 %v376, 16
          %v378 = vstv %s325
          %vm379 = vcmp.gt.s32.totalorder %v377, %v378
          %v380 = vsel %vm379, %v373, 0.0
          %v381 = vsel %vm379, %v374, 0.0
          %v382 = vxor.u32 %v381, 2147483648
          %383 = xla_tuple %v380, %v381
          %384 = xla_tuple %v380, %v382
          %v385 = vmul.f32 %v380, %v380
          %v386 = vmul.f32 %v381, %v382
          %v387 = vsub.f32 %v385, %v386
          %v388 = vmul.f32 %v380, %v382
          %v389 = vmul.f32 %v381, %v380
          %v390 = vadd.f32 %v388, %v389
          %391 = xla_tuple %v387, %v390
          %v392 = vadd.f32 %v370, %v387
          %s393 = scalar_lea.vmem %s258, 24 [#allocation2]
          %s394 = scalar_lea.vmem %s262, 24 [#allocation3]
          %v395 = vld [vmem:[%s393] sm:$0xff]
          %v396 = vld [vmem:[%s394] sm:$0xff]
          %v397 = vlaneseq
          %v398 = vshrl.u32 %v397, 7
          %v399 = vadd.s32 %v398, 24
          %v400 = vstv %s325
          %vm401 = vcmp.gt.s32.totalorder %v399, %v400
          %vm402 = vcmp.lt.s32.totalorder %v399, 32
          %vm403 = vmand %vm401, %vm402
          %v404 = vsel %vm403, %v395, 0.0
          %v405 = vsel %vm403, %v396, 0.0
          %v406 = vxor.u32 %v405, 2147483648
          %407 = xla_tuple %v404, %v405
          %408 = xla_tuple %v404, %v406
          %v409 = vmul.f32 %v404, %v404
          %v410 = vmul.f32 %v405, %v406
          %v411 = vsub.f32 %v409, %v410
          %v412 = vmul.f32 %v404, %v406
          %v413 = vmul.f32 %v405, %v404
          %v414 = vadd.f32 %v412, %v413
          %415 = xla_tuple %v411, %v414
          %v416 = vadd.f32 %v392, %v411
          %v417 = vrot.slane %v416, 4
          %v418 = vadd.f32 %v416, %v417
          %v419 = vrot.slane %v418, 2
          %v420 = vadd.f32 %v418, %v419
          %v421 = vrot.slane %v420, 1
          %v422 = vadd.f32 %v420, %v421
          %v423 = vrsqrt.pop %v422
          %v424 = vmul.f32 %v422, %v423
          %vm425 = vcmp.eq.f32.partialorder %v422, inf
          %v426 = vsel %vm425, %v422, %v424
          %vm427 = vcmp.eq.f32.partialorder %v422, 0.0
          %v428 = vand.u32 %v422, 2147483648
          %v429 = vsel %vm427, %v428, %v426
          %vm430 = vcmp.eq.f32.partialorder %v422, 0.0
          %s431 = sshrl.u32 %s325, 3
          %s432 = sand.u32 %s325, 7
          %s433 = smul.addr %s431, 8
          %s434 = sadd.s32 %s432, %s433
          %s435 = scalar_lea.vmem %s258, %s434 [#allocation2]
          %s436 = scalar_lea.vmem %s262, %s434 [#allocation3]
          %v437 = vld [vmem:[%s435] ss:$0 sm:$0xff]
          %v438 = vld [vmem:[%s436] ss:$0 sm:$0xff]
          %v439 = vand.u32 2147483647, %v437
          %v440 = vand.u32 2147483647, %v438
          %v441 = vmax.f32 %v439, %v440
          %v442 = vand.u32 2147483647, %v429
          %v443 = vmax.f32 %v441, %v442
          %v444 = vrcp.pop %v443
          %v445 = vmul.f32 %v439, %v444
          %v446 = vmul.f32 %v445, %v445
          %v447 = vrcp.pop %v443
          %v448 = vmul.f32 %v440, %v447
          %v449 = vmul.f32 %v448, %v448
          %v450 = vadd.f32 %v446, %v449
          %v451 = vrcp.pop %v443
          %v452 = vmul.f32 %v442, %v451
          %v453 = vmul.f32 %v452, %v452
          %v454 = vadd.f32 %v450, %v453
          %vm455 = vcmp.eq.f32.partialorder %v443, 0.0
          %v456 = vrsqrt.pop %v454
          %v457 = vmul.f32 %v454, %v456
          %vm458 = vcmp.eq.f32.partialorder %v454, inf
          %v459 = vsel %vm458, %v454, %v457
          %vm460 = vcmp.eq.f32.partialorder %v454, 0.0
          %v461 = vand.u32 %v454, 2147483648
          %v462 = vsel %vm460, %v461, %v459
          %v463 = vmul.f32 %v443, %v462
          %v464 = vsel %vm455, 0.0, %v463
          %vm465 = vcmp.lt.f32.partialorder %v437, 0.0
          %v466 = vxor.u32 %v464, 2147483648
          %v467 = vsel %vm465, %v464, %v466
          %v468 = vsub.f32 %v467, %v437
          %v469 = vrcp.pop %v467
          %v470 = vmul.f32 %v468, %v469
          %v471 = vxor.u32 %v438, 2147483648
          %v472 = vrcp.pop %v467
          %v473 = vmul.f32 %v471, %v472
          %vm474 = vcmp.eq.f32.partialorder %v438, 0.0
          %vm475 = vmand %vm430, %vm474
          %v476 = vsel %vm475, %v437, %v467
          %v477 = vsel %vm475, 0.0, %v470
          %v478 = vsel %vm475, 0.0, %v473
          %v479 = vsub.f32 %v437, %v476
          %s480 = smov %s258
          %s481 = smov %s262
          %v482 = vlaneseq
          %v483 = vshrl.u32 %v482, 7
          %v484 = vmov %v483
          %v485 = vld [vmem:[%s480] sm:$0xff]
          %v486 = vld [vmem:[%s481] sm:$0xff]
          %v488 = vstv %s325
          %vm489 = vcmp.gt.s32.totalorder %v484, %v488
          %v490 = vsel %vm489, %v485, 0.0
          %v491 = vsel %vm489, %v486, 0.0
          %492 = xla_tuple %v490, %v491
          %493 = xla_tuple %v479, %v438
          %v494 = vand.u32 2147483647, %v479
          %v495 = vand.u32 2147483647, %v438
          %vm496 = vcmp.lt.f32.partialorder %v494, %v495
          %v497 = vsel %vm496, %v479, %v438
          %v498 = vsel %vm496, %v438, %v479
          %v499 = vrcp.pop %v498
          %v500 = vmul.f32 %v497, %v499
          %v501 = vmul.f32 %v500, %v479
          %v502 = vadd.f32 %v438, %v501
          %v503 = vmul.f32 %v500, %v438
          %v504 = vadd.f32 %v479, %v503
          %v505 = vmul.f32 %v500, %v490
          %v506 = vadd.f32 %v505, %v491
          %v507 = vmul.f32 %v500, %v491
          %v508 = vadd.f32 %v507, %v490
          %v509 = vsel %vm496, %v506, %v508
          %v510 = vsel %vm496, %v502, %v504
          %v511 = vrcp.pop %v510
          %v512 = vmul.f32 %v509, %v511
          %v513 = vmul.f32 %v500, %v491
          %v514 = vsub.f32 %v513, %v490
          %v515 = vmul.f32 %v500, %v490
          %v516 = vsub.f32 %v491, %v515
          %v517 = vsel %vm496, %v514, %v516
          %v518 = vmul.f32 %v517, %v511
          %vm519 = vcmp.eq.f32.partialorder %v479, 0.0
          %vm520 = vcmp.eq.f32.partialorder %v438, 0.0
          %vm521 = vmand %vm519, %vm520
          %v522 = vand.u32 %v490, 2147483648
          %v523 = vor.u32 inf, %v522
          %v524 = vand.u32 %v491, 2147483648
          %v525 = vor.u32 inf, %v524
          %vm526 = vcmp.eq.f32.partialorder %v490, 0.0
          %v527 = vsel %vm526, nan, %v523
          %vm528 = vcmp.eq.f32.partialorder %v491, 0.0
          %v529 = vsel %vm528, nan, %v525
          %v530 = vsel %vm521, %v527, %v512
          %v531 = vsel %vm521, %v529, %v518
          %532 = xla_tuple %v530, %v531
          %v533 = vsel %vm475, 0.0, %v530
          %v534 = vsel %vm475, 0.0, %v531
          %v535 = vstv %s325
          %v536 = vlaneseq
          %v537 = vand.u32 %v536, 127
          %vm538 = vcmp.eq.s32.totalorder %v537, %v535
          %v539 = vsel %vm538, %v533, 0.0
          %v540 = vsel %vm538, %v534, 0.0
          %541 = vadd.xlane.f32.xlu0 %v539
          %v542 = vpop.xlane.xlu0 %541
          %543 = vadd.xlane.f32.xlu0 %v540
          %v544 = vpop.xlane.xlu0 %543
          %545 = vst [vmem:[#allocation8] sm:$0xff] %v542
          %546 = vst [vmem:[#allocation9] sm:$0xff] %v544
          %s547 = scalar_lea.vmem %s480, 8
          %s548 = scalar_lea.vmem %s481, 8
          %v549 = vld [vmem:[%s547] sm:$0xff]
          %v550 = vld [vmem:[%s548] sm:$0xff]
          %v551 = vadd.s32 %v484, 8
          %v552 = vstv %s325
          %vm553 = vcmp.gt.s32.totalorder %v551, %v552
          %v554 = vsel %vm553, %v549, 0.0
          %v555 = vsel %vm553, %v550, 0.0
          %556 = xla_tuple %v554, %v555
          %557 = xla_tuple %v479, %v438
          %v558 = vand.u32 2147483647, %v479
          %v559 = vand.u32 2147483647, %v438
          %vm560 = vcmp.lt.f32.partialorder %v558, %v559
          %v561 = vsel %vm560, %v479, %v438
          %v562 = vsel %vm560, %v438, %v479
          %v563 = vrcp.pop %v562
          %v564 = vmul.f32 %v561, %v563
          %v565 = vmul.f32 %v564, %v479
          %v566 = vadd.f32 %v438, %v565
          %v567 = vmul.f32 %v564, %v438
          %v568 = vadd.f32 %v479, %v567
          %v569 = vmul.f32 %v564, %v554
          %v570 = vadd.f32 %v569, %v555
          %v571 = vmul.f32 %v564, %v555
          %v572 = vadd.f32 %v571, %v554
          %v573 = vsel %vm560, %v570, %v572
          %v574 = vsel %vm560, %v566, %v568
          %v575 = vrcp.pop %v574
          %v576 = vmul.f32 %v573, %v575
          %v577 = vmul.f32 %v564, %v555
          %v578 = vsub.f32 %v577, %v554
          %v579 = vmul.f32 %v564, %v554
          %v580 = vsub.f32 %v555, %v579
          %v581 = vsel %vm560, %v578, %v580
          %v582 = vmul.f32 %v581, %v575
          %vm583 = vcmp.eq.f32.partialorder %v479, 0.0
          %vm584 = vcmp.eq.f32.partialorder %v438, 0.0
          %vm585 = vmand %vm583, %vm584
          %v586 = vand.u32 %v554, 2147483648
          %v587 = vor.u32 inf, %v586
          %v588 = vand.u32 %v555, 2147483648
          %v589 = vor.u32 inf, %v588
          %vm590 = vcmp.eq.f32.partialorder %v554, 0.0
          %v591 = vsel %vm590, nan, %v587
          %vm592 = vcmp.eq.f32.partialorder %v555, 0.0
          %v593 = vsel %vm592, nan, %v589
          %v594 = vsel %vm585, %v591, %v576
          %v595 = vsel %vm585, %v593, %v582
          %596 = xla_tuple %v594, %v595
          %v597 = vsel %vm475, 0.0, %v594
          %v598 = vsel %vm475, 0.0, %v595
          %v599 = vstv %s325
          %v600 = vlaneseq
          %v601 = vand.u32 %v600, 127
          %vm602 = vcmp.eq.s32.totalorder %v601, %v599
          %v603 = vsel %vm602, %v597, 0.0
          %v604 = vsel %vm602, %v598, 0.0
          %605 = vadd.xlane.f32.xlu0 %v603
          %v606 = vpop.xlane.xlu0 %605
          %607 = vadd.xlane.f32.xlu0 %v604
          %v608 = vpop.xlane.xlu0 %607
          %s609 = scalar_lea.vmem [#allocation8], 8
          %s610 = scalar_lea.vmem [#allocation9], 8
          %611 = vst [vmem:[%s609] sm:$0xff] %v606
          %612 = vst [vmem:[%s610] sm:$0xff] %v608
          %s613 = scalar_lea.vmem %s480, 16
          %s614 = scalar_lea.vmem %s481, 16
          %v615 = vld [vmem:[%s613] sm:$0xff]
          %v616 = vld [vmem:[%s614] sm:$0xff]
          %v617 = vadd.s32 %v484, 16
          %v618 = vstv %s325
          %vm619 = vcmp.gt.s32.totalorder %v617, %v618
          %v620 = vsel %vm619, %v615, 0.0
          %v621 = vsel %vm619, %v616, 0.0
          %622 = xla_tuple %v620, %v621
          %623 = xla_tuple %v479, %v438
          %v624 = vand.u32 2147483647, %v479
          %v625 = vand.u32 2147483647, %v438
          %vm626 = vcmp.lt.f32.partialorder %v624, %v625
          %v627 = vsel %vm626, %v479, %v438
          %v628 = vsel %vm626, %v438, %v479
          %v629 = vrcp.pop %v628
          %v630 = vmul.f32 %v627, %v629
          %v631 = vmul.f32 %v630, %v479
          %v632 = vadd.f32 %v438, %v631
          %v633 = vmul.f32 %v630, %v438
          %v634 = vadd.f32 %v479, %v633
          %v635 = vmul.f32 %v630, %v620
          %v636 = vadd.f32 %v635, %v621
          %v637 = vmul.f32 %v630, %v621
          %v638 = vadd.f32 %v637, %v620
          %v639 = vsel %vm626, %v636, %v638
          %v640 = vsel %vm626, %v632, %v634
          %v641 = vrcp.pop %v640
          %v642 = vmul.f32 %v639, %v641
          %v643 = vmul.f32 %v630, %v621
          %v644 = vsub.f32 %v643, %v620
          %v645 = vmul.f32 %v630, %v620
          %v646 = vsub.f32 %v621, %v645
          %v647 = vsel %vm626, %v644, %v646
          %v648 = vmul.f32 %v647, %v641
          %vm649 = vcmp.eq.f32.partialorder %v479, 0.0
          %vm650 = vcmp.eq.f32.partialorder %v438, 0.0
          %vm651 = vmand %vm649, %vm650
          %v652 = vand.u32 %v620, 2147483648
          %v653 = vor.u32 inf, %v652
          %v654 = vand.u32 %v621, 2147483648
          %v655 = vor.u32 inf, %v654
          %vm656 = vcmp.eq.f32.partialorder %v620, 0.0
          %v657 = vsel %vm656, nan, %v653
          %vm658 = vcmp.eq.f32.partialorder %v621, 0.0
          %v659 = vsel %vm658, nan, %v655
          %v660 = vsel %vm651, %v657, %v642
          %v661 = vsel %vm651, %v659, %v648
          %662 = xla_tuple %v660, %v661
          %v663 = vsel %vm475, 0.0, %v660
          %v664 = vsel %vm475, 0.0, %v661
          %v665 = vstv %s325
          %v666 = vlaneseq
          %v667 = vand.u32 %v666, 127
          %vm668 = vcmp.eq.s32.totalorder %v667, %v665
          %v669 = vsel %vm668, %v663, 0.0
          %v670 = vsel %vm668, %v664, 0.0
          %671 = vadd.xlane.f32.xlu0 %v669
          %v672 = vpop.xlane.xlu0 %671
          %673 = vadd.xlane.f32.xlu0 %v670
          %v674 = vpop.xlane.xlu0 %673
          %s675 = scalar_lea.vmem [#allocation8], 16
          %s676 = scalar_lea.vmem [#allocation9], 16
          %677 = vst [vmem:[%s675] sm:$0xff] %v672
          %678 = vst [vmem:[%s676] sm:$0xff] %v674
          %s679 = scalar_lea.vmem %s480, 24
          %s680 = scalar_lea.vmem %s481, 24
          %v681 = vld [vmem:[%s679] sm:$0xff]
          %v682 = vld [vmem:[%s680] sm:$0xff]
          %v683 = vadd.s32 %v484, 24
          %v684 = vstv %s325
          %vm685 = vcmp.gt.s32.totalorder %v683, %v684
          %vm686 = vcmp.lt.s32.totalorder %v683, 32
          %vm687 = vmand %vm685, %vm686
          %v688 = vsel %vm687, %v681, 0.0
          %v689 = vsel %vm687, %v682, 0.0
          %690 = xla_tuple %v688, %v689
          %691 = xla_tuple %v479, %v438
          %v692 = vand.u32 2147483647, %v479
          %v693 = vand.u32 2147483647, %v438
          %vm694 = vcmp.lt.f32.partialorder %v692, %v693
          %v695 = vsel %vm694, %v479, %v438
          %v696 = vsel %vm694, %v438, %v479
          %v697 = vrcp.pop %v696
          %v698 = vmul.f32 %v695, %v697
          %v699 = vmul.f32 %v698, %v479
          %v700 = vadd.f32 %v438, %v699
          %v701 = vmul.f32 %v698, %v438
          %v702 = vadd.f32 %v479, %v701
          %v703 = vmul.f32 %v698, %v688
          %v704 = vadd.f32 %v703, %v689
          %v705 = vmul.f32 %v698, %v689
          %v706 = vadd.f32 %v705, %v688
          %v707 = vsel %vm694, %v704, %v706
          %v708 = vsel %vm694, %v700, %v702
          %v709 = vrcp.pop %v708
          %v710 = vmul.f32 %v707, %v709
          %v711 = vmul.f32 %v698, %v689
          %v712 = vsub.f32 %v711, %v688
          %v713 = vmul.f32 %v698, %v688
          %v714 = vsub.f32 %v689, %v713
          %v715 = vsel %vm694, %v712, %v714
          %v716 = vmul.f32 %v715, %v709
          %vm717 = vcmp.eq.f32.partialorder %v479, 0.0
          %vm718 = vcmp.eq.f32.partialorder %v438, 0.0
          %vm719 = vmand %vm717, %vm718
          %v720 = vand.u32 %v688, 2147483648
          %v721 = vor.u32 inf, %v720
          %v722 = vand.u32 %v689, 2147483648
          %v723 = vor.u32 inf, %v722
          %vm724 = vcmp.eq.f32.partialorder %v688, 0.0
          %v725 = vsel %vm724, nan, %v721
          %vm726 = vcmp.eq.f32.partialorder %v689, 0.0
          %v727 = vsel %vm726, nan, %v723
          %v728 = vsel %vm719, %v725, %v710
          %v729 = vsel %vm719, %v727, %v716
          %730 = xla_tuple %v728, %v729
          %v731 = vsel %vm475, 0.0, %v728
          %v732 = vsel %vm475, 0.0, %v729
          %v733 = vstv %s325
          %v734 = vlaneseq
          %v735 = vand.u32 %v734, 127
          %vm736 = vcmp.eq.s32.totalorder %v735, %v733
          %v737 = vsel %vm736, %v731, 0.0
          %v738 = vsel %vm736, %v732, 0.0
          %739 = vadd.xlane.f32.xlu0 %v737
          %v740 = vpop.xlane.xlu0 %739
          %741 = vadd.xlane.f32.xlu0 %v738
          %v742 = vpop.xlane.xlu0 %741
          %s743 = scalar_lea.vmem [#allocation8], 24
          %s744 = scalar_lea.vmem [#allocation9], 24
          %745 = vst [vmem:[%s743] sm:$0xff] %v740
          %746 = vst [vmem:[%s744] sm:$0xff] %v742
          %s747 = scalar_lea.vmem [#allocation8], %s325
          %s748 = scalar_lea.vmem [#allocation9], %s325
          %749 = vst [vmem:[%s747] sm:$0x1] 1.0
          %750 = vst [vmem:[%s748] sm:$0x1] 0.0
          %v751 = vstv %s325
          %v752 = vlaneseq
          %v753 = vand.u32 %v752, 127
          %vm754 = vcmp.eq.s32.totalorder %v753, %v751
          %v755 = vsel %vm754, %v477, 0.0
          %v756 = vsel %vm754, %v478, 0.0
          %757 = vadd.xlane.f32.xlu0 %v755
          %v758 = vpop.xlane.xlu0 %757
          %759 = vadd.xlane.f32.xlu0 %v756
          %v760 = vpop.xlane.xlu0 %759
          %v761 = vstv %s325
          %v762 = vlaneseq
          %v763 = vand.u32 %v762, 127
          %vm764 = vcmp.eq.s32.totalorder %v763, %v761
          %v765 = vld [vmem:[%s292] ss:$0 sm:$0xff]
          %v766 = vld [vmem:[%s293] ss:$0 sm:$0xff]
          %v767 = vsel %vm764, %v758, %v765
          %v768 = vsel %vm764, %v760, %v766
          %769 = vst [vmem:[%s292] sm:$0x1] %v767
          %770 = vst [vmem:[%s293] sm:$0x1] %v768
          %s771 = smov %s258
          %s772 = smov %s262
          %s773 = smov [#allocation8]
          %s774 = smov [#allocation9]
          %v775 = vlaneseq
          %v776 = vshrl.u32 %v775, 7
          %v777 = vmov %v776
          %v779 = vld [vmem:[%s773] sm:$0xff]
          %v780 = vld [vmem:[%s774] sm:$0xff]
          %v781 = vld [vmem:[%s771] sm:$0xff]
          %v782 = vld [vmem:[%s772] sm:$0xff]
          %v783 = vxor.u32 %v780, 2147483648
          %784 = xla_tuple %v779, %v783
          %785 = xla_tuple %v781, %v782
          %v786 = vmul.f32 %v779, %v781
          %v787 = vmul.f32 %v783, %v782
          %v788 = vsub.f32 %v786, %v787
          %v789 = vmul.f32 %v779, %v782
          %v790 = vmul.f32 %v783, %v781
          %v791 = vadd.f32 %v789, %v790
          %792 = xla_tuple %v788, %v791
          %v793 = vadd.s32 %v777, 8
          %s794 = scalar_lea.vmem %s773, 8
          %s795 = scalar_lea.vmem %s774, 8
          %v796 = vld [vmem:[%s794] sm:$0xff]
          %v797 = vld [vmem:[%s795] sm:$0xff]
          %s798 = scalar_lea.vmem %s771, 8
          %s799 = scalar_lea.vmem %s772, 8
          %v800 = vld [vmem:[%s798] sm:$0xff]
          %v801 = vld [vmem:[%s799] sm:$0xff]
          %v802 = vxor.u32 %v797, 2147483648
          %803 = xla_tuple %v796, %v802
          %804 = xla_tuple %v800, %v801
          %v805 = vmul.f32 %v796, %v800
          %v806 = vmul.f32 %v802, %v801
          %v807 = vsub.f32 %v805, %v806
          %v808 = vmul.f32 %v796, %v801
          %v809 = vmul.f32 %v802, %v800
          %v810 = vadd.f32 %v808, %v809
          %811 = xla_tuple %v807, %v810
          %v812 = vadd.f32 %v788, %v807
          %v813 = vadd.f32 %v791, %v810
          %v814 = vadd.s32 %v777, 16
          %s815 = scalar_lea.vmem %s773, 16
          %s816 = scalar_lea.vmem %s774, 16
          %v817 = vld [vmem:[%s815] sm:$0xff]
          %v818 = vld [vmem:[%s816] sm:$0xff]
          %s819 = scalar_lea.vmem %s771, 16
          %s820 = scalar_lea.vmem %s772, 16
          %v821 = vld [vmem:[%s819] sm:$0xff]
          %v822 = vld [vmem:[%s820] sm:$0xff]
          %v823 = vxor.u32 %v818, 2147483648
          %824 = xla_tuple %v817, %v823
          %825 = xla_tuple %v821, %v822
          %v826 = vmul.f32 %v817, %v821
          %v827 = vmul.f32 %v823, %v822
          %v828 = vsub.f32 %v826, %v827
          %v829 = vmul.f32 %v817, %v822
          %v830 = vmul.f32 %v823, %v821
          %v831 = vadd.f32 %v829, %v830
          %832 = xla_tuple %v828, %v831
          %v833 = vadd.f32 %v812, %v828
          %v834 = vadd.f32 %v813, %v831
          %v835 = vadd.s32 %v777, 24
          %s836 = scalar_lea.vmem %s773, 24
          %s837 = scalar_lea.vmem %s774, 24
          %v838 = vld [vmem:[%s836] sm:$0xff]
          %v839 = vld [vmem:[%s837] sm:$0xff]
          %s840 = scalar_lea.vmem %s771, 24
          %s841 = scalar_lea.vmem %s772, 24
          %v842 = vld [vmem:[%s840] sm:$0xff]
          %v843 = vld [vmem:[%s841] sm:$0xff]
          %v844 = vxor.u32 %v839, 2147483648
          %845 = xla_tuple %v838, %v844
          %846 = xla_tuple %v842, %v843
          %v847 = vmul.f32 %v838, %v842
          %v848 = vmul.f32 %v844, %v843
          %v849 = vsub.f32 %v847, %v848
          %v850 = vmul.f32 %v838, %v843
          %v851 = vmul.f32 %v844, %v842
          %v852 = vadd.f32 %v850, %v851
          %853 = xla_tuple %v849, %v852
          %vm854 = vcmp.lt.s32.totalorder %v835, 32
          %v855 = vsel %vm854, %v849, 0.0
          %v856 = vsel %vm854, %v852, 0.0
          %v857 = vadd.f32 %v833, %v855
          %v858 = vadd.f32 %v834, %v856
          %v859 = vrot.slane %v857, 4
          %v860 = vadd.f32 %v857, %v859
          %v861 = vrot.slane %v860, 2
          %v862 = vadd.f32 %v860, %v861
          %v863 = vrot.slane %v862, 1
          %v864 = vadd.f32 %v862, %v863
          %v865 = vrot.slane %v858, 4
          %v866 = vadd.f32 %v858, %v865
          %v867 = vrot.slane %v866, 2
          %v868 = vadd.f32 %v866, %v867
          %v869 = vrot.slane %v868, 1
          %v870 = vadd.f32 %v868, %v869
          %s871 = smov %s771
          %s872 = smov %s772
          %s873 = smov %s773
          %s874 = smov %s774
          %v875 = vlaneseq
          %v876 = vshrl.u32 %v875, 7
          %v877 = vmov %v876
          %v878 = vxor.u32 %v760, 2147483648
          %879 = xla_tuple %v864, %v870
          %880 = xla_tuple %v758, %v878
          %v881 = vmul.f32 %v864, %v758
          %v882 = vmul.f32 %v870, %v878
          %v883 = vsub.f32 %v881, %v882
          %v884 = vmul.f32 %v864, %v878
          %v885 = vmul.f32 %v870, %v758
          %v886 = vadd.f32 %v884, %v885
          %887 = xla_tuple %v883, %v886
          %v889 = vlaneseq
          %v890 = vand.u32 %v889, 127
          %v891 = vld [vmem:[%s873] sm:$0xff]
          %v892 = vld [vmem:[%s874] sm:$0xff]
          %893 = xla_tuple %v891, %v892
          %894 = xla_tuple %v883, %v886
          %v895 = vmul.f32 %v891, %v883
          %v896 = vmul.f32 %v892, %v886
          %v897 = vsub.f32 %v895, %v896
          %v898 = vmul.f32 %v891, %v886
          %v899 = vmul.f32 %v892, %v883
          %v900 = vadd.f32 %v898, %v899
          %901 = xla_tuple %v897, %v900
          %v902 = vld [vmem:[%s871] sm:$0xff]
          %v903 = vld [vmem:[%s872] sm:$0xff]
          %v904 = vstv %s325
          %vm905 = vcmp.gt.s32.totalorder %v890, %v904
          %v906 = vsub.f32 %v902, %v897
          %v907 = vsub.f32 %v903, %v900
          %v908 = vsel %vm905, %v906, %v902
          %v909 = vsel %vm905, %v907, %v903
          %v910 = vstv %s325
          %v911 = vlaneseq
          %v912 = vand.u32 %v911, 127
          %vm913 = vcmp.eq.s32.totalorder %v912, %v910
          %v914 = vstv %s325
          %vm915 = vcmp.ge.s32.totalorder %v877, %v914
          %vm916 = vmand %vm913, %vm915
          %v917 = vsel %vm916, %v891, %v908
          %v918 = vsel %vm916, %v892, %v909
          %919 = vst [vmem:[%s871] sm:$0xff] %v917
          %920 = vst [vmem:[%s872] sm:$0xff] %v918
          %v921 = vadd.s32 %v877, 8
          %v922 = vlaneseq
          %v923 = vand.u32 %v922, 127
          %s924 = scalar_lea.vmem %s873, 8
          %s925 = scalar_lea.vmem %s874, 8
          %v926 = vld [vmem:[%s924] sm:$0xff]
          %v927 = vld [vmem:[%s925] sm:$0xff]
          %928 = xla_tuple %v926, %v927
          %929 = xla_tuple %v883, %v886
          %v930 = vmul.f32 %v926, %v883
          %v931 = vmul.f32 %v927, %v886
          %v932 = vsub.f32 %v930, %v931
          %v933 = vmul.f32 %v926, %v886
          %v934 = vmul.f32 %v927, %v883
          %v935 = vadd.f32 %v933, %v934
          %936 = xla_tuple %v932, %v935
          %s937 = scalar_lea.vmem %s871, 8
          %s938 = scalar_lea.vmem %s872, 8
          %v939 = vld [vmem:[%s937] sm:$0xff]
          %v940 = vld [vmem:[%s938] sm:$0xff]
          %v941 = vstv %s325
          %vm942 = vcmp.gt.s32.totalorder %v923, %v941
          %v943 = vsub.f32 %v939, %v932
          %v944 = vsub.f32 %v940, %v935
          %v945 = vsel %vm942, %v943, %v939
          %v946 = vsel %vm942, %v944, %v940
          %v947 = vstv %s325
          %v948 = vlaneseq
          %v949 = vand.u32 %v948, 127
          %vm950 = vcmp.eq.s32.totalorder %v949, %v947
          %v951 = vstv %s325
          %vm952 = vcmp.ge.s32.totalorder %v921, %v951
          %vm953 = vmand %vm950, %vm952
          %v954 = vsel %vm953, %v926, %v945
          %v955 = vsel %vm953, %v927, %v946
          %956 = vst [vmem:[%s937] sm:$0xff] %v954
          %957 = vst [vmem:[%s938] sm:$0xff] %v955
          %v958 = vadd.s32 %v877, 16
          %v959 = vlaneseq
          %v960 = vand.u32 %v959, 127
          %s961 = scalar_lea.vmem %s873, 16
          %s962 = scalar_lea.vmem %s874, 16
          %v963 = vld [vmem:[%s961] sm:$0xff]
          %v964 = vld [vmem:[%s962] sm:$0xff]
          %965 = xla_tuple %v963, %v964
          %966 = xla_tuple %v883, %v886
          %v967 = vmul.f32 %v963, %v883
          %v968 = vmul.f32 %v964, %v886
          %v969 = vsub.f32 %v967, %v968
          %v970 = vmul.f32 %v963, %v886
          %v971 = vmul.f32 %v964, %v883
          %v972 = vadd.f32 %v970, %v971
          %973 = xla_tuple %v969, %v972
          %s974 = scalar_lea.vmem %s871, 16
          %s975 = scalar_lea.vmem %s872, 16
          %v976 = vld [vmem:[%s974] sm:$0xff]
          %v977 = vld [vmem:[%s975] sm:$0xff]
          %v978 = vstv %s325
          %vm979 = vcmp.gt.s32.totalorder %v960, %v978
          %v980 = vsub.f32 %v976, %v969
          %v981 = vsub.f32 %v977, %v972
          %v982 = vsel %vm979, %v980, %v976
          %v983 = vsel %vm979, %v981, %v977
          %v984 = vstv %s325
          %v985 = vlaneseq
          %v986 = vand.u32 %v985, 127
          %vm987 = vcmp.eq.s32.totalorder %v986, %v984
          %v988 = vstv %s325
          %vm989 = vcmp.ge.s32.totalorder %v958, %v988
          %vm990 = vmand %vm987, %vm989
          %v991 = vsel %vm990, %v963, %v982
          %v992 = vsel %vm990, %v964, %v983
          %993 = vst [vmem:[%s974] sm:$0xff] %v991
          %994 = vst [vmem:[%s975] sm:$0xff] %v992
          %v995 = vadd.s32 %v877, 24
          %v996 = vlaneseq
          %v997 = vand.u32 %v996, 127
          %s998 = scalar_lea.vmem %s873, 24
          %s999 = scalar_lea.vmem %s874, 24
          %v1000 = vld [vmem:[%s998] sm:$0xff]
          %v1001 = vld [vmem:[%s999] sm:$0xff]
          %1002 = xla_tuple %v1000, %v1001
          %1003 = xla_tuple %v883, %v886
          %v1004 = vmul.f32 %v1000, %v883
          %v1005 = vmul.f32 %v1001, %v886
          %v1006 = vsub.f32 %v1004, %v1005
          %v1007 = vmul.f32 %v1000, %v886
          %v1008 = vmul.f32 %v1001, %v883
          %v1009 = vadd.f32 %v1007, %v1008
          %1010 = xla_tuple %v1006, %v1009
          %s1011 = scalar_lea.vmem %s871, 24
          %s1012 = scalar_lea.vmem %s872, 24
          %v1013 = vld [vmem:[%s1011] sm:$0xff]
          %v1014 = vld [vmem:[%s1012] sm:$0xff]
          %v1015 = vstv %s325
          %vm1016 = vcmp.gt.s32.totalorder %v997, %v1015
          %v1017 = vsub.f32 %v1013, %v1006
          %v1018 = vsub.f32 %v1014, %v1009
          %v1019 = vsel %vm1016, %v1017, %v1013
          %v1020 = vsel %vm1016, %v1018, %v1014
          %v1021 = vstv %s325
          %v1022 = vlaneseq
          %v1023 = vand.u32 %v1022, 127
          %vm1024 = vcmp.eq.s32.totalorder %v1023, %v1021
          %v1025 = vstv %s325
          %vm1026 = vcmp.ge.s32.totalorder %v995, %v1025
          %vm1027 = vmand %vm1024, %vm1026
          %v1028 = vsel %vm1027, %v1000, %v1019
          %v1029 = vsel %vm1027, %v1001, %v1020
          %1030 = vst [vmem:[%s1011] sm:$0xff] %v1028
          %1031 = vst [vmem:[%s1012] sm:$0xff] %v1029
          %s1032 = scalar_lea.vmem %s871, %s325
          %s1033 = scalar_lea.vmem %s872, %s325
          %v1034 = vld [vmem:[%s1032] ss:$0 sm:$0xff]
          %v1035 = vld [vmem:[%s1033] ss:$0 sm:$0xff]
          %v1036 = vstv %s325
          %v1037 = vlaneseq
          %v1038 = vand.u32 %v1037, 127
          %vm1039 = vcmp.eq.s32.totalorder %v1038, %v1036
          %v1040 = vsel %vm1039, %v476, %v1034
          %v1041 = vsel %vm1039, 0.0, %v1035
          %1042 = vst [vmem:[%s1032] sm:$0x1] %v1040
          %1043 = vst [vmem:[%s1033] sm:$0x1] %v1041
        $region93: #{custom-call.6} parent=87 // loop_footer
          %s329 = sadd.s32 1, %s325
        $region94: #{custom-call.6} parent=87 // loop_footer_branch
          %324 = sbr.rel target = $region90
        $region95: #{custom-call.6} parent=87 // loop_exit
          _
        %s1045 = sshll.u32 1, 2
        %s1046 = ssub.s32 %s1045, 1
        %v1048 = vld [vmem:[#allocation4] sm:%s1046]
        %s1049 = sshll.u32 1, 2
        %s1050 = ssub.s32 %s1049, 1
        %1051 = vst [vmem:[%s268] sm:%s1050] %v1048
        %s1053 = sshll.u32 1, 2
        %s1054 = ssub.s32 %s1053, 1
        %v1056 = vld [vmem:[#allocation6] sm:%s1054]
        %s1057 = sshll.u32 1, 2
        %s1058 = ssub.s32 %s1057, 1
        %1059 = vst [vmem:[%s274] sm:%s1058] %v1056
        %s1060 = sand.u32 %s13, 1
        %s1061 = sand.u32 %s13, 1
        %s1062 = smul.addr %s1061, 32
        %s1063 = scalar_lea.vmem [#allocation2], %s1062
        %s1064 = sand.u32 %s13, 1
        %s1065 = sand.u32 %s13, 1
        %s1066 = smul.addr %s1065, 32
        %s1067 = scalar_lea.vmem [#allocation3], %s1066
        %s1068 = sand.u32 %s52, 1
        %s1069 = sand.u32 %s52, 1
        %s1070 = smul.addr %s1069, 2
        %s1071 = scalar_lea.vmem [#allocation5], %s1070
        %s1072 = sand.u32 %s90, 1
        %s1073 = sand.u32 %s90, 1
        %s1074 = smul.addr %s1073, 2
        %s1075 = scalar_lea.vmem [#allocation7], %s1074
        %s1076 = smul.u32 4, %s19
        %s1077 = sadd.s32 %s20, %s1076
        %s1078 = smul.addr %s18, 4
        %s1079 = sadd.s32 %s1077, %s1078
        %s1080 = smul.addr %s1079, 8
        %s1081 = scalar_lea.vmem %s2, %s1080
        // Predicated region
        $region96: #{custom-call.6} parent=87 // pred_check
          _
        $region97: #{custom-call.6} parent=87 // pred_check_branch
          %1083 = sbr.rel (0) target = $region99
        $region98: #{custom-call.6} parent=87 // pred_region
          // Predicated region
          $region100: #{custom-call.6} parent=98 // pred_check
            _
          $region101: #{custom-call.6} parent=98 // pred_check_branch
            %1085 = sbr.rel (0) target = $region103
          $region102: #{custom-call.6} parent=98 // pred_region
            // Predicated region
            $region115: #{custom-call.6} parent=102 // pred_check
              _
            $region116: #{custom-call.6} parent=102 // pred_check_branch
              %1107 = sbr.rel (0) target = $region118
            $region117: #{custom-call.6} parent=102 // pred_region
              loop: start=0, step=1, limit=1
              $region119: #{custom-call.6} parent=117 // loop_pre_header
                _
              $region120: #{custom-call.6} parent=117 // loop_header
                %s1109 = sphi 0, %s1113
                %p1110 = scmp.ge.s32.totalorder %s1109, 1
                %s1114 = sphi %s1063, %s1063
                %s1115 = sphi %s1081, %s1081
              $region121: #{custom-call.6} parent=117 // loop_header_branch
                %1112 = sbr.rel (%p1110) target = $region125
              $region122: #{custom-call.6} parent=117 // loop_body
                %v1116 = vld [vmem:[%s1114] sm:$0xff]
                %1117 = vst [vmem:[%s1115] sm:$0xff] %v1116
                %v1118 = vld [vmem:[%s1114 + $0x8] sm:$0xff]
                %1119 = vst [vmem:[%s1115 + $0x8] sm:$0xff] %v1118
                %v1120 = vld [vmem:[%s1114 + $0x10] sm:$0xff]
                %1121 = vst [vmem:[%s1115 + $0x10] sm:$0xff] %v1120
                %v1122 = vld [vmem:[%s1114 + $0x18] sm:$0xff]
                %1123 = vst [vmem:[%s1115 + $0x18] sm:$0xff] %v1122
              $region123: #{custom-call.6} parent=117 // loop_footer
                %s1113 = sadd.s32 1, %s1109
              $region124: #{custom-call.6} parent=117 // loop_footer_branch
                %1108 = sbr.rel target = $region120
              $region125: #{custom-call.6} parent=117 // loop_exit
                _
            $region118: #{custom-call.6} parent=102 // pred_fallthru
              _
            // Predicated region
            $region126: #{custom-call.6} parent=102 // pred_check
              _
            $region127: #{custom-call.6} parent=102 // pred_check_branch
              %1125 = sbr.rel target = $region129
            $region128: #{custom-call.6} parent=102 // pred_region
              _
            $region129: #{custom-call.6} parent=102 // pred_fallthru
              _
          $region103: #{custom-call.6} parent=98 // pred_fallthru
            _
          // Predicated region
          $region104: #{custom-call.6} parent=98 // pred_check
            _
          $region105: #{custom-call.6} parent=98 // pred_check_branch
            %1087 = sbr.rel target = $region107
          $region106: #{custom-call.6} parent=98 // pred_region
            %s1089 = ssub.s32 256, 1
            loop: start=0, step=1, limit=1
            $region108: #{custom-call.6} parent=106 // loop_pre_header
              _
            $region109: #{custom-call.6} parent=106 // loop_header
              %s1091 = sphi 0, %s1095
              %p1092 = scmp.ge.s32.totalorder %s1091, 1
              %s1096 = sphi %s1063, %s1063
              %s1097 = sphi %s1081, %s1081
            $region110: #{custom-call.6} parent=106 // loop_header_branch
              %1094 = sbr.rel (%p1092) target = $region114
            $region111: #{custom-call.6} parent=106 // loop_body
              %v1098 = vld [vmem:[%s1096] sm:%s1089]
              %1099 = vst [vmem:[%s1097] sm:%s1089] %v1098
              %v1100 = vld [vmem:[%s1096 + $0x8] sm:%s1089]
              %1101 = vst [vmem:[%s1097 + $0x8] sm:%s1089] %v1100
              %v1102 = vld [vmem:[%s1096 + $0x10] sm:%s1089]
              %1103 = vst [vmem:[%s1097 + $0x10] sm:%s1089] %v1102
              %v1104 = vld [vmem:[%s1096 + $0x18] sm:%s1089]
              %1105 = vst [vmem:[%s1097 + $0x18] sm:%s1089] %v1104
            $region112: #{custom-call.6} parent=106 // loop_footer
              %s1095 = sadd.s32 1, %s1091
            $region113: #{custom-call.6} parent=106 // loop_footer_branch
              %1090 = sbr.rel target = $region109
            $region114: #{custom-call.6} parent=106 // loop_exit
              _
          $region107: #{custom-call.6} parent=98 // pred_fallthru
            _
        $region99: #{custom-call.6} parent=87 // pred_fallthru
          _
        %1126 = vnop
        %s1127 = smul.u32 4, %s19
        %s1128 = sadd.s32 %s20, %s1127
        %s1129 = smul.addr %s18, 4
        %s1130 = sadd.s32 %s1128, %s1129
        %s1131 = smul.addr %s1130, 8
        %s1132 = scalar_lea.vmem %s3, %s1131
        // Predicated region
        $region130: #{custom-call.6} parent=87 // pred_check
          _
        $region131: #{custom-call.6} parent=87 // pred_check_branch
          %1134 = sbr.rel (0) target = $region133
        $region132: #{custom-call.6} parent=87 // pred_region
          // Predicated region
          $region134: #{custom-call.6} parent=132 // pred_check
            _
          $region135: #{custom-call.6} parent=132 // pred_check_branch
            %1136 = sbr.rel (0) target = $region137
          $region136: #{custom-call.6} parent=132 // pred_region
            // Predicated region
            $region149: #{custom-call.6} parent=136 // pred_check
              _
            $region150: #{custom-call.6} parent=136 // pred_check_branch
              %1158 = sbr.rel (0) target = $region152
            $region151: #{custom-call.6} parent=136 // pred_region
              loop: start=0, step=1, limit=1
              $region153: #{custom-call.6} parent=151 // loop_pre_header
                _
              $region154: #{custom-call.6} parent=151 // loop_header
                %s1160 = sphi 0, %s1164
                %p1161 = scmp.ge.s32.totalorder %s1160, 1
                %s1165 = sphi %s1067, %s1067
                %s1166 = sphi %s1132, %s1132
              $region155: #{custom-call.6} parent=151 // loop_header_branch
                %1163 = sbr.rel (%p1161) target = $region159
              $region156: #{custom-call.6} parent=151 // loop_body
                %v1167 = vld [vmem:[%s1165] sm:$0xff]
                %1168 = vst [vmem:[%s1166] sm:$0xff] %v1167
                %v1169 = vld [vmem:[%s1165 + $0x8] sm:$0xff]
                %1170 = vst [vmem:[%s1166 + $0x8] sm:$0xff] %v1169
                %v1171 = vld [vmem:[%s1165 + $0x10] sm:$0xff]
                %1172 = vst [vmem:[%s1166 + $0x10] sm:$0xff] %v1171
                %v1173 = vld [vmem:[%s1165 + $0x18] sm:$0xff]
                %1174 = vst [vmem:[%s1166 + $0x18] sm:$0xff] %v1173
              $region157: #{custom-call.6} parent=151 // loop_footer
                %s1164 = sadd.s32 1, %s1160
              $region158: #{custom-call.6} parent=151 // loop_footer_branch
                %1159 = sbr.rel target = $region154
              $region159: #{custom-call.6} parent=151 // loop_exit
                _
            $region152: #{custom-call.6} parent=136 // pred_fallthru
              _
            // Predicated region
            $region160: #{custom-call.6} parent=136 // pred_check
              _
            $region161: #{custom-call.6} parent=136 // pred_check_branch
              %1176 = sbr.rel target = $region163
            $region162: #{custom-call.6} parent=136 // pred_region
              _
            $region163: #{custom-call.6} parent=136 // pred_fallthru
              _
          $region137: #{custom-call.6} parent=132 // pred_fallthru
            _
          // Predicated region
          $region138: #{custom-call.6} parent=132 // pred_check
            _
          $region139: #{custom-call.6} parent=132 // pred_check_branch
            %1138 = sbr.rel target = $region141
          $region140: #{custom-call.6} parent=132 // pred_region
            %s1140 = ssub.s32 256, 1
            loop: start=0, step=1, limit=1
            $region142: #{custom-call.6} parent=140 // loop_pre_header
              _
            $region143: #{custom-call.6} parent=140 // loop_header
              %s1142 = sphi 0, %s1146
              %p1143 = scmp.ge.s32.totalorder %s1142, 1
              %s1147 = sphi %s1067, %s1067
              %s1148 = sphi %s1132, %s1132
            $region144: #{custom-call.6} parent=140 // loop_header_branch
              %1145 = sbr.rel (%p1143) target = $region148
            $region145: #{custom-call.6} parent=140 // loop_body
              %v1149 = vld [vmem:[%s1147] sm:%s1140]
              %1150 = vst [vmem:[%s1148] sm:%s1140] %v1149
              %v1151 = vld [vmem:[%s1147 + $0x8] sm:%s1140]
              %1152 = vst [vmem:[%s1148 + $0x8] sm:%s1140] %v1151
              %v1153 = vld [vmem:[%s1147 + $0x10] sm:%s1140]
              %1154 = vst [vmem:[%s1148 + $0x10] sm:%s1140] %v1153
              %v1155 = vld [vmem:[%s1147 + $0x18] sm:%s1140]
              %1156 = vst [vmem:[%s1148 + $0x18] sm:%s1140] %v1155
            $region146: #{custom-call.6} parent=140 // loop_footer
              %s1146 = sadd.s32 1, %s1142
            $region147: #{custom-call.6} parent=140 // loop_footer_branch
              %1141 = sbr.rel target = $region143
            $region148: #{custom-call.6} parent=140 // loop_exit
              _
          $region141: #{custom-call.6} parent=132 // pred_fallthru
            _
        $region133: #{custom-call.6} parent=87 // pred_fallthru
          _
        %1177 = vnop
        // Predicated region
        $region164: #{custom-call.6} parent=87 // pred_check
          %p1178 = pneg %p62
        $region165: #{custom-call.6} parent=87 // pred_check_branch
          %1180 = sbr.rel (%p1178) target = $region167
        $region166: #{custom-call.6} parent=87 // pred_region
          %p1181 = scmp.lt.s32.totalorder %s18, 0
          %s1182 = ssub.s32 0, %s18
          %s1183 = scalar_select %p1181, %s1182, %s18
          %s1184 = sshrl.u32 %s1183, 3
          %s1185 = ssub.s32 0, %s1184
          %s1186 = scalar_select %p1181, %s1185, %s1184
          %s1187 = smul.addr %s1186, 2
          %s1188 = scalar_lea.vmem %s4, %s1187
          // Predicated region
          $region168: #{custom-call.6} parent=166 // pred_check
            _
          $region169: #{custom-call.6} parent=166 // pred_check_branch
            %1190 = sbr.rel (0) target = $region171
          $region170: #{custom-call.6} parent=166 // pred_region
            // Predicated region
            $region172: #{custom-call.6} parent=170 // pred_check
              _
            $region173: #{custom-call.6} parent=170 // pred_check_branch
              %1192 = sbr.rel target = $region175
            $region174: #{custom-call.6} parent=170 // pred_region
              // Predicated region
              $region187: #{custom-call.6} parent=174 // pred_check
                _
              $region188: #{custom-call.6} parent=174 // pred_check_branch
                %1208 = sbr.rel (0) target = $region190
              $region189: #{custom-call.6} parent=174 // pred_region
                %s1210 = ssub.s32 4, 1
                loop: start=0, step=1, limit=1
                $region191: #{custom-call.6} parent=189 // loop_pre_header
                  _
                $region192: #{custom-call.6} parent=189 // loop_header
                  %s1212 = sphi 0, %s1216
                  %p1213 = scmp.ge.s32.totalorder %s1212, 1
                  %s1217 = sphi %s1071, %s1071
                  %s1218 = sphi %s1188, %s1188
                $region193: #{custom-call.6} parent=189 // loop_header_branch
                  %1215 = sbr.rel (%p1213) target = $region197
                $region194: #{custom-call.6} parent=189 // loop_body
                  %v1219 = vld [vmem:[%s1217] sm:%s1210]
                  %1220 = vst [vmem:[%s1218] sm:%s1210] %v1219
                $region195: #{custom-call.6} parent=189 // loop_footer
                  %s1216 = sadd.s32 1, %s1212
                $region196: #{custom-call.6} parent=189 // loop_footer_branch
                  %1211 = sbr.rel target = $region192
                $region197: #{custom-call.6} parent=189 // loop_exit
                  _
              $region190: #{custom-call.6} parent=174 // pred_fallthru
                _
            $region175: #{custom-call.6} parent=170 // pred_fallthru
              _
            // Predicated region
            $region176: #{custom-call.6} parent=170 // pred_check
              _
            $region177: #{custom-call.6} parent=170 // pred_check_branch
              %1194 = sbr.rel (0) target = $region179
            $region178: #{custom-call.6} parent=170 // pred_region
              %s1196 = ssub.s32 4, 1
              loop: start=0, step=1, limit=1
              $region180: #{custom-call.6} parent=178 // loop_pre_header
                _
              $region181: #{custom-call.6} parent=178 // loop_header
                %s1198 = sphi 0, %s1202
                %p1199 = scmp.ge.s32.totalorder %s1198, 1
                %s1203 = sphi %s1071, %s1071
                %s1204 = sphi %s1188, %s1188
              $region182: #{custom-call.6} parent=178 // loop_header_branch
                %1201 = sbr.rel (%p1199) target = $region186
              $region183: #{custom-call.6} parent=178 // loop_body
                %v1205 = vld [vmem:[%s1203] sm:%s1196]
                %1206 = vst [vmem:[%s1204] sm:%s1196] %v1205
              $region184: #{custom-call.6} parent=178 // loop_footer
                %s1202 = sadd.s32 1, %s1198
              $region185: #{custom-call.6} parent=178 // loop_footer_branch
                %1197 = sbr.rel target = $region181
              $region186: #{custom-call.6} parent=178 // loop_exit
                _
            $region179: #{custom-call.6} parent=170 // pred_fallthru
              _
          $region171: #{custom-call.6} parent=166 // pred_fallthru
            _
          %1221 = vnop
        $region167: #{custom-call.6} parent=87 // pred_fallthru
          _
        // Predicated region
        $region198: #{custom-call.6} parent=87 // pred_check
          %p1222 = pneg %p100
        $region199: #{custom-call.6} parent=87 // pred_check_branch
          %1224 = sbr.rel (%p1222) target = $region201
        $region200: #{custom-call.6} parent=87 // pred_region
          %p1225 = scmp.lt.s32.totalorder %s18, 0
          %s1226 = ssub.s32 0, %s18
          %s1227 = scalar_select %p1225, %s1226, %s18
          %s1228 = sshrl.u32 %s1227, 3
          %s1229 = ssub.s32 0, %s1228
          %s1230 = scalar_select %p1225, %s1229, %s1228
          %s1231 = smul.addr %s1230, 2
          %s1232 = scalar_lea.vmem %s5, %s1231
          // Predicated region
          $region202: #{custom-call.6} parent=200 // pred_check
            _
          $region203: #{custom-call.6} parent=200 // pred_check_branch
            %1234 = sbr.rel (0) target = $region205
          $region204: #{custom-call.6} parent=200 // pred_region
            // Predicated region
            $region206: #{custom-call.6} parent=204 // pred_check
              _
            $region207: #{custom-call.6} parent=204 // pred_check_branch
              %1236 = sbr.rel target = $region209
            $region208: #{custom-call.6} parent=204 // pred_region
              // Predicated region
              $region221: #{custom-call.6} parent=208 // pred_check
                _
              $region222: #{custom-call.6} parent=208 // pred_check_branch
                %1252 = sbr.rel (0) target = $region224
              $region223: #{custom-call.6} parent=208 // pred_region
                %s1254 = ssub.s32 4, 1
                loop: start=0, step=1, limit=1
                $region225: #{custom-call.6} parent=223 // loop_pre_header
                  _
                $region226: #{custom-call.6} parent=223 // loop_header
                  %s1256 = sphi 0, %s1260
                  %p1257 = scmp.ge.s32.totalorder %s1256, 1
                  %s1261 = sphi %s1075, %s1075
                  %s1262 = sphi %s1232, %s1232
                $region227: #{custom-call.6} parent=223 // loop_header_branch
                  %1259 = sbr.rel (%p1257) target = $region231
                $region228: #{custom-call.6} parent=223 // loop_body
                  %v1263 = vld [vmem:[%s1261] sm:%s1254]
                  %1264 = vst [vmem:[%s1262] sm:%s1254] %v1263
                $region229: #{custom-call.6} parent=223 // loop_footer
                  %s1260 = sadd.s32 1, %s1256
                $region230: #{custom-call.6} parent=223 // loop_footer_branch
                  %1255 = sbr.rel target = $region226
                $region231: #{custom-call.6} parent=223 // loop_exit
                  _
              $region224: #{custom-call.6} parent=208 // pred_fallthru
                _
            $region209: #{custom-call.6} parent=204 // pred_fallthru
              _
            // Predicated region
            $region210: #{custom-call.6} parent=204 // pred_check
              _
            $region211: #{custom-call.6} parent=204 // pred_check_branch
              %1238 = sbr.rel (0) target = $region213
            $region212: #{custom-call.6} parent=204 // pred_region
              %s1240 = ssub.s32 4, 1
              loop: start=0, step=1, limit=1
              $region214: #{custom-call.6} parent=212 // loop_pre_header
                _
              $region215: #{custom-call.6} parent=212 // loop_header
                %s1242 = sphi 0, %s1246
                %p1243 = scmp.ge.s32.totalorder %s1242, 1
                %s1247 = sphi %s1075, %s1075
                %s1248 = sphi %s1232, %s1232
              $region216: #{custom-call.6} parent=212 // loop_header_branch
                %1245 = sbr.rel (%p1243) target = $region220
              $region217: #{custom-call.6} parent=212 // loop_body
                %v1249 = vld [vmem:[%s1247] sm:%s1240]
                %1250 = vst [vmem:[%s1248] sm:%s1240] %v1249
              $region218: #{custom-call.6} parent=212 // loop_footer
                %s1246 = sadd.s32 1, %s1242
              $region219: #{custom-call.6} parent=212 // loop_footer_branch
                %1241 = sbr.rel target = $region215
              $region220: #{custom-call.6} parent=212 // loop_exit
                _
            $region213: #{custom-call.6} parent=204 // pred_fallthru
              _
          $region205: #{custom-call.6} parent=200 // pred_fallthru
            _
          %1265 = vnop
        $region201: #{custom-call.6} parent=87 // pred_fallthru
          _
      $region88: #{custom-call.6} parent=5 // pred_fallthru
        _
      %p1266 = scmp.le.s32.totalorder 2, %s8
      // Predicated region
      $region232: #{custom-call.6} parent=5 // pred_check
        %p1267 = pneg %p1266
      $region233: #{custom-call.6} parent=5 // pred_check_branch
        %1269 = sbr.rel (%p1267) target = $region235
      $region234: #{custom-call.6} parent=5 // pred_region
        %s1270 = ssub.s32 %s8, 2
        %s1271 = sand.u32 %s14, 1
        %s1272 = sand.u32 %s14, 1
        %s1273 = smul.addr %s1272, 32
        %s1274 = scalar_lea.vmem [#allocation2], %s1273
        %s1275 = sand.u32 %s14, 1
        %s1276 = sand.u32 %s14, 1
        %s1277 = smul.addr %s1276, 32
        %s1278 = scalar_lea.vmem [#allocation3], %s1277
        // Predicated region
        $region236: #{custom-call.6} parent=234 // pred_check
          %p1279 = pneg %p68
        $region237: #{custom-call.6} parent=234 // pred_check_branch
          %1281 = sbr.rel (%p1279) target = $region239
        $region238: #{custom-call.6} parent=234 // pred_region
          %s1282 = sand.u32 %s53, 1
          %s1283 = sand.u32 %s53, 1
          %s1284 = smul.addr %s1283, 2
          %s1285 = scalar_lea.vmem [#allocation5], %s1284
        $region239: #{custom-call.6} parent=234 // pred_fallthru
          _
        // Predicated region
        $region240: #{custom-call.6} parent=234 // pred_check
          %p1286 = pneg %p106
        $region241: #{custom-call.6} parent=234 // pred_check_branch
          %1288 = sbr.rel (%p1286) target = $region243
        $region242: #{custom-call.6} parent=234 // pred_region
          %s1289 = sand.u32 %s91, 1
          %s1290 = sand.u32 %s91, 1
          %s1291 = smul.addr %s1290, 2
          %s1292 = scalar_lea.vmem [#allocation7], %s1291
        $region243: #{custom-call.6} parent=234 // pred_fallthru
          _
      $region235: #{custom-call.6} parent=5 // pred_fallthru
        _
    $region6: #{custom-call.6} parent=1 // loop_footer
      %s12 = sadd.s32 1, %s8
    $region7: #{custom-call.6} parent=1 // loop_footer_branch
      %7 = sbr.rel target = $region3
    $region8: #{custom-call.6} parent=1 // loop_exit
      _

// kernel: modu_network_forward.3
$region0: #{modu_network_forward.3}
  #allocation0 [shape = 'u32[]', space=smem, size = 0x4, offset = 0x4, fixed_abs, tag = 'smem constant byte address 0x4 - core index']
  #allocation1 [shape = 'u32[144,128]{1,0:T(1,128)}', space=vmem, size = 0x12000, scoped, tag = 'internal scratch']
  %s0 = inlined_call_operand.vmem [shape: bf16[8,128], index: 0, kind: input, shape index: {}]
  %s1 = inlined_call_operand.vmem [shape: bf16[128,2048], index: 1, kind: input, shape index: {}]
  %s2 = inlined_call_operand.vmem [shape: f32[1,2048], index: 2, kind: input, shape index: {}]
  %s3 = inlined_call_operand.vmem [shape: f32[8,2048], index: 3, kind: output, shape index: {}]
  %s4 = sld [smem:[#allocation0]]
  $region68: #{modu_network_forward.3} parent=0
    _
  %s6 = ssub.s32 1, %s4
  %s7 = scalar_select 0, %s6, %s4
  $region1: #{modu_network_forward.3} parent=0
    #allocation2 [shape = 'u8[524288]{0}', space=vmem, size = 0x80000, scoped, tag = 'input window, operand 1']
    loop: start=0, step=1, limit=4
    $region2: #{modu_network_forward.3} parent=1 // loop_pre_header
      _
    $region3: #{modu_network_forward.3} parent=1 // loop_header
      %s9 = sphi 0, %s13
      %p10 = scmp.ge.s32.totalorder %s9, 4
      %s17 = sphi 0, %s17
      %s19 = sphi 0, %s17
      %s20 = sphi 0, %s19
      %s34 = sphi 0, %s20
      %s40 = sphi 0, %s42
      %s43 = sphi 0, %s40
      %s44 = sphi 0, %s43
      %s60 = sphi 0, %s44
      %s66 = sphi 0, %s68
      %s69 = sphi 0, %s66
      %s70 = sphi 0, %s69
      %s86 = sphi 0, %s70
      %s92 = sphi 0, %s94
      %s95 = sphi 0, %s92
      %s96 = sphi 0, %s95
      %s112 = sphi 0, %s96
    $region4: #{modu_network_forward.3} parent=1 // loop_header_branch
      %12 = sbr.rel (%p10) target = $region8
    $region5: #{modu_network_forward.3} parent=1 // loop_body
      %s14 = ssub.s32 %s9, 1
      %s15 = ssub.s32 %s9, 2
      %s16 = sadd.s32 %s9, 1
      %s18 = sadd.s32 %s17, 1
      %p21 = scmp.eq.s32.totalorder %s9, 1
      %p22 = scmp.ne.s32.totalorder %s17, %s19
      %p23 = scmp.eq.s32.totalorder %s9, 0
      %p24 = por %p22, %p23
      %p25 = scmp.ne.s32.totalorder %s17, %s19
      %p26 = scmp.eq.s32.totalorder %s14, 1
      %p27 = por %p25, %p26
      %p28 = scmp.ne.s32.totalorder %s19, %s20
      %p29 = scmp.eq.s32.totalorder %s14, 0
      %p30 = por %p28, %p29
      %p31 = scmp.ne.s32.totalorder %s19, %s20
      %p32 = scmp.eq.s32.totalorder %s15, 1
      %p33 = por %p31, %p32
      %p35 = scmp.ne.s32.totalorder %s20, %s34
      %p36 = scmp.eq.s32.totalorder %s15, 0
      %p37 = por %p35, %p36
      %s38 = ssub.s32 %s9, %s16
      %p39 = scmp.eq.s32.totalorder %s38, 0
      %s41 = sadd.s32 %s40, 1
      %s42 = scalar_select %p39, %s40, %s41
      %p45 = pneg %p39
      %p46 = scmp.eq.s32.totalorder %s9, 1
      %p47 = por %p45, %p46
      %p48 = scmp.ne.s32.totalorder %s40, %s43
      %p49 = scmp.eq.s32.totalorder %s9, 0
      %p50 = por %p48, %p49
      %p51 = scmp.ne.s32.totalorder %s40, %s43
      %p52 = scmp.eq.s32.totalorder %s14, 1
      %p53 = por %p51, %p52
      %p54 = scmp.ne.s32.totalorder %s43, %s44
      %p55 = scmp.eq.s32.totalorder %s14, 0
      %p56 = por %p54, %p55
      %p57 = scmp.ne.s32.totalorder %s43, %s44
      %p58 = scmp.eq.s32.totalorder %s15, 1
      %p59 = por %p57, %p58
      %p61 = scmp.ne.s32.totalorder %s44, %s60
      %p62 = scmp.eq.s32.totalorder %s15, 0
      %p63 = por %p61, %p62
      %s64 = ssub.s32 %s9, %s16
      %p65 = scmp.eq.s32.totalorder %s64, 0
      %s67 = sadd.s32 %s66, 1
      %s68 = scalar_select %p65, %s66, %s67
      %p71 = pneg %p65
      %p72 = scmp.eq.s32.totalorder %s9, 1
      %p73 = por %p71, %p72
      %p74 = scmp.ne.s32.totalorder %s66, %s69
      %p75 = scmp.eq.s32.totalorder %s9, 0
      %p76 = por %p74, %p75
      %p77 = scmp.ne.s32.totalorder %s66, %s69
      %p78 = scmp.eq.s32.totalorder %s14, 1
      %p79 = por %p77, %p78
      %p80 = scmp.ne.s32.totalorder %s69, %s70
      %p81 = scmp.eq.s32.totalorder %s14, 0
      %p82 = por %p80, %p81
      %p83 = scmp.ne.s32.totalorder %s69, %s70
      %p84 = scmp.eq.s32.totalorder %s15, 1
      %p85 = por %p83, %p84
      %p87 = scmp.ne.s32.totalorder %s70, %s86
      %p88 = scmp.eq.s32.totalorder %s15, 0
      %p89 = por %p87, %p88
      %s90 = ssub.s32 %s9, %s16
      %p91 = scmp.eq.s32.totalorder %s90, 0
      %s93 = sadd.s32 %s92, 1
      %s94 = scalar_select %p91, %s92, %s93
      %p97 = pneg %p91
      %p98 = scmp.eq.s32.totalorder %s9, 1
      %p99 = por %p97, %p98
      %p100 = scmp.ne.s32.totalorder %s92, %s95
      %p101 = scmp.eq.s32.totalorder %s9, 0
      %p102 = por %p100, %p101
      %p103 = scmp.ne.s32.totalorder %s92, %s95
      %p104 = scmp.eq.s32.totalorder %s14, 1
      %p105 = por %p103, %p104
      %p106 = scmp.ne.s32.totalorder %s95, %s96
      %p107 = scmp.eq.s32.totalorder %s14, 0
      %p108 = por %p106, %p107
      %p109 = scmp.ne.s32.totalorder %s95, %s96
      %p110 = scmp.eq.s32.totalorder %s15, 1
      %p111 = por %p109, %p110
      %p113 = scmp.ne.s32.totalorder %s96, %s112
      %p114 = scmp.eq.s32.totalorder %s15, 0
      %p115 = por %p113, %p114
      %p116 = scmp.le.s32.totalorder 1, %s9
      %p117 = scmp.lt.s32.totalorder %s9, 3
      %p118 = pnand %p116, %p117
      %p119 = pneg %p118
      // Predicated region
      $region9: #{modu_network_forward.3} parent=5 // pred_check
        _
      $region10: #{modu_network_forward.3} parent=5 // pred_check_branch
        %121 = sbr.rel (%p118) target = $region12
      $region11: #{modu_network_forward.3} parent=5 // pred_region
        %s122 = ssub.s32 %s9, 1
        // Predicated region
        $region13: #{modu_network_forward.3} parent=11 // pred_check
          %p123 = pneg %p30
        $region14: #{modu_network_forward.3} parent=11 // pred_check_branch
          %125 = sbr.rel (%p123) target = $region16
        $region15: #{modu_network_forward.3} parent=11 // pred_region
          _
        $region16: #{modu_network_forward.3} parent=11 // pred_fallthru
          _
      $region12: #{modu_network_forward.3} parent=5 // pred_fallthru
        _
      %p126 = scmp.lt.s32.totalorder %s9, 2
      // Predicated region
      $region17: #{modu_network_forward.3} parent=5 // pred_check
        %p127 = pneg %p126
      $region18: #{modu_network_forward.3} parent=5 // pred_check_branch
        %129 = sbr.rel (%p127) target = $region20
      $region19: #{modu_network_forward.3} parent=5 // pred_region
        // Predicated region
        $region21: #{modu_network_forward.3} parent=19 // pred_check
          %p130 = pneg %p50
        $region22: #{modu_network_forward.3} parent=19 // pred_check_branch
          %132 = sbr.rel (%p130) target = $region24
        $region23: #{modu_network_forward.3} parent=19 // pred_region
          %s133 = sand.u32 %s40, 1
          %s134 = sand.u32 %s40, 1
          %s135 = smul.addr %s134, 512
          %s136 = scalar_lea.vmem [#allocation2], %s135
          %s137 = smul.u32 8, %s9
          %s138 = smul.addr %s137, 4
          %s139 = scalar_lea.vmem %s1, %s138
          // Predicated region
          $region25: #{modu_network_forward.3} parent=23 // pred_check
            _
          $region26: #{modu_network_forward.3} parent=23 // pred_check_branch
            %141 = sbr.rel (0) target = $region28
          $region27: #{modu_network_forward.3} parent=23 // pred_region
            // Predicated region
            $region29: #{modu_network_forward.3} parent=27 // pred_check
              _
            $region30: #{modu_network_forward.3} parent=27 // pred_check_branch
              %143 = sbr.rel (0) target = $region32
            $region31: #{modu_network_forward.3} parent=27 // pred_region
              loop: start=0, step=1, limit=1
              $region33: #{modu_network_forward.3} parent=31 // loop_pre_header
                _
              $region34: #{modu_network_forward.3} parent=31 // loop_header
                %s145 = sphi 0, %s149
                %p146 = scmp.ge.s32.totalorder %s145, 1
                %s150 = sphi %s139, %s139
                %s151 = sphi %s136, %s136
              $region35: #{modu_network_forward.3} parent=31 // loop_header_branch
                %148 = sbr.rel (%p146) target = $region39
              $region36: #{modu_network_forward.3} parent=31 // loop_body
                %v152 = vld [vmem:[%s150] sm:$0xff]
                %153 = vst [vmem:[%s151] sm:$0xff] %v152
                %v154 = vld [vmem:[%s150 + $0x8] sm:$0xff]
                %155 = vst [vmem:[%s151 + $0x8] sm:$0xff] %v154
                %v156 = vld [vmem:[%s150 + $0x10] sm:$0xff]
                %157 = vst [vmem:[%s151 + $0x10] sm:$0xff] %v156
                %v158 = vld [vmem:[%s150 + $0x18] sm:$0xff]
                %159 = vst [vmem:[%s151 + $0x18] sm:$0xff] %v158
                %v160 = vld [vmem:[%s150 + $0x40] sm:$0xff]
                %161 = vst [vmem:[%s151 + $0x20] sm:$0xff] %v160
                %v162 = vld [vmem:[%s150 + $0x48] sm:$0xff]
                %163 = vst [vmem:[%s151 + $0x28] sm:$0xff] %v162
                %v164 = vld [vmem:[%s150 + $0x50] sm:$0xff]
                %165 = vst [vmem:[%s151 + $0x30] sm:$0xff] %v164
                %v166 = vld [vmem:[%s150 + $0x58] sm:$0xff]
                %167 = vst [vmem:[%s151 + $0x38] sm:$0xff] %v166
                %v168 = vld [vmem:[%s150 + $0x80] sm:$0xff]
                %169 = vst [vmem:[%s151 + $0x40] sm:$0xff] %v168
                %v170 = vld [vmem:[%s150 + $0x88] sm:$0xff]
                %171 = vst [vmem:[%s151 + $0x48] sm:$0xff] %v170
                %v172 = vld [vmem:[%s150 + $0x90] sm:$0xff]
                %173 = vst [vmem:[%s151 + $0x50] sm:$0xff] %v172
                %v174 = vld [vmem:[%s150 + $0x98] sm:$0xff]
                %175 = vst [vmem:[%s151 + $0x58] sm:$0xff] %v174
                %v176 = vld [vmem:[%s150 + $0xc0] sm:$0xff]
                %177 = vst [vmem:[%s151 + $0x60] sm:$0xff] %v176
                %v178 = vld [vmem:[%s150 + $0xc8] sm:$0xff]
                %179 = vst [vmem:[%s151 + $0x68] sm:$0xff] %v178
                %v180 = vld [vmem:[%s150 + $0xd0] sm:$0xff]
                %181 = vst [vmem:[%s151 + $0x70] sm:$0xff] %v180
                %v182 = vld [vmem:[%s150 + $0xd8] sm:$0xff]
                %183 = vst [vmem:[%s151 + $0x78] sm:$0xff] %v182
                %v184 = vld [vmem:[%s150 + $0x100] sm:$0xff]
                %185 = vst [vmem:[%s151 + $0x80] sm:$0xff] %v184
                %v186 = vld [vmem:[%s150 + $0x108] sm:$0xff]
                %187 = vst [vmem:[%s151 + $0x88] sm:$0xff] %v186
                %v188 = vld [vmem:[%s150 + $0x110] sm:$0xff]
                %189 = vst [vmem:[%s151 + $0x90] sm:$0xff] %v188
                %v190 = vld [vmem:[%s150 + $0x118] sm:$0xff]
                %191 = vst [vmem:[%s151 + $0x98] sm:$0xff] %v190
                %v192 = vld [vmem:[%s150 + $0x140] sm:$0xff]
                %193 = vst [vmem:[%s151 + $0xa0] sm:$0xff] %v192
                %v194 = vld [vmem:[%s150 + $0x148] sm:$0xff]
                %195 = vst [vmem:[%s151 + $0xa8] sm:$0xff] %v194
                %v196 = vld [vmem:[%s150 + $0x150] sm:$0xff]
                %197 = vst [vmem:[%s151 + $0xb0] sm:$0xff] %v196
                %v198 = vld [vmem:[%s150 + $0x158] sm:$0xff]
                %199 = vst [vmem:[%s151 + $0xb8] sm:$0xff] %v198
                %v200 = vld [vmem:[%s150 + $0x180] sm:$0xff]
                %201 = vst [vmem:[%s151 + $0xc0] sm:$0xff] %v200
                %v202 = vld [vmem:[%s150 + $0x188] sm:$0xff]
                %203 = vst [vmem:[%s151 + $0xc8] sm:$0xff] %v202
                %v204 = vld [vmem:[%s150 + $0x190] sm:$0xff]
                %205 = vst [vmem:[%s151 + $0xd0] sm:$0xff] %v204
                %v206 = vld [vmem:[%s150 + $0x198] sm:$0xff]
                %207 = vst [vmem:[%s151 + $0xd8] sm:$0xff] %v206
                %v208 = vld [vmem:[%s150 + $0x1c0] sm:$0xff]
                %209 = vst [vmem:[%s151 + $0xe0] sm:$0xff] %v208
                %v210 = vld [vmem:[%s150 + $0x1c8] sm:$0xff]
                %211 = vst [vmem:[%s151 + $0xe8] sm:$0xff] %v210
                %v212 = vld [vmem:[%s150 + $0x1d0] sm:$0xff]
                %213 = vst [vmem:[%s151 + $0xf0] sm:$0xff] %v212
                %v214 = vld [vmem:[%s150 + $0x1d8] sm:$0xff]
                %215 = vst [vmem:[%s151 + $0xf8] sm:$0xff] %v214
                %v216 = vld [vmem:[%s150 + $0x200] sm:$0xff]
                %217 = vst [vmem:[%s151 + $0x100] sm:$0xff] %v216
                %v218 = vld [vmem:[%s150 + $0x208] sm:$0xff]
                %219 = vst [vmem:[%s151 + $0x108] sm:$0xff] %v218
                %v220 = vld [vmem:[%s150 + $0x210] sm:$0xff]
                %221 = vst [vmem:[%s151 + $0x110] sm:$0xff] %v220
                %v222 = vld [vmem:[%s150 + $0x218] sm:$0xff]
                %223 = vst [vmem:[%s151 + $0x118] sm:$0xff] %v222
                %v224 = vld [vmem:[%s150 + $0x240] sm:$0xff]
                %225 = vst [vmem:[%s151 + $0x120] sm:$0xff] %v224
                %v226 = vld [vmem:[%s150 + $0x248] sm:$0xff]
                %227 = vst [vmem:[%s151 + $0x128] sm:$0xff] %v226
                %v228 = vld [vmem:[%s150 + $0x250] sm:$0xff]
                %229 = vst [vmem:[%s151 + $0x130] sm:$0xff] %v228
                %v230 = vld [vmem:[%s150 + $0x258] sm:$0xff]
                %231 = vst [vmem:[%s151 + $0x138] sm:$0xff] %v230
                %v232 = vld [vmem:[%s150 + $0x280] sm:$0xff]
                %233 = vst [vmem:[%s151 + $0x140] sm:$0xff] %v232
                %v234 = vld [vmem:[%s150 + $0x288] sm:$0xff]
                %235 = vst [vmem:[%s151 + $0x148] sm:$0xff] %v234
                %v236 = vld [vmem:[%s150 + $0x290] sm:$0xff]
                %237 = vst [vmem:[%s151 + $0x150] sm:$0xff] %v236
                %v238 = vld [vmem:[%s150 + $0x298] sm:$0xff]
                %239 = vst [vmem:[%s151 + $0x158] sm:$0xff] %v238
                %v240 = vld [vmem:[%s150 + $0x2c0] sm:$0xff]
                %241 = vst [vmem:[%s151 + $0x160] sm:$0xff] %v240
                %v242 = vld [vmem:[%s150 + $0x2c8] sm:$0xff]
                %243 = vst [vmem:[%s151 + $0x168] sm:$0xff] %v242
                %v244 = vld [vmem:[%s150 + $0x2d0] sm:$0xff]
                %245 = vst [vmem:[%s151 + $0x170] sm:$0xff] %v244
                %v246 = vld [vmem:[%s150 + $0x2d8] sm:$0xff]
                %247 = vst [vmem:[%s151 + $0x178] sm:$0xff] %v246
                %v248 = vld [vmem:[%s150 + $0x300] sm:$0xff]
                %249 = vst [vmem:[%s151 + $0x180] sm:$0xff] %v248
                %v250 = vld [vmem:[%s150 + $0x308] sm:$0xff]
                %251 = vst [vmem:[%s151 + $0x188] sm:$0xff] %v250
                %v252 = vld [vmem:[%s150 + $0x310] sm:$0xff]
                %253 = vst [vmem:[%s151 + $0x190] sm:$0xff] %v252
                %v254 = vld [vmem:[%s150 + $0x318] sm:$0xff]
                %255 = vst [vmem:[%s151 + $0x198] sm:$0xff] %v254
                %v256 = vld [vmem:[%s150 + $0x340] sm:$0xff]
                %257 = vst [vmem:[%s151 + $0x1a0] sm:$0xff] %v256
                %v258 = vld [vmem:[%s150 + $0x348] sm:$0xff]
                %259 = vst [vmem:[%s151 + $0x1a8] sm:$0xff] %v258
                %v260 = vld [vmem:[%s150 + $0x350] sm:$0xff]
                %261 = vst [vmem:[%s151 + $0x1b0] sm:$0xff] %v260
                %v262 = vld [vmem:[%s150 + $0x358] sm:$0xff]
                %263 = vst [vmem:[%s151 + $0x1b8] sm:$0xff] %v262
                %v264 = vld [vmem:[%s150 + $0x380] sm:$0xff]
                %265 = vst [vmem:[%s151 + $0x1c0] sm:$0xff] %v264
                %v266 = vld [vmem:[%s150 + $0x388] sm:$0xff]
                %267 = vst [vmem:[%s151 + $0x1c8] sm:$0xff] %v266
                %v268 = vld [vmem:[%s150 + $0x390] sm:$0xff]
                %269 = vst [vmem:[%s151 + $0x1d0] sm:$0xff] %v268
                %v270 = vld [vmem:[%s150 + $0x398] sm:$0xff]
                %271 = vst [vmem:[%s151 + $0x1d8] sm:$0xff] %v270
                %v272 = vld [vmem:[%s150 + $0x3c0] sm:$0xff]
                %273 = vst [vmem:[%s151 + $0x1e0] sm:$0xff] %v272
                %v274 = vld [vmem:[%s150 + $0x3c8] sm:$0xff]
                %275 = vst [vmem:[%s151 + $0x1e8] sm:$0xff] %v274
                %v276 = vld [vmem:[%s150 + $0x3d0] sm:$0xff]
                %277 = vst [vmem:[%s151 + $0x1f0] sm:$0xff] %v276
                %v278 = vld [vmem:[%s150 + $0x3d8] sm:$0xff]
                %279 = vst [vmem:[%s151 + $0x1f8] sm:$0xff] %v278
              $region37: #{modu_network_forward.3} parent=31 // loop_footer
                %s149 = sadd.s32 1, %s145
              $region38: #{modu_network_forward.3} parent=31 // loop_footer_branch
                %144 = sbr.rel target = $region34
              $region39: #{modu_network_forward.3} parent=31 // loop_exit
                _
            $region32: #{modu_network_forward.3} parent=27 // pred_fallthru
              _
            // Predicated region
            $region40: #{modu_network_forward.3} parent=27 // pred_check
              _
            $region41: #{modu_network_forward.3} parent=27 // pred_check_branch
              %281 = sbr.rel target = $region43
            $region42: #{modu_network_forward.3} parent=27 // pred_region
              _
            $region43: #{modu_network_forward.3} parent=27 // pred_fallthru
              _
          $region28: #{modu_network_forward.3} parent=23 // pred_fallthru
            _
          %282 = vnop
        $region24: #{modu_network_forward.3} parent=19 // pred_fallthru
          _
        // Predicated region
        $region44: #{modu_network_forward.3} parent=19 // pred_check
          %p283 = pneg %p76
        $region45: #{modu_network_forward.3} parent=19 // pred_check_branch
          %285 = sbr.rel (%p283) target = $region47
        $region46: #{modu_network_forward.3} parent=19 // pred_region
          %s286 = smul.u32 8, %s9
          %p287 = scmp.lt.s32.totalorder %s286, 15
          %s288 = scalar_select %p287, %s286, 15
          %s289 = scalar_lea.vmem %s2, %s288
          %s290 = smul.u32 8, %s9
        $region47: #{modu_network_forward.3} parent=19 // pred_fallthru
          _
      $region20: #{modu_network_forward.3} parent=5 // pred_fallthru
        _
      %p291 = scmp.le.s32.totalorder 1, %s9
      %p292 = scmp.lt.s32.totalorder %s9, 3
      %p293 = pnand %p291, %p292
      %p294 = pneg %p293
      // Predicated region
      $region48: #{modu_network_forward.3} parent=5 // pred_check
        _
      $region49: #{modu_network_forward.3} parent=5 // pred_check_branch
        %296 = sbr.rel (%p293) target = $region51
      $region50: #{modu_network_forward.3} parent=5 // pred_region
        %s297 = ssub.s32 %s9, 1
        %s298 = sand.u32 %s43, 1
        %s299 = sand.u32 %s43, 1
        %s300 = smul.addr %s299, 512
        %s301 = scalar_lea.vmem [#allocation2], %s300
        // Predicated region
        $region52: #{modu_network_forward.3} parent=50 // pred_check
          %p302 = pneg %p56
        $region53: #{modu_network_forward.3} parent=50 // pred_check_branch
          %304 = sbr.rel (%p302) target = $region55
        $region54: #{modu_network_forward.3} parent=50 // pred_region
          _
        $region55: #{modu_network_forward.3} parent=50 // pred_fallthru
          _
        %p305 = pneg %p30
        %p306 = pneg %p27
        %s307 = sand.u32 %s43, 1
        %s308 = sand.u32 %s43, 1
        %s309 = smul.addr %s308, 512
        %s310 = scalar_lea.vmem [#allocation2], %s309
        %p311 = pneg %p56
        %p312 = pneg %p53
        %s313 = smul.u32 8, %s14
        %p314 = scmp.lt.s32.totalorder %s313, 15
        %s315 = scalar_select %p314, %s313, 15
        %s316 = scalar_lea.vmem %s2, %s315
        %p317 = pneg %p82
        %p318 = pneg %p79
        %p319 = pneg %p108
        %p320 = pneg %p105
        %s321 = smul.u32 8, %s14
        %p322 = scmp.lt.s32.totalorder %s321, 15
        %s323 = scalar_select %p322, %s321, 15
        %s324 = smul.addr %s323, 8
        %s325 = scalar_lea.vmem %s3, %s324
        %s326 = smul.u32 8, %s14
        %s327 = smul.u32 8, %s14
        %p328 = scmp.lt.s32.totalorder %s327, 15
        %s329 = scalar_select %p328, %s327, 15
        %s330 = scalar_lea.vmem %s2, %s329
        %s331 = smul.u32 8, %s14
        %s332 = smul.u32 8, %s14
        %p333 = scmp.lt.s32.totalorder %s332, 15
        %s334 = scalar_select %p333, %s332, 15
        %s335 = smul.addr %s334, 8
        %s336 = scalar_lea.vmem %s3, %s335
        %s337 = smul.u32 8, %s14
        %v339 = vld [vmem:[%s0] sm:$0xf]
        %v340 = vld [vmem:[%s301] sm:$0xff]
        %v341 = vld [vmem:[%s301 + $0x8] sm:$0xff]
        %v342 = vld [vmem:[%s301 + $0x10] sm:$0xff]
        %v343 = vld [vmem:[%s301 + $0x18] sm:$0xff]
        %v344 = vld [vmem:[%s301 + $0x20] sm:$0xff]
        %v345 = vld [vmem:[%s301 + $0x28] sm:$0xff]
        %v346 = vld [vmem:[%s301 + $0x30] sm:$0xff]
        %v347 = vld [vmem:[%s301 + $0x38] sm:$0xff]
        %v348 = vld [vmem:[%s301 + $0x40] sm:$0xff]
        %v349 = vld [vmem:[%s301 + $0x48] sm:$0xff]
        %v350 = vld [vmem:[%s301 + $0x50] sm:$0xff]
        %v351 = vld [vmem:[%s301 + $0x58] sm:$0xff]
        %v352 = vld [vmem:[%s301 + $0x60] sm:$0xff]
        %v353 = vld [vmem:[%s301 + $0x68] sm:$0xff]
        %v354 = vld [vmem:[%s301 + $0x70] sm:$0xff]
        %v355 = vld [vmem:[%s301 + $0x78] sm:$0xff]
        %v356 = vld [vmem:[%s301 + $0x80] sm:$0xff]
        %v357 = vld [vmem:[%s301 + $0x88] sm:$0xff]
        %v358 = vld [vmem:[%s301 + $0x90] sm:$0xff]
        %v359 = vld [vmem:[%s301 + $0x98] sm:$0xff]
        %v360 = vld [vmem:[%s301 + $0xa0] sm:$0xff]
        %v361 = vld [vmem:[%s301 + $0xa8] sm:$0xff]
        %v362 = vld [vmem:[%s301 + $0xb0] sm:$0xff]
        %v363 = vld [vmem:[%s301 + $0xb8] sm:$0xff]
        %v364 = vld [vmem:[%s301 + $0xc0] sm:$0xff]
        %v365 = vld [vmem:[%s301 + $0xc8] sm:$0xff]
        %v366 = vld [vmem:[%s301 + $0xd0] sm:$0xff]
        %v367 = vld [vmem:[%s301 + $0xd8] sm:$0xff]
        %v368 = vld [vmem:[%s301 + $0xe0] sm:$0xff]
        %v369 = vld [vmem:[%s301 + $0xe8] sm:$0xff]
        %v370 = vld [vmem:[%s301 + $0xf0] sm:$0xff]
        %v371 = vld [vmem:[%s301 + $0xf8] sm:$0xff]
        %v372 = vld [vmem:[%s301 + $0x100] sm:$0xff]
        %v373 = vld [vmem:[%s301 + $0x108] sm:$0xff]
        %v374 = vld [vmem:[%s301 + $0x110] sm:$0xff]
        %v375 = vld [vmem:[%s301 + $0x118] sm:$0xff]
        %v376 = vld [vmem:[%s301 + $0x120] sm:$0xff]
        %v377 = vld [vmem:[%s301 + $0x128] sm:$0xff]
        %v378 = vld [vmem:[%s301 + $0x130] sm:$0xff]
        %v379 = vld [vmem:[%s301 + $0x138] sm:$0xff]
        %v380 = vld [vmem:[%s301 + $0x140] sm:$0xff]
        %v381 = vld [vmem:[%s301 + $0x148] sm:$0xff]
        %v382 = vld [vmem:[%s301 + $0x150] sm:$0xff]
        %v383 = vld [vmem:[%s301 + $0x158] sm:$0xff]
        %v384 = vld [vmem:[%s301 + $0x160] sm:$0xff]
        %v385 = vld [vmem:[%s301 + $0x168] sm:$0xff]
        %v386 = vld [vmem:[%s301 + $0x170] sm:$0xff]
        %v387 = vld [vmem:[%s301 + $0x178] sm:$0xff]
        %v388 = vld [vmem:[%s301 + $0x180] sm:$0xff]
        %v389 = vld [vmem:[%s301 + $0x188] sm:$0xff]
        %v390 = vld [vmem:[%s301 + $0x190] sm:$0xff]
        %v391 = vld [vmem:[%s301 + $0x198] sm:$0xff]
        %v392 = vld [vmem:[%s301 + $0x1a0] sm:$0xff]
        %v393 = vld [vmem:[%s301 + $0x1a8] sm:$0xff]
        %v394 = vld [vmem:[%s301 + $0x1b0] sm:$0xff]
        %v395 = vld [vmem:[%s301 + $0x1b8] sm:$0xff]
        %v396 = vld [vmem:[%s301 + $0x1c0] sm:$0xff]
        %v397 = vld [vmem:[%s301 + $0x1c8] sm:$0xff]
        %v398 = vld [vmem:[%s301 + $0x1d0] sm:$0xff]
        %v399 = vld [vmem:[%s301 + $0x1d8] sm:$0xff]
        %v400 = vld [vmem:[%s301 + $0x1e0] sm:$0xff]
        %v401 = vld [vmem:[%s301 + $0x1e8] sm:$0xff]
        %v402 = vld [vmem:[%s301 + $0x1f0] sm:$0xff]
        %v403 = vld [vmem:[%s301 + $0x1f8] sm:$0xff]
        %v404 = vld [vmem:[%s330] sm:$0xff]
        %v406 = vlaneseq
        %v407 = vshrl.u32 %v406, 7
        %v408 = vsub.s32 0, %v407
        %v409 = vrot.slane %v404, %v408
        %v410 = vlaneseq
        %v411 = vshrl.u32 %v410, 7
        %v412 = vsub.s32 1, %v411
        %v413 = vrot.slane %v404, %v412
        %v414 = vlaneseq
        %v415 = vshrl.u32 %v414, 7
        %v416 = vsub.s32 2, %v415
        %v417 = vrot.slane %v404, %v416
        %v418 = vlaneseq
        %v419 = vshrl.u32 %v418, 7
        %v420 = vsub.s32 3, %v419
        %v421 = vrot.slane %v404, %v420
        %v422 = vlaneseq
        %v423 = vshrl.u32 %v422, 7
        %v424 = vsub.s32 4, %v423
        %v425 = vrot.slane %v404, %v424
        %v426 = vlaneseq
        %v427 = vshrl.u32 %v426, 7
        %v428 = vsub.s32 5, %v427
        %v429 = vrot.slane %v404, %v428
        %v430 = vlaneseq
        %v431 = vshrl.u32 %v430, 7
        %v432 = vsub.s32 6, %v431
        %v433 = vrot.slane %v404, %v432
        %v434 = vlaneseq
        %v435 = vshrl.u32 %v434, 7
        %v436 = vsub.s32 7, %v435
        %v437 = vrot.slane %v404, %v436
        %v510 = vunpack.c.l.b16 %v340
        %v511 = vunpack.c.h.b16 %v340
        %v512 = vunpack.c.l.b16 %v341
        %v513 = vunpack.c.h.b16 %v341
        %v514 = vunpack.c.l.b16 %v342
        %v515 = vunpack.c.h.b16 %v342
        %v516 = vunpack.c.l.b16 %v343
        %v517 = vunpack.c.h.b16 %v343
        %v518 = vunpack.c.l.b16 %v344
        %v519 = vunpack.c.h.b16 %v344
        %v520 = vunpack.c.l.b16 %v345
        %v521 = vunpack.c.h.b16 %v345
        %v522 = vunpack.c.l.b16 %v346
        %v523 = vunpack.c.h.b16 %v346
        %v524 = vunpack.c.l.b16 %v347
        %v525 = vunpack.c.h.b16 %v347
        %v526 = vunpack.c.l.b16 %v348
        %v527 = vunpack.c.h.b16 %v348
        %v528 = vunpack.c.l.b16 %v349
        %v529 = vunpack.c.h.b16 %v349
        %v530 = vunpack.c.l.b16 %v350
        %v531 = vunpack.c.h.b16 %v350
        %v532 = vunpack.c.l.b16 %v351
        %v533 = vunpack.c.h.b16 %v351
        %v534 = vunpack.c.l.b16 %v352
        %v535 = vunpack.c.h.b16 %v352
        %v536 = vunpack.c.l.b16 %v353
        %v537 = vunpack.c.h.b16 %v353
        %v538 = vunpack.c.l.b16 %v354
        %v539 = vunpack.c.h.b16 %v354
        %v540 = vunpack.c.l.b16 %v355
        %v541 = vunpack.c.h.b16 %v355
        %v542 = vunpack.c.l.b16 %v356
        %v543 = vunpack.c.h.b16 %v356
        %v544 = vunpack.c.l.b16 %v357
        %v545 = vunpack.c.h.b16 %v357
        %v546 = vunpack.c.l.b16 %v358
        %v547 = vunpack.c.h.b16 %v358
        %v548 = vunpack.c.l.b16 %v359
        %v549 = vunpack.c.h.b16 %v359
        %v550 = vunpack.c.l.b16 %v360
        %v551 = vunpack.c.h.b16 %v360
        %v552 = vunpack.c.l.b16 %v361
        %v553 = vunpack.c.h.b16 %v361
        %v554 = vunpack.c.l.b16 %v362
        %v555 = vunpack.c.h.b16 %v362
        %v556 = vunpack.c.l.b16 %v363
        %v557 = vunpack.c.h.b16 %v363
        %v558 = vunpack.c.l.b16 %v364
        %v559 = vunpack.c.h.b16 %v364
        %v560 = vunpack.c.l.b16 %v365
        %v561 = vunpack.c.h.b16 %v365
        %v562 = vunpack.c.l.b16 %v366
        %v563 = vunpack.c.h.b16 %v366
        %v564 = vunpack.c.l.b16 %v367
        %v565 = vunpack.c.h.b16 %v367
        %v566 = vunpack.c.l.b16 %v368
        %v567 = vunpack.c.h.b16 %v368
        %v568 = vunpack.c.l.b16 %v369
        %v569 = vunpack.c.h.b16 %v369
        %v570 = vunpack.c.l.b16 %v370
        %v571 = vunpack.c.h.b16 %v370
        %v572 = vunpack.c.l.b16 %v371
        %v573 = vunpack.c.h.b16 %v371
        %v574 = vunpack.c.l.b16 %v372
        %v575 = vunpack.c.h.b16 %v372
        %v576 = vunpack.c.l.b16 %v373
        %v577 = vunpack.c.h.b16 %v373
        %v578 = vunpack.c.l.b16 %v374
        %v579 = vunpack.c.h.b16 %v374
        %v580 = vunpack.c.l.b16 %v375
        %v581 = vunpack.c.h.b16 %v375
        %v582 = vunpack.c.l.b16 %v376
        %v583 = vunpack.c.h.b16 %v376
        %v584 = vunpack.c.l.b16 %v377
        %v585 = vunpack.c.h.b16 %v377
        %v586 = vunpack.c.l.b16 %v378
        %v587 = vunpack.c.h.b16 %v378
        %v588 = vunpack.c.l.b16 %v379
        %v589 = vunpack.c.h.b16 %v379
        %v590 = vunpack.c.l.b16 %v380
        %v591 = vunpack.c.h.b16 %v380
        %v592 = vunpack.c.l.b16 %v381
        %v593 = vunpack.c.h.b16 %v381
        %v594 = vunpack.c.l.b16 %v382
        %v595 = vunpack.c.h.b16 %v382
        %v596 = vunpack.c.l.b16 %v383
        %v597 = vunpack.c.h.b16 %v383
        %v598 = vunpack.c.l.b16 %v384
        %v599 = vunpack.c.h.b16 %v384
        %v600 = vunpack.c.l.b16 %v385
        %v601 = vunpack.c.h.b16 %v385
        %v602 = vunpack.c.l.b16 %v386
        %v603 = vunpack.c.h.b16 %v386
        %v604 = vunpack.c.l.b16 %v387
        %v605 = vunpack.c.h.b16 %v387
        %v606 = vunpack.c.l.b16 %v388
        %v607 = vunpack.c.h.b16 %v388
        %v608 = vunpack.c.l.b16 %v389
        %v609 = vunpack.c.h.b16 %v389
        %v610 = vunpack.c.l.b16 %v390
        %v611 = vunpack.c.h.b16 %v390
        %v612 = vunpack.c.l.b16 %v391
        %v613 = vunpack.c.h.b16 %v391
        %v614 = vunpack.c.l.b16 %v392
        %v615 = vunpack.c.h.b16 %v392
        %v616 = vunpack.c.l.b16 %v393
        %v617 = vunpack.c.h.b16 %v393
        %v618 = vunpack.c.l.b16 %v394
        %v619 = vunpack.c.h.b16 %v394
        %v620 = vunpack.c.l.b16 %v395
        %v621 = vunpack.c.h.b16 %v395
        %v622 = vunpack.c.l.b16 %v396
        %v623 = vunpack.c.h.b16 %v396
        %v624 = vunpack.c.l.b16 %v397
        %v625 = vunpack.c.h.b16 %v397
        %v626 = vunpack.c.l.b16 %v398
        %v627 = vunpack.c.h.b16 %v398
        %v628 = vunpack.c.l.b16 %v399
        %v629 = vunpack.c.h.b16 %v399
        %v630 = vunpack.c.l.b16 %v400
        %v631 = vunpack.c.h.b16 %v400
        %v632 = vunpack.c.l.b16 %v401
        %v633 = vunpack.c.h.b16 %v401
        %v634 = vunpack.c.l.b16 %v402
        %v635 = vunpack.c.h.b16 %v402
        %v636 = vunpack.c.l.b16 %v403
        %v637 = vunpack.c.h.b16 %v403
        %v638 = vpack.c.b16 %v518, %v510
        %v639 = vpack.c.b16 %v519, %v511
        %v640 = vpack.c.b16 %v520, %v512
        %v641 = vpack.c.b16 %v521, %v513
        %v642 = vpack.c.b16 %v522, %v514
        %v643 = vpack.c.b16 %v523, %v515
        %v644 = vpack.c.b16 %v524, %v516
        %v645 = vpack.c.b16 %v525, %v517
        %v646 = vpack.c.b16 %v534, %v526
        %v647 = vpack.c.b16 %v535, %v527
        %v648 = vpack.c.b16 %v536, %v528
        %v649 = vpack.c.b16 %v537, %v529
        %v650 = vpack.c.b16 %v538, %v530
        %v651 = vpack.c.b16 %v539, %v531
        %v652 = vpack.c.b16 %v540, %v532
        %v653 = vpack.c.b16 %v541, %v533
        %v654 = vpack.c.b16 %v550, %v542
        %v655 = vpack.c.b16 %v551, %v543
        %v656 = vpack.c.b16 %v552, %v544
        %v657 = vpack.c.b16 %v553, %v545
        %v658 = vpack.c.b16 %v554, %v546
        %v659 = vpack.c.b16 %v555, %v547
        %v660 = vpack.c.b16 %v556, %v548
        %v661 = vpack.c.b16 %v557, %v549
        %v662 = vpack.c.b16 %v566, %v558
        %v663 = vpack.c.b16 %v567, %v559
        %v664 = vpack.c.b16 %v568, %v560
        %v665 = vpack.c.b16 %v569, %v561
        %v666 = vpack.c.b16 %v570, %v562
        %v667 = vpack.c.b16 %v571, %v563
        %v668 = vpack.c.b16 %v572, %v564
        %v669 = vpack.c.b16 %v573, %v565
        %v670 = vpack.c.b16 %v582, %v574
        %v671 = vpack.c.b16 %v583, %v575
        %v672 = vpack.c.b16 %v584, %v576
        %v673 = vpack.c.b16 %v585, %v577
        %v674 = vpack.c.b16 %v586, %v578
        %v675 = vpack.c.b16 %v587, %v579
        %v676 = vpack.c.b16 %v588, %v580
        %v677 = vpack.c.b16 %v589, %v581
        %v678 = vpack.c.b16 %v598, %v590
        %v679 = vpack.c.b16 %v599, %v591
        %v680 = vpack.c.b16 %v600, %v592
        %v681 = vpack.c.b16 %v601, %v593
        %v682 = vpack.c.b16 %v602, %v594
        %v683 = vpack.c.b16 %v603, %v595
        %v684 = vpack.c.b16 %v604, %v596
        %v685 = vpack.c.b16 %v605, %v597
        %v686 = vpack.c.b16 %v614, %v606
        %v687 = vpack.c.b16 %v615, %v607
        %v688 = vpack.c.b16 %v616, %v608
        %v689 = vpack.c.b16 %v617, %v609
        %v690 = vpack.c.b16 %v618, %v610
        %v691 = vpack.c.b16 %v619, %v611
        %v692 = vpack.c.b16 %v620, %v612
        %v693 = vpack.c.b16 %v621, %v613
        %v694 = vpack.c.b16 %v630, %v622
        %v695 = vpack.c.b16 %v631, %v623
        %v696 = vpack.c.b16 %v632, %v624
        %v697 = vpack.c.b16 %v633, %v625
        %v698 = vpack.c.b16 %v634, %v626
        %v699 = vpack.c.b16 %v635, %v627
        %v700 = vpack.c.b16 %v636, %v628
        %v701 = vpack.c.b16 %v637, %v629
        %766 = vmatprep.subr.bf16.mxu0 %v695
        %767 = vmatpush1.bf16.msra.mxu0 %v694
        %768 = vmatprep.subr.bf16.mxu0 %v687
        %769 = vmatpush1.bf16.msra.mxu0 %v686
        %770 = vmatprep.subr.bf16.mxu0 %v679
        %771 = vmatpush1.bf16.msra.mxu0 %v678
        %772 = vmatprep.subr.bf16.mxu0 %v671
        %773 = vmatpush1.bf16.msra.mxu0 %v670
        %774 = vmatprep.subr.bf16.mxu0 %v663
        %775 = vmatpush1.bf16.msra.mxu0 %v662
        %776 = vmatprep.subr.bf16.mxu0 %v655
        %777 = vmatpush1.bf16.msra.mxu0 %v654
        %778 = vmatprep.subr.bf16.mxu0 %v647
        %779 = vmatpush1.bf16.msra.mxu0 %v646
        %780 = vmatprep.subr.bf16.mxu0 %v639
        %781 = vmatpush1.bf16.msra.mxu0 %v638
        %782 = vmatprep.subr.bf16.mxu0 0
        %783 = vmatpush2.bf16.msra.mxu0 0
        %784 = vmatprep.subr.bf16.mxu0 0
        %785 = vmatpush2.bf16.msra.mxu0 0
        %786 = vmatprep.subr.bf16.mxu0 0
        %787 = vmatpush2.bf16.msra.mxu0 0
        %788 = vmatprep.subr.bf16.mxu0 0
        %789 = vmatpush2.bf16.msra.mxu0 0
        %790 = vmatprep.subr.bf16.mxu0 0
        %791 = vmatpush2.bf16.msra.mxu0 0
        %792 = vmatprep.subr.bf16.mxu0 0
        %793 = vmatpush2.bf16.msra.mxu0 0
        %794 = vmatprep.subr.bf16.mxu0 0
        %795 = vmatpush2.bf16.msra.mxu0 0
        %796 = vmatprep.subr.bf16.mxu0 0
        %797 = vmatpush2.bf16.msra.mxu0 0
        %798 = vmatprep.mubr.bf16.mxu0 0
        %799 = vmatmul.mubr.bf16.gmra.mxu0 %v339
        %v800 = vpop.f32.mrf.mxu0
        %v801 = vadd.f32 %v409, %v800
        %v802 = vpop.f32.mrf.mxu0
        %v803 = vadd.f32 %v413, %v802
        %v804 = vpop.f32.mrf.mxu0
        %v805 = vpop.f32.mrf.mxu0
        %806 = vdwg.mxu0
        %807 = vmatprep.subr.bf16.mxu0 %v697
        %808 = vmatpush1.bf16.msra.mxu0 %v696
        %809 = vmatprep.subr.bf16.mxu0 %v689
        %810 = vmatpush1.bf16.msra.mxu0 %v688
        %811 = vmatprep.subr.bf16.mxu0 %v681
        %812 = vmatpush1.bf16.msra.mxu0 %v680
        %813 = vmatprep.subr.bf16.mxu0 %v673
        %814 = vmatpush1.bf16.msra.mxu0 %v672
        %815 = vmatprep.subr.bf16.mxu0 %v665
        %816 = vmatpush1.bf16.msra.mxu0 %v664
        %817 = vmatprep.subr.bf16.mxu0 %v657
        %818 = vmatpush1.bf16.msra.mxu0 %v656
        %819 = vmatprep.subr.bf16.mxu0 %v649
        %820 = vmatpush1.bf16.msra.mxu0 %v648
        %821 = vmatprep.subr.bf16.mxu0 %v641
        %822 = vmatpush1.bf16.msra.mxu0 %v640
        %823 = vmatprep.subr.bf16.mxu0 0
        %824 = vmatpush2.bf16.msra.mxu0 0
        %825 = vmatprep.subr.bf16.mxu0 0
        %826 = vmatpush2.bf16.msra.mxu0 0
        %827 = vmatprep.subr.bf16.mxu0 0
        %828 = vmatpush2.bf16.msra.mxu0 0
        %829 = vmatprep.subr.bf16.mxu0 0
        %830 = vmatpush2.bf16.msra.mxu0 0
        %831 = vmatprep.subr.bf16.mxu0 0
        %832 = vmatpush2.bf16.msra.mxu0 0
        %833 = vmatprep.subr.bf16.mxu0 0
        %834 = vmatpush2.bf16.msra.mxu0 0
        %835 = vmatprep.subr.bf16.mxu0 0
        %836 = vmatpush2.bf16.msra.mxu0 0
        %837 = vmatprep.subr.bf16.mxu0 0
        %838 = vmatpush2.bf16.msra.mxu0 0
        %839 = vmatprep.mubr.bf16.mxu0 0
        %840 = vmatmul.mubr.bf16.gmra.mxu0 %v339
        %v841 = vpop.f32.mrf.mxu0
        %v842 = vadd.f32 %v417, %v841
        %v843 = vpop.f32.mrf.mxu0
        %v844 = vadd.f32 %v421, %v843
        %v845 = vpop.f32.mrf.mxu0
        %v846 = vpop.f32.mrf.mxu0
        %847 = vdwg.mxu0
        %848 = vmatprep.subr.bf16.mxu0 %v699
        %849 = vmatpush1.bf16.msra.mxu0 %v698
        %850 = vmatprep.subr.bf16.mxu0 %v691
        %851 = vmatpush1.bf16.msra.mxu0 %v690
        %852 = vmatprep.subr.bf16.mxu0 %v683
        %853 = vmatpush1.bf16.msra.mxu0 %v682
        %854 = vmatprep.subr.bf16.mxu0 %v675
        %855 = vmatpush1.bf16.msra.mxu0 %v674
        %856 = vmatprep.subr.bf16.mxu0 %v667
        %857 = vmatpush1.bf16.msra.mxu0 %v666
        %858 = vmatprep.subr.bf16.mxu0 %v659
        %859 = vmatpush1.bf16.msra.mxu0 %v658
        %860 = vmatprep.subr.bf16.mxu0 %v651
        %861 = vmatpush1.bf16.msra.mxu0 %v650
        %862 = vmatprep.subr.bf16.mxu0 %v643
        %863 = vmatpush1.bf16.msra.mxu0 %v642
        %864 = vmatprep.subr.bf16.mxu0 0
        %865 = vmatpush2.bf16.msra.mxu0 0
        %866 = vmatprep.subr.bf16.mxu0 0
        %867 = vmatpush2.bf16.msra.mxu0 0
        %868 = vmatprep.subr.bf16.mxu0 0
        %869 = vmatpush2.bf16.msra.mxu0 0
        %870 = vmatprep.subr.bf16.mxu0 0
        %871 = vmatpush2.bf16.msra.mxu0 0
        %872 = vmatprep.subr.bf16.mxu0 0
        %873 = vmatpush2.bf16.msra.mxu0 0
        %874 = vmatprep.subr.bf16.mxu0 0
        %875 = vmatpush2.bf16.msra.mxu0 0
        %876 = vmatprep.subr.bf16.mxu0 0
        %877 = vmatpush2.bf16.msra.mxu0 0
        %878 = vmatprep.subr.bf16.mxu0 0
        %879 = vmatpush2.bf16.msra.mxu0 0
        %880 = vmatprep.mubr.bf16.mxu0 0
        %881 = vmatmul.mubr.bf16.gmra.mxu0 %v339
        %v882 = vpop.f32.mrf.mxu0
        %v883 = vadd.f32 %v425, %v882
        %v884 = vpop.f32.mrf.mxu0
        %v885 = vadd.f32 %v429, %v884
        %v886 = vpop.f32.mrf.mxu0
        %v887 = vpop.f32.mrf.mxu0
        %888 = vdwg.mxu0
        %889 = vmatprep.subr.bf16.mxu0 %v701
        %890 = vmatpush1.bf16.msra.mxu0 %v700
        %891 = vmatprep.subr.bf16.mxu0 %v693
        %892 = vmatpush1.bf16.msra.mxu0 %v692
        %893 = vmatprep.subr.bf16.mxu0 %v685
        %894 = vmatpush1.bf16.msra.mxu0 %v684
        %895 = vmatprep.subr.bf16.mxu0 %v677
        %896 = vmatpush1.bf16.msra.mxu0 %v676
        %897 = vmatprep.subr.bf16.mxu0 %v669
        %898 = vmatpush1.bf16.msra.mxu0 %v668
        %899 = vmatprep.subr.bf16.mxu0 %v661
        %900 = vmatpush1.bf16.msra.mxu0 %v660
        %901 = vmatprep.subr.bf16.mxu0 %v653
        %902 = vmatpush1.bf16.msra.mxu0 %v652
        %903 = vmatprep.subr.bf16.mxu0 %v645
        %904 = vmatpush1.bf16.msra.mxu0 %v644
        %905 = vmatprep.subr.bf16.mxu0 0
        %906 = vmatpush2.bf16.msra.mxu0 0
        %907 = vmatprep.subr.bf16.mxu0 0
        %908 = vmatpush2.bf16.msra.mxu0 0
        %909 = vmatprep.subr.bf16.mxu0 0
        %910 = vmatpush2.bf16.msra.mxu0 0
        %911 = vmatprep.subr.bf16.mxu0 0
        %912 = vmatpush2.bf16.msra.mxu0 0
        %913 = vmatprep.subr.bf16.mxu0 0
        %914 = vmatpush2.bf16.msra.mxu0 0
        %915 = vmatprep.subr.bf16.mxu0 0
        %916 = vmatpush2.bf16.msra.mxu0 0
        %917 = vmatprep.subr.bf16.mxu0 0
        %918 = vmatpush2.bf16.msra.mxu0 0
        %919 = vmatprep.subr.bf16.mxu0 0
        %920 = vmatpush2.bf16.msra.mxu0 0
        %921 = vmatprep.mubr.bf16.mxu0 0
        %922 = vmatmul.mubr.bf16.gmra.mxu0 %v339
        %v923 = vpop.f32.mrf.mxu0
        %v924 = vadd.f32 %v433, %v923
        %v925 = vpop.f32.mrf.mxu0
        %v926 = vadd.f32 %v437, %v925
        %v927 = vpop.f32.mrf.mxu0
        %v928 = vpop.f32.mrf.mxu0
        %929 = vdwg.mxu0
        %930 = vst [vmem:[%s336] sm:$0xff] %v801
        %931 = vst [vmem:[%s336 + $0x8] sm:$0xff] %v803
        %932 = vst [vmem:[%s336 + $0x10] sm:$0xff] %v842
        %933 = vst [vmem:[%s336 + $0x18] sm:$0xff] %v844
        %934 = vst [vmem:[%s336 + $0x20] sm:$0xff] %v883
        %935 = vst [vmem:[%s336 + $0x28] sm:$0xff] %v885
        %936 = vst [vmem:[%s336 + $0x30] sm:$0xff] %v924
        %937 = vst [vmem:[%s336 + $0x38] sm:$0xff] %v926
        %s938 = smul.u32 8, %s14
        %p939 = scmp.lt.s32.totalorder %s938, 15
        %s940 = scalar_select %p939, %s938, 15
        %s941 = smul.addr %s940, 8
        %s942 = scalar_lea.vmem %s3, %s941
        // Predicated region
        $region56: #{modu_network_forward.3} parent=50 // pred_check
          %p943 = pneg %p105
        $region57: #{modu_network_forward.3} parent=50 // pred_check_branch
          %945 = sbr.rel (%p943) target = $region59
        $region58: #{modu_network_forward.3} parent=50 // pred_region
          %s946 = smul.u32 8, %s14
        $region59: #{modu_network_forward.3} parent=50 // pred_fallthru
          _
      $region51: #{modu_network_forward.3} parent=5 // pred_fallthru
        _
      %p947 = scmp.le.s32.totalorder 2, %s9
      // Predicated region
      $region60: #{modu_network_forward.3} parent=5 // pred_check
        %p948 = pneg %p947
      $region61: #{modu_network_forward.3} parent=5 // pred_check_branch
        %950 = sbr.rel (%p948) target = $region63
      $region62: #{modu_network_forward.3} parent=5 // pred_region
        %s951 = ssub.s32 %s9, 2
        // Predicated region
        $region64: #{modu_network_forward.3} parent=62 // pred_check
          %p952 = pneg %p111
        $region65: #{modu_network_forward.3} parent=62 // pred_check_branch
          %954 = sbr.rel (%p952) target = $region67
        $region66: #{modu_network_forward.3} parent=62 // pred_region
          %s955 = smul.u32 8, %s15
          %p956 = scmp.lt.s32.totalorder %s955, 15
          %s957 = scalar_select %p956, %s955, 15
          %s958 = smul.addr %s957, 8
          %s959 = scalar_lea.vmem %s3, %s958
        $region67: #{modu_network_forward.3} parent=62 // pred_fallthru
          _
      $region63: #{modu_network_forward.3} parent=5 // pred_fallthru
        _
    $region6: #{modu_network_forward.3} parent=1 // loop_footer
      %s13 = sadd.s32 1, %s9
    $region7: #{modu_network_forward.3} parent=1 // loop_footer_branch
      %8 = sbr.rel target = $region3
    $region8: #{modu_network_forward.3} parent=1 // loop_exit
      _

// kernel: custom-call.8
$region0: #{custom-call.8}
  %s0 = inlined_call_operand.vmem [shape: f32[2,32,32], index: 0, kind: input, shape index: {}]
  %s1 = inlined_call_operand.vmem [shape: f32[2,32,32], index: 1, kind: input, shape index: {}]
  %s2 = inlined_call_operand.vmem [shape: f32[2,32,32], index: 2, kind: output, shape index: {0}]
  %s3 = inlined_call_operand.vmem [shape: f32[2,32,32], index: 3, kind: output, shape index: {1}]
  %4 = xla_tuple %s2, %s3
  $region1: #{custom-call.8} parent=0
    #allocation0 [shape = 'u8[32768]{0}', space=vmem, size = 0x8000, scoped, tag = 'operand span for operand 0']
    #allocation1 [shape = 'u8[32768]{0}', space=vmem, size = 0x8000, scoped, tag = 'operand span for operand 1']
    #allocation2 [shape = 'u8[32768]{0}', space=vmem, size = 0x8000, scoped, tag = 'operand span for operand 2']
    #allocation3 [shape = 'u8[32768]{0}', space=vmem, size = 0x8000, scoped, tag = 'operand span for operand 3']
    loop: start=0, step=1, limit=4
    $region2: #{custom-call.8} parent=1 // loop_pre_header
      _
    $region3: #{custom-call.8} parent=1 // loop_header
      %s6 = sphi 0, %s10
      %p7 = scmp.ge.s32.totalorder %s6, 4
    $region4: #{custom-call.8} parent=1 // loop_header_branch
      %9 = sbr.rel (%p7) target = $region8
    $region5: #{custom-call.8} parent=1 // loop_body
      %s11 = ssub.s32 %s6, 1
      %s12 = ssub.s32 %s6, 2
      %s13 = sadd.s32 %s6, 1
      %p14 = scmp.le.s32.totalorder 1, %s6
      %p15 = scmp.lt.s32.totalorder %s6, 3
      %p16 = pnand %p14, %p15
      %p17 = pneg %p16
      // Predicated region
      $region9: #{custom-call.8} parent=5 // pred_check
        _
      $region10: #{custom-call.8} parent=5 // pred_check_branch
        %19 = sbr.rel (%p16) target = $region12
      $region11: #{custom-call.8} parent=5 // pred_region
        %s20 = ssub.s32 %s6, 1
      $region12: #{custom-call.8} parent=5 // pred_fallthru
        _
      %p21 = scmp.lt.s32.totalorder %s6, 2
      // Predicated region
      $region13: #{custom-call.8} parent=5 // pred_check
        %p22 = pneg %p21
      $region14: #{custom-call.8} parent=5 // pred_check_branch
        %24 = sbr.rel (%p22) target = $region16
      $region15: #{custom-call.8} parent=5 // pred_region
        %s25 = sand.u32 %s6, 1
        %s26 = sand.u32 %s6, 1
        %s27 = smul.addr %s26, 32
        %s28 = scalar_lea.vmem [#allocation0], %s27
        %s29 = smul.addr %s6, 32
        %s30 = scalar_lea.vmem %s0, %s29
        // Predicated region
        $region17: #{custom-call.8} parent=15 // pred_check
          _
        $region18: #{custom-call.8} parent=15 // pred_check_branch
          %32 = sbr.rel (0) target = $region20
        $region19: #{custom-call.8} parent=15 // pred_region
          // Predicated region
          $region21: #{custom-call.8} parent=19 // pred_check
            _
          $region22: #{custom-call.8} parent=19 // pred_check_branch
            %34 = sbr.rel (0) target = $region24
          $region23: #{custom-call.8} parent=19 // pred_region
            loop: start=0, step=1, limit=1
            $region25: #{custom-call.8} parent=23 // loop_pre_header
              _
            $region26: #{custom-call.8} parent=23 // loop_header
              %s36 = sphi 0, %s40
              %p37 = scmp.ge.s32.totalorder %s36, 1
              %s41 = sphi %s30, %s30
              %s42 = sphi %s28, %s28
            $region27: #{custom-call.8} parent=23 // loop_header_branch
              %39 = sbr.rel (%p37) target = $region31
            $region28: #{custom-call.8} parent=23 // loop_body
              %v43 = vld [vmem:[%s41] sm:$0xff]
              %44 = vst [vmem:[%s42] sm:$0xff] %v43
              %v45 = vld [vmem:[%s41 + $0x8] sm:$0xff]
              %46 = vst [vmem:[%s42 + $0x8] sm:$0xff] %v45
              %v47 = vld [vmem:[%s41 + $0x10] sm:$0xff]
              %48 = vst [vmem:[%s42 + $0x10] sm:$0xff] %v47
              %v49 = vld [vmem:[%s41 + $0x18] sm:$0xff]
              %50 = vst [vmem:[%s42 + $0x18] sm:$0xff] %v49
            $region29: #{custom-call.8} parent=23 // loop_footer
              %s40 = sadd.s32 1, %s36
            $region30: #{custom-call.8} parent=23 // loop_footer_branch
              %35 = sbr.rel target = $region26
            $region31: #{custom-call.8} parent=23 // loop_exit
              _
          $region24: #{custom-call.8} parent=19 // pred_fallthru
            _
          // Predicated region
          $region32: #{custom-call.8} parent=19 // pred_check
            _
          $region33: #{custom-call.8} parent=19 // pred_check_branch
            %52 = sbr.rel target = $region35
          $region34: #{custom-call.8} parent=19 // pred_region
            _
          $region35: #{custom-call.8} parent=19 // pred_fallthru
            _
        $region20: #{custom-call.8} parent=15 // pred_fallthru
          _
        %53 = vnop
        %s54 = sand.u32 %s6, 1
        %s55 = sand.u32 %s6, 1
        %s56 = smul.addr %s55, 32
        %s57 = scalar_lea.vmem [#allocation1], %s56
        %s58 = smul.addr %s6, 32
        %s59 = scalar_lea.vmem %s1, %s58
        // Predicated region
        $region36: #{custom-call.8} parent=15 // pred_check
          _
        $region37: #{custom-call.8} parent=15 // pred_check_branch
          %61 = sbr.rel (0) target = $region39
        $region38: #{custom-call.8} parent=15 // pred_region
          // Predicated region
          $region40: #{custom-call.8} parent=38 // pred_check
            _
          $region41: #{custom-call.8} parent=38 // pred_check_branch
            %63 = sbr.rel (0) target = $region43
          $region42: #{custom-call.8} parent=38 // pred_region
            loop: start=0, step=1, limit=1
            $region44: #{custom-call.8} parent=42 // loop_pre_header
              _
            $region45: #{custom-call.8} parent=42 // loop_header
              %s65 = sphi 0, %s69
              %p66 = scmp.ge.s32.totalorder %s65, 1
              %s70 = sphi %s59, %s59
              %s71 = sphi %s57, %s57
            $region46: #{custom-call.8} parent=42 // loop_header_branch
              %68 = sbr.rel (%p66) target = $region50
            $region47: #{custom-call.8} parent=42 // loop_body
              %v72 = vld [vmem:[%s70] sm:$0xff]
              %73 = vst [vmem:[%s71] sm:$0xff] %v72
              %v74 = vld [vmem:[%s70 + $0x8] sm:$0xff]
              %75 = vst [vmem:[%s71 + $0x8] sm:$0xff] %v74
              %v76 = vld [vmem:[%s70 + $0x10] sm:$0xff]
              %77 = vst [vmem:[%s71 + $0x10] sm:$0xff] %v76
              %v78 = vld [vmem:[%s70 + $0x18] sm:$0xff]
              %79 = vst [vmem:[%s71 + $0x18] sm:$0xff] %v78
            $region48: #{custom-call.8} parent=42 // loop_footer
              %s69 = sadd.s32 1, %s65
            $region49: #{custom-call.8} parent=42 // loop_footer_branch
              %64 = sbr.rel target = $region45
            $region50: #{custom-call.8} parent=42 // loop_exit
              _
          $region43: #{custom-call.8} parent=38 // pred_fallthru
            _
          // Predicated region
          $region51: #{custom-call.8} parent=38 // pred_check
            _
          $region52: #{custom-call.8} parent=38 // pred_check_branch
            %81 = sbr.rel target = $region54
          $region53: #{custom-call.8} parent=38 // pred_region
            _
          $region54: #{custom-call.8} parent=38 // pred_fallthru
            _
        $region39: #{custom-call.8} parent=15 // pred_fallthru
          _
        %82 = vnop
      $region16: #{custom-call.8} parent=5 // pred_fallthru
        _
      %p83 = scmp.le.s32.totalorder 1, %s6
      %p84 = scmp.lt.s32.totalorder %s6, 3
      %p85 = pnand %p83, %p84
      %p86 = pneg %p85
      // Predicated region
      $region55: #{custom-call.8} parent=5 // pred_check
        _
      $region56: #{custom-call.8} parent=5 // pred_check_branch
        %88 = sbr.rel (%p85) target = $region58
      $region57: #{custom-call.8} parent=5 // pred_region
        %s89 = ssub.s32 %s6, 1
        %s90 = sand.u32 %s11, 1
        %s91 = sand.u32 %s11, 1
        %s92 = smul.addr %s91, 32
        %s93 = scalar_lea.vmem [#allocation0], %s92
        %s94 = sand.u32 %s11, 1
        %s95 = sand.u32 %s11, 1
        %s96 = smul.addr %s95, 32
        %s97 = scalar_lea.vmem [#allocation1], %s96
        %s98 = sand.u32 %s11, 1
        %s99 = sand.u32 %s11, 1
        %s100 = smul.addr %s99, 32
        %s101 = scalar_lea.vmem [#allocation0], %s100
        %s102 = sand.u32 %s11, 1
        %s103 = sand.u32 %s11, 1
        %s104 = smul.addr %s103, 32
        %s105 = scalar_lea.vmem [#allocation1], %s104
        %s106 = sand.u32 %s11, 1
        %s107 = sand.u32 %s11, 1
        %s108 = smul.addr %s107, 32
        %s109 = scalar_lea.vmem [#allocation2], %s108
        %s110 = sand.u32 %s11, 1
        %s111 = sand.u32 %s11, 1
        %s112 = smul.addr %s111, 32
        %s113 = scalar_lea.vmem [#allocation3], %s112
        %v114 = vlaneseq
        %v115 = vand.u32 %v114, 127
        %v116 = vlaneseq
        %v117 = vshrl.u32 %v116, 7
        %vm119 = vcmp.eq.s32.totalorder %v115, %v117
        %v120 = vld [vmem:[%s93] sm:$0xff]
        %v121 = vld [vmem:[%s97] sm:$0xff]
        %v122 = vlaneseq
        %v123 = vand.u32 %v122, 127
        %vm124 = vcmp.eq.s32.totalorder %v123, 0
        %v125 = vsel %vm124, %v120, 1.0
        %v126 = vsel %vm124, %v121, 0.0
        %v127 = vsel %vm119, %v125, 0.0
        %v128 = vsel %vm119, %v126, 0.0
        %v129 = vlaneseq
        %v130 = vand.u32 %v129, 127
        %v131 = vlaneseq
        %v132 = vshrl.u32 %v131, 7
        %v133 = vadd.s32 %v132, 8
        %vm134 = vcmp.eq.s32.totalorder %v130, %v133
        %v135 = vsel %vm134, 1.0, 0.0
        %v136 = vlaneseq
        %v137 = vand.u32 %v136, 127
        %v138 = vlaneseq
        %v139 = vshrl.u32 %v138, 7
        %v140 = vadd.s32 %v139, 16
        %vm141 = vcmp.eq.s32.totalorder %v137, %v140
        %v142 = vsel %vm141, 1.0, 0.0
        %v143 = vlaneseq
        %v144 = vand.u32 %v143, 127
        %v145 = vlaneseq
        %v146 = vshrl.u32 %v145, 7
        %v147 = vadd.s32 %v146, 24
        %vm148 = vcmp.eq.s32.totalorder %v144, %v147
        %v149 = vsel %vm148, 1.0, 0.0
        %s150 = scalar_lea.vmem %s93, 1 [#allocation0]
        %s151 = scalar_lea.vmem %s97, 1 [#allocation1]
        %v152 = vld [vmem:[%s150] ss:$0 sm:$0xff]
        %v153 = vld [vmem:[%s151] ss:$0 sm:$0xff]
        %vm154 = vcmask 261120
        %v155 = vsel %vm154, %v152, 0.0
        %v156 = vsel %vm154, %v153, 0.0
        %v157 = vlaneseq
        %v158 = vand.u32 %v157, 127
        %vm159 = vcmp.eq.s32.totalorder %v158, 1
        %160 = xla_tuple %v155, %v156
        %161 = xla_tuple %v127, %v128
        %v162 = vmul.f32 %v155, %v127
        %v163 = vmul.f32 %v156, %v128
        %v164 = vsub.f32 %v162, %v163
        %v165 = vmul.f32 %v155, %v128
        %v166 = vmul.f32 %v156, %v127
        %v167 = vadd.f32 %v165, %v166
        %168 = xla_tuple %v164, %v167
        %169 = vadd.xlane.f32.xlu0 %v164
        %v170 = vpop.xlane.xlu0 %169
        %171 = vadd.xlane.f32.xlu0 %v167
        %v172 = vpop.xlane.xlu0 %171
        %v173 = vsel %vm159, %v170, %v127
        %v174 = vsel %vm159, %v172, %v128
        %s175 = scalar_lea.vmem %s93, 2 [#allocation0]
        %s176 = scalar_lea.vmem %s97, 2 [#allocation1]
        %v177 = vld [vmem:[%s175] ss:$0 sm:$0xff]
        %v178 = vld [vmem:[%s176] ss:$0 sm:$0xff]
        %vm179 = vcmask 261120
        %v180 = vsel %vm179, %v177, 0.0
        %v181 = vsel %vm179, %v178, 0.0
        %v182 = vlaneseq
        %v183 = vand.u32 %v182, 127
        %vm184 = vcmp.eq.s32.totalorder %v183, 2
        %185 = xla_tuple %v180, %v181
        %186 = xla_tuple %v173, %v174
        %v187 = vmul.f32 %v180, %v173
        %v188 = vmul.f32 %v181, %v174
        %v189 = vsub.f32 %v187, %v188
        %v190 = vmul.f32 %v180, %v174
        %v191 = vmul.f32 %v181, %v173
        %v192 = vadd.f32 %v190, %v191
        %193 = xla_tuple %v189, %v192
        %194 = vadd.xlane.f32.xlu0 %v189
        %v195 = vpop.xlane.xlu0 %194
        %196 = vadd.xlane.f32.xlu0 %v192
        %v197 = vpop.xlane.xlu0 %196
        %v198 = vsel %vm184, %v195, %v173
        %v199 = vsel %vm184, %v197, %v174
        %s200 = scalar_lea.vmem %s93, 3 [#allocation0]
        %s201 = scalar_lea.vmem %s97, 3 [#allocation1]
        %v202 = vld [vmem:[%s200] ss:$0 sm:$0xff]
        %v203 = vld [vmem:[%s201] ss:$0 sm:$0xff]
        %vm204 = vcmask 261120
        %v205 = vsel %vm204, %v202, 0.0
        %v206 = vsel %vm204, %v203, 0.0
        %v207 = vlaneseq
        %v208 = vand.u32 %v207, 127
        %vm209 = vcmp.eq.s32.totalorder %v208, 3
        %210 = xla_tuple %v205, %v206
        %211 = xla_tuple %v198, %v199
        %v212 = vmul.f32 %v205, %v198
        %v213 = vmul.f32 %v206, %v199
        %v214 = vsub.f32 %v212, %v213
        %v215 = vmul.f32 %v205, %v199
        %v216 = vmul.f32 %v206, %v198
        %v217 = vadd.f32 %v215, %v216
        %218 = xla_tuple %v214, %v217
        %219 = vadd.xlane.f32.xlu0 %v214
        %v220 = vpop.xlane.xlu0 %219
        %221 = vadd.xlane.f32.xlu0 %v217
        %v222 = vpop.xlane.xlu0 %221
        %v223 = vsel %vm209, %v220, %v198
        %v224 = vsel %vm209, %v222, %v199
        %s225 = scalar_lea.vmem %s93, 4 [#allocation0]
        %s226 = scalar_lea.vmem %s97, 4 [#allocation1]
        %v227 = vld [vmem:[%s225] ss:$0 sm:$0xff]
        %v228 = vld [vmem:[%s226] ss:$0 sm:$0xff]
        %vm229 = vcmask 261120
        %v230 = vsel %vm229, %v227, 0.0
        %v231 = vsel %vm229, %v228, 0.0
        %v232 = vlaneseq
        %v233 = vand.u32 %v232, 127
        %vm234 = vcmp.eq.s32.totalorder %v233, 4
        %235 = xla_tuple %v230, %v231
        %236 = xla_tuple %v223, %v224
        %v237 = vmul.f32 %v230, %v223
        %v238 = vmul.f32 %v231, %v224
        %v239 = vsub.f32 %v237, %v238
        %v240 = vmul.f32 %v230, %v224
        %v241 = vmul.f32 %v231, %v223
        %v242 = vadd.f32 %v240, %v241
        %243 = xla_tuple %v239, %v242
        %244 = vadd.xlane.f32.xlu0 %v239
        %v245 = vpop.xlane.xlu0 %244
        %246 = vadd.xlane.f32.xlu0 %v242
        %v247 = vpop.xlane.xlu0 %246
        %v248 = vsel %vm234, %v245, %v223
        %v249 = vsel %vm234, %v247, %v224
        %s250 = scalar_lea.vmem %s93, 5 [#allocation0]
        %s251 = scalar_lea.vmem %s97, 5 [#allocation1]
        %v252 = vld [vmem:[%s250] ss:$0 sm:$0xff]
        %v253 = vld [vmem:[%s251] ss:$0 sm:$0xff]
        %vm254 = vcmask 261120
        %v255 = vsel %vm254, %v252, 0.0
        %v256 = vsel %vm254, %v253, 0.0
        %v257 = vlaneseq
        %v258 = vand.u32 %v257, 127
        %vm259 = vcmp.eq.s32.totalorder %v258, 5
        %260 = xla_tuple %v255, %v256
        %261 = xla_tuple %v248, %v249
        %v262 = vmul.f32 %v255, %v248
        %v263 = vmul.f32 %v256, %v249
        %v264 = vsub.f32 %v262, %v263
        %v265 = vmul.f32 %v255, %v249
        %v266 = vmul.f32 %v256, %v248
        %v267 = vadd.f32 %v265, %v266
        %268 = xla_tuple %v264, %v267
        %269 = vadd.xlane.f32.xlu0 %v264
        %v270 = vpop.xlane.xlu0 %269
        %271 = vadd.xlane.f32.xlu0 %v267
        %v272 = vpop.xlane.xlu0 %271
        %v273 = vsel %vm259, %v270, %v248
        %v274 = vsel %vm259, %v272, %v249
        %s275 = scalar_lea.vmem %s93, 6 [#allocation0]
        %s276 = scalar_lea.vmem %s97, 6 [#allocation1]
        %v277 = vld [vmem:[%s275] ss:$0 sm:$0xff]
        %v278 = vld [vmem:[%s276] ss:$0 sm:$0xff]
        %vm279 = vcmask 261120
        %v280 = vsel %vm279, %v277, 0.0
        %v281 = vsel %vm279, %v278, 0.0
        %v282 = vlaneseq
        %v283 = vand.u32 %v282, 127
        %vm284 = vcmp.eq.s32.totalorder %v283, 6
        %285 = xla_tuple %v280, %v281
        %286 = xla_tuple %v273, %v274
        %v287 = vmul.f32 %v280, %v273
        %v288 = vmul.f32 %v281, %v274
        %v289 = vsub.f32 %v287, %v288
        %v290 = vmul.f32 %v280, %v274
        %v291 = vmul.f32 %v281, %v273
        %v292 = vadd.f32 %v290, %v291
        %293 = xla_tuple %v289, %v292
        %294 = vadd.xlane.f32.xlu0 %v289
        %v295 = vpop.xlane.xlu0 %294
        %296 = vadd.xlane.f32.xlu0 %v292
        %v297 = vpop.xlane.xlu0 %296
        %v298 = vsel %vm284, %v295, %v273
        %v299 = vsel %vm284, %v297, %v274
        %s300 = scalar_lea.vmem %s93, 7 [#allocation0]
        %s301 = scalar_lea.vmem %s97, 7 [#allocation1]
        %v302 = vld [vmem:[%s300] ss:$0 sm:$0xff]
        %v303 = vld [vmem:[%s301] ss:$0 sm:$0xff]
        %vm304 = vcmask 261120
        %v305 = vsel %vm304, %v302, 0.0
        %v306 = vsel %vm304, %v303, 0.0
        %v307 = vlaneseq
        %v308 = vand.u32 %v307, 127
        %vm309 = vcmp.eq.s32.totalorder %v308, 7
        %310 = xla_tuple %v305, %v306
        %311 = xla_tuple %v298, %v299
        %v312 = vmul.f32 %v305, %v298
        %v313 = vmul.f32 %v306, %v299
        %v314 = vsub.f32 %v312, %v313
        %v315 = vmul.f32 %v305, %v299
        %v316 = vmul.f32 %v306, %v298
        %v317 = vadd.f32 %v315, %v316
        %318 = xla_tuple %v314, %v317
        %319 = vadd.xlane.f32.xlu0 %v314
        %v320 = vpop.xlane.xlu0 %319
        %321 = vadd.xlane.f32.xlu0 %v317
        %v322 = vpop.xlane.xlu0 %321
        %v323 = vsel %vm309, %v320, %v298
        %v324 = vsel %vm309, %v322, %v299
        %s325 = scalar_lea.vmem %s93, 8 [#allocation0]
        %s326 = scalar_lea.vmem %s97, 8 [#allocation1]
        %v327 = vld [vmem:[%s325] ss:$0 sm:$0xff]
        %v328 = vld [vmem:[%s326] ss:$0 sm:$0xff]
        %vm329 = vcmask 261120
        %v330 = vsel %vm329, %v327, 0.0
        %v331 = vsel %vm329, %v328, 0.0
        %v332 = vlaneseq
        %v333 = vand.u32 %v332, 127
        %vm334 = vcmp.eq.s32.totalorder %v333, 8
        %335 = xla_tuple %v330, %v331
        %336 = xla_tuple %v323, %v324
        %v337 = vmul.f32 %v330, %v323
        %v338 = vmul.f32 %v331, %v324
        %v339 = vsub.f32 %v337, %v338
        %v340 = vmul.f32 %v330, %v324
        %v341 = vmul.f32 %v331, %v323
        %v342 = vadd.f32 %v340, %v341
        %343 = xla_tuple %v339, %v342
        %344 = vadd.xlane.f32.xlu0 %v339
        %v345 = vpop.xlane.xlu0 %344
        %346 = vadd.xlane.f32.xlu0 %v342
        %v347 = vpop.xlane.xlu0 %346
        %v348 = vsel %vm334, %v345, %v323
        %v349 = vsel %vm334, %v347, %v324
        %350 = xla_tuple %v330, %v331
        %351 = xla_tuple %v135, 0.0
        %v352 = vmul.f32 %v330, %v135
        %v353 = vmul.f32 %v331, 0.0
        %v354 = vsub.f32 %v352, %v353
        %v355 = vmul.f32 %v330, 0.0
        %v356 = vmul.f32 %v331, %v135
        %v357 = vadd.f32 %v355, %v356
        %358 = xla_tuple %v354, %v357
        %359 = vadd.xlane.f32.xlu0 %v354
        %v360 = vpop.xlane.xlu0 %359
        %361 = vadd.xlane.f32.xlu0 %v357
        %v362 = vpop.xlane.xlu0 %361
        %v363 = vsel %vm334, %v360, %v135
        %v364 = vsel %vm334, %v362, 0.0
        %s365 = scalar_lea.vmem %s93, 9 [#allocation0]
        %s366 = scalar_lea.vmem %s97, 9 [#allocation1]
        %v367 = vld [vmem:[%s365] ss:$0 sm:$0xff]
        %v368 = vld [vmem:[%s366] ss:$0 sm:$0xff]
        %vm369 = vcmask 261120
        %v370 = vsel %vm369, %v367, 0.0
        %v371 = vsel %vm369, %v368, 0.0
        %v372 = vlaneseq
        %v373 = vand.u32 %v372, 127
        %vm374 = vcmp.eq.s32.totalorder %v373, 9
        %375 = xla_tuple %v370, %v371
        %376 = xla_tuple %v348, %v349
        %v377 = vmul.f32 %v370, %v348
        %v378 = vmul.f32 %v371, %v349
        %v379 = vsub.f32 %v377, %v378
        %v380 = vmul.f32 %v370, %v349
        %v381 = vmul.f32 %v371, %v348
        %v382 = vadd.f32 %v380, %v381
        %383 = xla_tuple %v379, %v382
        %384 = vadd.xlane.f32.xlu0 %v379
        %v385 = vpop.xlane.xlu0 %384
        %386 = vadd.xlane.f32.xlu0 %v382
        %v387 = vpop.xlane.xlu0 %386
        %v388 = vsel %vm374, %v385, %v348
        %v389 = vsel %vm374, %v387, %v349
        %390 = xla_tuple %v370, %v371
        %391 = xla_tuple %v363, %v364
        %v392 = vmul.f32 %v370, %v363
        %v393 = vmul.f32 %v371, %v364
        %v394 = vsub.f32 %v392, %v393
        %v395 = vmul.f32 %v370, %v364
        %v396 = vmul.f32 %v371, %v363
        %v397 = vadd.f32 %v395, %v396
        %398 = xla_tuple %v394, %v397
        %399 = vadd.xlane.f32.xlu0 %v394
        %v400 = vpop.xlane.xlu0 %399
        %401 = vadd.xlane.f32.xlu0 %v397
        %v402 = vpop.xlane.xlu0 %401
        %v403 = vsel %vm374, %v400, %v363
        %v404 = vsel %vm374, %v402, %v364
        %s405 = scalar_lea.vmem %s93, 10 [#allocation0]
        %s406 = scalar_lea.vmem %s97, 10 [#allocation1]
        %v407 = vld [vmem:[%s405] ss:$0 sm:$0xff]
        %v408 = vld [vmem:[%s406] ss:$0 sm:$0xff]
        %vm409 = vcmask 261120
        %v410 = vsel %vm409, %v407, 0.0
        %v411 = vsel %vm409, %v408, 0.0
        %v412 = vlaneseq
        %v413 = vand.u32 %v412, 127
        %vm414 = vcmp.eq.s32.totalorder %v413, 10
        %415 = xla_tuple %v410, %v411
        %416 = xla_tuple %v388, %v389
        %v417 = vmul.f32 %v410, %v388
        %v418 = vmul.f32 %v411, %v389
        %v419 = vsub.f32 %v417, %v418
        %v420 = vmul.f32 %v410, %v389
        %v421 = vmul.f32 %v411, %v388
        %v422 = vadd.f32 %v420, %v421
        %423 = xla_tuple %v419, %v422
        %424 = vadd.xlane.f32.xlu0 %v419
        %v425 = vpop.xlane.xlu0 %424
        %426 = vadd.xlane.f32.xlu0 %v422
        %v427 = vpop.xlane.xlu0 %426
        %v428 = vsel %vm414, %v425, %v388
        %v429 = vsel %vm414, %v427, %v389
        %430 = xla_tuple %v410, %v411
        %431 = xla_tuple %v403, %v404
        %v432 = vmul.f32 %v410, %v403
        %v433 = vmul.f32 %v411, %v404
        %v434 = vsub.f32 %v432, %v433
        %v435 = vmul.f32 %v410, %v404
        %v436 = vmul.f32 %v411, %v403
        %v437 = vadd.f32 %v435, %v436
        %438 = xla_tuple %v434, %v437
        %439 = vadd.xlane.f32.xlu0 %v434
        %v440 = vpop.xlane.xlu0 %439
        %441 = vadd.xlane.f32.xlu0 %v437
        %v442 = vpop.xlane.xlu0 %441
        %v443 = vsel %vm414, %v440, %v403
        %v444 = vsel %vm414, %v442, %v404
        %s445 = scalar_lea.vmem %s93, 11 [#allocation0]
        %s446 = scalar_lea.vmem %s97, 11 [#allocation1]
        %v447 = vld [vmem:[%s445] ss:$0 sm:$0xff]
        %v448 = vld [vmem:[%s446] ss:$0 sm:$0xff]
        %vm449 = vcmask 261120
        %v450 = vsel %vm449, %v447, 0.0
        %v451 = vsel %vm449, %v448, 0.0
        %v452 = vlaneseq
        %v453 = vand.u32 %v452, 127
        %vm454 = vcmp.eq.s32.totalorder %v453, 11
        %455 = xla_tuple %v450, %v451
        %456 = xla_tuple %v428, %v429
        %v457 = vmul.f32 %v450, %v428
        %v458 = vmul.f32 %v451, %v429
        %v459 = vsub.f32 %v457, %v458
        %v460 = vmul.f32 %v450, %v429
        %v461 = vmul.f32 %v451, %v428
        %v462 = vadd.f32 %v460, %v461
        %463 = xla_tuple %v459, %v462
        %464 = vadd.xlane.f32.xlu0 %v459
        %v465 = vpop.xlane.xlu0 %464
        %466 = vadd.xlane.f32.xlu0 %v462
        %v467 = vpop.xlane.xlu0 %466
        %v468 = vsel %vm454, %v465, %v428
        %v469 = vsel %vm454, %v467, %v429
        %470 = xla_tuple %v450, %v451
        %471 = xla_tuple %v443, %v444
        %v472 = vmul.f32 %v450, %v443
        %v473 = vmul.f32 %v451, %v444
        %v474 = vsub.f32 %v472, %v473
        %v475 = vmul.f32 %v450, %v444
        %v476 = vmul.f32 %v451, %v443
        %v477 = vadd.f32 %v475, %v476
        %478 = xla_tuple %v474, %v477
        %479 = vadd.xlane.f32.xlu0 %v474
        %v480 = vpop.xlane.xlu0 %479
        %481 = vadd.xlane.f32.xlu0 %v477
        %v482 = vpop.xlane.xlu0 %481
        %v483 = vsel %vm454, %v480, %v443
        %v484 = vsel %vm454, %v482, %v444
        %s485 = scalar_lea.vmem %s93, 12 [#allocation0]
        %s486 = scalar_lea.vmem %s97, 12 [#allocation1]
        %v487 = vld [vmem:[%s485] ss:$0 sm:$0xff]
        %v488 = vld [vmem:[%s486] ss:$0 sm:$0xff]
        %vm489 = vcmask 261120
        %v490 = vsel %vm489, %v487, 0.0
        %v491 = vsel %vm489, %v488, 0.0
        %v492 = vlaneseq
        %v493 = vand.u32 %v492, 127
        %vm494 = vcmp.eq.s32.totalorder %v493, 12
        %495 = xla_tuple %v490, %v491
        %496 = xla_tuple %v468, %v469
        %v497 = vmul.f32 %v490, %v468
        %v498 = vmul.f32 %v491, %v469
        %v499 = vsub.f32 %v497, %v498
        %v500 = vmul.f32 %v490, %v469
        %v501 = vmul.f32 %v491, %v468
        %v502 = vadd.f32 %v500, %v501
        %503 = xla_tuple %v499, %v502
        %504 = vadd.xlane.f32.xlu0 %v499
        %v505 = vpop.xlane.xlu0 %504
        %506 = vadd.xlane.f32.xlu0 %v502
        %v507 = vpop.xlane.xlu0 %506
        %v508 = vsel %vm494, %v505, %v468
        %v509 = vsel %vm494, %v507, %v469
        %510 = xla_tuple %v490, %v491
        %511 = xla_tuple %v483, %v484
        %v512 = vmul.f32 %v490, %v483
        %v513 = vmul.f32 %v491, %v484
        %v514 = vsub.f32 %v512, %v513
        %v515 = vmul.f32 %v490, %v484
        %v516 = vmul.f32 %v491, %v483
        %v517 = vadd.f32 %v515, %v516
        %518 = xla_tuple %v514, %v517
        %519 = vadd.xlane.f32.xlu0 %v514
        %v520 = vpop.xlane.xlu0 %519
        %521 = vadd.xlane.f32.xlu0 %v517
        %v522 = vpop.xlane.xlu0 %521
        %v523 = vsel %vm494, %v520, %v483
        %v524 = vsel %vm494, %v522, %v484
        %s525 = scalar_lea.vmem %s93, 13 [#allocation0]
        %s526 = scalar_lea.vmem %s97, 13 [#allocation1]
        %v527 = vld [vmem:[%s525] ss:$0 sm:$0xff]
        %v528 = vld [vmem:[%s526] ss:$0 sm:$0xff]
        %vm529 = vcmask 261120
        %v530 = vsel %vm529, %v527, 0.0
        %v531 = vsel %vm529, %v528, 0.0
        %v532 = vlaneseq
        %v533 = vand.u32 %v532, 127
        %vm534 = vcmp.eq.s32.totalorder %v533, 13
        %535 = xla_tuple %v530, %v531
        %536 = xla_tuple %v508, %v509
        %v537 = vmul.f32 %v530, %v508
        %v538 = vmul.f32 %v531, %v509
        %v539 = vsub.f32 %v537, %v538
        %v540 = vmul.f32 %v530, %v509
        %v541 = vmul.f32 %v531, %v508
        %v542 = vadd.f32 %v540, %v541
        %543 = xla_tuple %v539, %v542
        %544 = vadd.xlane.f32.xlu0 %v539
        %v545 = vpop.xlane.xlu0 %544
        %546 = vadd.xlane.f32.xlu0 %v542
        %v547 = vpop.xlane.xlu0 %546
        %v548 = vsel %vm534, %v545, %v508
        %v549 = vsel %vm534, %v547, %v509
        %550 = xla_tuple %v530, %v531
        %551 = xla_tuple %v523, %v524
        %v552 = vmul.f32 %v530, %v523
        %v553 = vmul.f32 %v531, %v524
        %v554 = vsub.f32 %v552, %v553
        %v555 = vmul.f32 %v530, %v524
        %v556 = vmul.f32 %v531, %v523
        %v557 = vadd.f32 %v555, %v556
        %558 = xla_tuple %v554, %v557
        %559 = vadd.xlane.f32.xlu0 %v554
        %v560 = vpop.xlane.xlu0 %559
        %561 = vadd.xlane.f32.xlu0 %v557
        %v562 = vpop.xlane.xlu0 %561
        %v563 = vsel %vm534, %v560, %v523
        %v564 = vsel %vm534, %v562, %v524
        %s565 = scalar_lea.vmem %s93, 14 [#allocation0]
        %s566 = scalar_lea.vmem %s97, 14 [#allocation1]
        %v567 = vld [vmem:[%s565] ss:$0 sm:$0xff]
        %v568 = vld [vmem:[%s566] ss:$0 sm:$0xff]
        %vm569 = vcmask 261120
        %v570 = vsel %vm569, %v567, 0.0
        %v571 = vsel %vm569, %v568, 0.0
        %v572 = vlaneseq
        %v573 = vand.u32 %v572, 127
        %vm574 = vcmp.eq.s32.totalorder %v573, 14
        %575 = xla_tuple %v570, %v571
        %576 = xla_tuple %v548, %v549
        %v577 = vmul.f32 %v570, %v548
        %v578 = vmul.f32 %v571, %v549
        %v579 = vsub.f32 %v577, %v578
        %v580 = vmul.f32 %v570, %v549
        %v581 = vmul.f32 %v571, %v548
        %v582 = vadd.f32 %v580, %v581
        %583 = xla_tuple %v579, %v582
        %584 = vadd.xlane.f32.xlu0 %v579
        %v585 = vpop.xlane.xlu0 %584
        %586 = vadd.xlane.f32.xlu0 %v582
        %v587 = vpop.xlane.xlu0 %586
        %v588 = vsel %vm574, %v585, %v548
        %v589 = vsel %vm574, %v587, %v549
        %590 = xla_tuple %v570, %v571
        %591 = xla_tuple %v563, %v564
        %v592 = vmul.f32 %v570, %v563
        %v593 = vmul.f32 %v571, %v564
        %v594 = vsub.f32 %v592, %v593
        %v595 = vmul.f32 %v570, %v564
        %v596 = vmul.f32 %v571, %v563
        %v597 = vadd.f32 %v595, %v596
        %598 = xla_tuple %v594, %v597
        %599 = vadd.xlane.f32.xlu0 %v594
        %v600 = vpop.xlane.xlu0 %599
        %601 = vadd.xlane.f32.xlu0 %v597
        %v602 = vpop.xlane.xlu0 %601
        %v603 = vsel %vm574, %v600, %v563
        %v604 = vsel %vm574, %v602, %v564
        %s605 = scalar_lea.vmem %s93, 15 [#allocation0]
        %s606 = scalar_lea.vmem %s97, 15 [#allocation1]
        %v607 = vld [vmem:[%s605] ss:$0 sm:$0xff]
        %v608 = vld [vmem:[%s606] ss:$0 sm:$0xff]
        %vm609 = vcmask 261120
        %v610 = vsel %vm609, %v607, 0.0
        %v611 = vsel %vm609, %v608, 0.0
        %v612 = vlaneseq
        %v613 = vand.u32 %v612, 127
        %vm614 = vcmp.eq.s32.totalorder %v613, 15
        %615 = xla_tuple %v610, %v611
        %616 = xla_tuple %v588, %v589
        %v617 = vmul.f32 %v610, %v588
        %v618 = vmul.f32 %v611, %v589
        %v619 = vsub.f32 %v617, %v618
        %v620 = vmul.f32 %v610, %v589
        %v621 = vmul.f32 %v611, %v588
        %v622 = vadd.f32 %v620, %v621
        %623 = xla_tuple %v619, %v622
        %624 = vadd.xlane.f32.xlu0 %v619
        %v625 = vpop.xlane.xlu0 %624
        %626 = vadd.xlane.f32.xlu0 %v622
        %v627 = vpop.xlane.xlu0 %626
        %v628 = vsel %vm614, %v625, %v588
        %v629 = vsel %vm614, %v627, %v589
        %630 = xla_tuple %v610, %v611
        %631 = xla_tuple %v603, %v604
        %v632 = vmul.f32 %v610, %v603
        %v633 = vmul.f32 %v611, %v604
        %v634 = vsub.f32 %v632, %v633
        %v635 = vmul.f32 %v610, %v604
        %v636 = vmul.f32 %v611, %v603
        %v637 = vadd.f32 %v635, %v636
        %638 = xla_tuple %v634, %v637
        %639 = vadd.xlane.f32.xlu0 %v634
        %v640 = vpop.xlane.xlu0 %639
        %641 = vadd.xlane.f32.xlu0 %v637
        %v642 = vpop.xlane.xlu0 %641
        %v643 = vsel %vm614, %v640, %v603
        %v644 = vsel %vm614, %v642, %v604
        %s645 = scalar_lea.vmem %s93, 16 [#allocation0]
        %s646 = scalar_lea.vmem %s97, 16 [#allocation1]
        %v647 = vld [vmem:[%s645] ss:$0 sm:$0xff]
        %v648 = vld [vmem:[%s646] ss:$0 sm:$0xff]
        %vm649 = vcmask 261120
        %v650 = vsel %vm649, %v647, 0.0
        %v651 = vsel %vm649, %v648, 0.0
        %v652 = vlaneseq
        %v653 = vand.u32 %v652, 127
        %vm654 = vcmp.eq.s32.totalorder %v653, 16
        %655 = xla_tuple %v650, %v651
        %656 = xla_tuple %v628, %v629
        %v657 = vmul.f32 %v650, %v628
        %v658 = vmul.f32 %v651, %v629
        %v659 = vsub.f32 %v657, %v658
        %v660 = vmul.f32 %v650, %v629
        %v661 = vmul.f32 %v651, %v628
        %v662 = vadd.f32 %v660, %v661
        %663 = xla_tuple %v659, %v662
        %664 = vadd.xlane.f32.xlu0 %v659
        %v665 = vpop.xlane.xlu0 %664
        %666 = vadd.xlane.f32.xlu0 %v662
        %v667 = vpop.xlane.xlu0 %666
        %v668 = vsel %vm654, %v665, %v628
        %v669 = vsel %vm654, %v667, %v629
        %670 = xla_tuple %v650, %v651
        %671 = xla_tuple %v643, %v644
        %v672 = vmul.f32 %v650, %v643
        %v673 = vmul.f32 %v651, %v644
        %v674 = vsub.f32 %v672, %v673
        %v675 = vmul.f32 %v650, %v644
        %v676 = vmul.f32 %v651, %v643
        %v677 = vadd.f32 %v675, %v676
        %678 = xla_tuple %v674, %v677
        %679 = vadd.xlane.f32.xlu0 %v674
        %v680 = vpop.xlane.xlu0 %679
        %681 = vadd.xlane.f32.xlu0 %v677
        %v682 = vpop.xlane.xlu0 %681
        %v683 = vsel %vm654, %v680, %v643
        %v684 = vsel %vm654, %v682, %v644
        %685 = xla_tuple %v650, %v651
        %686 = xla_tuple %v142, 0.0
        %v687 = vmul.f32 %v650, %v142
        %v688 = vmul.f32 %v651, 0.0
        %v689 = vsub.f32 %v687, %v688
        %v690 = vmul.f32 %v650, 0.0
        %v691 = vmul.f32 %v651, %v142
        %v692 = vadd.f32 %v690, %v691
        %693 = xla_tuple %v689, %v692
        %694 = vadd.xlane.f32.xlu0 %v689
        %v695 = vpop.xlane.xlu0 %694
        %696 = vadd.xlane.f32.xlu0 %v692
        %v697 = vpop.xlane.xlu0 %696
        %v698 = vsel %vm654, %v695, %v142
        %v699 = vsel %vm654, %v697, 0.0
        %s700 = scalar_lea.vmem %s93, 17 [#allocation0]
        %s701 = scalar_lea.vmem %s97, 17 [#allocation1]
        %v702 = vld [vmem:[%s700] ss:$0 sm:$0xff]
        %v703 = vld [vmem:[%s701] ss:$0 sm:$0xff]
        %vm704 = vcmask 261120
        %v705 = vsel %vm704, %v702, 0.0
        %v706 = vsel %vm704, %v703, 0.0
        %v707 = vlaneseq
        %v708 = vand.u32 %v707, 127
        %vm709 = vcmp.eq.s32.totalorder %v708, 17
        %710 = xla_tuple %v705, %v706
        %711 = xla_tuple %v668, %v669
        %v712 = vmul.f32 %v705, %v668
        %v713 = vmul.f32 %v706, %v669
        %v714 = vsub.f32 %v712, %v713
        %v715 = vmul.f32 %v705, %v669
        %v716 = vmul.f32 %v706, %v668
        %v717 = vadd.f32 %v715, %v716
        %718 = xla_tuple %v714, %v717
        %719 = vadd.xlane.f32.xlu0 %v714
        %v720 = vpop.xlane.xlu0 %719
        %721 = vadd.xlane.f32.xlu0 %v717
        %v722 = vpop.xlane.xlu0 %721
        %v723 = vsel %vm709, %v720, %v668
        %v724 = vsel %vm709, %v722, %v669
        %725 = xla_tuple %v705, %v706
        %726 = xla_tuple %v683, %v684
        %v727 = vmul.f32 %v705, %v683
        %v728 = vmul.f32 %v706, %v684
        %v729 = vsub.f32 %v727, %v728
        %v730 = vmul.f32 %v705, %v684
        %v731 = vmul.f32 %v706, %v683
        %v732 = vadd.f32 %v730, %v731
        %733 = xla_tuple %v729, %v732
        %734 = vadd.xlane.f32.xlu0 %v729
        %v735 = vpop.xlane.xlu0 %734
        %736 = vadd.xlane.f32.xlu0 %v732
        %v737 = vpop.xlane.xlu0 %736
        %v738 = vsel %vm709, %v735, %v683
        %v739 = vsel %vm709, %v737, %v684
        %740 = xla_tuple %v705, %v706
        %741 = xla_tuple %v698, %v699
        %v742 = vmul.f32 %v705, %v698
        %v743 = vmul.f32 %v706, %v699
        %v744 = vsub.f32 %v742, %v743
        %v745 = vmul.f32 %v705, %v699
        %v746 = vmul.f32 %v706, %v698
        %v747 = vadd.f32 %v745, %v746
        %748 = xla_tuple %v744, %v747
        %749 = vadd.xlane.f32.xlu0 %v744
        %v750 = vpop.xlane.xlu0 %749
        %751 = vadd.xlane.f32.xlu0 %v747
        %v752 = vpop.xlane.xlu0 %751
        %v753 = vsel %vm709, %v750, %v698
        %v754 = vsel %vm709, %v752, %v699
        %s755 = scalar_lea.vmem %s93, 18 [#allocation0]
        %s756 = scalar_lea.vmem %s97, 18 [#allocation1]
        %v757 = vld [vmem:[%s755] ss:$0 sm:$0xff]
        %v758 = vld [vmem:[%s756] ss:$0 sm:$0xff]
        %vm759 = vcmask 261120
        %v760 = vsel %vm759, %v757, 0.0
        %v761 = vsel %vm759, %v758, 0.0
        %v762 = vlaneseq
        %v763 = vand.u32 %v762, 127
        %vm764 = vcmp.eq.s32.totalorder %v763, 18
        %765 = xla_tuple %v760, %v761
        %766 = xla_tuple %v723, %v724
        %v767 = vmul.f32 %v760, %v723
        %v768 = vmul.f32 %v761, %v724
        %v769 = vsub.f32 %v767, %v768
        %v770 = vmul.f32 %v760, %v724
        %v771 = vmul.f32 %v761, %v723
        %v772 = vadd.f32 %v770, %v771
        %773 = xla_tuple %v769, %v772
        %774 = vadd.xlane.f32.xlu0 %v769
        %v775 = vpop.xlane.xlu0 %774
        %776 = vadd.xlane.f32.xlu0 %v772
        %v777 = vpop.xlane.xlu0 %776
        %v778 = vsel %vm764, %v775, %v723
        %v779 = vsel %vm764, %v777, %v724
        %780 = xla_tuple %v760, %v761
        %781 = xla_tuple %v738, %v739
        %v782 = vmul.f32 %v760, %v738
        %v783 = vmul.f32 %v761, %v739
        %v784 = vsub.f32 %v782, %v783
        %v785 = vmul.f32 %v760, %v739
        %v786 = vmul.f32 %v761, %v738
        %v787 = vadd.f32 %v785, %v786
        %788 = xla_tuple %v784, %v787
        %789 = vadd.xlane.f32.xlu0 %v784
        %v790 = vpop.xlane.xlu0 %789
        %791 = vadd.xlane.f32.xlu0 %v787
        %v792 = vpop.xlane.xlu0 %791
        %v793 = vsel %vm764, %v790, %v738
        %v794 = vsel %vm764, %v792, %v739
        %795 = xla_tuple %v760, %v761
        %796 = xla_tuple %v753, %v754
        %v797 = vmul.f32 %v760, %v753
        %v798 = vmul.f32 %v761, %v754
        %v799 = vsub.f32 %v797, %v798
        %v800 = vmul.f32 %v760, %v754
        %v801 = vmul.f32 %v761, %v753
        %v802 = vadd.f32 %v800, %v801
        %803 = xla_tuple %v799, %v802
        %804 = vadd.xlane.f32.xlu0 %v799
        %v805 = vpop.xlane.xlu0 %804
        %806 = vadd.xlane.f32.xlu0 %v802
        %v807 = vpop.xlane.xlu0 %806
        %v808 = vsel %vm764, %v805, %v753
        %v809 = vsel %vm764, %v807, %v754
        %s810 = scalar_lea.vmem %s93, 19 [#allocation0]
        %s811 = scalar_lea.vmem %s97, 19 [#allocation1]
        %v812 = vld [vmem:[%s810] ss:$0 sm:$0xff]
        %v813 = vld [vmem:[%s811] ss:$0 sm:$0xff]
        %vm814 = vcmask 261120
        %v815 = vsel %vm814, %v812, 0.0
        %v816 = vsel %vm814, %v813, 0.0
        %v817 = vlaneseq
        %v818 = vand.u32 %v817, 127
        %vm819 = vcmp.eq.s32.totalorder %v818, 19
        %820 = xla_tuple %v815, %v816
        %821 = xla_tuple %v778, %v779
        %v822 = vmul.f32 %v815, %v778
        %v823 = vmul.f32 %v816, %v779
        %v824 = vsub.f32 %v822, %v823
        %v825 = vmul.f32 %v815, %v779
        %v826 = vmul.f32 %v816, %v778
        %v827 = vadd.f32 %v825, %v826
        %828 = xla_tuple %v824, %v827
        %829 = vadd.xlane.f32.xlu0 %v824
        %v830 = vpop.xlane.xlu0 %829
        %831 = vadd.xlane.f32.xlu0 %v827
        %v832 = vpop.xlane.xlu0 %831
        %v833 = vsel %vm819, %v830, %v778
        %v834 = vsel %vm819, %v832, %v779
        %835 = xla_tuple %v815, %v816
        %836 = xla_tuple %v793, %v794
        %v837 = vmul.f32 %v815, %v793
        %v838 = vmul.f32 %v816, %v794
        %v839 = vsub.f32 %v837, %v838
        %v840 = vmul.f32 %v815, %v794
        %v841 = vmul.f32 %v816, %v793
        %v842 = vadd.f32 %v840, %v841
        %843 = xla_tuple %v839, %v842
        %844 = vadd.xlane.f32.xlu0 %v839
        %v845 = vpop.xlane.xlu0 %844
        %846 = vadd.xlane.f32.xlu0 %v842
        %v847 = vpop.xlane.xlu0 %846
        %v848 = vsel %vm819, %v845, %v793
        %v849 = vsel %vm819, %v847, %v794
        %850 = xla_tuple %v815, %v816
        %851 = xla_tuple %v808, %v809
        %v852 = vmul.f32 %v815, %v808
        %v853 = vmul.f32 %v816, %v809
        %v854 = vsub.f32 %v852, %v853
        %v855 = vmul.f32 %v815, %v809
        %v856 = vmul.f32 %v816, %v808
        %v857 = vadd.f32 %v855, %v856
        %858 = xla_tuple %v854, %v857
        %859 = vadd.xlane.f32.xlu0 %v854
        %v860 = vpop.xlane.xlu0 %859
        %861 = vadd.xlane.f32.xlu0 %v857
        %v862 = vpop.xlane.xlu0 %861
        %v863 = vsel %vm819, %v860, %v808
        %v864 = vsel %vm819, %v862, %v809
        %s865 = scalar_lea.vmem %s93, 20 [#allocation0]
        %s866 = scalar_lea.vmem %s97, 20 [#allocation1]
        %v867 = vld [vmem:[%s865] ss:$0 sm:$0xff]
        %v868 = vld [vmem:[%s866] ss:$0 sm:$0xff]
        %vm869 = vcmask 261120
        %v870 = vsel %vm869, %v867, 0.0
        %v871 = vsel %vm869, %v868, 0.0
        %v872 = vlaneseq
        %v873 = vand.u32 %v872, 127
        %vm874 = vcmp.eq.s32.totalorder %v873, 20
        %875 = xla_tuple %v870, %v871
        %876 = xla_tuple %v833, %v834
        %v877 = vmul.f32 %v870, %v833
        %v878 = vmul.f32 %v871, %v834
        %v879 = vsub.f32 %v877, %v878
        %v880 = vmul.f32 %v870, %v834
        %v881 = vmul.f32 %v871, %v833
        %v882 = vadd.f32 %v880, %v881
        %883 = xla_tuple %v879, %v882
        %884 = vadd.xlane.f32.xlu0 %v879
        %v885 = vpop.xlane.xlu0 %884
        %886 = vadd.xlane.f32.xlu0 %v882
        %v887 = vpop.xlane.xlu0 %886
        %v888 = vsel %vm874, %v885, %v833
        %v889 = vsel %vm874, %v887, %v834
        %890 = xla_tuple %v870, %v871
        %891 = xla_tuple %v848, %v849
        %v892 = vmul.f32 %v870, %v848
        %v893 = vmul.f32 %v871, %v849
        %v894 = vsub.f32 %v892, %v893
        %v895 = vmul.f32 %v870, %v849
        %v896 = vmul.f32 %v871, %v848
        %v897 = vadd.f32 %v895, %v896
        %898 = xla_tuple %v894, %v897
        %899 = vadd.xlane.f32.xlu0 %v894
        %v900 = vpop.xlane.xlu0 %899
        %901 = vadd.xlane.f32.xlu0 %v897
        %v902 = vpop.xlane.xlu0 %901
        %v903 = vsel %vm874, %v900, %v848
        %v904 = vsel %vm874, %v902, %v849
        %905 = xla_tuple %v870, %v871
        %906 = xla_tuple %v863, %v864
        %v907 = vmul.f32 %v870, %v863
        %v908 = vmul.f32 %v871, %v864
        %v909 = vsub.f32 %v907, %v908
        %v910 = vmul.f32 %v870, %v864
        %v911 = vmul.f32 %v871, %v863
        %v912 = vadd.f32 %v910, %v911
        %913 = xla_tuple %v909, %v912
        %914 = vadd.xlane.f32.xlu0 %v909
        %v915 = vpop.xlane.xlu0 %914
        %916 = vadd.xlane.f32.xlu0 %v912
        %v917 = vpop.xlane.xlu0 %916
        %v918 = vsel %vm874, %v915, %v863
        %v919 = vsel %vm874, %v917, %v864
        %s920 = scalar_lea.vmem %s93, 21 [#allocation0]
        %s921 = scalar_lea.vmem %s97, 21 [#allocation1]
        %v922 = vld [vmem:[%s920] ss:$0 sm:$0xff]
        %v923 = vld [vmem:[%s921] ss:$0 sm:$0xff]
        %vm924 = vcmask 261120
        %v925 = vsel %vm924, %v922, 0.0
        %v926 = vsel %vm924, %v923, 0.0
        %v927 = vlaneseq
        %v928 = vand.u32 %v927, 127
        %vm929 = vcmp.eq.s32.totalorder %v928, 21
        %930 = xla_tuple %v925, %v926
        %931 = xla_tuple %v888, %v889
        %v932 = vmul.f32 %v925, %v888
        %v933 = vmul.f32 %v926, %v889
        %v934 = vsub.f32 %v932, %v933
        %v935 = vmul.f32 %v925, %v889
        %v936 = vmul.f32 %v926, %v888
        %v937 = vadd.f32 %v935, %v936
        %938 = xla_tuple %v934, %v937
        %939 = vadd.xlane.f32.xlu0 %v934
        %v940 = vpop.xlane.xlu0 %939
        %941 = vadd.xlane.f32.xlu0 %v937
        %v942 = vpop.xlane.xlu0 %941
        %v943 = vsel %vm929, %v940, %v888
        %v944 = vsel %vm929, %v942, %v889
        %945 = xla_tuple %v925, %v926
        %946 = xla_tuple %v903, %v904
        %v947 = vmul.f32 %v925, %v903
        %v948 = vmul.f32 %v926, %v904
        %v949 = vsub.f32 %v947, %v948
        %v950 = vmul.f32 %v925, %v904
        %v951 = vmul.f32 %v926, %v903
        %v952 = vadd.f32 %v950, %v951
        %953 = xla_tuple %v949, %v952
        %954 = vadd.xlane.f32.xlu0 %v949
        %v955 = vpop.xlane.xlu0 %954
        %956 = vadd.xlane.f32.xlu0 %v952
        %v957 = vpop.xlane.xlu0 %956
        %v958 = vsel %vm929, %v955, %v903
        %v959 = vsel %vm929, %v957, %v904
        %960 = xla_tuple %v925, %v926
        %961 = xla_tuple %v918, %v919
        %v962 = vmul.f32 %v925, %v918
        %v963 = vmul.f32 %v926, %v919
        %v964 = vsub.f32 %v962, %v963
        %v965 = vmul.f32 %v925, %v919
        %v966 = vmul.f32 %v926, %v918
        %v967 = vadd.f32 %v965, %v966
        %968 = xla_tuple %v964, %v967
        %969 = vadd.xlane.f32.xlu0 %v964
        %v970 = vpop.xlane.xlu0 %969
        %971 = vadd.xlane.f32.xlu0 %v967
        %v972 = vpop.xlane.xlu0 %971
        %v973 = vsel %vm929, %v970, %v918
        %v974 = vsel %vm929, %v972, %v919
        %s975 = scalar_lea.vmem %s93, 22 [#allocation0]
        %s976 = scalar_lea.vmem %s97, 22 [#allocation1]
        %v977 = vld [vmem:[%s975] ss:$0 sm:$0xff]
        %v978 = vld [vmem:[%s976] ss:$0 sm:$0xff]
        %vm979 = vcmask 261120
        %v980 = vsel %vm979, %v977, 0.0
        %v981 = vsel %vm979, %v978, 0.0
        %v982 = vlaneseq
        %v983 = vand.u32 %v982, 127
        %vm984 = vcmp.eq.s32.totalorder %v983, 22
        %985 = xla_tuple %v980, %v981
        %986 = xla_tuple %v943, %v944
        %v987 = vmul.f32 %v980, %v943
        %v988 = vmul.f32 %v981, %v944
        %v989 = vsub.f32 %v987, %v988
        %v990 = vmul.f32 %v980, %v944
        %v991 = vmul.f32 %v981, %v943
        %v992 = vadd.f32 %v990, %v991
        %993 = xla_tuple %v989, %v992
        %994 = vadd.xlane.f32.xlu0 %v989
        %v995 = vpop.xlane.xlu0 %994
        %996 = vadd.xlane.f32.xlu0 %v992
        %v997 = vpop.xlane.xlu0 %996
        %v998 = vsel %vm984, %v995, %v943
        %v999 = vsel %vm984, %v997, %v944
        %1000 = xla_tuple %v980, %v981
        %1001 = xla_tuple %v958, %v959
        %v1002 = vmul.f32 %v980, %v958
        %v1003 = vmul.f32 %v981, %v959
        %v1004 = vsub.f32 %v1002, %v1003
        %v1005 = vmul.f32 %v980, %v959
        %v1006 = vmul.f32 %v981, %v958
        %v1007 = vadd.f32 %v1005, %v1006
        %1008 = xla_tuple %v1004, %v1007
        %1009 = vadd.xlane.f32.xlu0 %v1004
        %v1010 = vpop.xlane.xlu0 %1009
        %1011 = vadd.xlane.f32.xlu0 %v1007
        %v1012 = vpop.xlane.xlu0 %1011
        %v1013 = vsel %vm984, %v1010, %v958
        %v1014 = vsel %vm984, %v1012, %v959
        %1015 = xla_tuple %v980, %v981
        %1016 = xla_tuple %v973, %v974
        %v1017 = vmul.f32 %v980, %v973
        %v1018 = vmul.f32 %v981, %v974
        %v1019 = vsub.f32 %v1017, %v1018
        %v1020 = vmul.f32 %v980, %v974
        %v1021 = vmul.f32 %v981, %v973
        %v1022 = vadd.f32 %v1020, %v1021
        %1023 = xla_tuple %v1019, %v1022
        %1024 = vadd.xlane.f32.xlu0 %v1019
        %v1025 = vpop.xlane.xlu0 %1024
        %1026 = vadd.xlane.f32.xlu0 %v1022
        %v1027 = vpop.xlane.xlu0 %1026
        %v1028 = vsel %vm984, %v1025, %v973
        %v1029 = vsel %vm984, %v1027, %v974
        %s1030 = scalar_lea.vmem %s93, 23 [#allocation0]
        %s1031 = scalar_lea.vmem %s97, 23 [#allocation1]
        %v1032 = vld [vmem:[%s1030] ss:$0 sm:$0xff]
        %v1033 = vld [vmem:[%s1031] ss:$0 sm:$0xff]
        %vm1034 = vcmask 261120
        %v1035 = vsel %vm1034, %v1032, 0.0
        %v1036 = vsel %vm1034, %v1033, 0.0
        %v1037 = vlaneseq
        %v1038 = vand.u32 %v1037, 127
        %vm1039 = vcmp.eq.s32.totalorder %v1038, 23
        %1040 = xla_tuple %v1035, %v1036
        %1041 = xla_tuple %v998, %v999
        %v1042 = vmul.f32 %v1035, %v998
        %v1043 = vmul.f32 %v1036, %v999
        %v1044 = vsub.f32 %v1042, %v1043
        %v1045 = vmul.f32 %v1035, %v999
        %v1046 = vmul.f32 %v1036, %v998
        %v1047 = vadd.f32 %v1045, %v1046
        %1048 = xla_tuple %v1044, %v1047
        %1049 = vadd.xlane.f32.xlu0 %v1044
        %v1050 = vpop.xlane.xlu0 %1049
        %1051 = vadd.xlane.f32.xlu0 %v1047
        %v1052 = vpop.xlane.xlu0 %1051
        %v1053 = vsel %vm1039, %v1050, %v998
        %v1054 = vsel %vm1039, %v1052, %v999
        %1055 = xla_tuple %v1035, %v1036
        %1056 = xla_tuple %v1013, %v1014
        %v1057 = vmul.f32 %v1035, %v1013
        %v1058 = vmul.f32 %v1036, %v1014
        %v1059 = vsub.f32 %v1057, %v1058
        %v1060 = vmul.f32 %v1035, %v1014
        %v1061 = vmul.f32 %v1036, %v1013
        %v1062 = vadd.f32 %v1060, %v1061
        %1063 = xla_tuple %v1059, %v1062
        %1064 = vadd.xlane.f32.xlu0 %v1059
        %v1065 = vpop.xlane.xlu0 %1064
        %1066 = vadd.xlane.f32.xlu0 %v1062
        %v1067 = vpop.xlane.xlu0 %1066
        %v1068 = vsel %vm1039, %v1065, %v1013
        %v1069 = vsel %vm1039, %v1067, %v1014
        %1070 = xla_tuple %v1035, %v1036
        %1071 = xla_tuple %v1028, %v1029
        %v1072 = vmul.f32 %v1035, %v1028
        %v1073 = vmul.f32 %v1036, %v1029
        %v1074 = vsub.f32 %v1072, %v1073
        %v1075 = vmul.f32 %v1035, %v1029
        %v1076 = vmul.f32 %v1036, %v1028
        %v1077 = vadd.f32 %v1075, %v1076
        %1078 = xla_tuple %v1074, %v1077
        %1079 = vadd.xlane.f32.xlu0 %v1074
        %v1080 = vpop.xlane.xlu0 %1079
        %1081 = vadd.xlane.f32.xlu0 %v1077
        %v1082 = vpop.xlane.xlu0 %1081
        %v1083 = vsel %vm1039, %v1080, %v1028
        %v1084 = vsel %vm1039, %v1082, %v1029
        %s1085 = scalar_lea.vmem %s93, 24 [#allocation0]
        %s1086 = scalar_lea.vmem %s97, 24 [#allocation1]
        %v1087 = vld [vmem:[%s1085] ss:$0 sm:$0xff]
        %v1088 = vld [vmem:[%s1086] ss:$0 sm:$0xff]
        %vm1089 = vcmask 261120
        %v1090 = vsel %vm1089, %v1087, 0.0
        %v1091 = vsel %vm1089, %v1088, 0.0
        %v1092 = vlaneseq
        %v1093 = vand.u32 %v1092, 127
        %vm1094 = vcmp.eq.s32.totalorder %v1093, 24
        %1095 = xla_tuple %v1090, %v1091
        %1096 = xla_tuple %v1053, %v1054
        %v1097 = vmul.f32 %v1090, %v1053
        %v1098 = vmul.f32 %v1091, %v1054
        %v1099 = vsub.f32 %v1097, %v1098
        %v1100 = vmul.f32 %v1090, %v1054
        %v1101 = vmul.f32 %v1091, %v1053
        %v1102 = vadd.f32 %v1100, %v1101
        %1103 = xla_tuple %v1099, %v1102
        %1104 = vadd.xlane.f32.xlu0 %v1099
        %v1105 = vpop.xlane.xlu0 %1104
        %1106 = vadd.xlane.f32.xlu0 %v1102
        %v1107 = vpop.xlane.xlu0 %1106
        %v1108 = vsel %vm1094, %v1105, %v1053
        %v1109 = vsel %vm1094, %v1107, %v1054
        %1110 = xla_tuple %v1090, %v1091
        %1111 = xla_tuple %v1068, %v1069
        %v1112 = vmul.f32 %v1090, %v1068
        %v1113 = vmul.f32 %v1091, %v1069
        %v1114 = vsub.f32 %v1112, %v1113
        %v1115 = vmul.f32 %v1090, %v1069
        %v1116 = vmul.f32 %v1091, %v1068
        %v1117 = vadd.f32 %v1115, %v1116
        %1118 = xla_tuple %v1114, %v1117
        %1119 = vadd.xlane.f32.xlu0 %v1114
        %v1120 = vpop.xlane.xlu0 %1119
        %1121 = vadd.xlane.f32.xlu0 %v1117
        %v1122 = vpop.xlane.xlu0 %1121
        %v1123 = vsel %vm1094, %v1120, %v1068
        %v1124 = vsel %vm1094, %v1122, %v1069
        %1125 = xla_tuple %v1090, %v1091
        %1126 = xla_tuple %v1083, %v1084
        %v1127 = vmul.f32 %v1090, %v1083
        %v1128 = vmul.f32 %v1091, %v1084
        %v1129 = vsub.f32 %v1127, %v1128
        %v1130 = vmul.f32 %v1090, %v1084
        %v1131 = vmul.f32 %v1091, %v1083
        %v1132 = vadd.f32 %v1130, %v1131
        %1133 = xla_tuple %v1129, %v1132
        %1134 = vadd.xlane.f32.xlu0 %v1129
        %v1135 = vpop.xlane.xlu0 %1134
        %1136 = vadd.xlane.f32.xlu0 %v1132
        %v1137 = vpop.xlane.xlu0 %1136
        %v1138 = vsel %vm1094, %v1135, %v1083
        %v1139 = vsel %vm1094, %v1137, %v1084
        %1140 = xla_tuple %v1090, %v1091
        %1141 = xla_tuple %v149, 0.0
        %v1142 = vmul.f32 %v1090, %v149
        %v1143 = vmul.f32 %v1091, 0.0
        %v1144 = vsub.f32 %v1142, %v1143
        %v1145 = vmul.f32 %v1090, 0.0
        %v1146 = vmul.f32 %v1091, %v149
        %v1147 = vadd.f32 %v1145, %v1146
        %1148 = xla_tuple %v1144, %v1147
        %1149 = vadd.xlane.f32.xlu0 %v1144
        %v1150 = vpop.xlane.xlu0 %1149
        %1151 = vadd.xlane.f32.xlu0 %v1147
        %v1152 = vpop.xlane.xlu0 %1151
        %v1153 = vsel %vm1094, %v1150, %v149
        %v1154 = vsel %vm1094, %v1152, 0.0
        %s1155 = scalar_lea.vmem %s93, 25 [#allocation0]
        %s1156 = scalar_lea.vmem %s97, 25 [#allocation1]
        %v1157 = vld [vmem:[%s1155] ss:$0 sm:$0xff]
        %v1158 = vld [vmem:[%s1156] ss:$0 sm:$0xff]
        %vm1159 = vcmask 261120
        %v1160 = vsel %vm1159, %v1157, 0.0
        %v1161 = vsel %vm1159, %v1158, 0.0
        %v1162 = vlaneseq
        %v1163 = vand.u32 %v1162, 127
        %vm1164 = vcmp.eq.s32.totalorder %v1163, 25
        %1165 = xla_tuple %v1160, %v1161
        %1166 = xla_tuple %v1108, %v1109
        %v1167 = vmul.f32 %v1160, %v1108
        %v1168 = vmul.f32 %v1161, %v1109
        %v1169 = vsub.f32 %v1167, %v1168
        %v1170 = vmul.f32 %v1160, %v1109
        %v1171 = vmul.f32 %v1161, %v1108
        %v1172 = vadd.f32 %v1170, %v1171
        %1173 = xla_tuple %v1169, %v1172
        %1174 = vadd.xlane.f32.xlu0 %v1169
        %v1175 = vpop.xlane.xlu0 %1174
        %1176 = vadd.xlane.f32.xlu0 %v1172
        %v1177 = vpop.xlane.xlu0 %1176
        %v1178 = vsel %vm1164, %v1175, %v1108
        %v1179 = vsel %vm1164, %v1177, %v1109
        %1180 = xla_tuple %v1160, %v1161
        %1181 = xla_tuple %v1123, %v1124
        %v1182 = vmul.f32 %v1160, %v1123
        %v1183 = vmul.f32 %v1161, %v1124
        %v1184 = vsub.f32 %v1182, %v1183
        %v1185 = vmul.f32 %v1160, %v1124
        %v1186 = vmul.f32 %v1161, %v1123
        %v1187 = vadd.f32 %v1185, %v1186
        %1188 = xla_tuple %v1184, %v1187
        %1189 = vadd.xlane.f32.xlu0 %v1184
        %v1190 = vpop.xlane.xlu0 %1189
        %1191 = vadd.xlane.f32.xlu0 %v1187
        %v1192 = vpop.xlane.xlu0 %1191
        %v1193 = vsel %vm1164, %v1190, %v1123
        %v1194 = vsel %vm1164, %v1192, %v1124
        %1195 = xla_tuple %v1160, %v1161
        %1196 = xla_tuple %v1138, %v1139
        %v1197 = vmul.f32 %v1160, %v1138
        %v1198 = vmul.f32 %v1161, %v1139
        %v1199 = vsub.f32 %v1197, %v1198
        %v1200 = vmul.f32 %v1160, %v1139
        %v1201 = vmul.f32 %v1161, %v1138
        %v1202 = vadd.f32 %v1200, %v1201
        %1203 = xla_tuple %v1199, %v1202
        %1204 = vadd.xlane.f32.xlu0 %v1199
        %v1205 = vpop.xlane.xlu0 %1204
        %1206 = vadd.xlane.f32.xlu0 %v1202
        %v1207 = vpop.xlane.xlu0 %1206
        %v1208 = vsel %vm1164, %v1205, %v1138
        %v1209 = vsel %vm1164, %v1207, %v1139
        %1210 = xla_tuple %v1160, %v1161
        %1211 = xla_tuple %v1153, %v1154
        %v1212 = vmul.f32 %v1160, %v1153
        %v1213 = vmul.f32 %v1161, %v1154
        %v1214 = vsub.f32 %v1212, %v1213
        %v1215 = vmul.f32 %v1160, %v1154
        %v1216 = vmul.f32 %v1161, %v1153
        %v1217 = vadd.f32 %v1215, %v1216
        %1218 = xla_tuple %v1214, %v1217
        %1219 = vadd.xlane.f32.xlu0 %v1214
        %v1220 = vpop.xlane.xlu0 %1219
        %1221 = vadd.xlane.f32.xlu0 %v1217
        %v1222 = vpop.xlane.xlu0 %1221
        %v1223 = vsel %vm1164, %v1220, %v1153
        %v1224 = vsel %vm1164, %v1222, %v1154
        %s1225 = scalar_lea.vmem %s93, 26 [#allocation0]
        %s1226 = scalar_lea.vmem %s97, 26 [#allocation1]
        %v1227 = vld [vmem:[%s1225] ss:$0 sm:$0xff]
        %v1228 = vld [vmem:[%s1226] ss:$0 sm:$0xff]
        %vm1229 = vcmask 261120
        %v1230 = vsel %vm1229, %v1227, 0.0
        %v1231 = vsel %vm1229, %v1228, 0.0
        %v1232 = vlaneseq
        %v1233 = vand.u32 %v1232, 127
        %vm1234 = vcmp.eq.s32.totalorder %v1233, 26
        %1235 = xla_tuple %v1230, %v1231
        %1236 = xla_tuple %v1178, %v1179
        %v1237 = vmul.f32 %v1230, %v1178
        %v1238 = vmul.f32 %v1231, %v1179
        %v1239 = vsub.f32 %v1237, %v1238
        %v1240 = vmul.f32 %v1230, %v1179
        %v1241 = vmul.f32 %v1231, %v1178
        %v1242 = vadd.f32 %v1240, %v1241
        %1243 = xla_tuple %v1239, %v1242
        %1244 = vadd.xlane.f32.xlu0 %v1239
        %v1245 = vpop.xlane.xlu0 %1244
        %1246 = vadd.xlane.f32.xlu0 %v1242
        %v1247 = vpop.xlane.xlu0 %1246
        %v1248 = vsel %vm1234, %v1245, %v1178
        %v1249 = vsel %vm1234, %v1247, %v1179
        %1250 = xla_tuple %v1230, %v1231
        %1251 = xla_tuple %v1193, %v1194
        %v1252 = vmul.f32 %v1230, %v1193
        %v1253 = vmul.f32 %v1231, %v1194
        %v1254 = vsub.f32 %v1252, %v1253
        %v1255 = vmul.f32 %v1230, %v1194
        %v1256 = vmul.f32 %v1231, %v1193
        %v1257 = vadd.f32 %v1255, %v1256
        %1258 = xla_tuple %v1254, %v1257
        %1259 = vadd.xlane.f32.xlu0 %v1254
        %v1260 = vpop.xlane.xlu0 %1259
        %1261 = vadd.xlane.f32.xlu0 %v1257
        %v1262 = vpop.xlane.xlu0 %1261
        %v1263 = vsel %vm1234, %v1260, %v1193
        %v1264 = vsel %vm1234, %v1262, %v1194
        %1265 = xla_tuple %v1230, %v1231
        %1266 = xla_tuple %v1208, %v1209
        %v1267 = vmul.f32 %v1230, %v1208
        %v1268 = vmul.f32 %v1231, %v1209
        %v1269 = vsub.f32 %v1267, %v1268
        %v1270 = vmul.f32 %v1230, %v1209
        %v1271 = vmul.f32 %v1231, %v1208
        %v1272 = vadd.f32 %v1270, %v1271
        %1273 = xla_tuple %v1269, %v1272
        %1274 = vadd.xlane.f32.xlu0 %v1269
        %v1275 = vpop.xlane.xlu0 %1274
        %1276 = vadd.xlane.f32.xlu0 %v1272
        %v1277 = vpop.xlane.xlu0 %1276
        %v1278 = vsel %vm1234, %v1275, %v1208
        %v1279 = vsel %vm1234, %v1277, %v1209
        %1280 = xla_tuple %v1230, %v1231
        %1281 = xla_tuple %v1223, %v1224
        %v1282 = vmul.f32 %v1230, %v1223
        %v1283 = vmul.f32 %v1231, %v1224
        %v1284 = vsub.f32 %v1282, %v1283
        %v1285 = vmul.f32 %v1230, %v1224
        %v1286 = vmul.f32 %v1231, %v1223
        %v1287 = vadd.f32 %v1285, %v1286
        %1288 = xla_tuple %v1284, %v1287
        %1289 = vadd.xlane.f32.xlu0 %v1284
        %v1290 = vpop.xlane.xlu0 %1289
        %1291 = vadd.xlane.f32.xlu0 %v1287
        %v1292 = vpop.xlane.xlu0 %1291
        %v1293 = vsel %vm1234, %v1290, %v1223
        %v1294 = vsel %vm1234, %v1292, %v1224
        %s1295 = scalar_lea.vmem %s93, 27 [#allocation0]
        %s1296 = scalar_lea.vmem %s97, 27 [#allocation1]
        %v1297 = vld [vmem:[%s1295] ss:$0 sm:$0xff]
        %v1298 = vld [vmem:[%s1296] ss:$0 sm:$0xff]
        %vm1299 = vcmask 261120
        %v1300 = vsel %vm1299, %v1297, 0.0
        %v1301 = vsel %vm1299, %v1298, 0.0
        %v1302 = vlaneseq
        %v1303 = vand.u32 %v1302, 127
        %vm1304 = vcmp.eq.s32.totalorder %v1303, 27
        %1305 = xla_tuple %v1300, %v1301
        %1306 = xla_tuple %v1248, %v1249
        %v1307 = vmul.f32 %v1300, %v1248
        %v1308 = vmul.f32 %v1301, %v1249
        %v1309 = vsub.f32 %v1307, %v1308
        %v1310 = vmul.f32 %v1300, %v1249
        %v1311 = vmul.f32 %v1301, %v1248
        %v1312 = vadd.f32 %v1310, %v1311
        %1313 = xla_tuple %v1309, %v1312
        %1314 = vadd.xlane.f32.xlu0 %v1309
        %v1315 = vpop.xlane.xlu0 %1314
        %1316 = vadd.xlane.f32.xlu0 %v1312
        %v1317 = vpop.xlane.xlu0 %1316
        %v1318 = vsel %vm1304, %v1315, %v1248
        %v1319 = vsel %vm1304, %v1317, %v1249
        %1320 = xla_tuple %v1300, %v1301
        %1321 = xla_tuple %v1263, %v1264
        %v1322 = vmul.f32 %v1300, %v1263
        %v1323 = vmul.f32 %v1301, %v1264
        %v1324 = vsub.f32 %v1322, %v1323
        %v1325 = vmul.f32 %v1300, %v1264
        %v1326 = vmul.f32 %v1301, %v1263
        %v1327 = vadd.f32 %v1325, %v1326
        %1328 = xla_tuple %v1324, %v1327
        %1329 = vadd.xlane.f32.xlu0 %v1324
        %v1330 = vpop.xlane.xlu0 %1329
        %1331 = vadd.xlane.f32.xlu0 %v1327
        %v1332 = vpop.xlane.xlu0 %1331
        %v1333 = vsel %vm1304, %v1330, %v1263
        %v1334 = vsel %vm1304, %v1332, %v1264
        %1335 = xla_tuple %v1300, %v1301
        %1336 = xla_tuple %v1278, %v1279
        %v1337 = vmul.f32 %v1300, %v1278
        %v1338 = vmul.f32 %v1301, %v1279
        %v1339 = vsub.f32 %v1337, %v1338
        %v1340 = vmul.f32 %v1300, %v1279
        %v1341 = vmul.f32 %v1301, %v1278
        %v1342 = vadd.f32 %v1340, %v1341
        %1343 = xla_tuple %v1339, %v1342
        %1344 = vadd.xlane.f32.xlu0 %v1339
        %v1345 = vpop.xlane.xlu0 %1344
        %1346 = vadd.xlane.f32.xlu0 %v1342
        %v1347 = vpop.xlane.xlu0 %1346
        %v1348 = vsel %vm1304, %v1345, %v1278
        %v1349 = vsel %vm1304, %v1347, %v1279
        %1350 = xla_tuple %v1300, %v1301
        %1351 = xla_tuple %v1293, %v1294
        %v1352 = vmul.f32 %v1300, %v1293
        %v1353 = vmul.f32 %v1301, %v1294
        %v1354 = vsub.f32 %v1352, %v1353
        %v1355 = vmul.f32 %v1300, %v1294
        %v1356 = vmul.f32 %v1301, %v1293
        %v1357 = vadd.f32 %v1355, %v1356
        %1358 = xla_tuple %v1354, %v1357
        %1359 = vadd.xlane.f32.xlu0 %v1354
        %v1360 = vpop.xlane.xlu0 %1359
        %1361 = vadd.xlane.f32.xlu0 %v1357
        %v1362 = vpop.xlane.xlu0 %1361
        %v1363 = vsel %vm1304, %v1360, %v1293
        %v1364 = vsel %vm1304, %v1362, %v1294
        %s1365 = scalar_lea.vmem %s93, 28 [#allocation0]
        %s1366 = scalar_lea.vmem %s97, 28 [#allocation1]
        %v1367 = vld [vmem:[%s1365] ss:$0 sm:$0xff]
        %v1368 = vld [vmem:[%s1366] ss:$0 sm:$0xff]
        %vm1369 = vcmask 261120
        %v1370 = vsel %vm1369, %v1367, 0.0
        %v1371 = vsel %vm1369, %v1368, 0.0
        %v1372 = vlaneseq
        %v1373 = vand.u32 %v1372, 127
        %vm1374 = vcmp.eq.s32.totalorder %v1373, 28
        %1375 = xla_tuple %v1370, %v1371
        %1376 = xla_tuple %v1318, %v1319
        %v1377 = vmul.f32 %v1370, %v1318
        %v1378 = vmul.f32 %v1371, %v1319
        %v1379 = vsub.f32 %v1377, %v1378
        %v1380 = vmul.f32 %v1370, %v1319
        %v1381 = vmul.f32 %v1371, %v1318
        %v1382 = vadd.f32 %v1380, %v1381
        %1383 = xla_tuple %v1379, %v1382
        %1384 = vadd.xlane.f32.xlu0 %v1379
        %v1385 = vpop.xlane.xlu0 %1384
        %1386 = vadd.xlane.f32.xlu0 %v1382
        %v1387 = vpop.xlane.xlu0 %1386
        %v1388 = vsel %vm1374, %v1385, %v1318
        %v1389 = vsel %vm1374, %v1387, %v1319
        %1390 = xla_tuple %v1370, %v1371
        %1391 = xla_tuple %v1333, %v1334
        %v1392 = vmul.f32 %v1370, %v1333
        %v1393 = vmul.f32 %v1371, %v1334
        %v1394 = vsub.f32 %v1392, %v1393
        %v1395 = vmul.f32 %v1370, %v1334
        %v1396 = vmul.f32 %v1371, %v1333
        %v1397 = vadd.f32 %v1395, %v1396
        %1398 = xla_tuple %v1394, %v1397
        %1399 = vadd.xlane.f32.xlu0 %v1394
        %v1400 = vpop.xlane.xlu0 %1399
        %1401 = vadd.xlane.f32.xlu0 %v1397
        %v1402 = vpop.xlane.xlu0 %1401
        %v1403 = vsel %vm1374, %v1400, %v1333
        %v1404 = vsel %vm1374, %v1402, %v1334
        %1405 = xla_tuple %v1370, %v1371
        %1406 = xla_tuple %v1348, %v1349
        %v1407 = vmul.f32 %v1370, %v1348
        %v1408 = vmul.f32 %v1371, %v1349
        %v1409 = vsub.f32 %v1407, %v1408
        %v1410 = vmul.f32 %v1370, %v1349
        %v1411 = vmul.f32 %v1371, %v1348
        %v1412 = vadd.f32 %v1410, %v1411
        %1413 = xla_tuple %v1409, %v1412
        %1414 = vadd.xlane.f32.xlu0 %v1409
        %v1415 = vpop.xlane.xlu0 %1414
        %1416 = vadd.xlane.f32.xlu0 %v1412
        %v1417 = vpop.xlane.xlu0 %1416
        %v1418 = vsel %vm1374, %v1415, %v1348
        %v1419 = vsel %vm1374, %v1417, %v1349
        %1420 = xla_tuple %v1370, %v1371
        %1421 = xla_tuple %v1363, %v1364
        %v1422 = vmul.f32 %v1370, %v1363
        %v1423 = vmul.f32 %v1371, %v1364
        %v1424 = vsub.f32 %v1422, %v1423
        %v1425 = vmul.f32 %v1370, %v1364
        %v1426 = vmul.f32 %v1371, %v1363
        %v1427 = vadd.f32 %v1425, %v1426
        %1428 = xla_tuple %v1424, %v1427
        %1429 = vadd.xlane.f32.xlu0 %v1424
        %v1430 = vpop.xlane.xlu0 %1429
        %1431 = vadd.xlane.f32.xlu0 %v1427
        %v1432 = vpop.xlane.xlu0 %1431
        %v1433 = vsel %vm1374, %v1430, %v1363
        %v1434 = vsel %vm1374, %v1432, %v1364
        %s1435 = scalar_lea.vmem %s93, 29 [#allocation0]
        %s1436 = scalar_lea.vmem %s97, 29 [#allocation1]
        %v1437 = vld [vmem:[%s1435] ss:$0 sm:$0xff]
        %v1438 = vld [vmem:[%s1436] ss:$0 sm:$0xff]
        %vm1439 = vcmask 261120
        %v1440 = vsel %vm1439, %v1437, 0.0
        %v1441 = vsel %vm1439, %v1438, 0.0
        %v1442 = vlaneseq
        %v1443 = vand.u32 %v1442, 127
        %vm1444 = vcmp.eq.s32.totalorder %v1443, 29
        %1445 = xla_tuple %v1440, %v1441
        %1446 = xla_tuple %v1388, %v1389
        %v1447 = vmul.f32 %v1440, %v1388
        %v1448 = vmul.f32 %v1441, %v1389
        %v1449 = vsub.f32 %v1447, %v1448
        %v1450 = vmul.f32 %v1440, %v1389
        %v1451 = vmul.f32 %v1441, %v1388
        %v1452 = vadd.f32 %v1450, %v1451
        %1453 = xla_tuple %v1449, %v1452
        %1454 = vadd.xlane.f32.xlu0 %v1449
        %v1455 = vpop.xlane.xlu0 %1454
        %1456 = vadd.xlane.f32.xlu0 %v1452
        %v1457 = vpop.xlane.xlu0 %1456
        %v1458 = vsel %vm1444, %v1455, %v1388
        %v1459 = vsel %vm1444, %v1457, %v1389
        %1460 = xla_tuple %v1440, %v1441
        %1461 = xla_tuple %v1403, %v1404
        %v1462 = vmul.f32 %v1440, %v1403
        %v1463 = vmul.f32 %v1441, %v1404
        %v1464 = vsub.f32 %v1462, %v1463
        %v1465 = vmul.f32 %v1440, %v1404
        %v1466 = vmul.f32 %v1441, %v1403
        %v1467 = vadd.f32 %v1465, %v1466
        %1468 = xla_tuple %v1464, %v1467
        %1469 = vadd.xlane.f32.xlu0 %v1464
        %v1470 = vpop.xlane.xlu0 %1469
        %1471 = vadd.xlane.f32.xlu0 %v1467
        %v1472 = vpop.xlane.xlu0 %1471
        %v1473 = vsel %vm1444, %v1470, %v1403
        %v1474 = vsel %vm1444, %v1472, %v1404
        %1475 = xla_tuple %v1440, %v1441
        %1476 = xla_tuple %v1418, %v1419
        %v1477 = vmul.f32 %v1440, %v1418
        %v1478 = vmul.f32 %v1441, %v1419
        %v1479 = vsub.f32 %v1477, %v1478
        %v1480 = vmul.f32 %v1440, %v1419
        %v1481 = vmul.f32 %v1441, %v1418
        %v1482 = vadd.f32 %v1480, %v1481
        %1483 = xla_tuple %v1479, %v1482
        %1484 = vadd.xlane.f32.xlu0 %v1479
        %v1485 = vpop.xlane.xlu0 %1484
        %1486 = vadd.xlane.f32.xlu0 %v1482
        %v1487 = vpop.xlane.xlu0 %1486
        %v1488 = vsel %vm1444, %v1485, %v1418
        %v1489 = vsel %vm1444, %v1487, %v1419
        %1490 = xla_tuple %v1440, %v1441
        %1491 = xla_tuple %v1433, %v1434
        %v1492 = vmul.f32 %v1440, %v1433
        %v1493 = vmul.f32 %v1441, %v1434
        %v1494 = vsub.f32 %v1492, %v1493
        %v1495 = vmul.f32 %v1440, %v1434
        %v1496 = vmul.f32 %v1441, %v1433
        %v1497 = vadd.f32 %v1495, %v1496
        %1498 = xla_tuple %v1494, %v1497
        %1499 = vadd.xlane.f32.xlu0 %v1494
        %v1500 = vpop.xlane.xlu0 %1499
        %1501 = vadd.xlane.f32.xlu0 %v1497
        %v1502 = vpop.xlane.xlu0 %1501
        %v1503 = vsel %vm1444, %v1500, %v1433
        %v1504 = vsel %vm1444, %v1502, %v1434
        %s1505 = scalar_lea.vmem %s93, 30 [#allocation0]
        %s1506 = scalar_lea.vmem %s97, 30 [#allocation1]
        %v1507 = vld [vmem:[%s1505] ss:$0 sm:$0xff]
        %v1508 = vld [vmem:[%s1506] ss:$0 sm:$0xff]
        %vm1509 = vcmask 261120
        %v1510 = vsel %vm1509, %v1507, 0.0
        %v1511 = vsel %vm1509, %v1508, 0.0
        %v1512 = vlaneseq
        %v1513 = vand.u32 %v1512, 127
        %vm1514 = vcmp.eq.s32.totalorder %v1513, 30
        %1515 = xla_tuple %v1510, %v1511
        %1516 = xla_tuple %v1458, %v1459
        %v1517 = vmul.f32 %v1510, %v1458
        %v1518 = vmul.f32 %v1511, %v1459
        %v1519 = vsub.f32 %v1517, %v1518
        %v1520 = vmul.f32 %v1510, %v1459
        %v1521 = vmul.f32 %v1511, %v1458
        %v1522 = vadd.f32 %v1520, %v1521
        %1523 = xla_tuple %v1519, %v1522
        %1524 = vadd.xlane.f32.xlu0 %v1519
        %v1525 = vpop.xlane.xlu0 %1524
        %1526 = vadd.xlane.f32.xlu0 %v1522
        %v1527 = vpop.xlane.xlu0 %1526
        %v1528 = vsel %vm1514, %v1525, %v1458
        %v1529 = vsel %vm1514, %v1527, %v1459
        %1530 = xla_tuple %v1510, %v1511
        %1531 = xla_tuple %v1473, %v1474
        %v1532 = vmul.f32 %v1510, %v1473
        %v1533 = vmul.f32 %v1511, %v1474
        %v1534 = vsub.f32 %v1532, %v1533
        %v1535 = vmul.f32 %v1510, %v1474
        %v1536 = vmul.f32 %v1511, %v1473
        %v1537 = vadd.f32 %v1535, %v1536
        %1538 = xla_tuple %v1534, %v1537
        %1539 = vadd.xlane.f32.xlu0 %v1534
        %v1540 = vpop.xlane.xlu0 %1539
        %1541 = vadd.xlane.f32.xlu0 %v1537
        %v1542 = vpop.xlane.xlu0 %1541
        %v1543 = vsel %vm1514, %v1540, %v1473
        %v1544 = vsel %vm1514, %v1542, %v1474
        %1545 = xla_tuple %v1510, %v1511
        %1546 = xla_tuple %v1488, %v1489
        %v1547 = vmul.f32 %v1510, %v1488
        %v1548 = vmul.f32 %v1511, %v1489
        %v1549 = vsub.f32 %v1547, %v1548
        %v1550 = vmul.f32 %v1510, %v1489
        %v1551 = vmul.f32 %v1511, %v1488
        %v1552 = vadd.f32 %v1550, %v1551
        %1553 = xla_tuple %v1549, %v1552
        %1554 = vadd.xlane.f32.xlu0 %v1549
        %v1555 = vpop.xlane.xlu0 %1554
        %1556 = vadd.xlane.f32.xlu0 %v1552
        %v1557 = vpop.xlane.xlu0 %1556
        %v1558 = vsel %vm1514, %v1555, %v1488
        %v1559 = vsel %vm1514, %v1557, %v1489
        %1560 = xla_tuple %v1510, %v1511
        %1561 = xla_tuple %v1503, %v1504
        %v1562 = vmul.f32 %v1510, %v1503
        %v1563 = vmul.f32 %v1511, %v1504
        %v1564 = vsub.f32 %v1562, %v1563
        %v1565 = vmul.f32 %v1510, %v1504
        %v1566 = vmul.f32 %v1511, %v1503
        %v1567 = vadd.f32 %v1565, %v1566
        %1568 = xla_tuple %v1564, %v1567
        %1569 = vadd.xlane.f32.xlu0 %v1564
        %v1570 = vpop.xlane.xlu0 %1569
        %1571 = vadd.xlane.f32.xlu0 %v1567
        %v1572 = vpop.xlane.xlu0 %1571
        %v1573 = vsel %vm1514, %v1570, %v1503
        %v1574 = vsel %vm1514, %v1572, %v1504
        %s1575 = scalar_lea.vmem %s93, 31 [#allocation0]
        %s1576 = scalar_lea.vmem %s97, 31 [#allocation1]
        %v1577 = vld [vmem:[%s1575] ss:$0 sm:$0xff]
        %v1578 = vld [vmem:[%s1576] ss:$0 sm:$0xff]
        %vm1579 = vcmask 261120
        %v1580 = vsel %vm1579, %v1577, 0.0
        %v1581 = vsel %vm1579, %v1578, 0.0
        %v1582 = vlaneseq
        %v1583 = vand.u32 %v1582, 127
        %vm1584 = vcmp.eq.s32.totalorder %v1583, 31
        %1585 = xla_tuple %v1580, %v1581
        %1586 = xla_tuple %v1528, %v1529
        %v1587 = vmul.f32 %v1580, %v1528
        %v1588 = vmul.f32 %v1581, %v1529
        %v1589 = vsub.f32 %v1587, %v1588
        %v1590 = vmul.f32 %v1580, %v1529
        %v1591 = vmul.f32 %v1581, %v1528
        %v1592 = vadd.f32 %v1590, %v1591
        %1593 = xla_tuple %v1589, %v1592
        %1594 = vadd.xlane.f32.xlu0 %v1589
        %v1595 = vpop.xlane.xlu0 %1594
        %1596 = vadd.xlane.f32.xlu0 %v1592
        %v1597 = vpop.xlane.xlu0 %1596
        %v1598 = vsel %vm1584, %v1595, %v1528
        %v1599 = vsel %vm1584, %v1597, %v1529
        %1600 = xla_tuple %v1580, %v1581
        %1601 = xla_tuple %v1543, %v1544
        %v1602 = vmul.f32 %v1580, %v1543
        %v1603 = vmul.f32 %v1581, %v1544
        %v1604 = vsub.f32 %v1602, %v1603
        %v1605 = vmul.f32 %v1580, %v1544
        %v1606 = vmul.f32 %v1581, %v1543
        %v1607 = vadd.f32 %v1605, %v1606
        %1608 = xla_tuple %v1604, %v1607
        %1609 = vadd.xlane.f32.xlu0 %v1604
        %v1610 = vpop.xlane.xlu0 %1609
        %1611 = vadd.xlane.f32.xlu0 %v1607
        %v1612 = vpop.xlane.xlu0 %1611
        %v1613 = vsel %vm1584, %v1610, %v1543
        %v1614 = vsel %vm1584, %v1612, %v1544
        %1615 = xla_tuple %v1580, %v1581
        %1616 = xla_tuple %v1558, %v1559
        %v1617 = vmul.f32 %v1580, %v1558
        %v1618 = vmul.f32 %v1581, %v1559
        %v1619 = vsub.f32 %v1617, %v1618
        %v1620 = vmul.f32 %v1580, %v1559
        %v1621 = vmul.f32 %v1581, %v1558
        %v1622 = vadd.f32 %v1620, %v1621
        %1623 = xla_tuple %v1619, %v1622
        %1624 = vadd.xlane.f32.xlu0 %v1619
        %v1625 = vpop.xlane.xlu0 %1624
        %1626 = vadd.xlane.f32.xlu0 %v1622
        %v1627 = vpop.xlane.xlu0 %1626
        %v1628 = vsel %vm1584, %v1625, %v1558
        %v1629 = vsel %vm1584, %v1627, %v1559
        %1630 = xla_tuple %v1580, %v1581
        %1631 = xla_tuple %v1573, %v1574
        %v1632 = vmul.f32 %v1580, %v1573
        %v1633 = vmul.f32 %v1581, %v1574
        %v1634 = vsub.f32 %v1632, %v1633
        %v1635 = vmul.f32 %v1580, %v1574
        %v1636 = vmul.f32 %v1581, %v1573
        %v1637 = vadd.f32 %v1635, %v1636
        %1638 = xla_tuple %v1634, %v1637
        %1639 = vadd.xlane.f32.xlu0 %v1634
        %v1640 = vpop.xlane.xlu0 %1639
        %1641 = vadd.xlane.f32.xlu0 %v1637
        %v1642 = vpop.xlane.xlu0 %1641
        %v1643 = vsel %vm1584, %v1640, %v1573
        %v1644 = vsel %vm1584, %v1642, %v1574
        %1645 = vst [vmem:[%s109] sm:$0xff] %v1598
        %1646 = vst [vmem:[%s113] sm:$0xff] %v1599
        %s1647 = scalar_lea.vmem %s109, 8 [#allocation2]
        %s1648 = scalar_lea.vmem %s113, 8 [#allocation3]
        %1649 = vst [vmem:[%s1647] sm:$0xff] %v1613
        %1650 = vst [vmem:[%s1648] sm:$0xff] %v1614
        %s1651 = scalar_lea.vmem %s109, 16 [#allocation2]
        %s1652 = scalar_lea.vmem %s113, 16 [#allocation3]
        %1653 = vst [vmem:[%s1651] sm:$0xff] %v1628
        %1654 = vst [vmem:[%s1652] sm:$0xff] %v1629
        %s1655 = scalar_lea.vmem %s109, 24 [#allocation2]
        %s1656 = scalar_lea.vmem %s113, 24 [#allocation3]
        %1657 = vst [vmem:[%s1655] sm:$0xff] %v1643
        %1658 = vst [vmem:[%s1656] sm:$0xff] %v1644
        %s1659 = sand.u32 %s11, 1
        %s1660 = sand.u32 %s11, 1
        %s1661 = smul.addr %s1660, 32
        %s1662 = scalar_lea.vmem [#allocation2], %s1661
        %s1663 = sand.u32 %s11, 1
        %s1664 = sand.u32 %s11, 1
        %s1665 = smul.addr %s1664, 32
        %s1666 = scalar_lea.vmem [#allocation3], %s1665
        %s1667 = smul.addr %s11, 32
        %s1668 = scalar_lea.vmem %s2, %s1667
        // Predicated region
        $region59: #{custom-call.8} parent=57 // pred_check
          _
        $region60: #{custom-call.8} parent=57 // pred_check_branch
          %1670 = sbr.rel (0) target = $region62
        $region61: #{custom-call.8} parent=57 // pred_region
          // Predicated region
          $region63: #{custom-call.8} parent=61 // pred_check
            _
          $region64: #{custom-call.8} parent=61 // pred_check_branch
            %1672 = sbr.rel (0) target = $region66
          $region65: #{custom-call.8} parent=61 // pred_region
            loop: start=0, step=1, limit=1
            $region67: #{custom-call.8} parent=65 // loop_pre_header
              _
            $region68: #{custom-call.8} parent=65 // loop_header
              %s1674 = sphi 0, %s1678
              %p1675 = scmp.ge.s32.totalorder %s1674, 1
              %s1679 = sphi %s1662, %s1662
              %s1680 = sphi %s1668, %s1668
            $region69: #{custom-call.8} parent=65 // loop_header_branch
              %1677 = sbr.rel (%p1675) target = $region73
            $region70: #{custom-call.8} parent=65 // loop_body
              %v1681 = vld [vmem:[%s1679] sm:$0xff]
              %1682 = vst [vmem:[%s1680] sm:$0xff] %v1681
              %v1683 = vld [vmem:[%s1679 + $0x8] sm:$0xff]
              %1684 = vst [vmem:[%s1680 + $0x8] sm:$0xff] %v1683
              %v1685 = vld [vmem:[%s1679 + $0x10] sm:$0xff]
              %1686 = vst [vmem:[%s1680 + $0x10] sm:$0xff] %v1685
              %v1687 = vld [vmem:[%s1679 + $0x18] sm:$0xff]
              %1688 = vst [vmem:[%s1680 + $0x18] sm:$0xff] %v1687
            $region71: #{custom-call.8} parent=65 // loop_footer
              %s1678 = sadd.s32 1, %s1674
            $region72: #{custom-call.8} parent=65 // loop_footer_branch
              %1673 = sbr.rel target = $region68
            $region73: #{custom-call.8} parent=65 // loop_exit
              _
          $region66: #{custom-call.8} parent=61 // pred_fallthru
            _
          // Predicated region
          $region74: #{custom-call.8} parent=61 // pred_check
            _
          $region75: #{custom-call.8} parent=61 // pred_check_branch
            %1690 = sbr.rel target = $region77
          $region76: #{custom-call.8} parent=61 // pred_region
            _
          $region77: #{custom-call.8} parent=61 // pred_fallthru
            _
        $region62: #{custom-call.8} parent=57 // pred_fallthru
          _
        %1691 = vnop
        %s1692 = smul.addr %s11, 32
        %s1693 = scalar_lea.vmem %s3, %s1692
        // Predicated region
        $region78: #{custom-call.8} parent=57 // pred_check
          _
        $region79: #{custom-call.8} parent=57 // pred_check_branch
          %1695 = sbr.rel (0) target = $region81
        $region80: #{custom-call.8} parent=57 // pred_region
          // Predicated region
          $region82: #{custom-call.8} parent=80 // pred_check
            _
          $region83: #{custom-call.8} parent=80 // pred_check_branch
            %1697 = sbr.rel (0) target = $region85
          $region84: #{custom-call.8} parent=80 // pred_region
            loop: start=0, step=1, limit=1
            $region86: #{custom-call.8} parent=84 // loop_pre_header
              _
            $region87: #{custom-call.8} parent=84 // loop_header
              %s1699 = sphi 0, %s1703
              %p1700 = scmp.ge.s32.totalorder %s1699, 1
              %s1704 = sphi %s1666, %s1666
              %s1705 = sphi %s1693, %s1693
            $region88: #{custom-call.8} parent=84 // loop_header_branch
              %1702 = sbr.rel (%p1700) target = $region92
            $region89: #{custom-call.8} parent=84 // loop_body
              %v1706 = vld [vmem:[%s1704] sm:$0xff]
              %1707 = vst [vmem:[%s1705] sm:$0xff] %v1706
              %v1708 = vld [vmem:[%s1704 + $0x8] sm:$0xff]
              %1709 = vst [vmem:[%s1705 + $0x8] sm:$0xff] %v1708
              %v1710 = vld [vmem:[%s1704 + $0x10] sm:$0xff]
              %1711 = vst [vmem:[%s1705 + $0x10] sm:$0xff] %v1710
              %v1712 = vld [vmem:[%s1704 + $0x18] sm:$0xff]
              %1713 = vst [vmem:[%s1705 + $0x18] sm:$0xff] %v1712
            $region90: #{custom-call.8} parent=84 // loop_footer
              %s1703 = sadd.s32 1, %s1699
            $region91: #{custom-call.8} parent=84 // loop_footer_branch
              %1698 = sbr.rel target = $region87
            $region92: #{custom-call.8} parent=84 // loop_exit
              _
          $region85: #{custom-call.8} parent=80 // pred_fallthru
            _
          // Predicated region
          $region93: #{custom-call.8} parent=80 // pred_check
            _
          $region94: #{custom-call.8} parent=80 // pred_check_branch
            %1715 = sbr.rel target = $region96
          $region95: #{custom-call.8} parent=80 // pred_region
            _
          $region96: #{custom-call.8} parent=80 // pred_fallthru
            _
        $region81: #{custom-call.8} parent=57 // pred_fallthru
          _
        %1716 = vnop
      $region58: #{custom-call.8} parent=5 // pred_fallthru
        _
      %p1717 = scmp.le.s32.totalorder 2, %s6
      // Predicated region
      $region97: #{custom-call.8} parent=5 // pred_check
        %p1718 = pneg %p1717
      $region98: #{custom-call.8} parent=5 // pred_check_branch
        %1720 = sbr.rel (%p1718) target = $region100
      $region99: #{custom-call.8} parent=5 // pred_region
        %s1721 = ssub.s32 %s6, 2
        %s1722 = sand.u32 %s12, 1
        %s1723 = sand.u32 %s12, 1
        %s1724 = smul.addr %s1723, 32
        %s1725 = scalar_lea.vmem [#allocation2], %s1724
        %s1726 = sand.u32 %s12, 1
        %s1727 = sand.u32 %s12, 1
        %s1728 = smul.addr %s1727, 32
        %s1729 = scalar_lea.vmem [#allocation3], %s1728
      $region100: #{custom-call.8} parent=5 // pred_fallthru
        _
    $region6: #{custom-call.8} parent=1 // loop_footer
      %s10 = sadd.s32 1, %s6
    $region7: #{custom-call.8} parent=1 // loop_footer_branch
      %5 = sbr.rel target = $region3
    $region8: #{custom-call.8} parent=1 // loop_exit
      _

// kernel: modu_network_forward.2
$region0: #{modu_network_forward.2}
  #allocation0 [shape = 'u32[]', space=smem, size = 0x4, offset = 0x4, fixed_abs, tag = 'smem constant byte address 0x4 - core index']
  #allocation1 [shape = 'u32[144,128]{1,0:T(1,128)}', space=vmem, size = 0x12000, scoped, tag = 'internal scratch']
  #allocation2 [shape = 'f32[8,256]{1,0:T(8,128)}', space=vmem, size = 0x2000, scoped, tag = 'scratch operand']
  %s0 = inlined_call_operand.vmem [shape: bf16[8,2560], index: 0, kind: input, shape index: {}]
  %s1 = inlined_call_operand.hbm [shape: bf16[2560,256], index: 1, kind: input, shape index: {}]
  %s2 = inlined_call_operand.hbm [shape: f32[1,256], index: 2, kind: input, shape index: {}]
  %s3 = inlined_call_operand.hbm [shape: bf16[256,128], index: 3, kind: input, shape index: {}]
  %s4 = inlined_call_operand.hbm [shape: f32[1,128], index: 4, kind: input, shape index: {}]
  %s5 = inlined_call_operand.hbm [shape: bf16[128,128], index: 5, kind: input, shape index: {}]
  %s6 = inlined_call_operand.hbm [shape: f32[1,128], index: 6, kind: input, shape index: {}]
  %s7 = inlined_call_operand.vmem [shape: bf16[8,128], index: 7, kind: output, shape index: {}]
  %s8 = sld [smem:[#allocation0]]
  $region70: #{modu_network_forward.2} parent=0
    _
  %s10 = ssub.s32 1, %s8
  %s11 = scalar_select 0, %s10, %s8
  $region1: #{modu_network_forward.2} parent=0
    #allocation3 [shape = 'u8[1310720]{0}', space=vmem, size = 0x140000, scoped, tag = 'input window, operand 1, single buffered']
    #allocation4 [shape = 's32[1]{0}', space=sflag, size = 0x4, scoped, tag = 'scoped memory for modu_network_forward.2']
    #allocation5 [shape = 'u8[1024]{0}', space=vmem, size = 0x400, scoped, tag = 'input window, operand 2, single buffered']
    #allocation6 [shape = 's32[1]{0}', space=sflag, size = 0x4, scoped, tag = 'scoped memory for modu_network_forward.2']
    #allocation7 [shape = 'u8[65536]{0}', space=vmem, size = 0x10000, scoped, tag = 'input window, operand 3, single buffered']
    #allocation8 [shape = 'u8[512]{0}', space=vmem, size = 0x400, scoped, tag = 'input window, operand 4, single buffered']
    #allocation9 [shape = 's32[1]{0}', space=sflag, size = 0x4, scoped, tag = 'scoped memory for modu_network_forward.2']
    #allocation10 [shape = 'u8[32768]{0}', space=vmem, size = 0x8000, scoped, tag = 'input window, operand 5, single buffered']
    #allocation11 [shape = 'u8[512]{0}', space=vmem, size = 0x400, scoped, tag = 'input window, operand 6, single buffered']
    #allocation12 [shape = 's32[1]{0}', space=sflag, size = 0x4, scoped, tag = 'scoped memory for modu_network_forward.2']
    %12 = vsyncpa [#allocation4], 0
    %13 = vsyncpa [#allocation6], 0
    %14 = vsyncpa [#allocation9], 0
    %15 = vsyncpa [#allocation12], 0
    // Predicated region
    $region2: #{modu_network_forward.2} parent=1 // pred_check
      _
    $region3: #{modu_network_forward.2} parent=1 // pred_check_branch
      %17 = sbr.rel (0) target = $region5
    $region4: #{modu_network_forward.2} parent=1 // pred_region
      _
    $region5: #{modu_network_forward.2} parent=1 // pred_fallthru
      _
    // Predicated region
    $region6: #{modu_network_forward.2} parent=1 // pred_check
      _
    $region7: #{modu_network_forward.2} parent=1 // pred_check_branch
      %19 = sbr.rel (0) target = $region9
    $region8: #{modu_network_forward.2} parent=1 // pred_region
      %s21 = ssub.s32 40960, 40960
      %22 = vsyncadd [#allocation4], %s21
      %s23 = sshll.u32 [#allocation3], 4
      %s24 = int_to_ptr.vmem [resolvable:$true] %s23
      %29 = dma.hbm_to_vmem [thread:$0]  %s1, 40960, %s24, [#allocation4], 128, 128, 8
    $region9: #{modu_network_forward.2} parent=1 // pred_fallthru
      _
    // Predicated region
    $region10: #{modu_network_forward.2} parent=1 // pred_check
      _
    $region11: #{modu_network_forward.2} parent=1 // pred_check_branch
      %31 = sbr.rel (0) target = $region13
    $region12: #{modu_network_forward.2} parent=1 // pred_region
      %s33 = ssub.s32 32, 32
      %34 = vsyncadd [#allocation6], %s33
      %s36 = sshll.u32 [#allocation5], 4
      %s37 = int_to_ptr.vmem [resolvable:$true] %s36
      %39 = dma.hbm_to_vmem [thread:$0]  %s2, 32, %s37, [#allocation6]
    $region13: #{modu_network_forward.2} parent=1 // pred_fallthru
      _
    // Predicated region
    $region14: #{modu_network_forward.2} parent=1 // pred_check
      _
    $region15: #{modu_network_forward.2} parent=1 // pred_check_branch
      %41 = sbr.rel (0) target = $region17
    $region16: #{modu_network_forward.2} parent=1 // pred_region
      %s43 = ssub.s32 2048, 2048
      %44 = vsyncadd [#allocation6], %s43
      %s45 = sshll.u32 [#allocation7], 4
      %s46 = int_to_ptr.vmem [resolvable:$true] %s45
      %51 = dma.hbm_to_vmem [thread:$0]  %s3, 2048, %s46, [#allocation6], 64, 64, 4
    $region17: #{modu_network_forward.2} parent=1 // pred_fallthru
      _
    // Predicated region
    $region18: #{modu_network_forward.2} parent=1 // pred_check
      _
    $region19: #{modu_network_forward.2} parent=1 // pred_check_branch
      %53 = sbr.rel (0) target = $region21
    $region20: #{modu_network_forward.2} parent=1 // pred_region
      %s55 = ssub.s32 16, 16
      %56 = vsyncadd [#allocation9], %s55
      %s58 = sshll.u32 [#allocation8], 4
      %s59 = int_to_ptr.vmem [resolvable:$true] %s58
      %61 = dma.hbm_to_vmem [thread:$0]  %s4, 16, %s59, [#allocation9]
    $region21: #{modu_network_forward.2} parent=1 // pred_fallthru
      _
    // Predicated region
    $region22: #{modu_network_forward.2} parent=1 // pred_check
      _
    $region23: #{modu_network_forward.2} parent=1 // pred_check_branch
      %63 = sbr.rel (0) target = $region25
    $region24: #{modu_network_forward.2} parent=1 // pred_region
      %s65 = ssub.s32 1024, 1024
      %66 = vsyncadd [#allocation9], %s65
      %s67 = sshll.u32 [#allocation10], 4
      %s68 = int_to_ptr.vmem [resolvable:$true] %s67
      %73 = dma.hbm_to_vmem [thread:$0]  %s5, 1024, %s68, [#allocation9], 64, 64, 4
    $region25: #{modu_network_forward.2} parent=1 // pred_fallthru
      _
    // Predicated region
    $region26: #{modu_network_forward.2} parent=1 // pred_check
      _
    $region27: #{modu_network_forward.2} parent=1 // pred_check_branch
      %75 = sbr.rel (0) target = $region29
    $region28: #{modu_network_forward.2} parent=1 // pred_region
      %s77 = ssub.s32 16, 16
      %78 = vsyncadd [#allocation12], %s77
      %s80 = sshll.u32 [#allocation11], 4
      %s81 = int_to_ptr.vmem [resolvable:$true] %s80
      %83 = dma.hbm_to_vmem [thread:$0]  %s6, 16, %s81, [#allocation12]
    $region29: #{modu_network_forward.2} parent=1 // pred_fallthru
      _
    // Predicated region
    $region30: #{modu_network_forward.2} parent=1 // pred_check
      _
    $region31: #{modu_network_forward.2} parent=1 // pred_check_branch
      %85 = sbr.rel (0) target = $region33
    $region32: #{modu_network_forward.2} parent=1 // pred_region
      %86 = dma.done [#allocation4], 40960
    $region33: #{modu_network_forward.2} parent=1 // pred_fallthru
      _
    // Predicated region
    $region34: #{modu_network_forward.2} parent=1 // pred_check
      _
    $region35: #{modu_network_forward.2} parent=1 // pred_check_branch
      %88 = sbr.rel (0) target = $region37
    $region36: #{modu_network_forward.2} parent=1 // pred_region
      %89 = dma.done [#allocation6], 32
    $region37: #{modu_network_forward.2} parent=1 // pred_fallthru
      _
    // Predicated region
    $region38: #{modu_network_forward.2} parent=1 // pred_check
      _
    $region39: #{modu_network_forward.2} parent=1 // pred_check_branch
      %91 = sbr.rel (0) target = $region41
    $region40: #{modu_network_forward.2} parent=1 // pred_region
      %92 = dma.done [#allocation6], 2048
    $region41: #{modu_network_forward.2} parent=1 // pred_fallthru
      _
    // Predicated region
    $region42: #{modu_network_forward.2} parent=1 // pred_check
      _
    $region43: #{modu_network_forward.2} parent=1 // pred_check_branch
      %94 = sbr.rel (0) target = $region45
    $region44: #{modu_network_forward.2} parent=1 // pred_region
      %95 = dma.done [#allocation9], 16
    $region45: #{modu_network_forward.2} parent=1 // pred_fallthru
      _
    // Predicated region
    $region46: #{modu_network_forward.2} parent=1 // pred_check
      _
    $region47: #{modu_network_forward.2} parent=1 // pred_check_branch
      %97 = sbr.rel (0) target = $region49
    $region48: #{modu_network_forward.2} parent=1 // pred_region
      %98 = dma.done [#allocation9], 1024
    $region49: #{modu_network_forward.2} parent=1 // pred_fallthru
      _
    // Predicated region
    $region50: #{modu_network_forward.2} parent=1 // pred_check
      _
    $region51: #{modu_network_forward.2} parent=1 // pred_check_branch
      %100 = sbr.rel (0) target = $region53
    $region52: #{modu_network_forward.2} parent=1 // pred_region
      %101 = dma.done [#allocation12], 16
    $region53: #{modu_network_forward.2} parent=1 // pred_fallthru
      _
    %p103 = scmp.eq.s32.totalorder 0, 0
    // Predicated region
    $region54: #{modu_network_forward.2} parent=1 // pred_check
      %p104 = pneg %p103
    $region55: #{modu_network_forward.2} parent=1 // pred_check_branch
      %106 = sbr.rel (%p104) target = $region57
    $region56: #{modu_network_forward.2} parent=1 // pred_region
      %107 = vst [vmem:[#allocation2] sm:$0xff] 0.0
      %108 = vst [vmem:[#allocation2 + $0x8] sm:$0xff] 0.0
    $region57: #{modu_network_forward.2} parent=1 // pred_fallthru
      _
    %v109 = vld [vmem:[#allocation2] sm:$0xff]
    %v110 = vld [vmem:[#allocation2 + $0x8] sm:$0xff]
    %v111 = vld [vmem:[%s0] sm:$0xff]
    %v112 = vld [vmem:[%s0 + $0x8] sm:$0xff]
    %v113 = vld [vmem:[%s0 + $0x10] sm:$0xff]
    %v114 = vld [vmem:[%s0 + $0x18] sm:$0xff]
    %v115 = vld [vmem:[%s0 + $0x20] sm:$0xff]
    %v116 = vld [vmem:[%s0 + $0x28] sm:$0xff]
    %v117 = vld [vmem:[%s0 + $0x30] sm:$0xff]
    %v118 = vld [vmem:[%s0 + $0x38] sm:$0xff]
    %v119 = vld [vmem:[%s0 + $0x40] sm:$0xff]
    %v120 = vld [vmem:[%s0 + $0x48] sm:$0xff]
    %v121 = vld [vmem:[#allocation3] sm:$0xff]
    %v122 = vld [vmem:[#allocation3 + $0x8] sm:$0xff]
    %v123 = vld [vmem:[#allocation3 + $0x10] sm:$0xff]
    %v124 = vld [vmem:[#allocation3 + $0x18] sm:$0xff]
    %v125 = vld [vmem:[#allocation3 + $0x20] sm:$0xff]
    %v126 = vld [vmem:[#allocation3 + $0x28] sm:$0xff]
    %v127 = vld [vmem:[#allocation3 + $0x30] sm:$0xff]
    %v128 = vld [vmem:[#allocation3 + $0x38] sm:$0xff]
    %v129 = vld [vmem:[#allocation3 + $0x40] sm:$0xff]
    %v130 = vld [vmem:[#allocation3 + $0x48] sm:$0xff]
    %v131 = vld [vmem:[#allocation3 + $0x50] sm:$0xff]
    %v132 = vld [vmem:[#allocation3 + $0x58] sm:$0xff]
    %v133 = vld [vmem:[#allocation3 + $0x60] sm:$0xff]
    %v134 = vld [vmem:[#allocation3 + $0x68] sm:$0xff]
    %v135 = vld [vmem:[#allocation3 + $0x70] sm:$0xff]
    %v136 = vld [vmem:[#allocation3 + $0x78] sm:$0xff]
    %v137 = vld [vmem:[#allocation3 + $0x80] sm:$0xff]
    %v138 = vld [vmem:[#allocation3 + $0x88] sm:$0xff]
    %v139 = vld [vmem:[#allocation3 + $0x90] sm:$0xff]
    %v140 = vld [vmem:[#allocation3 + $0x98] sm:$0xff]
    %v141 = vld [vmem:[#allocation3 + $0xa0] sm:$0xff]
    %v142 = vld [vmem:[#allocation3 + $0xa8] sm:$0xff]
    %v143 = vld [vmem:[#allocation3 + $0xb0] sm:$0xff]
    %v144 = vld [vmem:[#allocation3 + $0xb8] sm:$0xff]
    %v145 = vld [vmem:[#allocation3 + $0xc0] sm:$0xff]
    %v146 = vld [vmem:[#allocation3 + $0xc8] sm:$0xff]
    %v147 = vld [vmem:[#allocation3 + $0xd0] sm:$0xff]
    %v148 = vld [vmem:[#allocation3 + $0xd8] sm:$0xff]
    %v149 = vld [vmem:[#allocation3 + $0xe0] sm:$0xff]
    %v150 = vld [vmem:[#allocation3 + $0xe8] sm:$0xff]
    %v151 = vld [vmem:[#allocation3 + $0xf0] sm:$0xff]
    %v152 = vld [vmem:[#allocation3 + $0xf8] sm:$0xff]
    %v153 = vld [vmem:[#allocation3 + $0x100] sm:$0xff]
    %v154 = vld [vmem:[#allocation3 + $0x108] sm:$0xff]
    %v155 = vld [vmem:[#allocation3 + $0x110] sm:$0xff]
    %v156 = vld [vmem:[#allocation3 + $0x118] sm:$0xff]
    %v157 = vld [vmem:[#allocation3 + $0x120] sm:$0xff]
    %v158 = vld [vmem:[#allocation3 + $0x128] sm:$0xff]
    %v159 = vld [vmem:[#allocation3 + $0x130] sm:$0xff]
    %v160 = vld [vmem:[#allocation3 + $0x138] sm:$0xff]
    %v161 = vld [vmem:[#allocation3 + $0x140] sm:$0xff]
    %v162 = vld [vmem:[#allocation3 + $0x148] sm:$0xff]
    %v163 = vld [vmem:[#allocation3 + $0x150] sm:$0xff]
    %v164 = vld [vmem:[#allocation3 + $0x158] sm:$0xff]
    %v165 = vld [vmem:[#allocation3 + $0x160] sm:$0xff]
    %v166 = vld [vmem:[#allocation3 + $0x168] sm:$0xff]
    %v167 = vld [vmem:[#allocation3 + $0x170] sm:$0xff]
    %v168 = vld [vmem:[#allocation3 + $0x178] sm:$0xff]
    %v169 = vld [vmem:[#allocation3 + $0x180] sm:$0xff]
    %v170 = vld [vmem:[#allocation3 + $0x188] sm:$0xff]
    %v171 = vld [vmem:[#allocation3 + $0x190] sm:$0xff]
    %v172 = vld [vmem:[#allocation3 + $0x198] sm:$0xff]
    %v173 = vld [vmem:[#allocation3 + $0x1a0] sm:$0xff]
    %v174 = vld [vmem:[#allocation3 + $0x1a8] sm:$0xff]
    %v175 = vld [vmem:[#allocation3 + $0x1b0] sm:$0xff]
    %v176 = vld [vmem:[#allocation3 + $0x1b8] sm:$0xff]
    %v177 = vld [vmem:[#allocation3 + $0x1c0] sm:$0xff]
    %v178 = vld [vmem:[#allocation3 + $0x1c8] sm:$0xff]
    %v179 = vld [vmem:[#allocation3 + $0x1d0] sm:$0xff]
    %v180 = vld [vmem:[#allocation3 + $0x1d8] sm:$0xff]
    %v181 = vld [vmem:[#allocation3 + $0x1e0] sm:$0xff]
    %v182 = vld [vmem:[#allocation3 + $0x1e8] sm:$0xff]
    %v183 = vld [vmem:[#allocation3 + $0x1f0] sm:$0xff]
    %v184 = vld [vmem:[#allocation3 + $0x1f8] sm:$0xff]
    %v185 = vld [vmem:[#allocation3 + $0x200] sm:$0xff]
    %v186 = vld [vmem:[#allocation3 + $0x208] sm:$0xff]
    %v187 = vld [vmem:[#allocation3 + $0x210] sm:$0xff]
    %v188 = vld [vmem:[#allocation3 + $0x218] sm:$0xff]
    %v189 = vld [vmem:[#allocation3 + $0x220] sm:$0xff]
    %v190 = vld [vmem:[#allocation3 + $0x228] sm:$0xff]
    %v191 = vld [vmem:[#allocation3 + $0x230] sm:$0xff]
    %v192 = vld [vmem:[#allocation3 + $0x238] sm:$0xff]
    %v193 = vld [vmem:[#allocation3 + $0x240] sm:$0xff]
    %v194 = vld [vmem:[#allocation3 + $0x248] sm:$0xff]
    %v195 = vld [vmem:[#allocation3 + $0x250] sm:$0xff]
    %v196 = vld [vmem:[#allocation3 + $0x258] sm:$0xff]
    %v197 = vld [vmem:[#allocation3 + $0x260] sm:$0xff]
    %v198 = vld [vmem:[#allocation3 + $0x268] sm:$0xff]
    %v199 = vld [vmem:[#allocation3 + $0x270] sm:$0xff]
    %v200 = vld [vmem:[#allocation3 + $0x278] sm:$0xff]
    %v201 = vld [vmem:[#allocation3 + $0x280] sm:$0xff]
    %v202 = vld [vmem:[#allocation3 + $0x288] sm:$0xff]
    %v203 = vld [vmem:[#allocation3 + $0x290] sm:$0xff]
    %v204 = vld [vmem:[#allocation3 + $0x298] sm:$0xff]
    %v205 = vld [vmem:[#allocation3 + $0x2a0] sm:$0xff]
    %v206 = vld [vmem:[#allocation3 + $0x2a8] sm:$0xff]
    %v207 = vld [vmem:[#allocation3 + $0x2b0] sm:$0xff]
    %v208 = vld [vmem:[#allocation3 + $0x2b8] sm:$0xff]
    %v209 = vld [vmem:[#allocation3 + $0x2c0] sm:$0xff]
    %v210 = vld [vmem:[#allocation3 + $0x2c8] sm:$0xff]
    %v211 = vld [vmem:[#allocation3 + $0x2d0] sm:$0xff]
    %v212 = vld [vmem:[#allocation3 + $0x2d8] sm:$0xff]
    %v213 = vld [vmem:[#allocation3 + $0x2e0] sm:$0xff]
    %v214 = vld [vmem:[#allocation3 + $0x2e8] sm:$0xff]
    %v215 = vld [vmem:[#allocation3 + $0x2f0] sm:$0xff]
    %v216 = vld [vmem:[#allocation3 + $0x2f8] sm:$0xff]
    %v217 = vld [vmem:[#allocation3 + $0x300] sm:$0xff]
    %v218 = vld [vmem:[#allocation3 + $0x308] sm:$0xff]
    %v219 = vld [vmem:[#allocation3 + $0x310] sm:$0xff]
    %v220 = vld [vmem:[#allocation3 + $0x318] sm:$0xff]
    %v221 = vld [vmem:[#allocation3 + $0x320] sm:$0xff]
    %v222 = vld [vmem:[#allocation3 + $0x328] sm:$0xff]
    %v223 = vld [vmem:[#allocation3 + $0x330] sm:$0xff]
    %v224 = vld [vmem:[#allocation3 + $0x338] sm:$0xff]
    %v225 = vld [vmem:[#allocation3 + $0x340] sm:$0xff]
    %v226 = vld [vmem:[#allocation3 + $0x348] sm:$0xff]
    %v227 = vld [vmem:[#allocation3 + $0x350] sm:$0xff]
    %v228 = vld [vmem:[#allocation3 + $0x358] sm:$0xff]
    %v229 = vld [vmem:[#allocation3 + $0x360] sm:$0xff]
    %v230 = vld [vmem:[#allocation3 + $0x368] sm:$0xff]
    %v231 = vld [vmem:[#allocation3 + $0x370] sm:$0xff]
    %v232 = vld [vmem:[#allocation3 + $0x378] sm:$0xff]
    %v233 = vld [vmem:[#allocation3 + $0x380] sm:$0xff]
    %v234 = vld [vmem:[#allocation3 + $0x388] sm:$0xff]
    %v235 = vld [vmem:[#allocation3 + $0x390] sm:$0xff]
    %v236 = vld [vmem:[#allocation3 + $0x398] sm:$0xff]
    %v237 = vld [vmem:[#allocation3 + $0x3a0] sm:$0xff]
    %v238 = vld [vmem:[#allocation3 + $0x3a8] sm:$0xff]
    %v239 = vld [vmem:[#allocation3 + $0x3b0] sm:$0xff]
    %v240 = vld [vmem:[#allocation3 + $0x3b8] sm:$0xff]
    %v241 = vld [vmem:[#allocation3 + $0x3c0] sm:$0xff]
    %v242 = vld [vmem:[#allocation3 + $0x3c8] sm:$0xff]
    %v243 = vld [vmem:[#allocation3 + $0x3d0] sm:$0xff]
    %v244 = vld [vmem:[#allocation3 + $0x3d8] sm:$0xff]
    %v245 = vld [vmem:[#allocation3 + $0x3e0] sm:$0xff]
    %v246 = vld [vmem:[#allocation3 + $0x3e8] sm:$0xff]
    %v247 = vld [vmem:[#allocation3 + $0x3f0] sm:$0xff]
    %v248 = vld [vmem:[#allocation3 + $0x3f8] sm:$0xff]
    %v249 = vld [vmem:[#allocation3 + $0x400] sm:$0xff]
    %v250 = vld [vmem:[#allocation3 + $0x408] sm:$0xff]
    %v251 = vld [vmem:[#allocation3 + $0x410] sm:$0xff]
    %v252 = vld [vmem:[#allocation3 + $0x418] sm:$0xff]
    %v253 = vld [vmem:[#allocation3 + $0x420] sm:$0xff]
    %v254 = vld [vmem:[#allocation3 + $0x428] sm:$0xff]
    %v255 = vld [vmem:[#allocation3 + $0x430] sm:$0xff]
    %v256 = vld [vmem:[#allocation3 + $0x438] sm:$0xff]
    %v257 = vld [vmem:[#allocation3 + $0x440] sm:$0xff]
    %v258 = vld [vmem:[#allocation3 + $0x448] sm:$0xff]
    %v259 = vld [vmem:[#allocation3 + $0x450] sm:$0xff]
    %v260 = vld [vmem:[#allocation3 + $0x458] sm:$0xff]
    %v261 = vld [vmem:[#allocation3 + $0x460] sm:$0xff]
    %v262 = vld [vmem:[#allocation3 + $0x468] sm:$0xff]
    %v263 = vld [vmem:[#allocation3 + $0x470] sm:$0xff]
    %v264 = vld [vmem:[#allocation3 + $0x478] sm:$0xff]
    %v265 = vld [vmem:[#allocation3 + $0x480] sm:$0xff]
    %v266 = vld [vmem:[#allocation3 + $0x488] sm:$0xff]
    %v267 = vld [vmem:[#allocation3 + $0x490] sm:$0xff]
    %v268 = vld [vmem:[#allocation3 + $0x498] sm:$0xff]
    %v269 = vld [vmem:[#allocation3 + $0x4a0] sm:$0xff]
    %v270 = vld [vmem:[#allocation3 + $0x4a8] sm:$0xff]
    %v271 = vld [vmem:[#allocation3 + $0x4b0] sm:$0xff]
    %v272 = vld [vmem:[#allocation3 + $0x4b8] sm:$0xff]
    %v273 = vld [vmem:[#allocation3 + $0x4c0] sm:$0xff]
    %v274 = vld [vmem:[#allocation3 + $0x4c8] sm:$0xff]
    %v275 = vld [vmem:[#allocation3 + $0x4d0] sm:$0xff]
    %v276 = vld [vmem:[#allocation3 + $0x4d8] sm:$0xff]
    %v277 = vld [vmem:[#allocation3 + $0x4e0] sm:$0xff]
    %v278 = vld [vmem:[#allocation3 + $0x4e8] sm:$0xff]
    %v279 = vld [vmem:[#allocation3 + $0x4f0] sm:$0xff]
    %v280 = vld [vmem:[#allocation3 + $0x4f8] sm:$0xff]
    %v281 = vld [vmem:[#allocation3 + $0x500] sm:$0xff]
    %v282 = vld [vmem:[#allocation3 + $0x508] sm:$0xff]
    %v283 = vld [vmem:[#allocation3 + $0x510] sm:$0xff]
    %v284 = vld [vmem:[#allocation3 + $0x518] sm:$0xff]
    %v285 = vld [vmem:[#allocation3 + $0x520] sm:$0xff]
    %v286 = vld [vmem:[#allocation3 + $0x528] sm:$0xff]
    %v287 = vld [vmem:[#allocation3 + $0x530] sm:$0xff]
    %v288 = vld [vmem:[#allocation3 + $0x538] sm:$0xff]
    %v289 = vld [vmem:[#allocation3 + $0x540] sm:$0xff]
    %v290 = vld [vmem:[#allocation3 + $0x548] sm:$0xff]
    %v291 = vld [vmem:[#allocation3 + $0x550] sm:$0xff]
    %v292 = vld [vmem:[#allocation3 + $0x558] sm:$0xff]
    %v293 = vld [vmem:[#allocation3 + $0x560] sm:$0xff]
    %v294 = vld [vmem:[#allocation3 + $0x568] sm:$0xff]
    %v295 = vld [vmem:[#allocation3 + $0x570] sm:$0xff]
    %v296 = vld [vmem:[#allocation3 + $0x578] sm:$0xff]
    %v297 = vld [vmem:[#allocation3 + $0x580] sm:$0xff]
    %v298 = vld [vmem:[#allocation3 + $0x588] sm:$0xff]
    %v299 = vld [vmem:[#allocation3 + $0x590] sm:$0xff]
    %v300 = vld [vmem:[#allocation3 + $0x598] sm:$0xff]
    %v301 = vld [vmem:[#allocation3 + $0x5a0] sm:$0xff]
    %v302 = vld [vmem:[#allocation3 + $0x5a8] sm:$0xff]
    %v303 = vld [vmem:[#allocation3 + $0x5b0] sm:$0xff]
    %v304 = vld [vmem:[#allocation3 + $0x5b8] sm:$0xff]
    %v305 = vld [vmem:[#allocation3 + $0x5c0] sm:$0xff]
    %v306 = vld [vmem:[#allocation3 + $0x5c8] sm:$0xff]
    %v307 = vld [vmem:[#allocation3 + $0x5d0] sm:$0xff]
    %v308 = vld [vmem:[#allocation3 + $0x5d8] sm:$0xff]
    %v309 = vld [vmem:[#allocation3 + $0x5e0] sm:$0xff]
    %v310 = vld [vmem:[#allocation3 + $0x5e8] sm:$0xff]
    %v311 = vld [vmem:[#allocation3 + $0x5f0] sm:$0xff]
    %v312 = vld [vmem:[#allocation3 + $0x5f8] sm:$0xff]
    %v313 = vld [vmem:[#allocation3 + $0x600] sm:$0xff]
    %v314 = vld [vmem:[#allocation3 + $0x608] sm:$0xff]
    %v315 = vld [vmem:[#allocation3 + $0x610] sm:$0xff]
    %v316 = vld [vmem:[#allocation3 + $0x618] sm:$0xff]
    %v317 = vld [vmem:[#allocation3 + $0x620] sm:$0xff]
    %v318 = vld [vmem:[#allocation3 + $0x628] sm:$0xff]
    %v319 = vld [vmem:[#allocation3 + $0x630] sm:$0xff]
    %v320 = vld [vmem:[#allocation3 + $0x638] sm:$0xff]
    %v321 = vld [vmem:[#allocation3 + $0x640] sm:$0xff]
    %v322 = vld [vmem:[#allocation3 + $0x648] sm:$0xff]
    %v323 = vld [vmem:[#allocation3 + $0x650] sm:$0xff]
    %v324 = vld [vmem:[#allocation3 + $0x658] sm:$0xff]
    %v325 = vld [vmem:[#allocation3 + $0x660] sm:$0xff]
    %v326 = vld [vmem:[#allocation3 + $0x668] sm:$0xff]
    %v327 = vld [vmem:[#allocation3 + $0x670] sm:$0xff]
    %v328 = vld [vmem:[#allocation3 + $0x678] sm:$0xff]
    %v329 = vld [vmem:[#allocation3 + $0x680] sm:$0xff]
    %v330 = vld [vmem:[#allocation3 + $0x688] sm:$0xff]
    %v331 = vld [vmem:[#allocation3 + $0x690] sm:$0xff]
    %v332 = vld [vmem:[#allocation3 + $0x698] sm:$0xff]
    %v333 = vld [vmem:[#allocation3 + $0x6a0] sm:$0xff]
    %v334 = vld [vmem:[#allocation3 + $0x6a8] sm:$0xff]
    %v335 = vld [vmem:[#allocation3 + $0x6b0] sm:$0xff]
    %v336 = vld [vmem:[#allocation3 + $0x6b8] sm:$0xff]
    %v337 = vld [vmem:[#allocation3 + $0x6c0] sm:$0xff]
    %v338 = vld [vmem:[#allocation3 + $0x6c8] sm:$0xff]
    %v339 = vld [vmem:[#allocation3 + $0x6d0] sm:$0xff]
    %v340 = vld [vmem:[#allocation3 + $0x6d8] sm:$0xff]
    %v341 = vld [vmem:[#allocation3 + $0x6e0] sm:$0xff]
    %v342 = vld [vmem:[#allocation3 + $0x6e8] sm:$0xff]
    %v343 = vld [vmem:[#allocation3 + $0x6f0] sm:$0xff]
    %v344 = vld [vmem:[#allocation3 + $0x6f8] sm:$0xff]
    %v345 = vld [vmem:[#allocation3 + $0x700] sm:$0xff]
    %v346 = vld [vmem:[#allocation3 + $0x708] sm:$0xff]
    %v347 = vld [vmem:[#allocation3 + $0x710] sm:$0xff]
    %v348 = vld [vmem:[#allocation3 + $0x718] sm:$0xff]
    %v349 = vld [vmem:[#allocation3 + $0x720] sm:$0xff]
    %v350 = vld [vmem:[#allocation3 + $0x728] sm:$0xff]
    %v351 = vld [vmem:[#allocation3 + $0x730] sm:$0xff]
    %v352 = vld [vmem:[#allocation3 + $0x738] sm:$0xff]
    %v353 = vld [vmem:[#allocation3 + $0x740] sm:$0xff]
    %v354 = vld [vmem:[#allocation3 + $0x748] sm:$0xff]
    %v355 = vld [vmem:[#allocation3 + $0x750] sm:$0xff]
    %v356 = vld [vmem:[#allocation3 + $0x758] sm:$0xff]
    %v357 = vld [vmem:[#allocation3 + $0x760] sm:$0xff]
    %v358 = vld [vmem:[#allocation3 + $0x768] sm:$0xff]
    %v359 = vld [vmem:[#allocation3 + $0x770] sm:$0xff]
    %v360 = vld [vmem:[#allocation3 + $0x778] sm:$0xff]
    %v361 = vld [vmem:[#allocation3 + $0x780] sm:$0xff]
    %v362 = vld [vmem:[#allocation3 + $0x788] sm:$0xff]
    %v363 = vld [vmem:[#allocation3 + $0x790] sm:$0xff]
    %v364 = vld [vmem:[#allocation3 + $0x798] sm:$0xff]
    %v365 = vld [vmem:[#allocation3 + $0x7a0] sm:$0xff]
    %v366 = vld [vmem:[#allocation3 + $0x7a8] sm:$0xff]
    %v367 = vld [vmem:[#allocation3 + $0x7b0] sm:$0xff]
    %v368 = vld [vmem:[#allocation3 + $0x7b8] sm:$0xff]
    %v369 = vld [vmem:[#allocation3 + $0x7c0] sm:$0xff]
    %v370 = vld [vmem:[#allocation3 + $0x7c8] sm:$0xff]
    %v371 = vld [vmem:[#allocation3 + $0x7d0] sm:$0xff]
    %v372 = vld [vmem:[#allocation3 + $0x7d8] sm:$0xff]
    %v373 = vld [vmem:[#allocation3 + $0x7e0] sm:$0xff]
    %v374 = vld [vmem:[#allocation3 + $0x7e8] sm:$0xff]
    %v375 = vld [vmem:[#allocation3 + $0x7f0] sm:$0xff]
    %v376 = vld [vmem:[#allocation3 + $0x7f8] sm:$0xff]
    %v377 = vld [vmem:[#allocation3 + $0x800] sm:$0xff]
    %v378 = vld [vmem:[#allocation3 + $0x808] sm:$0xff]
    %v379 = vld [vmem:[#allocation3 + $0x810] sm:$0xff]
    %v380 = vld [vmem:[#allocation3 + $0x818] sm:$0xff]
    %v381 = vld [vmem:[#allocation3 + $0x820] sm:$0xff]
    %v382 = vld [vmem:[#allocation3 + $0x828] sm:$0xff]
    %v383 = vld [vmem:[#allocation3 + $0x830] sm:$0xff]
    %v384 = vld [vmem:[#allocation3 + $0x838] sm:$0xff]
    %v385 = vld [vmem:[#allocation3 + $0x840] sm:$0xff]
    %v386 = vld [vmem:[#allocation3 + $0x848] sm:$0xff]
    %v387 = vld [vmem:[#allocation3 + $0x850] sm:$0xff]
    %v388 = vld [vmem:[#allocation3 + $0x858] sm:$0xff]
    %v389 = vld [vmem:[#allocation3 + $0x860] sm:$0xff]
    %v390 = vld [vmem:[#allocation3 + $0x868] sm:$0xff]
    %v391 = vld [vmem:[#allocation3 + $0x870] sm:$0xff]
    %v392 = vld [vmem:[#allocation3 + $0x878] sm:$0xff]
    %v393 = vld [vmem:[#allocation3 + $0x880] sm:$0xff]
    %v394 = vld [vmem:[#allocation3 + $0x888] sm:$0xff]
    %v395 = vld [vmem:[#allocation3 + $0x890] sm:$0xff]
    %v396 = vld [vmem:[#allocation3 + $0x898] sm:$0xff]
    %v397 = vld [vmem:[#allocation3 + $0x8a0] sm:$0xff]
    %v398 = vld [vmem:[#allocation3 + $0x8a8] sm:$0xff]
    %v399 = vld [vmem:[#allocation3 + $0x8b0] sm:$0xff]
    %v400 = vld [vmem:[#allocation3 + $0x8b8] sm:$0xff]
    %v401 = vld [vmem:[#allocation3 + $0x8c0] sm:$0xff]
    %v402 = vld [vmem:[#allocation3 + $0x8c8] sm:$0xff]
    %v403 = vld [vmem:[#allocation3 + $0x8d0] sm:$0xff]
    %v404 = vld [vmem:[#allocation3 + $0x8d8] sm:$0xff]
    %v405 = vld [vmem:[#allocation3 + $0x8e0] sm:$0xff]
    %v406 = vld [vmem:[#allocation3 + $0x8e8] sm:$0xff]
    %v407 = vld [vmem:[#allocation3 + $0x8f0] sm:$0xff]
    %v408 = vld [vmem:[#allocation3 + $0x8f8] sm:$0xff]
    %v409 = vld [vmem:[#allocation3 + $0x900] sm:$0xff]
    %v410 = vld [vmem:[#allocation3 + $0x908] sm:$0xff]
    %v411 = vld [vmem:[#allocation3 + $0x910] sm:$0xff]
    %v412 = vld [vmem:[#allocation3 + $0x918] sm:$0xff]
    %v413 = vld [vmem:[#allocation3 + $0x920] sm:$0xff]
    %v414 = vld [vmem:[#allocation3 + $0x928] sm:$0xff]
    %v415 = vld [vmem:[#allocation3 + $0x930] sm:$0xff]
    %v416 = vld [vmem:[#allocation3 + $0x938] sm:$0xff]
    %v417 = vld [vmem:[#allocation3 + $0x940] sm:$0xff]
    %v418 = vld [vmem:[#allocation3 + $0x948] sm:$0xff]
    %v419 = vld [vmem:[#allocation3 + $0x950] sm:$0xff]
    %v420 = vld [vmem:[#allocation3 + $0x958] sm:$0xff]
    %v421 = vld [vmem:[#allocation3 + $0x960] sm:$0xff]
    %v422 = vld [vmem:[#allocation3 + $0x968] sm:$0xff]
    %v423 = vld [vmem:[#allocation3 + $0x970] sm:$0xff]
    %v424 = vld [vmem:[#allocation3 + $0x978] sm:$0xff]
    %v425 = vld [vmem:[#allocation3 + $0x980] sm:$0xff]
    %v426 = vld [vmem:[#allocation3 + $0x988] sm:$0xff]
    %v427 = vld [vmem:[#allocation3 + $0x990] sm:$0xff]
    %v428 = vld [vmem:[#allocation3 + $0x998] sm:$0xff]
    %v429 = vld [vmem:[#allocation3 + $0x9a0] sm:$0xff]
    %v430 = vld [vmem:[#allocation3 + $0x9a8] sm:$0xff]
    %v431 = vld [vmem:[#allocation3 + $0x9b0] sm:$0xff]
    %v432 = vld [vmem:[#allocation3 + $0x9b8] sm:$0xff]
    %v433 = vld [vmem:[#allocation3 + $0x9c0] sm:$0xff]
    %v434 = vld [vmem:[#allocation3 + $0x9c8] sm:$0xff]
    %v435 = vld [vmem:[#allocation3 + $0x9d0] sm:$0xff]
    %v436 = vld [vmem:[#allocation3 + $0x9d8] sm:$0xff]
    %v437 = vld [vmem:[#allocation3 + $0x9e0] sm:$0xff]
    %v438 = vld [vmem:[#allocation3 + $0x9e8] sm:$0xff]
    %v439 = vld [vmem:[#allocation3 + $0x9f0] sm:$0xff]
    %v440 = vld [vmem:[#allocation3 + $0x9f8] sm:$0xff]
    %v451 = vunpack.c.l.b16 %v111
    %v452 = vunpack.c.h.b16 %v111
    %v453 = vunpack.c.l.b16 %v112
    %v454 = vunpack.c.h.b16 %v112
    %v455 = vunpack.c.l.b16 %v113
    %v456 = vunpack.c.h.b16 %v113
    %v457 = vunpack.c.l.b16 %v114
    %v458 = vunpack.c.h.b16 %v114
    %v459 = vunpack.c.l.b16 %v115
    %v460 = vunpack.c.h.b16 %v115
    %v461 = vunpack.c.l.b16 %v116
    %v462 = vunpack.c.h.b16 %v116
    %v463 = vunpack.c.l.b16 %v117
    %v464 = vunpack.c.h.b16 %v117
    %v465 = vunpack.c.l.b16 %v118
    %v466 = vunpack.c.h.b16 %v118
    %v467 = vunpack.c.l.b16 %v119
    %v468 = vunpack.c.h.b16 %v119
    %v469 = vunpack.c.l.b16 %v120
    %v470 = vunpack.c.h.b16 %v120
    %v471 = vpack.c.b16 %v451, %v451
    %v472 = vpack.c.b16 %v452, %v452
    %v473 = vpack.c.b16 %v453, %v453
    %v474 = vpack.c.b16 %v454, %v454
    %v475 = vpack.c.b16 %v455, %v455
    %v476 = vpack.c.b16 %v456, %v456
    %v477 = vpack.c.b16 %v457, %v457
    %v478 = vpack.c.b16 %v458, %v458
    %v479 = vpack.c.b16 %v459, %v459
    %v480 = vpack.c.b16 %v460, %v460
    %v481 = vpack.c.b16 %v461, %v461
    %v482 = vpack.c.b16 %v462, %v462
    %v483 = vpack.c.b16 %v463, %v463
    %v484 = vpack.c.b16 %v464, %v464
    %v485 = vpack.c.b16 %v465, %v465
    %v486 = vpack.c.b16 %v466, %v466
    %v487 = vpack.c.b16 %v467, %v467
    %v488 = vpack.c.b16 %v468, %v468
    %v489 = vpack.c.b16 %v469, %v469
    %v490 = vpack.c.b16 %v470, %v470
    %v831 = vunpack.c.l.b16 %v121
    %v832 = vunpack.c.h.b16 %v121
    %v833 = vunpack.c.l.b16 %v122
    %v834 = vunpack.c.h.b16 %v122
    %v835 = vunpack.c.l.b16 %v123
    %v836 = vunpack.c.h.b16 %v123
    %v837 = vunpack.c.l.b16 %v124
    %v838 = vunpack.c.h.b16 %v124
    %v839 = vunpack.c.l.b16 %v125
    %v840 = vunpack.c.h.b16 %v125
    %v841 = vunpack.c.l.b16 %v126
    %v842 = vunpack.c.h.b16 %v126
    %v843 = vunpack.c.l.b16 %v127
    %v844 = vunpack.c.h.b16 %v127
    %v845 = vunpack.c.l.b16 %v128
    %v846 = vunpack.c.h.b16 %v128
    %v847 = vunpack.c.l.b16 %v129
    %v848 = vunpack.c.h.b16 %v129
    %v849 = vunpack.c.l.b16 %v130
    %v850 = vunpack.c.h.b16 %v130
    %v851 = vunpack.c.l.b16 %v131
    %v852 = vunpack.c.h.b16 %v131
    %v853 = vunpack.c.l.b16 %v132
    %v854 = vunpack.c.h.b16 %v132
    %v855 = vunpack.c.l.b16 %v133
    %v856 = vunpack.c.h.b16 %v133
    %v857 = vunpack.c.l.b16 %v134
    %v858 = vunpack.c.h.b16 %v134
    %v859 = vunpack.c.l.b16 %v135
    %v860 = vunpack.c.h.b16 %v135
    %v861 = vunpack.c.l.b16 %v136
    %v862 = vunpack.c.h.b16 %v136
    %v863 = vunpack.c.l.b16 %v137
    %v864 = vunpack.c.h.b16 %v137
    %v865 = vunpack.c.l.b16 %v138
    %v866 = vunpack.c.h.b16 %v138
    %v867 = vunpack.c.l.b16 %v139
    %v868 = vunpack.c.h.b16 %v139
    %v869 = vunpack.c.l.b16 %v140
    %v870 = vunpack.c.h.b16 %v140
    %v871 = vunpack.c.l.b16 %v141
    %v872 = vunpack.c.h.b16 %v141
    %v873 = vunpack.c.l.b16 %v142
    %v874 = vunpack.c.h.b16 %v142
    %v875 = vunpack.c.l.b16 %v143
    %v876 = vunpack.c.h.b16 %v143
    %v877 = vunpack.c.l.b16 %v144
    %v878 = vunpack.c.h.b16 %v144
    %v879 = vunpack.c.l.b16 %v145
    %v880 = vunpack.c.h.b16 %v145
    %v881 = vunpack.c.l.b16 %v146
    %v882 = vunpack.c.h.b16 %v146
    %v883 = vunpack.c.l.b16 %v147
    %v884 = vunpack.c.h.b16 %v147
    %v885 = vunpack.c.l.b16 %v148
    %v886 = vunpack.c.h.b16 %v148
    %v887 = vunpack.c.l.b16 %v149
    %v888 = vunpack.c.h.b16 %v149
    %v889 = vunpack.c.l.b16 %v150
    %v890 = vunpack.c.h.b16 %v150
    %v891 = vunpack.c.l.b16 %v151
    %v892 = vunpack.c.h.b16 %v151
    %v893 = vunpack.c.l.b16 %v152
    %v894 = vunpack.c.h.b16 %v152
    %v895 = vunpack.c.l.b16 %v153
    %v896 = vunpack.c.h.b16 %v153
    %v897 = vunpack.c.l.b16 %v154
    %v898 = vunpack.c.h.b16 %v154
    %v899 = vunpack.c.l.b16 %v155
    %v900 = vunpack.c.h.b16 %v155
    %v901 = vunpack.c.l.b16 %v156
    %v902 = vunpack.c.h.b16 %v156
    %v903 = vunpack.c.l.b16 %v157
    %v904 = vunpack.c.h.b16 %v157
    %v905 = vunpack.c.l.b16 %v158
    %v906 = vunpack.c.h.b16 %v158
    %v907 = vunpack.c.l.b16 %v159
    %v908 = vunpack.c.h.b16 %v159
    %v909 = vunpack.c.l.b16 %v160
    %v910 = vunpack.c.h.b16 %v160
    %v911 = vunpack.c.l.b16 %v161
    %v912 = vunpack.c.h.b16 %v161
    %v913 = vunpack.c.l.b16 %v162
    %v914 = vunpack.c.h.b16 %v162
    %v915 = vunpack.c.l.b16 %v163
    %v916 = vunpack.c.h.b16 %v163
    %v917 = vunpack.c.l.b16 %v164
    %v918 = vunpack.c.h.b16 %v164
    %v919 = vunpack.c.l.b16 %v165
    %v920 = vunpack.c.h.b16 %v165
    %v921 = vunpack.c.l.b16 %v166
    %v922 = vunpack.c.h.b16 %v166
    %v923 = vunpack.c.l.b16 %v167
    %v924 = vunpack.c.h.b16 %v167
    %v925 = vunpack.c.l.b16 %v168
    %v926 = vunpack.c.h.b16 %v168
    %v927 = vunpack.c.l.b16 %v169
    %v928 = vunpack.c.h.b16 %v169
    %v929 = vunpack.c.l.b16 %v170
    %v930 = vunpack.c.h.b16 %v170
    %v931 = vunpack.c.l.b16 %v171
    %v932 = vunpack.c.h.b16 %v171
    %v933 = vunpack.c.l.b16 %v172
    %v934 = vunpack.c.h.b16 %v172
    %v935 = vunpack.c.l.b16 %v173
    %v936 = vunpack.c.h.b16 %v173
    %v937 = vunpack.c.l.b16 %v174
    %v938 = vunpack.c.h.b16 %v174
    %v939 = vunpack.c.l.b16 %v175
    %v940 = vunpack.c.h.b16 %v175
    %v941 = vunpack.c.l.b16 %v176
    %v942 = vunpack.c.h.b16 %v176
    %v943 = vunpack.c.l.b16 %v177
    %v944 = vunpack.c.h.b16 %v177
    %v945 = vunpack.c.l.b16 %v178
    %v946 = vunpack.c.h.b16 %v178
    %v947 = vunpack.c.l.b16 %v179
    %v948 = vunpack.c.h.b16 %v179
    %v949 = vunpack.c.l.b16 %v180
    %v950 = vunpack.c.h.b16 %v180
    %v951 = vunpack.c.l.b16 %v181
    %v952 = vunpack.c.h.b16 %v181
    %v953 = vunpack.c.l.b16 %v182
    %v954 = vunpack.c.h.b16 %v182
    %v955 = vunpack.c.l.b16 %v183
    %v956 = vunpack.c.h.b16 %v183
    %v957 = vunpack.c.l.b16 %v184
    %v958 = vunpack.c.h.b16 %v184
    %v959 = vunpack.c.l.b16 %v185
    %v960 = vunpack.c.h.b16 %v185
    %v961 = vunpack.c.l.b16 %v186
    %v962 = vunpack.c.h.b16 %v186
    %v963 = vunpack.c.l.b16 %v187
    %v964 = vunpack.c.h.b16 %v187
    %v965 = vunpack.c.l.b16 %v188
    %v966 = vunpack.c.h.b16 %v188
    %v967 = vunpack.c.l.b16 %v189
    %v968 = vunpack.c.h.b16 %v189
    %v969 = vunpack.c.l.b16 %v190
    %v970 = vunpack.c.h.b16 %v190
    %v971 = vunpack.c.l.b16 %v191
    %v972 = vunpack.c.h.b16 %v191
    %v973 = vunpack.c.l.b16 %v192
    %v974 = vunpack.c.h.b16 %v192
    %v975 = vunpack.c.l.b16 %v193
    %v976 = vunpack.c.h.b16 %v193
    %v977 = vunpack.c.l.b16 %v194
    %v978 = vunpack.c.h.b16 %v194
    %v979 = vunpack.c.l.b16 %v195
    %v980 = vunpack.c.h.b16 %v195
    %v981 = vunpack.c.l.b16 %v196
    %v982 = vunpack.c.h.b16 %v196
    %v983 = vunpack.c.l.b16 %v197
    %v984 = vunpack.c.h.b16 %v197
    %v985 = vunpack.c.l.b16 %v198
    %v986 = vunpack.c.h.b16 %v198
    %v987 = vunpack.c.l.b16 %v199
    %v988 = vunpack.c.h.b16 %v199
    %v989 = vunpack.c.l.b16 %v200
    %v990 = vunpack.c.h.b16 %v200
    %v991 = vunpack.c.l.b16 %v201
    %v992 = vunpack.c.h.b16 %v201
    %v993 = vunpack.c.l.b16 %v202
    %v994 = vunpack.c.h.b16 %v202
    %v995 = vunpack.c.l.b16 %v203
    %v996 = vunpack.c.h.b16 %v203
    %v997 = vunpack.c.l.b16 %v204
    %v998 = vunpack.c.h.b16 %v204
    %v999 = vunpack.c.l.b16 %v205
    %v1000 = vunpack.c.h.b16 %v205
    %v1001 = vunpack.c.l.b16 %v206
    %v1002 = vunpack.c.h.b16 %v206
    %v1003 = vunpack.c.l.b16 %v207
    %v1004 = vunpack.c.h.b16 %v207
    %v1005 = vunpack.c.l.b16 %v208
    %v1006 = vunpack.c.h.b16 %v208
    %v1007 = vunpack.c.l.b16 %v209
    %v1008 = vunpack.c.h.b16 %v209
    %v1009 = vunpack.c.l.b16 %v210
    %v1010 = vunpack.c.h.b16 %v210
    %v1011 = vunpack.c.l.b16 %v211
    %v1012 = vunpack.c.h.b16 %v211
    %v1013 = vunpack.c.l.b16 %v212
    %v1014 = vunpack.c.h.b16 %v212
    %v1015 = vunpack.c.l.b16 %v213
    %v1016 = vunpack.c.h.b16 %v213
    %v1017 = vunpack.c.l.b16 %v214
    %v1018 = vunpack.c.h.b16 %v214
    %v1019 = vunpack.c.l.b16 %v215
    %v1020 = vunpack.c.h.b16 %v215
    %v1021 = vunpack.c.l.b16 %v216
    %v1022 = vunpack.c.h.b16 %v216
    %v1023 = vunpack.c.l.b16 %v217
    %v1024 = vunpack.c.h.b16 %v217
    %v1025 = vunpack.c.l.b16 %v218
    %v1026 = vunpack.c.h.b16 %v218
    %v1027 = vunpack.c.l.b16 %v219
    %v1028 = vunpack.c.h.b16 %v219
    %v1029 = vunpack.c.l.b16 %v220
    %v1030 = vunpack.c.h.b16 %v220
    %v1031 = vunpack.c.l.b16 %v221
    %v1032 = vunpack.c.h.b16 %v221
    %v1033 = vunpack.c.l.b16 %v222
    %v1034 = vunpack.c.h.b16 %v222
    %v1035 = vunpack.c.l.b16 %v223
    %v1036 = vunpack.c.h.b16 %v223
    %v1037 = vunpack.c.l.b16 %v224
    %v1038 = vunpack.c.h.b16 %v224
    %v1039 = vunpack.c.l.b16 %v225
    %v1040 = vunpack.c.h.b16 %v225
    %v1041 = vunpack.c.l.b16 %v226
    %v1042 = vunpack.c.h.b16 %v226
    %v1043 = vunpack.c.l.b16 %v227
    %v1044 = vunpack.c.h.b16 %v227
    %v1045 = vunpack.c.l.b16 %v228
    %v1046 = vunpack.c.h.b16 %v228
    %v1047 = vunpack.c.l.b16 %v229
    %v1048 = vunpack.c.h.b16 %v229
    %v1049 = vunpack.c.l.b16 %v230
    %v1050 = vunpack.c.h.b16 %v230
    %v1051 = vunpack.c.l.b16 %v231
    %v1052 = vunpack.c.h.b16 %v231
    %v1053 = vunpack.c.l.b16 %v232
    %v1054 = vunpack.c.h.b16 %v232
    %v1055 = vunpack.c.l.b16 %v233
    %v1056 = vunpack.c.h.b16 %v233
    %v1057 = vunpack.c.l.b16 %v234
    %v1058 = vunpack.c.h.b16 %v234
    %v1059 = vunpack.c.l.b16 %v235
    %v1060 = vunpack.c.h.b16 %v235
    %v1061 = vunpack.c.l.b16 %v236
    %v1062 = vunpack.c.h.b16 %v236
    %v1063 = vunpack.c.l.b16 %v237
    %v1064 = vunpack.c.h.b16 %v237
    %v1065 = vunpack.c.l.b16 %v238
    %v1066 = vunpack.c.h.b16 %v238
    %v1067 = vunpack.c.l.b16 %v239
    %v1068 = vunpack.c.h.b16 %v239
    %v1069 = vunpack.c.l.b16 %v240
    %v1070 = vunpack.c.h.b16 %v240
    %v1071 = vunpack.c.l.b16 %v241
    %v1072 = vunpack.c.h.b16 %v241
    %v1073 = vunpack.c.l.b16 %v242
    %v1074 = vunpack.c.h.b16 %v242
    %v1075 = vunpack.c.l.b16 %v243
    %v1076 = vunpack.c.h.b16 %v243
    %v1077 = vunpack.c.l.b16 %v244
    %v1078 = vunpack.c.h.b16 %v244
    %v1079 = vunpack.c.l.b16 %v245
    %v1080 = vunpack.c.h.b16 %v245
    %v1081 = vunpack.c.l.b16 %v246
    %v1082 = vunpack.c.h.b16 %v246
    %v1083 = vunpack.c.l.b16 %v247
    %v1084 = vunpack.c.h.b16 %v247
    %v1085 = vunpack.c.l.b16 %v248
    %v1086 = vunpack.c.h.b16 %v248
    %v1087 = vunpack.c.l.b16 %v249
    %v1088 = vunpack.c.h.b16 %v249
    %v1089 = vunpack.c.l.b16 %v250
    %v1090 = vunpack.c.h.b16 %v250
    %v1091 = vunpack.c.l.b16 %v251
    %v1092 = vunpack.c.h.b16 %v251
    %v1093 = vunpack.c.l.b16 %v252
    %v1094 = vunpack.c.h.b16 %v252
    %v1095 = vunpack.c.l.b16 %v253
    %v1096 = vunpack.c.h.b16 %v253
    %v1097 = vunpack.c.l.b16 %v254
    %v1098 = vunpack.c.h.b16 %v254
    %v1099 = vunpack.c.l.b16 %v255
    %v1100 = vunpack.c.h.b16 %v255
    %v1101 = vunpack.c.l.b16 %v256
    %v1102 = vunpack.c.h.b16 %v256
    %v1103 = vunpack.c.l.b16 %v257
    %v1104 = vunpack.c.h.b16 %v257
    %v1105 = vunpack.c.l.b16 %v258
    %v1106 = vunpack.c.h.b16 %v258
    %v1107 = vunpack.c.l.b16 %v259
    %v1108 = vunpack.c.h.b16 %v259
    %v1109 = vunpack.c.l.b16 %v260
    %v1110 = vunpack.c.h.b16 %v260
    %v1111 = vunpack.c.l.b16 %v261
    %v1112 = vunpack.c.h.b16 %v261
    %v1113 = vunpack.c.l.b16 %v262
    %v1114 = vunpack.c.h.b16 %v262
    %v1115 = vunpack.c.l.b16 %v263
    %v1116 = vunpack.c.h.b16 %v263
    %v1117 = vunpack.c.l.b16 %v264
    %v1118 = vunpack.c.h.b16 %v264
    %v1119 = vunpack.c.l.b16 %v265
    %v1120 = vunpack.c.h.b16 %v265
    %v1121 = vunpack.c.l.b16 %v266
    %v1122 = vunpack.c.h.b16 %v266
    %v1123 = vunpack.c.l.b16 %v267
    %v1124 = vunpack.c.h.b16 %v267
    %v1125 = vunpack.c.l.b16 %v268
    %v1126 = vunpack.c.h.b16 %v268
    %v1127 = vunpack.c.l.b16 %v269
    %v1128 = vunpack.c.h.b16 %v269
    %v1129 = vunpack.c.l.b16 %v270
    %v1130 = vunpack.c.h.b16 %v270
    %v1131 = vunpack.c.l.b16 %v271
    %v1132 = vunpack.c.h.b16 %v271
    %v1133 = vunpack.c.l.b16 %v272
    %v1134 = vunpack.c.h.b16 %v272
    %v1135 = vunpack.c.l.b16 %v273
    %v1136 = vunpack.c.h.b16 %v273
    %v1137 = vunpack.c.l.b16 %v274
    %v1138 = vunpack.c.h.b16 %v274
    %v1139 = vunpack.c.l.b16 %v275
    %v1140 = vunpack.c.h.b16 %v275
    %v1141 = vunpack.c.l.b16 %v276
    %v1142 = vunpack.c.h.b16 %v276
    %v1143 = vunpack.c.l.b16 %v277
    %v1144 = vunpack.c.h.b16 %v277
    %v1145 = vunpack.c.l.b16 %v278
    %v1146 = vunpack.c.h.b16 %v278
    %v1147 = vunpack.c.l.b16 %v279
    %v1148 = vunpack.c.h.b16 %v279
    %v1149 = vunpack.c.l.b16 %v280
    %v1150 = vunpack.c.h.b16 %v280
    %v1151 = vunpack.c.l.b16 %v281
    %v1152 = vunpack.c.h.b16 %v281
    %v1153 = vunpack.c.l.b16 %v282
    %v1154 = vunpack.c.h.b16 %v282
    %v1155 = vunpack.c.l.b16 %v283
    %v1156 = vunpack.c.h.b16 %v283
    %v1157 = vunpack.c.l.b16 %v284
    %v1158 = vunpack.c.h.b16 %v284
    %v1159 = vunpack.c.l.b16 %v285
    %v1160 = vunpack.c.h.b16 %v285
    %v1161 = vunpack.c.l.b16 %v286
    %v1162 = vunpack.c.h.b16 %v286
    %v1163 = vunpack.c.l.b16 %v287
    %v1164 = vunpack.c.h.b16 %v287
    %v1165 = vunpack.c.l.b16 %v288
    %v1166 = vunpack.c.h.b16 %v288
    %v1167 = vunpack.c.l.b16 %v289
    %v1168 = vunpack.c.h.b16 %v289
    %v1169 = vunpack.c.l.b16 %v290
    %v1170 = vunpack.c.h.b16 %v290
    %v1171 = vunpack.c.l.b16 %v291
    %v1172 = vunpack.c.h.b16 %v291
    %v1173 = vunpack.c.l.b16 %v292
    %v1174 = vunpack.c.h.b16 %v292
    %v1175 = vunpack.c.l.b16 %v293
    %v1176 = vunpack.c.h.b16 %v293
    %v1177 = vunpack.c.l.b16 %v294
    %v1178 = vunpack.c.h.b16 %v294
    %v1179 = vunpack.c.l.b16 %v295
    %v1180 = vunpack.c.h.b16 %v295
    %v1181 = vunpack.c.l.b16 %v296
    %v1182 = vunpack.c.h.b16 %v296
    %v1183 = vunpack.c.l.b16 %v297
    %v1184 = vunpack.c.h.b16 %v297
    %v1185 = vunpack.c.l.b16 %v298
    %v1186 = vunpack.c.h.b16 %v298
    %v1187 = vunpack.c.l.b16 %v299
    %v1188 = vunpack.c.h.b16 %v299
    %v1189 = vunpack.c.l.b16 %v300
    %v1190 = vunpack.c.h.b16 %v300
    %v1191 = vunpack.c.l.b16 %v301
    %v1192 = vunpack.c.h.b16 %v301
    %v1193 = vunpack.c.l.b16 %v302
    %v1194 = vunpack.c.h.b16 %v302
    %v1195 = vunpack.c.l.b16 %v303
    %v1196 = vunpack.c.h.b16 %v303
    %v1197 = vunpack.c.l.b16 %v304
    %v1198 = vunpack.c.h.b16 %v304
    %v1199 = vunpack.c.l.b16 %v305
    %v1200 = vunpack.c.h.b16 %v305
    %v1201 = vunpack.c.l.b16 %v306
    %v1202 = vunpack.c.h.b16 %v306
    %v1203 = vunpack.c.l.b16 %v307
    %v1204 = vunpack.c.h.b16 %v307
    %v1205 = vunpack.c.l.b16 %v308
    %v1206 = vunpack.c.h.b16 %v308
    %v1207 = vunpack.c.l.b16 %v309
    %v1208 = vunpack.c.h.b16 %v309
    %v1209 = vunpack.c.l.b16 %v310
    %v1210 = vunpack.c.h.b16 %v310
    %v1211 = vunpack.c.l.b16 %v311
    %v1212 = vunpack.c.h.b16 %v311
    %v1213 = vunpack.c.l.b16 %v312
    %v1214 = vunpack.c.h.b16 %v312
    %v1215 = vunpack.c.l.b16 %v313
    %v1216 = vunpack.c.h.b16 %v313
    %v1217 = vunpack.c.l.b16 %v314
    %v1218 = vunpack.c.h.b16 %v314
    %v1219 = vunpack.c.l.b16 %v315
    %v1220 = vunpack.c.h.b16 %v315
    %v1221 = vunpack.c.l.b16 %v316
    %v1222 = vunpack.c.h.b16 %v316
    %v1223 = vunpack.c.l.b16 %v317
    %v1224 = vunpack.c.h.b16 %v317
    %v1225 = vunpack.c.l.b16 %v318
    %v1226 = vunpack.c.h.b16 %v318
    %v1227 = vunpack.c.l.b16 %v319
    %v1228 = vunpack.c.h.b16 %v319
    %v1229 = vunpack.c.l.b16 %v320
    %v1230 = vunpack.c.h.b16 %v320
    %v1231 = vunpack.c.l.b16 %v321
    %v1232 = vunpack.c.h.b16 %v321
    %v1233 = vunpack.c.l.b16 %v322
    %v1234 = vunpack.c.h.b16 %v322
    %v1235 = vunpack.c.l.b16 %v323
    %v1236 = vunpack.c.h.b16 %v323
    %v1237 = vunpack.c.l.b16 %v324
    %v1238 = vunpack.c.h.b16 %v324
    %v1239 = vunpack.c.l.b16 %v325
    %v1240 = vunpack.c.h.b16 %v325
    %v1241 = vunpack.c.l.b16 %v326
    %v1242 = vunpack.c.h.b16 %v326
    %v1243 = vunpack.c.l.b16 %v327
    %v1244 = vunpack.c.h.b16 %v327
    %v1245 = vunpack.c.l.b16 %v328
    %v1246 = vunpack.c.h.b16 %v328
    %v1247 = vunpack.c.l.b16 %v329
    %v1248 = vunpack.c.h.b16 %v329
    %v1249 = vunpack.c.l.b16 %v330
    %v1250 = vunpack.c.h.b16 %v330
    %v1251 = vunpack.c.l.b16 %v331
    %v1252 = vunpack.c.h.b16 %v331
    %v1253 = vunpack.c.l.b16 %v332
    %v1254 = vunpack.c.h.b16 %v332
    %v1255 = vunpack.c.l.b16 %v333
    %v1256 = vunpack.c.h.b16 %v333
    %v1257 = vunpack.c.l.b16 %v334
    %v1258 = vunpack.c.h.b16 %v334
    %v1259 = vunpack.c.l.b16 %v335
    %v1260 = vunpack.c.h.b16 %v335
    %v1261 = vunpack.c.l.b16 %v336
    %v1262 = vunpack.c.h.b16 %v336
    %v1263 = vunpack.c.l.b16 %v337
    %v1264 = vunpack.c.h.b16 %v337
    %v1265 = vunpack.c.l.b16 %v338
    %v1266 = vunpack.c.h.b16 %v338
    %v1267 = vunpack.c.l.b16 %v339
    %v1268 = vunpack.c.h.b16 %v339
    %v1269 = vunpack.c.l.b16 %v340
    %v1270 = vunpack.c.h.b16 %v340
    %v1271 = vunpack.c.l.b16 %v341
    %v1272 = vunpack.c.h.b16 %v341
    %v1273 = vunpack.c.l.b16 %v342
    %v1274 = vunpack.c.h.b16 %v342
    %v1275 = vunpack.c.l.b16 %v343
    %v1276 = vunpack.c.h.b16 %v343
    %v1277 = vunpack.c.l.b16 %v344
    %v1278 = vunpack.c.h.b16 %v344
    %v1279 = vunpack.c.l.b16 %v345
    %v1280 = vunpack.c.h.b16 %v345
    %v1281 = vunpack.c.l.b16 %v346
    %v1282 = vunpack.c.h.b16 %v346
    %v1283 = vunpack.c.l.b16 %v347
    %v1284 = vunpack.c.h.b16 %v347
    %v1285 = vunpack.c.l.b16 %v348
    %v1286 = vunpack.c.h.b16 %v348
    %v1287 = vunpack.c.l.b16 %v349
    %v1288 = vunpack.c.h.b16 %v349
    %v1289 = vunpack.c.l.b16 %v350
    %v1290 = vunpack.c.h.b16 %v350
    %v1291 = vunpack.c.l.b16 %v351
    %v1292 = vunpack.c.h.b16 %v351
    %v1293 = vunpack.c.l.b16 %v352
    %v1294 = vunpack.c.h.b16 %v352
    %v1295 = vunpack.c.l.b16 %v353
    %v1296 = vunpack.c.h.b16 %v353
    %v1297 = vunpack.c.l.b16 %v354
    %v1298 = vunpack.c.h.b16 %v354
    %v1299 = vunpack.c.l.b16 %v355
    %v1300 = vunpack.c.h.b16 %v355
    %v1301 = vunpack.c.l.b16 %v356
    %v1302 = vunpack.c.h.b16 %v356
    %v1303 = vunpack.c.l.b16 %v357
    %v1304 = vunpack.c.h.b16 %v357
    %v1305 = vunpack.c.l.b16 %v358
    %v1306 = vunpack.c.h.b16 %v358
    %v1307 = vunpack.c.l.b16 %v359
    %v1308 = vunpack.c.h.b16 %v359
    %v1309 = vunpack.c.l.b16 %v360
    %v1310 = vunpack.c.h.b16 %v360
    %v1311 = vunpack.c.l.b16 %v361
    %v1312 = vunpack.c.h.b16 %v361
    %v1313 = vunpack.c.l.b16 %v362
    %v1314 = vunpack.c.h.b16 %v362
    %v1315 = vunpack.c.l.b16 %v363
    %v1316 = vunpack.c.h.b16 %v363
    %v1317 = vunpack.c.l.b16 %v364
    %v1318 = vunpack.c.h.b16 %v364
    %v1319 = vunpack.c.l.b16 %v365
    %v1320 = vunpack.c.h.b16 %v365
    %v1321 = vunpack.c.l.b16 %v366
    %v1322 = vunpack.c.h.b16 %v366
    %v1323 = vunpack.c.l.b16 %v367
    %v1324 = vunpack.c.h.b16 %v367
    %v1325 = vunpack.c.l.b16 %v368
    %v1326 = vunpack.c.h.b16 %v368
    %v1327 = vunpack.c.l.b16 %v369
    %v1328 = vunpack.c.h.b16 %v369
    %v1329 = vunpack.c.l.b16 %v370
    %v1330 = vunpack.c.h.b16 %v370
    %v1331 = vunpack.c.l.b16 %v371
    %v1332 = vunpack.c.h.b16 %v371
    %v1333 = vunpack.c.l.b16 %v372
    %v1334 = vunpack.c.h.b16 %v372
    %v1335 = vunpack.c.l.b16 %v373
    %v1336 = vunpack.c.h.b16 %v373
    %v1337 = vunpack.c.l.b16 %v374
    %v1338 = vunpack.c.h.b16 %v374
    %v1339 = vunpack.c.l.b16 %v375
    %v1340 = vunpack.c.h.b16 %v375
    %v1341 = vunpack.c.l.b16 %v376
    %v1342 = vunpack.c.h.b16 %v376
    %v1343 = vunpack.c.l.b16 %v377
    %v1344 = vunpack.c.h.b16 %v377
    %v1345 = vunpack.c.l.b16 %v378
    %v1346 = vunpack.c.h.b16 %v378
    %v1347 = vunpack.c.l.b16 %v379
    %v1348 = vunpack.c.h.b16 %v379
    %v1349 = vunpack.c.l.b16 %v380
    %v1350 = vunpack.c.h.b16 %v380
    %v1351 = vunpack.c.l.b16 %v381
    %v1352 = vunpack.c.h.b16 %v381
    %v1353 = vunpack.c.l.b16 %v382
    %v1354 = vunpack.c.h.b16 %v382
    %v1355 = vunpack.c.l.b16 %v383
    %v1356 = vunpack.c.h.b16 %v383
    %v1357 = vunpack.c.l.b16 %v384
    %v1358 = vunpack.c.h.b16 %v384
    %v1359 = vunpack.c.l.b16 %v385
    %v1360 = vunpack.c.h.b16 %v385
    %v1361 = vunpack.c.l.b16 %v386
    %v1362 = vunpack.c.h.b16 %v386
    %v1363 = vunpack.c.l.b16 %v387
    %v1364 = vunpack.c.h.b16 %v387
    %v1365 = vunpack.c.l.b16 %v388
    %v1366 = vunpack.c.h.b16 %v388
    %v1367 = vunpack.c.l.b16 %v389
    %v1368 = vunpack.c.h.b16 %v389
    %v1369 = vunpack.c.l.b16 %v390
    %v1370 = vunpack.c.h.b16 %v390
    %v1371 = vunpack.c.l.b16 %v391
    %v1372 = vunpack.c.h.b16 %v391
    %v1373 = vunpack.c.l.b16 %v392
    %v1374 = vunpack.c.h.b16 %v392
    %v1375 = vunpack.c.l.b16 %v393
    %v1376 = vunpack.c.h.b16 %v393
    %v1377 = vunpack.c.l.b16 %v394
    %v1378 = vunpack.c.h.b16 %v394
    %v1379 = vunpack.c.l.b16 %v395
    %v1380 = vunpack.c.h.b16 %v395
    %v1381 = vunpack.c.l.b16 %v396
    %v1382 = vunpack.c.h.b16 %v396
    %v1383 = vunpack.c.l.b16 %v397
    %v1384 = vunpack.c.h.b16 %v397
    %v1385 = vunpack.c.l.b16 %v398
    %v1386 = vunpack.c.h.b16 %v398
    %v1387 = vunpack.c.l.b16 %v399
    %v1388 = vunpack.c.h.b16 %v399
    %v1389 = vunpack.c.l.b16 %v400
    %v1390 = vunpack.c.h.b16 %v400
    %v1391 = vunpack.c.l.b16 %v401
    %v1392 = vunpack.c.h.b16 %v401
    %v1393 = vunpack.c.l.b16 %v402
    %v1394 = vunpack.c.h.b16 %v402
    %v1395 = vunpack.c.l.b16 %v403
    %v1396 = vunpack.c.h.b16 %v403
    %v1397 = vunpack.c.l.b16 %v404
    %v1398 = vunpack.c.h.b16 %v404
    %v1399 = vunpack.c.l.b16 %v405
    %v1400 = vunpack.c.h.b16 %v405
    %v1401 = vunpack.c.l.b16 %v406
    %v1402 = vunpack.c.h.b16 %v406
    %v1403 = vunpack.c.l.b16 %v407
    %v1404 = vunpack.c.h.b16 %v407
    %v1405 = vunpack.c.l.b16 %v408
    %v1406 = vunpack.c.h.b16 %v408
    %v1407 = vunpack.c.l.b16 %v409
    %v1408 = vunpack.c.h.b16 %v409
    %v1409 = vunpack.c.l.b16 %v410
    %v1410 = vunpack.c.h.b16 %v410
    %v1411 = vunpack.c.l.b16 %v411
    %v1412 = vunpack.c.h.b16 %v411
    %v1413 = vunpack.c.l.b16 %v412
    %v1414 = vunpack.c.h.b16 %v412
    %v1415 = vunpack.c.l.b16 %v413
    %v1416 = vunpack.c.h.b16 %v413
    %v1417 = vunpack.c.l.b16 %v414
    %v1418 = vunpack.c.h.b16 %v414
    %v1419 = vunpack.c.l.b16 %v415
    %v1420 = vunpack.c.h.b16 %v415
    %v1421 = vunpack.c.l.b16 %v416
    %v1422 = vunpack.c.h.b16 %v416
    %v1423 = vunpack.c.l.b16 %v417
    %v1424 = vunpack.c.h.b16 %v417
    %v1425 = vunpack.c.l.b16 %v418
    %v1426 = vunpack.c.h.b16 %v418
    %v1427 = vunpack.c.l.b16 %v419
    %v1428 = vunpack.c.h.b16 %v419
    %v1429 = vunpack.c.l.b16 %v420
    %v1430 = vunpack.c.h.b16 %v420
    %v1431 = vunpack.c.l.b16 %v421
    %v1432 = vunpack.c.h.b16 %v421
    %v1433 = vunpack.c.l.b16 %v422
    %v1434 = vunpack.c.h.b16 %v422
    %v1435 = vunpack.c.l.b16 %v423
    %v1436 = vunpack.c.h.b16 %v423
    %v1437 = vunpack.c.l.b16 %v424
    %v1438 = vunpack.c.h.b16 %v424
    %v1439 = vunpack.c.l.b16 %v425
    %v1440 = vunpack.c.h.b16 %v425
    %v1441 = vunpack.c.l.b16 %v426
    %v1442 = vunpack.c.h.b16 %v426
    %v1443 = vunpack.c.l.b16 %v427
    %v1444 = vunpack.c.h.b16 %v427
    %v1445 = vunpack.c.l.b16 %v428
    %v1446 = vunpack.c.h.b16 %v428
    %v1447 = vunpack.c.l.b16 %v429
    %v1448 = vunpack.c.h.b16 %v429
    %v1449 = vunpack.c.l.b16 %v430
    %v1450 = vunpack.c.h.b16 %v430
    %v1451 = vunpack.c.l.b16 %v431
    %v1452 = vunpack.c.h.b16 %v431
    %v1453 = vunpack.c.l.b16 %v432
    %v1454 = vunpack.c.h.b16 %v432
    %v1455 = vunpack.c.l.b16 %v433
    %v1456 = vunpack.c.h.b16 %v433
    %v1457 = vunpack.c.l.b16 %v434
    %v1458 = vunpack.c.h.b16 %v434
    %v1459 = vunpack.c.l.b16 %v435
    %v1460 = vunpack.c.h.b16 %v435
    %v1461 = vunpack.c.l.b16 %v436
    %v1462 = vunpack.c.h.b16 %v436
    %v1463 = vunpack.c.l.b16 %v437
    %v1464 = vunpack.c.h.b16 %v437
    %v1465 = vunpack.c.l.b16 %v438
    %v1466 = vunpack.c.h.b16 %v438
    %v1467 = vunpack.c.l.b16 %v439
    %v1468 = vunpack.c.h.b16 %v439
    %v1469 = vunpack.c.l.b16 %v440
    %v1470 = vunpack.c.h.b16 %v440
    %v1471 = vpack.c.b16 %v833, %v831
    %v1472 = vpack.c.b16 %v834, %v832
    %v1473 = vpack.c.b16 %v837, %v835
    %v1474 = vpack.c.b16 %v838, %v836
    %v1475 = vpack.c.b16 %v841, %v839
    %v1476 = vpack.c.b16 %v842, %v840
    %v1477 = vpack.c.b16 %v845, %v843
    %v1478 = vpack.c.b16 %v846, %v844
    %v1479 = vpack.c.b16 %v849, %v847
    %v1480 = vpack.c.b16 %v850, %v848
    %v1481 = vpack.c.b16 %v853, %v851
    %v1482 = vpack.c.b16 %v854, %v852
    %v1483 = vpack.c.b16 %v857, %v855
    %v1484 = vpack.c.b16 %v858, %v856
    %v1485 = vpack.c.b16 %v861, %v859
    %v1486 = vpack.c.b16 %v862, %v860
    %v1487 = vpack.c.b16 %v865, %v863
    %v1488 = vpack.c.b16 %v866, %v864
    %v1489 = vpack.c.b16 %v869, %v867
    %v1490 = vpack.c.b16 %v870, %v868
    %v1491 = vpack.c.b16 %v873, %v871
    %v1492 = vpack.c.b16 %v874, %v872
    %v1493 = vpack.c.b16 %v877, %v875
    %v1494 = vpack.c.b16 %v878, %v876
    %v1495 = vpack.c.b16 %v881, %v879
    %v1496 = vpack.c.b16 %v882, %v880
    %v1497 = vpack.c.b16 %v885, %v883
    %v1498 = vpack.c.b16 %v886, %v884
    %v1499 = vpack.c.b16 %v889, %v887
    %v1500 = vpack.c.b16 %v890, %v888
    %v1501 = vpack.c.b16 %v893, %v891
    %v1502 = vpack.c.b16 %v894, %v892
    %v1503 = vpack.c.b16 %v897, %v895
    %v1504 = vpack.c.b16 %v898, %v896
    %v1505 = vpack.c.b16 %v901, %v899
    %v1506 = vpack.c.b16 %v902, %v900
    %v1507 = vpack.c.b16 %v905, %v903
    %v1508 = vpack.c.b16 %v906, %v904
    %v1509 = vpack.c.b16 %v909, %v907
    %v1510 = vpack.c.b16 %v910, %v908
    %v1511 = vpack.c.b16 %v913, %v911
    %v1512 = vpack.c.b16 %v914, %v912
    %v1513 = vpack.c.b16 %v917, %v915
    %v1514 = vpack.c.b16 %v918, %v916
    %v1515 = vpack.c.b16 %v921, %v919
    %v1516 = vpack.c.b16 %v922, %v920
    %v1517 = vpack.c.b16 %v925, %v923
    %v1518 = vpack.c.b16 %v926, %v924
    %v1519 = vpack.c.b16 %v929, %v927
    %v1520 = vpack.c.b16 %v930, %v928
    %v1521 = vpack.c.b16 %v933, %v931
    %v1522 = vpack.c.b16 %v934, %v932
    %v1523 = vpack.c.b16 %v937, %v935
    %v1524 = vpack.c.b16 %v938, %v936
    %v1525 = vpack.c.b16 %v941, %v939
    %v1526 = vpack.c.b16 %v942, %v940
    %v1527 = vpack.c.b16 %v945, %v943
    %v1528 = vpack.c.b16 %v946, %v944
    %v1529 = vpack.c.b16 %v949, %v947
    %v1530 = vpack.c.b16 %v950, %v948
    %v1531 = vpack.c.b16 %v953, %v951
    %v1532 = vpack.c.b16 %v954, %v952
    %v1533 = vpack.c.b16 %v957, %v955
    %v1534 = vpack.c.b16 %v958, %v956
    %v1535 = vpack.c.b16 %v961, %v959
    %v1536 = vpack.c.b16 %v962, %v960
    %v1537 = vpack.c.b16 %v965, %v963
    %v1538 = vpack.c.b16 %v966, %v964
    %v1539 = vpack.c.b16 %v969, %v967
    %v1540 = vpack.c.b16 %v970, %v968
    %v1541 = vpack.c.b16 %v973, %v971
    %v1542 = vpack.c.b16 %v974, %v972
    %v1543 = vpack.c.b16 %v977, %v975
    %v1544 = vpack.c.b16 %v978, %v976
    %v1545 = vpack.c.b16 %v981, %v979
    %v1546 = vpack.c.b16 %v982, %v980
    %v1547 = vpack.c.b16 %v985, %v983
    %v1548 = vpack.c.b16 %v986, %v984
    %v1549 = vpack.c.b16 %v989, %v987
    %v1550 = vpack.c.b16 %v990, %v988
    %v1551 = vpack.c.b16 %v993, %v991
    %v1552 = vpack.c.b16 %v994, %v992
    %v1553 = vpack.c.b16 %v997, %v995
    %v1554 = vpack.c.b16 %v998, %v996
    %v1555 = vpack.c.b16 %v1001, %v999
    %v1556 = vpack.c.b16 %v1002, %v1000
    %v1557 = vpack.c.b16 %v1005, %v1003
    %v1558 = vpack.c.b16 %v1006, %v1004
    %v1559 = vpack.c.b16 %v1009, %v1007
    %v1560 = vpack.c.b16 %v1010, %v1008
    %v1561 = vpack.c.b16 %v1013, %v1011
    %v1562 = vpack.c.b16 %v1014, %v1012
    %v1563 = vpack.c.b16 %v1017, %v1015
    %v1564 = vpack.c.b16 %v1018, %v1016
    %v1565 = vpack.c.b16 %v1021, %v1019
    %v1566 = vpack.c.b16 %v1022, %v1020
    %v1567 = vpack.c.b16 %v1025, %v1023
    %v1568 = vpack.c.b16 %v1026, %v1024
    %v1569 = vpack.c.b16 %v1029, %v1027
    %v1570 = vpack.c.b16 %v1030, %v1028
    %v1571 = vpack.c.b16 %v1033, %v1031
    %v1572 = vpack.c.b16 %v1034, %v1032
    %v1573 = vpack.c.b16 %v1037, %v1035
    %v1574 = vpack.c.b16 %v1038, %v1036
    %v1575 = vpack.c.b16 %v1041, %v1039
    %v1576 = vpack.c.b16 %v1042, %v1040
    %v1577 = vpack.c.b16 %v1045, %v1043
    %v1578 = vpack.c.b16 %v1046, %v1044
    %v1579 = vpack.c.b16 %v1049, %v1047
    %v1580 = vpack.c.b16 %v1050, %v1048
    %v1581 = vpack.c.b16 %v1053, %v1051
    %v1582 = vpack.c.b16 %v1054, %v1052
    %v1583 = vpack.c.b16 %v1057, %v1055
    %v1584 = vpack.c.b16 %v1058, %v1056
    %v1585 = vpack.c.b16 %v1061, %v1059
    %v1586 = vpack.c.b16 %v1062, %v1060
    %v1587 = vpack.c.b16 %v1065, %v1063
    %v1588 = vpack.c.b16 %v1066, %v1064
    %v1589 = vpack.c.b16 %v1069, %v1067
    %v1590 = vpack.c.b16 %v1070, %v1068
    %v1591 = vpack.c.b16 %v1073, %v1071
    %v1592 = vpack.c.b16 %v1074, %v1072
    %v1593 = vpack.c.b16 %v1077, %v1075
    %v1594 = vpack.c.b16 %v1078, %v1076
    %v1595 = vpack.c.b16 %v1081, %v1079
    %v1596 = vpack.c.b16 %v1082, %v1080
    %v1597 = vpack.c.b16 %v1085, %v1083
    %v1598 = vpack.c.b16 %v1086, %v1084
    %v1599 = vpack.c.b16 %v1089, %v1087
    %v1600 = vpack.c.b16 %v1090, %v1088
    %v1601 = vpack.c.b16 %v1093, %v1091
    %v1602 = vpack.c.b16 %v1094, %v1092
    %v1603 = vpack.c.b16 %v1097, %v1095
    %v1604 = vpack.c.b16 %v1098, %v1096
    %v1605 = vpack.c.b16 %v1101, %v1099
    %v1606 = vpack.c.b16 %v1102, %v1100
    %v1607 = vpack.c.b16 %v1105, %v1103
    %v1608 = vpack.c.b16 %v1106, %v1104
    %v1609 = vpack.c.b16 %v1109, %v1107
    %v1610 = vpack.c.b16 %v1110, %v1108
    %v1611 = vpack.c.b16 %v1113, %v1111
    %v1612 = vpack.c.b16 %v1114, %v1112
    %v1613 = vpack.c.b16 %v1117, %v1115
    %v1614 = vpack.c.b16 %v1118, %v1116
    %v1615 = vpack.c.b16 %v1121, %v1119
    %v1616 = vpack.c.b16 %v1122, %v1120
    %v1617 = vpack.c.b16 %v1125, %v1123
    %v1618 = vpack.c.b16 %v1126, %v1124
    %v1619 = vpack.c.b16 %v1129, %v1127
    %v1620 = vpack.c.b16 %v1130, %v1128
    %v1621 = vpack.c.b16 %v1133, %v1131
    %v1622 = vpack.c.b16 %v1134, %v1132
    %v1623 = vpack.c.b16 %v1137, %v1135
    %v1624 = vpack.c.b16 %v1138, %v1136
    %v1625 = vpack.c.b16 %v1141, %v1139
    %v1626 = vpack.c.b16 %v1142, %v1140
    %v1627 = vpack.c.b16 %v1145, %v1143
    %v1628 = vpack.c.b16 %v1146, %v1144
    %v1629 = vpack.c.b16 %v1149, %v1147
    %v1630 = vpack.c.b16 %v1150, %v1148
    %v1631 = vpack.c.b16 %v1153, %v1151
    %v1632 = vpack.c.b16 %v1154, %v1152
    %v1633 = vpack.c.b16 %v1157, %v1155
    %v1634 = vpack.c.b16 %v1158, %v1156
    %v1635 = vpack.c.b16 %v1161, %v1159
    %v1636 = vpack.c.b16 %v1162, %v1160
    %v1637 = vpack.c.b16 %v1165, %v1163
    %v1638 = vpack.c.b16 %v1166, %v1164
    %v1639 = vpack.c.b16 %v1169, %v1167
    %v1640 = vpack.c.b16 %v1170, %v1168
    %v1641 = vpack.c.b16 %v1173, %v1171
    %v1642 = vpack.c.b16 %v1174, %v1172
    %v1643 = vpack.c.b16 %v1177, %v1175
    %v1644 = vpack.c.b16 %v1178, %v1176
    %v1645 = vpack.c.b16 %v1181, %v1179
    %v1646 = vpack.c.b16 %v1182, %v1180
    %v1647 = vpack.c.b16 %v1185, %v1183
    %v1648 = vpack.c.b16 %v1186, %v1184
    %v1649 = vpack.c.b16 %v1189, %v1187
    %v1650 = vpack.c.b16 %v1190, %v1188
    %v1651 = vpack.c.b16 %v1193, %v1191
    %v1652 = vpack.c.b16 %v1194, %v1192
    %v1653 = vpack.c.b16 %v1197, %v1195
    %v1654 = vpack.c.b16 %v1198, %v1196
    %v1655 = vpack.c.b16 %v1201, %v1199
    %v1656 = vpack.c.b16 %v1202, %v1200
    %v1657 = vpack.c.b16 %v1205, %v1203
    %v1658 = vpack.c.b16 %v1206, %v1204
    %v1659 = vpack.c.b16 %v1209, %v1207
    %v1660 = vpack.c.b16 %v1210, %v1208
    %v1661 = vpack.c.b16 %v1213, %v1211
    %v1662 = vpack.c.b16 %v1214, %v1212
    %v1663 = vpack.c.b16 %v1217, %v1215
    %v1664 = vpack.c.b16 %v1218, %v1216
    %v1665 = vpack.c.b16 %v1221, %v1219
    %v1666 = vpack.c.b16 %v1222, %v1220
    %v1667 = vpack.c.b16 %v1225, %v1223
    %v1668 = vpack.c.b16 %v1226, %v1224
    %v1669 = vpack.c.b16 %v1229, %v1227
    %v1670 = vpack.c.b16 %v1230, %v1228
    %v1671 = vpack.c.b16 %v1233, %v1231
    %v1672 = vpack.c.b16 %v1234, %v1232
    %v1673 = vpack.c.b16 %v1237, %v1235
    %v1674 = vpack.c.b16 %v1238, %v1236
    %v1675 = vpack.c.b16 %v1241, %v1239
    %v1676 = vpack.c.b16 %v1242, %v1240
    %v1677 = vpack.c.b16 %v1245, %v1243
    %v1678 = vpack.c.b16 %v1246, %v1244
    %v1679 = vpack.c.b16 %v1249, %v1247
    %v1680 = vpack.c.b16 %v1250, %v1248
    %v1681 = vpack.c.b16 %v1253, %v1251
    %v1682 = vpack.c.b16 %v1254, %v1252
    %v1683 = vpack.c.b16 %v1257, %v1255
    %v1684 = vpack.c.b16 %v1258, %v1256
    %v1685 = vpack.c.b16 %v1261, %v1259
    %v1686 = vpack.c.b16 %v1262, %v1260
    %v1687 = vpack.c.b16 %v1265, %v1263
    %v1688 = vpack.c.b16 %v1266, %v1264
    %v1689 = vpack.c.b16 %v1269, %v1267
    %v1690 = vpack.c.b16 %v1270, %v1268
    %v1691 = vpack.c.b16 %v1273, %v1271
    %v1692 = vpack.c.b16 %v1274, %v1272
    %v1693 = vpack.c.b16 %v1277, %v1275
    %v1694 = vpack.c.b16 %v1278, %v1276
    %v1695 = vpack.c.b16 %v1281, %v1279
    %v1696 = vpack.c.b16 %v1282, %v1280
    %v1697 = vpack.c.b16 %v1285, %v1283
    %v1698 = vpack.c.b16 %v1286, %v1284
    %v1699 = vpack.c.b16 %v1289, %v1287
    %v1700 = vpack.c.b16 %v1290, %v1288
    %v1701 = vpack.c.b16 %v1293, %v1291
    %v1702 = vpack.c.b16 %v1294, %v1292
    %v1703 = vpack.c.b16 %v1297, %v1295
    %v1704 = vpack.c.b16 %v1298, %v1296
    %v1705 = vpack.c.b16 %v1301, %v1299
    %v1706 = vpack.c.b16 %v1302, %v1300
    %v1707 = vpack.c.b16 %v1305, %v1303
    %v1708 = vpack.c.b16 %v1306, %v1304
    %v1709 = vpack.c.b16 %v1309, %v1307
    %v1710 = vpack.c.b16 %v1310, %v1308
    %v1711 = vpack.c.b16 %v1313, %v1311
    %v1712 = vpack.c.b16 %v1314, %v1312
    %v1713 = vpack.c.b16 %v1317, %v1315
    %v1714 = vpack.c.b16 %v1318, %v1316
    %v1715 = vpack.c.b16 %v1321, %v1319
    %v1716 = vpack.c.b16 %v1322, %v1320
    %v1717 = vpack.c.b16 %v1325, %v1323
    %v1718 = vpack.c.b16 %v1326, %v1324
    %v1719 = vpack.c.b16 %v1329, %v1327
    %v1720 = vpack.c.b16 %v1330, %v1328
    %v1721 = vpack.c.b16 %v1333, %v1331
    %v1722 = vpack.c.b16 %v1334, %v1332
    %v1723 = vpack.c.b16 %v1337, %v1335
    %v1724 = vpack.c.b16 %v1338, %v1336
    %v1725 = vpack.c.b16 %v1341, %v1339
    %v1726 = vpack.c.b16 %v1342, %v1340
    %v1727 = vpack.c.b16 %v1345, %v1343
    %v1728 = vpack.c.b16 %v1346, %v1344
    %v1729 = vpack.c.b16 %v1349, %v1347
    %v1730 = vpack.c.b16 %v1350, %v1348
    %v1731 = vpack.c.b16 %v1353, %v1351
    %v1732 = vpack.c.b16 %v1354, %v1352
    %v1733 = vpack.c.b16 %v1357, %v1355
    %v1734 = vpack.c.b16 %v1358, %v1356
    %v1735 = vpack.c.b16 %v1361, %v1359
    %v1736 = vpack.c.b16 %v1362, %v1360
    %v1737 = vpack.c.b16 %v1365, %v1363
    %v1738 = vpack.c.b16 %v1366, %v1364
    %v1739 = vpack.c.b16 %v1369, %v1367
    %v1740 = vpack.c.b16 %v1370, %v1368
    %v1741 = vpack.c.b16 %v1373, %v1371
    %v1742 = vpack.c.b16 %v1374, %v1372
    %v1743 = vpack.c.b16 %v1377, %v1375
    %v1744 = vpack.c.b16 %v1378, %v1376
    %v1745 = vpack.c.b16 %v1381, %v1379
    %v1746 = vpack.c.b16 %v1382, %v1380
    %v1747 = vpack.c.b16 %v1385, %v1383
    %v1748 = vpack.c.b16 %v1386, %v1384
    %v1749 = vpack.c.b16 %v1389, %v1387
    %v1750 = vpack.c.b16 %v1390, %v1388
    %v1751 = vpack.c.b16 %v1393, %v1391
    %v1752 = vpack.c.b16 %v1394, %v1392
    %v1753 = vpack.c.b16 %v1397, %v1395
    %v1754 = vpack.c.b16 %v1398, %v1396
    %v1755 = vpack.c.b16 %v1401, %v1399
    %v1756 = vpack.c.b16 %v1402, %v1400
    %v1757 = vpack.c.b16 %v1405, %v1403
    %v1758 = vpack.c.b16 %v1406, %v1404
    %v1759 = vpack.c.b16 %v1409, %v1407
    %v1760 = vpack.c.b16 %v1410, %v1408
    %v1761 = vpack.c.b16 %v1413, %v1411
    %v1762 = vpack.c.b16 %v1414, %v1412
    %v1763 = vpack.c.b16 %v1417, %v1415
    %v1764 = vpack.c.b16 %v1418, %v1416
    %v1765 = vpack.c.b16 %v1421, %v1419
    %v1766 = vpack.c.b16 %v1422, %v1420
    %v1767 = vpack.c.b16 %v1425, %v1423
    %v1768 = vpack.c.b16 %v1426, %v1424
    %v1769 = vpack.c.b16 %v1429, %v1427
    %v1770 = vpack.c.b16 %v1430, %v1428
    %v1771 = vpack.c.b16 %v1433, %v1431
    %v1772 = vpack.c.b16 %v1434, %v1432
    %v1773 = vpack.c.b16 %v1437, %v1435
    %v1774 = vpack.c.b16 %v1438, %v1436
    %v1775 = vpack.c.b16 %v1441, %v1439
    %v1776 = vpack.c.b16 %v1442, %v1440
    %v1777 = vpack.c.b16 %v1445, %v1443
    %v1778 = vpack.c.b16 %v1446, %v1444
    %v1779 = vpack.c.b16 %v1449, %v1447
    %v1780 = vpack.c.b16 %v1450, %v1448
    %v1781 = vpack.c.b16 %v1453, %v1451
    %v1782 = vpack.c.b16 %v1454, %v1452
    %v1783 = vpack.c.b16 %v1457, %v1455
    %v1784 = vpack.c.b16 %v1458, %v1456
    %v1785 = vpack.c.b16 %v1461, %v1459
    %v1786 = vpack.c.b16 %v1462, %v1460
    %v1787 = vpack.c.b16 %v1465, %v1463
    %v1788 = vpack.c.b16 %v1466, %v1464
    %v1789 = vpack.c.b16 %v1469, %v1467
    %v1790 = vpack.c.b16 %v1470, %v1468
    %2111 = vmatprep.subr.bf16.mxu0 %v1486
    %2112 = vmatpush1.bf16.msra.mxu0 %v1485
    %2113 = vmatprep.subr.bf16.mxu0 %v1484
    %2114 = vmatpush1.bf16.msra.mxu0 %v1483
    %2115 = vmatprep.subr.bf16.mxu0 %v1482
    %2116 = vmatpush1.bf16.msra.mxu0 %v1481
    %2117 = vmatprep.subr.bf16.mxu0 %v1480
    %2118 = vmatpush1.bf16.msra.mxu0 %v1479
    %2119 = vmatprep.subr.bf16.mxu0 %v1478
    %2120 = vmatpush1.bf16.msra.mxu0 %v1477
    %2121 = vmatprep.subr.bf16.mxu0 %v1476
    %2122 = vmatpush1.bf16.msra.mxu0 %v1475
    %2123 = vmatprep.subr.bf16.mxu0 %v1474
    %2124 = vmatpush1.bf16.msra.mxu0 %v1473
    %2125 = vmatprep.subr.bf16.mxu0 %v1472
    %2126 = vmatpush1.bf16.msra.mxu0 %v1471
    %2127 = vmatprep.subr.bf16.mxu0 %v1502
    %2128 = vmatpush2.bf16.msra.mxu0 %v1501
    %2129 = vmatprep.subr.bf16.mxu0 %v1500
    %2130 = vmatpush2.bf16.msra.mxu0 %v1499
    %2131 = vmatprep.subr.bf16.mxu0 %v1498
    %2132 = vmatpush2.bf16.msra.mxu0 %v1497
    %2133 = vmatprep.subr.bf16.mxu0 %v1496
    %2134 = vmatpush2.bf16.msra.mxu0 %v1495
    %2135 = vmatprep.subr.bf16.mxu0 %v1494
    %2136 = vmatpush2.bf16.msra.mxu0 %v1493
    %2137 = vmatprep.subr.bf16.mxu0 %v1492
    %2138 = vmatpush2.bf16.msra.mxu0 %v1491
    %2139 = vmatprep.subr.bf16.mxu0 %v1490
    %2140 = vmatpush2.bf16.msra.mxu0 %v1489
    %2141 = vmatprep.subr.bf16.mxu0 %v1488
    %2142 = vmatpush2.bf16.msra.mxu0 %v1487
    %2143 = vmatprep.mubr.bf16.mxu0 %v472
    %2144 = vmatmul.mubr.bf16.gmra.mxu0 %v471
    %v2145 = vpop.f32.mrf.mxu0
    %v2146 = vadd.f32 0.0, %v2145
    %v2147 = vpop.f32.mrf.mxu0
    %v2148 = vadd.f32 0.0, %v2147
    %v2149 = vpop.f32.mrf.mxu0
    %v2150 = vpop.f32.mrf.mxu0
    %2151 = vdwg.mxu0
    %2152 = vmatprep.subr.bf16.mxu0 %v1518
    %2153 = vmatpush1.bf16.msra.mxu0 %v1517
    %2154 = vmatprep.subr.bf16.mxu0 %v1516
    %2155 = vmatpush1.bf16.msra.mxu0 %v1515
    %2156 = vmatprep.subr.bf16.mxu0 %v1514
    %2157 = vmatpush1.bf16.msra.mxu0 %v1513
    %2158 = vmatprep.subr.bf16.mxu0 %v1512
    %2159 = vmatpush1.bf16.msra.mxu0 %v1511
    %2160 = vmatprep.subr.bf16.mxu0 %v1510
    %2161 = vmatpush1.bf16.msra.mxu0 %v1509
    %2162 = vmatprep.subr.bf16.mxu0 %v1508
    %2163 = vmatpush1.bf16.msra.mxu0 %v1507
    %2164 = vmatprep.subr.bf16.mxu0 %v1506
    %2165 = vmatpush1.bf16.msra.mxu0 %v1505
    %2166 = vmatprep.subr.bf16.mxu0 %v1504
    %2167 = vmatpush1.bf16.msra.mxu0 %v1503
    %2168 = vmatprep.subr.bf16.mxu0 %v1534
    %2169 = vmatpush2.bf16.msra.mxu0 %v1533
    %2170 = vmatprep.subr.bf16.mxu0 %v1532
    %2171 = vmatpush2.bf16.msra.mxu0 %v1531
    %2172 = vmatprep.subr.bf16.mxu0 %v1530
    %2173 = vmatpush2.bf16.msra.mxu0 %v1529
    %2174 = vmatprep.subr.bf16.mxu0 %v1528
    %2175 = vmatpush2.bf16.msra.mxu0 %v1527
    %2176 = vmatprep.subr.bf16.mxu0 %v1526
    %2177 = vmatpush2.bf16.msra.mxu0 %v1525
    %2178 = vmatprep.subr.bf16.mxu0 %v1524
    %2179 = vmatpush2.bf16.msra.mxu0 %v1523
    %2180 = vmatprep.subr.bf16.mxu0 %v1522
    %2181 = vmatpush2.bf16.msra.mxu0 %v1521
    %2182 = vmatprep.subr.bf16.mxu0 %v1520
    %2183 = vmatpush2.bf16.msra.mxu0 %v1519
    %2184 = vmatprep.mubr.bf16.mxu0 %v474
    %2185 = vmatmul.mubr.bf16.gmra.mxu0 %v473
    %v2186 = vpop.f32.mrf.mxu0
    %v2187 = vadd.f32 %v2146, %v2186
    %v2188 = vpop.f32.mrf.mxu0
    %v2189 = vadd.f32 %v2148, %v2188
    %v2190 = vpop.f32.mrf.mxu0
    %v2191 = vpop.f32.mrf.mxu0
    %2192 = vdwg.mxu0
    %2193 = vmatprep.subr.bf16.mxu0 %v1550
    %2194 = vmatpush1.bf16.msra.mxu0 %v1549
    %2195 = vmatprep.subr.bf16.mxu0 %v1548
    %2196 = vmatpush1.bf16.msra.mxu0 %v1547
    %2197 = vmatprep.subr.bf16.mxu0 %v1546
    %2198 = vmatpush1.bf16.msra.mxu0 %v1545
    %2199 = vmatprep.subr.bf16.mxu0 %v1544
    %2200 = vmatpush1.bf16.msra.mxu0 %v1543
    %2201 = vmatprep.subr.bf16.mxu0 %v1542
    %2202 = vmatpush1.bf16.msra.mxu0 %v1541
    %2203 = vmatprep.subr.bf16.mxu0 %v1540
    %2204 = vmatpush1.bf16.msra.mxu0 %v1539
    %2205 = vmatprep.subr.bf16.mxu0 %v1538
    %2206 = vmatpush1.bf16.msra.mxu0 %v1537
    %2207 = vmatprep.subr.bf16.mxu0 %v1536
    %2208 = vmatpush1.bf16.msra.mxu0 %v1535
    %2209 = vmatprep.subr.bf16.mxu0 %v1566
    %2210 = vmatpush2.bf16.msra.mxu0 %v1565
    %2211 = vmatprep.subr.bf16.mxu0 %v1564
    %2212 = vmatpush2.bf16.msra.mxu0 %v1563
    %2213 = vmatprep.subr.bf16.mxu0 %v1562
    %2214 = vmatpush2.bf16.msra.mxu0 %v1561
    %2215 = vmatprep.subr.bf16.mxu0 %v1560
    %2216 = vmatpush2.bf16.msra.mxu0 %v1559
    %2217 = vmatprep.subr.bf16.mxu0 %v1558
    %2218 = vmatpush2.bf16.msra.mxu0 %v1557
    %2219 = vmatprep.subr.bf16.mxu0 %v1556
    %2220 = vmatpush2.bf16.msra.mxu0 %v1555
    %2221 = vmatprep.subr.bf16.mxu0 %v1554
    %2222 = vmatpush2.bf16.msra.mxu0 %v1553
    %2223 = vmatprep.subr.bf16.mxu0 %v1552
    %2224 = vmatpush2.bf16.msra.mxu0 %v1551
    %2225 = vmatprep.mubr.bf16.mxu0 %v476
    %2226 = vmatmul.mubr.bf16.gmra.mxu0 %v475
    %v2227 = vpop.f32.mrf.mxu0
    %v2228 = vadd.f32 %v2187, %v2227
    %v2229 = vpop.f32.mrf.mxu0
    %v2230 = vadd.f32 %v2189, %v2229
    %v2231 = vpop.f32.mrf.mxu0
    %v2232 = vpop.f32.mrf.mxu0
    %2233 = vdwg.mxu0
    %2234 = vmatprep.subr.bf16.mxu0 %v1582
    %2235 = vmatpush1.bf16.msra.mxu0 %v1581
    %2236 = vmatprep.subr.bf16.mxu0 %v1580
    %2237 = vmatpush1.bf16.msra.mxu0 %v1579
    %2238 = vmatprep.subr.bf16.mxu0 %v1578
    %2239 = vmatpush1.bf16.msra.mxu0 %v1577
    %2240 = vmatprep.subr.bf16.mxu0 %v1576
    %2241 = vmatpush1.bf16.msra.mxu0 %v1575
    %2242 = vmatprep.subr.bf16.mxu0 %v1574
    %2243 = vmatpush1.bf16.msra.mxu0 %v1573
    %2244 = vmatprep.subr.bf16.mxu0 %v1572
    %2245 = vmatpush1.bf16.msra.mxu0 %v1571
    %2246 = vmatprep.subr.bf16.mxu0 %v1570
    %2247 = vmatpush1.bf16.msra.mxu0 %v1569
    %2248 = vmatprep.subr.bf16.mxu0 %v1568
    %2249 = vmatpush1.bf16.msra.mxu0 %v1567
    %2250 = vmatprep.subr.bf16.mxu0 %v1598
    %2251 = vmatpush2.bf16.msra.mxu0 %v1597
    %2252 = vmatprep.subr.bf16.mxu0 %v1596
    %2253 = vmatpush2.bf16.msra.mxu0 %v1595
    %2254 = vmatprep.subr.bf16.mxu0 %v1594
    %2255 = vmatpush2.bf16.msra.mxu0 %v1593
    %2256 = vmatprep.subr.bf16.mxu0 %v1592
    %2257 = vmatpush2.bf16.msra.mxu0 %v1591
    %2258 = vmatprep.subr.bf16.mxu0 %v1590
    %2259 = vmatpush2.bf16.msra.mxu0 %v1589
    %2260 = vmatprep.subr.bf16.mxu0 %v1588
    %2261 = vmatpush2.bf16.msra.mxu0 %v1587
    %2262 = vmatprep.subr.bf16.mxu0 %v1586
    %2263 = vmatpush2.bf16.msra.mxu0 %v1585
    %2264 = vmatprep.subr.bf16.mxu0 %v1584
    %2265 = vmatpush2.bf16.msra.mxu0 %v1583
    %2266 = vmatprep.mubr.bf16.mxu0 %v478
    %2267 = vmatmul.mubr.bf16.gmra.mxu0 %v477
    %v2268 = vpop.f32.mrf.mxu0
    %v2269 = vadd.f32 %v2228, %v2268
    %v2270 = vpop.f32.mrf.mxu0
    %v2271 = vadd.f32 %v2230, %v2270
    %v2272 = vpop.f32.mrf.mxu0
    %v2273 = vpop.f32.mrf.mxu0
    %2274 = vdwg.mxu0
    %2275 = vmatprep.subr.bf16.mxu0 %v1614
    %2276 = vmatpush1.bf16.msra.mxu0 %v1613
    %2277 = vmatprep.subr.bf16.mxu0 %v1612
    %2278 = vmatpush1.bf16.msra.mxu0 %v1611
    %2279 = vmatprep.subr.bf16.mxu0 %v1610
    %2280 = vmatpush1.bf16.msra.mxu0 %v1609
    %2281 = vmatprep.subr.bf16.mxu0 %v1608
    %2282 = vmatpush1.bf16.msra.mxu0 %v1607
    %2283 = vmatprep.subr.bf16.mxu0 %v1606
    %2284 = vmatpush1.bf16.msra.mxu0 %v1605
    %2285 = vmatprep.subr.bf16.mxu0 %v1604
    %2286 = vmatpush1.bf16.msra.mxu0 %v1603
    %2287 = vmatprep.subr.bf16.mxu0 %v1602
    %2288 = vmatpush1.bf16.msra.mxu0 %v1601
    %2289 = vmatprep.subr.bf16.mxu0 %v1600
    %2290 = vmatpush1.bf16.msra.mxu0 %v1599
    %2291 = vmatprep.subr.bf16.mxu0 %v1630
    %2292 = vmatpush2.bf16.msra.mxu0 %v1629
    %2293 = vmatprep.subr.bf16.mxu0 %v1628
    %2294 = vmatpush2.bf16.msra.mxu0 %v1627
    %2295 = vmatprep.subr.bf16.mxu0 %v1626
    %2296 = vmatpush2.bf16.msra.mxu0 %v1625
    %2297 = vmatprep.subr.bf16.mxu0 %v1624
    %2298 = vmatpush2.bf16.msra.mxu0 %v1623
    %2299 = vmatprep.subr.bf16.mxu0 %v1622
    %2300 = vmatpush2.bf16.msra.mxu0 %v1621
    %2301 = vmatprep.subr.bf16.mxu0 %v1620
    %2302 = vmatpush2.bf16.msra.mxu0 %v1619
    %2303 = vmatprep.subr.bf16.mxu0 %v1618
    %2304 = vmatpush2.bf16.msra.mxu0 %v1617
    %2305 = vmatprep.subr.bf16.mxu0 %v1616
    %2306 = vmatpush2.bf16.msra.mxu0 %v1615
    %2307 = vmatprep.mubr.bf16.mxu0 %v480
    %2308 = vmatmul.mubr.bf16.gmra.mxu0 %v479
    %v2309 = vpop.f32.mrf.mxu0
    %v2310 = vadd.f32 %v2269, %v2309
    %v2311 = vpop.f32.mrf.mxu0
    %v2312 = vadd.f32 %v2271, %v2311
    %v2313 = vpop.f32.mrf.mxu0
    %v2314 = vpop.f32.mrf.mxu0
    %2315 = vdwg.mxu0
    %2316 = vmatprep.subr.bf16.mxu0 %v1646
    %2317 = vmatpush1.bf16.msra.mxu0 %v1645
    %2318 = vmatprep.subr.bf16.mxu0 %v1644
    %2319 = vmatpush1.bf16.msra.mxu0 %v1643
    %2320 = vmatprep.subr.bf16.mxu0 %v1642
    %2321 = vmatpush1.bf16.msra.mxu0 %v1641
    %2322 = vmatprep.subr.bf16.mxu0 %v1640
    %2323 = vmatpush1.bf16.msra.mxu0 %v1639
    %2324 = vmatprep.subr.bf16.mxu0 %v1638
    %2325 = vmatpush1.bf16.msra.mxu0 %v1637
    %2326 = vmatprep.subr.bf16.mxu0 %v1636
    %2327 = vmatpush1.bf16.msra.mxu0 %v1635
    %2328 = vmatprep.subr.bf16.mxu0 %v1634
    %2329 = vmatpush1.bf16.msra.mxu0 %v1633
    %2330 = vmatprep.subr.bf16.mxu0 %v1632
    %2331 = vmatpush1.bf16.msra.mxu0 %v1631
    %2332 = vmatprep.subr.bf16.mxu0 %v1662
    %2333 = vmatpush2.bf16.msra.mxu0 %v1661
    %2334 = vmatprep.subr.bf16.mxu0 %v1660
    %2335 = vmatpush2.bf16.msra.mxu0 %v1659
    %2336 = vmatprep.subr.bf16.mxu0 %v1658
    %2337 = vmatpush2.bf16.msra.mxu0 %v1657
    %2338 = vmatprep.subr.bf16.mxu0 %v1656
    %2339 = vmatpush2.bf16.msra.mxu0 %v1655
    %2340 = vmatprep.subr.bf16.mxu0 %v1654
    %2341 = vmatpush2.bf16.msra.mxu0 %v1653
    %2342 = vmatprep.subr.bf16.mxu0 %v1652
    %2343 = vmatpush2.bf16.msra.mxu0 %v1651
    %2344 = vmatprep.subr.bf16.mxu0 %v1650
    %2345 = vmatpush2.bf16.msra.mxu0 %v1649
    %2346 = vmatprep.subr.bf16.mxu0 %v1648
    %2347 = vmatpush2.bf16.msra.mxu0 %v1647
    %2348 = vmatprep.mubr.bf16.mxu0 %v482
    %2349 = vmatmul.mubr.bf16.gmra.mxu0 %v481
    %v2350 = vpop.f32.mrf.mxu0
    %v2351 = vadd.f32 %v2310, %v2350
    %v2352 = vpop.f32.mrf.mxu0
    %v2353 = vadd.f32 %v2312, %v2352
    %v2354 = vpop.f32.mrf.mxu0
    %v2355 = vpop.f32.mrf.mxu0
    %2356 = vdwg.mxu0
    %2357 = vmatprep.subr.bf16.mxu0 %v1678
    %2358 = vmatpush1.bf16.msra.mxu0 %v1677
    %2359 = vmatprep.subr.bf16.mxu0 %v1676
    %2360 = vmatpush1.bf16.msra.mxu0 %v1675
    %2361 = vmatprep.subr.bf16.mxu0 %v1674
    %2362 = vmatpush1.bf16.msra.mxu0 %v1673
    %2363 = vmatprep.subr.bf16.mxu0 %v1672
    %2364 = vmatpush1.bf16.msra.mxu0 %v1671
    %2365 = vmatprep.subr.bf16.mxu0 %v1670
    %2366 = vmatpush1.bf16.msra.mxu0 %v1669
    %2367 = vmatprep.subr.bf16.mxu0 %v1668
    %2368 = vmatpush1.bf16.msra.mxu0 %v1667
    %2369 = vmatprep.subr.bf16.mxu0 %v1666
    %2370 = vmatpush1.bf16.msra.mxu0 %v1665
    %2371 = vmatprep.subr.bf16.mxu0 %v1664
    %2372 = vmatpush1.bf16.msra.mxu0 %v1663
    %2373 = vmatprep.subr.bf16.mxu0 %v1694
    %2374 = vmatpush2.bf16.msra.mxu0 %v1693
    %2375 = vmatprep.subr.bf16.mxu0 %v1692
    %2376 = vmatpush2.bf16.msra.mxu0 %v1691
    %2377 = vmatprep.subr.bf16.mxu0 %v1690
    %2378 = vmatpush2.bf16.msra.mxu0 %v1689
    %2379 = vmatprep.subr.bf16.mxu0 %v1688
    %2380 = vmatpush2.bf16.msra.mxu0 %v1687
    %2381 = vmatprep.subr.bf16.mxu0 %v1686
    %2382 = vmatpush2.bf16.msra.mxu0 %v1685
    %2383 = vmatprep.subr.bf16.mxu0 %v1684
    %2384 = vmatpush2.bf16.msra.mxu0 %v1683
    %2385 = vmatprep.subr.bf16.mxu0 %v1682
    %2386 = vmatpush2.bf16.msra.mxu0 %v1681
    %2387 = vmatprep.subr.bf16.mxu0 %v1680
    %2388 = vmatpush2.bf16.msra.mxu0 %v1679
    %2389 = vmatprep.mubr.bf16.mxu0 %v484
    %2390 = vmatmul.mubr.bf16.gmra.mxu0 %v483
    %v2391 = vpop.f32.mrf.mxu0
    %v2392 = vadd.f32 %v2351, %v2391
    %v2393 = vpop.f32.mrf.mxu0
    %v2394 = vadd.f32 %v2353, %v2393
    %v2395 = vpop.f32.mrf.mxu0
    %v2396 = vpop.f32.mrf.mxu0
    %2397 = vdwg.mxu0
    %2398 = vmatprep.subr.bf16.mxu0 %v1710
    %2399 = vmatpush1.bf16.msra.mxu0 %v1709
    %2400 = vmatprep.subr.bf16.mxu0 %v1708
    %2401 = vmatpush1.bf16.msra.mxu0 %v1707
    %2402 = vmatprep.subr.bf16.mxu0 %v1706
    %2403 = vmatpush1.bf16.msra.mxu0 %v1705
    %2404 = vmatprep.subr.bf16.mxu0 %v1704
    %2405 = vmatpush1.bf16.msra.mxu0 %v1703
    %2406 = vmatprep.subr.bf16.mxu0 %v1702
    %2407 = vmatpush1.bf16.msra.mxu0 %v1701
    %2408 = vmatprep.subr.bf16.mxu0 %v1700
    %2409 = vmatpush1.bf16.msra.mxu0 %v1699
    %2410 = vmatprep.subr.bf16.mxu0 %v1698
    %2411 = vmatpush1.bf16.msra.mxu0 %v1697
    %2412 = vmatprep.subr.bf16.mxu0 %v1696
    %2413 = vmatpush1.bf16.msra.mxu0 %v1695
    %2414 = vmatprep.subr.bf16.mxu0 %v1726
    %2415 = vmatpush2.bf16.msra.mxu0 %v1725
    %2416 = vmatprep.subr.bf16.mxu0 %v1724
    %2417 = vmatpush2.bf16.msra.mxu0 %v1723
    %2418 = vmatprep.subr.bf16.mxu0 %v1722
    %2419 = vmatpush2.bf16.msra.mxu0 %v1721
    %2420 = vmatprep.subr.bf16.mxu0 %v1720
    %2421 = vmatpush2.bf16.msra.mxu0 %v1719
    %2422 = vmatprep.subr.bf16.mxu0 %v1718
    %2423 = vmatpush2.bf16.msra.mxu0 %v1717
    %2424 = vmatprep.subr.bf16.mxu0 %v1716
    %2425 = vmatpush2.bf16.msra.mxu0 %v1715
    %2426 = vmatprep.subr.bf16.mxu0 %v1714
    %2427 = vmatpush2.bf16.msra.mxu0 %v1713
    %2428 = vmatprep.subr.bf16.mxu0 %v1712
    %2429 = vmatpush2.bf16.msra.mxu0 %v1711
    %2430 = vmatprep.mubr.bf16.mxu0 %v486
    %2431 = vmatmul.mubr.bf16.gmra.mxu0 %v485
    %v2432 = vpop.f32.mrf.mxu0
    %v2433 = vadd.f32 %v2392, %v2432
    %v2434 = vpop.f32.mrf.mxu0
    %v2435 = vadd.f32 %v2394, %v2434
    %v2436 = vpop.f32.mrf.mxu0
    %v2437 = vpop.f32.mrf.mxu0
    %2438 = vdwg.mxu0
    %2439 = vmatprep.subr.bf16.mxu0 %v1742
    %2440 = vmatpush1.bf16.msra.mxu0 %v1741
    %2441 = vmatprep.subr.bf16.mxu0 %v1740
    %2442 = vmatpush1.bf16.msra.mxu0 %v1739
    %2443 = vmatprep.subr.bf16.mxu0 %v1738
    %2444 = vmatpush1.bf16.msra.mxu0 %v1737
    %2445 = vmatprep.subr.bf16.mxu0 %v1736
    %2446 = vmatpush1.bf16.msra.mxu0 %v1735
    %2447 = vmatprep.subr.bf16.mxu0 %v1734
    %2448 = vmatpush1.bf16.msra.mxu0 %v1733
    %2449 = vmatprep.subr.bf16.mxu0 %v1732
    %2450 = vmatpush1.bf16.msra.mxu0 %v1731
    %2451 = vmatprep.subr.bf16.mxu0 %v1730
    %2452 = vmatpush1.bf16.msra.mxu0 %v1729
    %2453 = vmatprep.subr.bf16.mxu0 %v1728
    %2454 = vmatpush1.bf16.msra.mxu0 %v1727
    %2455 = vmatprep.subr.bf16.mxu0 %v1758
    %2456 = vmatpush2.bf16.msra.mxu0 %v1757
    %2457 = vmatprep.subr.bf16.mxu0 %v1756
    %2458 = vmatpush2.bf16.msra.mxu0 %v1755
    %2459 = vmatprep.subr.bf16.mxu0 %v1754
    %2460 = vmatpush2.bf16.msra.mxu0 %v1753
    %2461 = vmatprep.subr.bf16.mxu0 %v1752
    %2462 = vmatpush2.bf16.msra.mxu0 %v1751
    %2463 = vmatprep.subr.bf16.mxu0 %v1750
    %2464 = vmatpush2.bf16.msra.mxu0 %v1749
    %2465 = vmatprep.subr.bf16.mxu0 %v1748
    %2466 = vmatpush2.bf16.msra.mxu0 %v1747
    %2467 = vmatprep.subr.bf16.mxu0 %v1746
    %2468 = vmatpush2.bf16.msra.mxu0 %v1745
    %2469 = vmatprep.subr.bf16.mxu0 %v1744
    %2470 = vmatpush2.bf16.msra.mxu0 %v1743
    %2471 = vmatprep.mubr.bf16.mxu0 %v488
    %2472 = vmatmul.mubr.bf16.gmra.mxu0 %v487
    %v2473 = vpop.f32.mrf.mxu0
    %v2474 = vadd.f32 %v2433, %v2473
    %v2475 = vpop.f32.mrf.mxu0
    %v2476 = vadd.f32 %v2435, %v2475
    %v2477 = vpop.f32.mrf.mxu0
    %v2478 = vpop.f32.mrf.mxu0
    %2479 = vdwg.mxu0
    %2480 = vmatprep.subr.bf16.mxu0 %v1774
    %2481 = vmatpush1.bf16.msra.mxu0 %v1773
    %2482 = vmatprep.subr.bf16.mxu0 %v1772
    %2483 = vmatpush1.bf16.msra.mxu0 %v1771
    %2484 = vmatprep.subr.bf16.mxu0 %v1770
    %2485 = vmatpush1.bf16.msra.mxu0 %v1769
    %2486 = vmatprep.subr.bf16.mxu0 %v1768
    %2487 = vmatpush1.bf16.msra.mxu0 %v1767
    %2488 = vmatprep.subr.bf16.mxu0 %v1766
    %2489 = vmatpush1.bf16.msra.mxu0 %v1765
    %2490 = vmatprep.subr.bf16.mxu0 %v1764
    %2491 = vmatpush1.bf16.msra.mxu0 %v1763
    %2492 = vmatprep.subr.bf16.mxu0 %v1762
    %2493 = vmatpush1.bf16.msra.mxu0 %v1761
    %2494 = vmatprep.subr.bf16.mxu0 %v1760
    %2495 = vmatpush1.bf16.msra.mxu0 %v1759
    %2496 = vmatprep.subr.bf16.mxu0 %v1790
    %2497 = vmatpush2.bf16.msra.mxu0 %v1789
    %2498 = vmatprep.subr.bf16.mxu0 %v1788
    %2499 = vmatpush2.bf16.msra.mxu0 %v1787
    %2500 = vmatprep.subr.bf16.mxu0 %v1786
    %2501 = vmatpush2.bf16.msra.mxu0 %v1785
    %2502 = vmatprep.subr.bf16.mxu0 %v1784
    %2503 = vmatpush2.bf16.msra.mxu0 %v1783
    %2504 = vmatprep.subr.bf16.mxu0 %v1782
    %2505 = vmatpush2.bf16.msra.mxu0 %v1781
    %2506 = vmatprep.subr.bf16.mxu0 %v1780
    %2507 = vmatpush2.bf16.msra.mxu0 %v1779
    %2508 = vmatprep.subr.bf16.mxu0 %v1778
    %2509 = vmatpush2.bf16.msra.mxu0 %v1777
    %2510 = vmatprep.subr.bf16.mxu0 %v1776
    %2511 = vmatpush2.bf16.msra.mxu0 %v1775
    %2512 = vmatprep.mubr.bf16.mxu0 %v490
    %2513 = vmatmul.mubr.bf16.gmra.mxu0 %v489
    %v2514 = vpop.f32.mrf.mxu0
    %v2515 = vadd.f32 %v2474, %v2514
    %v2516 = vpop.f32.mrf.mxu0
    %v2517 = vadd.f32 %v2476, %v2516
    %v2518 = vpop.f32.mrf.mxu0
    %v2519 = vpop.f32.mrf.mxu0
    %2520 = vdwg.mxu0
    %v2521 = vadd.f32 %v109, %v2515
    %v2522 = vadd.f32 %v110, %v2517
    %2523 = vst [vmem:[#allocation2] sm:$0xff] %v2521
    %2524 = vst [vmem:[#allocation2 + $0x8] sm:$0xff] %v2522
    // Predicated region
    $region58: #{modu_network_forward.2} parent=1 // pred_check
      %p2525 = pneg %p103
    $region59: #{modu_network_forward.2} parent=1 // pred_check_branch
      %2527 = sbr.rel (%p2525) target = $region61
    $region60: #{modu_network_forward.2} parent=1 // pred_region
      %v2528 = vld [vmem:[#allocation2] sm:$0xff]
      %v2529 = vld [vmem:[#allocation2 + $0x8] sm:$0xff]
      %v2530 = vld [vmem:[#allocation5] sm:$0x3]
      %v2532 = vlaneseq
      %v2533 = vshrl.u32 %v2532, 7
      %v2534 = vsub.s32 0, %v2533
      %v2535 = vrot.slane %v2530, %v2534
      %v2536 = vlaneseq
      %v2537 = vshrl.u32 %v2536, 7
      %v2538 = vsub.s32 1, %v2537
      %v2539 = vrot.slane %v2530, %v2538
      %v2542 = vadd.f32 %v2528, %v2535
      %v2543 = vadd.f32 %v2529, %v2539
      %v2544 = vmul.f32 %v2542, 0.5
      %v2545 = vmul.f32 %v2543, 0.5
      %v2546 = vmul.f32 %v2542, 0.70710677
      %v2547 = vmul.f32 %v2543, 0.70710677
      %v2548 = verf.f32.pop %v2546
      %v2549 = verf.f32.pop %v2547
      %v2550 = vadd.f32 %v2548, 1.0
      %v2551 = vadd.f32 %v2549, 1.0
      %v2552 = vmul.f32 %v2544, %v2550
      %v2553 = vmul.f32 %v2545, %v2551
      %v2554 = vpack.c.bf16 %v2552, %v2552
      %v2555 = vpack.c.bf16 %v2553, %v2553
      %v2556 = vld [vmem:[#allocation7] sm:$0xf]
      %v2557 = vld [vmem:[#allocation7 + $0x4] sm:$0xf]
      %v2558 = vld [vmem:[#allocation7 + $0x8] sm:$0xf]
      %v2559 = vld [vmem:[#allocation7 + $0xc] sm:$0xf]
      %v2560 = vld [vmem:[#allocation7 + $0x10] sm:$0xf]
      %v2561 = vld [vmem:[#allocation7 + $0x14] sm:$0xf]
      %v2562 = vld [vmem:[#allocation7 + $0x18] sm:$0xf]
      %v2563 = vld [vmem:[#allocation7 + $0x1c] sm:$0xf]
      %v2564 = vld [vmem:[#allocation7 + $0x20] sm:$0xf]
      %v2565 = vld [vmem:[#allocation7 + $0x24] sm:$0xf]
      %v2566 = vld [vmem:[#allocation7 + $0x28] sm:$0xf]
      %v2567 = vld [vmem:[#allocation7 + $0x2c] sm:$0xf]
      %v2568 = vld [vmem:[#allocation7 + $0x30] sm:$0xf]
      %v2569 = vld [vmem:[#allocation7 + $0x34] sm:$0xf]
      %v2570 = vld [vmem:[#allocation7 + $0x38] sm:$0xf]
      %v2571 = vld [vmem:[#allocation7 + $0x3c] sm:$0xf]
      %v2572 = vld [vmem:[#allocation7 + $0x40] sm:$0xf]
      %v2573 = vld [vmem:[#allocation7 + $0x44] sm:$0xf]
      %v2574 = vld [vmem:[#allocation7 + $0x48] sm:$0xf]
      %v2575 = vld [vmem:[#allocation7 + $0x4c] sm:$0xf]
      %v2576 = vld [vmem:[#allocation7 + $0x50] sm:$0xf]
      %v2577 = vld [vmem:[#allocation7 + $0x54] sm:$0xf]
      %v2578 = vld [vmem:[#allocation7 + $0x58] sm:$0xf]
      %v2579 = vld [vmem:[#allocation7 + $0x5c] sm:$0xf]
      %v2580 = vld [vmem:[#allocation7 + $0x60] sm:$0xf]
      %v2581 = vld [vmem:[#allocation7 + $0x64] sm:$0xf]
      %v2582 = vld [vmem:[#allocation7 + $0x68] sm:$0xf]
      %v2583 = vld [vmem:[#allocation7 + $0x6c] sm:$0xf]
      %v2584 = vld [vmem:[#allocation7 + $0x70] sm:$0xf]
      %v2585 = vld [vmem:[#allocation7 + $0x74] sm:$0xf]
      %v2586 = vld [vmem:[#allocation7 + $0x78] sm:$0xf]
      %v2587 = vld [vmem:[#allocation7 + $0x7c] sm:$0xf]
      %v2588 = vld [vmem:[#allocation8] sm:$0x1]
      %v2590 = vlaneseq
      %v2591 = vshrl.u32 %v2590, 7
      %v2592 = vsub.s32 0, %v2591
      %v2593 = vrot.slane %v2588, %v2592
      %v2627 = vunpack.c.l.b16 %v2556
      %v2628 = vunpack.c.l.b16 %v2557
      %v2629 = vunpack.c.l.b16 %v2558
      %v2630 = vunpack.c.l.b16 %v2559
      %v2631 = vunpack.c.l.b16 %v2560
      %v2632 = vunpack.c.l.b16 %v2561
      %v2633 = vunpack.c.l.b16 %v2562
      %v2634 = vunpack.c.l.b16 %v2563
      %v2635 = vunpack.c.l.b16 %v2564
      %v2636 = vunpack.c.l.b16 %v2565
      %v2637 = vunpack.c.l.b16 %v2566
      %v2638 = vunpack.c.l.b16 %v2567
      %v2639 = vunpack.c.l.b16 %v2568
      %v2640 = vunpack.c.l.b16 %v2569
      %v2641 = vunpack.c.l.b16 %v2570
      %v2642 = vunpack.c.l.b16 %v2571
      %v2643 = vunpack.c.l.b16 %v2572
      %v2644 = vunpack.c.l.b16 %v2573
      %v2645 = vunpack.c.l.b16 %v2574
      %v2646 = vunpack.c.l.b16 %v2575
      %v2647 = vunpack.c.l.b16 %v2576
      %v2648 = vunpack.c.l.b16 %v2577
      %v2649 = vunpack.c.l.b16 %v2578
      %v2650 = vunpack.c.l.b16 %v2579
      %v2651 = vunpack.c.l.b16 %v2580
      %v2652 = vunpack.c.l.b16 %v2581
      %v2653 = vunpack.c.l.b16 %v2582
      %v2654 = vunpack.c.l.b16 %v2583
      %v2655 = vunpack.c.l.b16 %v2584
      %v2656 = vunpack.c.l.b16 %v2585
      %v2657 = vunpack.c.l.b16 %v2586
      %v2658 = vunpack.c.l.b16 %v2587
      %v2659 = vpack.c.b16 %v2628, %v2627
      %v2660 = vpack.c.b16 %v2630, %v2629
      %v2661 = vpack.c.b16 %v2632, %v2631
      %v2662 = vpack.c.b16 %v2634, %v2633
      %v2663 = vpack.c.b16 %v2636, %v2635
      %v2664 = vpack.c.b16 %v2638, %v2637
      %v2665 = vpack.c.b16 %v2640, %v2639
      %v2666 = vpack.c.b16 %v2642, %v2641
      %v2667 = vpack.c.b16 %v2644, %v2643
      %v2668 = vpack.c.b16 %v2646, %v2645
      %v2669 = vpack.c.b16 %v2648, %v2647
      %v2670 = vpack.c.b16 %v2650, %v2649
      %v2671 = vpack.c.b16 %v2652, %v2651
      %v2672 = vpack.c.b16 %v2654, %v2653
      %v2673 = vpack.c.b16 %v2656, %v2655
      %v2674 = vpack.c.b16 %v2658, %v2657
      %2691 = vmatprep.subr.bf16.mxu0 0
      %2692 = vmatpush1.bf16.msra.mxu0 %v2666
      %2693 = vmatprep.subr.bf16.mxu0 0
      %2694 = vmatpush1.bf16.msra.mxu0 %v2665
      %2695 = vmatprep.subr.bf16.mxu0 0
      %2696 = vmatpush1.bf16.msra.mxu0 %v2664
      %2697 = vmatprep.subr.bf16.mxu0 0
      %2698 = vmatpush1.bf16.msra.mxu0 %v2663
      %2699 = vmatprep.subr.bf16.mxu0 0
      %2700 = vmatpush1.bf16.msra.mxu0 %v2662
      %2701 = vmatprep.subr.bf16.mxu0 0
      %2702 = vmatpush1.bf16.msra.mxu0 %v2661
      %2703 = vmatprep.subr.bf16.mxu0 0
      %2704 = vmatpush1.bf16.msra.mxu0 %v2660
      %2705 = vmatprep.subr.bf16.mxu0 0
      %2706 = vmatpush1.bf16.msra.mxu0 %v2659
      %2707 = vmatprep.subr.bf16.mxu0 0
      %2708 = vmatpush2.bf16.msra.mxu0 %v2674
      %2709 = vmatprep.subr.bf16.mxu0 0
      %2710 = vmatpush2.bf16.msra.mxu0 %v2673
      %2711 = vmatprep.subr.bf16.mxu0 0
      %2712 = vmatpush2.bf16.msra.mxu0 %v2672
      %2713 = vmatprep.subr.bf16.mxu0 0
      %2714 = vmatpush2.bf16.msra.mxu0 %v2671
      %2715 = vmatprep.subr.bf16.mxu0 0
      %2716 = vmatpush2.bf16.msra.mxu0 %v2670
      %2717 = vmatprep.subr.bf16.mxu0 0
      %2718 = vmatpush2.bf16.msra.mxu0 %v2669
      %2719 = vmatprep.subr.bf16.mxu0 0
      %2720 = vmatpush2.bf16.msra.mxu0 %v2668
      %2721 = vmatprep.subr.bf16.mxu0 0
      %2722 = vmatpush2.bf16.msra.mxu0 %v2667
      %2723 = vmatprep.mubr.bf16.mxu0 %v2555
      %2724 = vmatmul.mubr.bf16.gmra.mxu0 %v2554
      %v2725 = vpop.f32.mrf.mxu0
      %v2726 = vadd.f32 %v2593, %v2725
      %v2727 = vpop.f32.mrf.mxu0
      %v2728 = vpop.f32.mrf.mxu0
      %v2729 = vpop.f32.mrf.mxu0
      %2730 = vdwg.mxu0
      %v2731 = vmul.f32 %v2726, 0.5
      %v2732 = vmul.f32 %v2726, 0.70710677
      %v2733 = verf.f32.pop %v2732
      %v2734 = vadd.f32 %v2733, 1.0
      %v2735 = vmul.f32 %v2731, %v2734
      %v2736 = vpack.c.bf16 %v2735, %v2735
      %v2737 = vld [vmem:[#allocation10] sm:$0xf]
      %v2738 = vld [vmem:[#allocation10 + $0x4] sm:$0xf]
      %v2739 = vld [vmem:[#allocation10 + $0x8] sm:$0xf]
      %v2740 = vld [vmem:[#allocation10 + $0xc] sm:$0xf]
      %v2741 = vld [vmem:[#allocation10 + $0x10] sm:$0xf]
      %v2742 = vld [vmem:[#allocation10 + $0x14] sm:$0xf]
      %v2743 = vld [vmem:[#allocation10 + $0x18] sm:$0xf]
      %v2744 = vld [vmem:[#allocation10 + $0x1c] sm:$0xf]
      %v2745 = vld [vmem:[#allocation10 + $0x20] sm:$0xf]
      %v2746 = vld [vmem:[#allocation10 + $0x24] sm:$0xf]
      %v2747 = vld [vmem:[#allocation10 + $0x28] sm:$0xf]
      %v2748 = vld [vmem:[#allocation10 + $0x2c] sm:$0xf]
      %v2749 = vld [vmem:[#allocation10 + $0x30] sm:$0xf]
      %v2750 = vld [vmem:[#allocation10 + $0x34] sm:$0xf]
      %v2751 = vld [vmem:[#allocation10 + $0x38] sm:$0xf]
      %v2752 = vld [vmem:[#allocation10 + $0x3c] sm:$0xf]
      %v2753 = vld [vmem:[#allocation11] sm:$0x1]
      %v2755 = vlaneseq
      %v2756 = vshrl.u32 %v2755, 7
      %v2757 = vsub.s32 0, %v2756
      %v2758 = vrot.slane %v2753, %v2757
      %v2776 = vunpack.c.l.b16 %v2737
      %v2777 = vunpack.c.l.b16 %v2738
      %v2778 = vunpack.c.l.b16 %v2739
      %v2779 = vunpack.c.l.b16 %v2740
      %v2780 = vunpack.c.l.b16 %v2741
      %v2781 = vunpack.c.l.b16 %v2742
      %v2782 = vunpack.c.l.b16 %v2743
      %v2783 = vunpack.c.l.b16 %v2744
      %v2784 = vunpack.c.l.b16 %v2745
      %v2785 = vunpack.c.l.b16 %v2746
      %v2786 = vunpack.c.l.b16 %v2747
      %v2787 = vunpack.c.l.b16 %v2748
      %v2788 = vunpack.c.l.b16 %v2749
      %v2789 = vunpack.c.l.b16 %v2750
      %v2790 = vunpack.c.l.b16 %v2751
      %v2791 = vunpack.c.l.b16 %v2752
      %v2792 = vpack.c.b16 %v2777, %v2776
      %v2793 = vpack.c.b16 %v2779, %v2778
      %v2794 = vpack.c.b16 %v2781, %v2780
      %v2795 = vpack.c.b16 %v2783, %v2782
      %v2796 = vpack.c.b16 %v2785, %v2784
      %v2797 = vpack.c.b16 %v2787, %v2786
      %v2798 = vpack.c.b16 %v2789, %v2788
      %v2799 = vpack.c.b16 %v2791, %v2790
      %2808 = vmatprep.subr.bf16.mxu0 0
      %2809 = vmatpush1.bf16.msra.mxu0 %v2799
      %2810 = vmatprep.subr.bf16.mxu0 0
      %2811 = vmatpush1.bf16.msra.mxu0 %v2798
      %2812 = vmatprep.subr.bf16.mxu0 0
      %2813 = vmatpush1.bf16.msra.mxu0 %v2797
      %2814 = vmatprep.subr.bf16.mxu0 0
      %2815 = vmatpush1.bf16.msra.mxu0 %v2796
      %2816 = vmatprep.subr.bf16.mxu0 0
      %2817 = vmatpush1.bf16.msra.mxu0 %v2795
      %2818 = vmatprep.subr.bf16.mxu0 0
      %2819 = vmatpush1.bf16.msra.mxu0 %v2794
      %2820 = vmatprep.subr.bf16.mxu0 0
      %2821 = vmatpush1.bf16.msra.mxu0 %v2793
      %2822 = vmatprep.subr.bf16.mxu0 0
      %2823 = vmatpush1.bf16.msra.mxu0 %v2792
      %2824 = vmatprep.subr.bf16.mxu0 0
      %2825 = vmatpush2.bf16.msra.mxu0 0
      %2826 = vmatprep.subr.bf16.mxu0 0
      %2827 = vmatpush2.bf16.msra.mxu0 0
      %2828 = vmatprep.subr.bf16.mxu0 0
      %2829 = vmatpush2.bf16.msra.mxu0 0
      %2830 = vmatprep.subr.bf16.mxu0 0
      %2831 = vmatpush2.bf16.msra.mxu0 0
      %2832 = vmatprep.subr.bf16.mxu0 0
      %2833 = vmatpush2.bf16.msra.mxu0 0
      %2834 = vmatprep.subr.bf16.mxu0 0
      %2835 = vmatpush2.bf16.msra.mxu0 0
      %2836 = vmatprep.subr.bf16.mxu0 0
      %2837 = vmatpush2.bf16.msra.mxu0 0
      %2838 = vmatprep.subr.bf16.mxu0 0
      %2839 = vmatpush2.bf16.msra.mxu0 0
      %2840 = vmatprep.mubr.bf16.mxu0 0
      %2841 = vmatmul.mubr.bf16.gmra.mxu0 %v2736
      %v2842 = vpop.f32.mrf.mxu0
      %v2843 = vadd.f32 %v2758, %v2842
      %v2844 = vpop.f32.mrf.mxu0
      %v2845 = vpop.f32.mrf.mxu0
      %v2846 = vpop.f32.mrf.mxu0
      %2847 = vdwg.mxu0
      %v2848 = vmul.f32 %v2843, 0.5
      %v2849 = vmul.f32 %v2843, 0.70710677
      %v2850 = verf.f32.pop %v2849
      %v2851 = vadd.f32 %v2850, 1.0
      %v2852 = vmul.f32 %v2848, %v2851
      %v2853 = vpack.c.bf16 %v2852, %v2852
      %2854 = vst [vmem:[%s7] sm:$0xf] %v2853
    $region61: #{modu_network_forward.2} parent=1 // pred_fallthru
      _
    // Predicated region
    $region62: #{modu_network_forward.2} parent=1 // pred_check
      _
    $region63: #{modu_network_forward.2} parent=1 // pred_check_branch
      %2856 = sbr.rel (0) target = $region65
    $region64: #{modu_network_forward.2} parent=1 // pred_region
      _
    $region65: #{modu_network_forward.2} parent=1 // pred_fallthru
      _
    // Predicated region
    $region66: #{modu_network_forward.2} parent=1 // pred_check
      _
    $region67: #{modu_network_forward.2} parent=1 // pred_check_branch
      %2858 = sbr.rel (0) target = $region69
    $region68: #{modu_network_forward.2} parent=1 // pred_region
      _
    $region69: #{modu_network_forward.2} parent=1 // pred_fallthru
      _
    %2859 = vsyncpa [#allocation4], 1
    %2860 = vsyncpa [#allocation6], 1
    %2861 = vsyncpa [#allocation9], 1
    %2862 = vsyncpa [#allocation12], 1

</llo_original>
